<compile_context>
chip_gen: v5e
topology: v5e:2x2
jax: 0.10.0
libtpu: 0.0.40
codegen_flags: <defaults>
</compile_context>

<pallas_src>
import functools

import jax
import jax.numpy as jnp
from jax.experimental import pallas as pl
from jax.experimental.pallas import tpu as pltpu

H = 768          # BERT hidden size (fixed by the module's __init__)
H2 = 768 * 2     # hidden2 output size
NOUT = 2         # discriminator classes
NOUT_PAD = 128   # lane-dense padded output width


def _round_up(x, m):
    return ((x + m - 1) // m) * m


def _disc_kernel(x_ref,
                 wp_ref, bp_ref,
                 w2_ref, b2_ref,
                 w3_ref, b3_ref,
                 wo_ref, bo_ref,
                 out_ref):
    # x_ref: [TM, H] pooled (first-token) hidden states, bf16 in VMEM.
    x = x_ref[...]

    # BertPooler: dense(H -> H) + tanh.  bf16 x bf16 on the MXU, f32 accum.
    h = jnp.tanh(
        jnp.dot(x, wp_ref[...], preferred_element_type=jnp.float32)
        + bp_ref[...])

    # hidden2: dense(H -> 2H) + tanh   (dropout = identity in eval)
    h = jnp.tanh(
        jnp.dot(h.astype(jnp.bfloat16), w2_ref[...],
                preferred_element_type=jnp.float32) + b2_ref[...])

    # hidden3: dense(2H -> H) + tanh   (dropout = identity in eval)
    h = jnp.tanh(
        jnp.dot(h.astype(jnp.bfloat16), w3_ref[...],
                preferred_element_type=jnp.float32) + b3_ref[...])

    # output: dense(H -> NOUT_PAD, zero-padded beyond NOUT), no activation.
    out_ref[...] = (
        jnp.dot(h.astype(jnp.bfloat16), wo_ref[...],
                preferred_element_type=jnp.float32) + bo_ref[...])


@jax.jit
def hs_addn_discriminator(x_bsh, params):
    """x_bsh: [B, S, H] hidden states. Returns [B, 2] float32 logits."""
    # Glue: BertPooler takes the first token's hidden state.  Cast to bf16 so
    # the x DMA into the kernel is half-width (XLA fuses slice+cast).
    x0 = x_bsh[:, 0, :].astype(jnp.bfloat16)  # [B, H]
    B = x0.shape[0]

    # Pad batch to a multiple of 8 (sublane) and tile it (<=256 rows / step,
    # matching v6e/v7x 256-wide MXU tiles; tiny batches collapse to one tile).
    BP8 = _round_up(B, 8)
    TM = min(256, BP8)
    BP = _round_up(BP8, TM)          # padding waste bounded by < TM rows
    if BP != B:
        x0 = jnp.pad(x0, ((0, BP - B), (0, 0)))
    num_tiles = BP // TM
    grid = (num_tiles,)

    args = (
        x0,
        params["wp"], params["bp"],
        params["w2"], params["b2"],
        params["w3"], params["b3"],
        params["wo_pad"], params["bo_pad"],
    )

    # Weights / biases: constant block index + single-buffered -> stay
    # VMEM-resident across grid steps with one copy only.
    resident = functools.partial(pl.BlockSpec, pipeline_mode=pl.Buffered(1))
    in_specs = [
        # x tile walks the batch grid.
        pl.BlockSpec((TM, H), lambda i: (i, 0)),
        resident((H, H), lambda i: (0, 0)),           # wp  (bf16)
        resident((1, H), lambda i: (0, 0)),           # bp  (f32)
        resident((H, H2), lambda i: (0, 0)),          # w2  (bf16)
        resident((1, H2), lambda i: (0, 0)),          # b2  (f32)
        resident((H2, H), lambda i: (0, 0)),          # w3  (bf16)
        resident((1, H), lambda i: (0, 0)),           # b3  (f32)
        resident((H, NOUT_PAD), lambda i: (0, 0)),    # wo  (bf16, padded)
        resident((1, NOUT_PAD), lambda i: (0, 0)),    # bo  (f32, padded)
    ]
    out_specs = pl.BlockSpec((TM, NOUT_PAD), lambda i: (i, 0))

    # Advisory cost estimate so XLA can overlap this DMA-bound call.
    flops = 2 * BP * (H * H + H * H2 + H2 * H + H * NOUT_PAD)
    transcendentals = BP * (H + H2 + H)
    bytes_accessed = int(
        sum(int(a.size) * jnp.dtype(a.dtype).itemsize for a in args)
        + BP * NOUT_PAD * 4)

    out = pl.pallas_call(
        _disc_kernel,
        grid=grid,
        out_shape=jax.ShapeDtypeStruct((BP, NOUT_PAD), jnp.float32),
        in_specs=in_specs,
        out_specs=out_specs,
        compiler_params=pltpu.CompilerParams(
            # Only ask for megacore sharding when there is >1 batch tile;
            # otherwise it just duplicates the weight DMA across cores.
            dimension_semantics=(
                ("parallel",) if num_tiles > 1 else ("arbitrary",)),
            vmem_limit_bytes=24 << 20,
        ),
        cost_estimate=pl.CostEstimate(
            flops=flops,
            transcendentals=transcendentals,
            bytes_accessed=bytes_accessed,
        ),
    )(*args)

    # Drop batch padding and the padded output lanes.
    return out[:B, :NOUT]


def init_params(key):
    """Deterministic synthetic parameters.

    Weights are stored as [in, out] (transpose of PyTorch nn.Linear's
    [out, in]) so the kernel computes x @ W + b directly.  The matmul weights
    are stored bf16 (fed straight to the MXU); biases stay f32.  The output
    head is pre-padded to 128 lanes so the kernel's stores are lane-dense.
    """
    ks = jax.random.split(key, 8)
    scale = 0.02
    wo = scale * jax.random.normal(ks[6], (H, NOUT), jnp.float32)
    bo = scale * jax.random.normal(ks[7], (1, NOUT), jnp.float32)
    return {
        # bert.pooler.dense: Linear(768, 768)
        "wp": (scale * jax.random.normal(ks[0], (H, H), jnp.float32)
               ).astype(jnp.bfloat16),
        "bp": scale * jax.random.normal(ks[1], (1, H), jnp.float32),
        # hidden2: Linear(768, 1536)
        "w2": (scale * jax.random.normal(ks[2], (H, H2), jnp.float32)
               ).astype(jnp.bfloat16),
        "b2": scale * jax.random.normal(ks[3], (1, H2), jnp.float32),
        # hidden3: Linear(1536, 768)
        "w3": (scale * jax.random.normal(ks[4], (H2, H), jnp.float32)
               ).astype(jnp.bfloat16),
        "b3": scale * jax.random.normal(ks[5], (1, H), jnp.float32),
        # output: Linear(768, 2), padded to 128 lanes at init time.
        "wo_pad": jnp.pad(wo, ((0, 0), (0, NOUT_PAD - NOUT))
                          ).astype(jnp.bfloat16),
        "bo_pad": jnp.pad(bo, ((0, 0), (0, NOUT_PAD - NOUT))),
    }


def reference_forward(x_bsh, p):
    """Pure-JAX reference mirroring the kernel's bf16-activation numerics."""
    x = x_bsh[:, 0, :].astype(jnp.bfloat16)
    h = jnp.tanh(jnp.dot(x, p["wp"], preferred_element_type=jnp.float32)
                 + p["bp"])
    h = jnp.tanh(jnp.dot(h.astype(jnp.bfloat16), p["w2"],
                         preferred_element_type=jnp.float32) + p["b2"])
    h = jnp.tanh(jnp.dot(h.astype(jnp.bfloat16), p["w3"],
                         preferred_element_type=jnp.float32) + p["b3"])
    out = (jnp.dot(h.astype(jnp.bfloat16), p["wo_pad"],
                   preferred_element_type=jnp.float32) + p["bo_pad"])
    return out[:, :NOUT]


if __name__ == "__main__":
    key = jax.random.PRNGKey(0)
    k_x, k_p = jax.random.split(key)

    B, S = 2, 8  # small batch / sequence; hidden size fixed at 768 by the module
    x = jax.random.normal(k_x, (B, S, H), jnp.float32)
    params = init_params(k_p)

    out = hs_addn_discriminator(x, params)
    out = jax.block_until_ready(out)

    ref = reference_forward(x, params)
    assert out.shape == (B, NOUT), out.shape
    assert jnp.allclose(out, ref, atol=2e-3, rtol=2e-3), "mismatch vs reference"

    print("KERNEL_OK")
</pallas_src>

<mosaic_0001>
module attributes {stable_mosaic.version = 11 : i64} {
  func.func @_disc_kernel(%arg0: i32, %arg1: memref<8x768xbf16, #tpu.memory_space<vmem>>, %arg2: memref<768x768xbf16, #tpu.memory_space<vmem>>, %arg3: memref<1x768xf32, #tpu.memory_space<vmem>>, %arg4: memref<768x1536xbf16, #tpu.memory_space<vmem>>, %arg5: memref<1x1536xf32, #tpu.memory_space<vmem>>, %arg6: memref<1536x768xbf16, #tpu.memory_space<vmem>>, %arg7: memref<1x768xf32, #tpu.memory_space<vmem>>, %arg8: memref<768x128xbf16, #tpu.memory_space<vmem>>, %arg9: memref<1x128xf32, #tpu.memory_space<vmem>>, %arg10: memref<8x128xf32, #tpu.memory_space<vmem>>) attributes {dimension_semantics = [#tpu.dimension_semantics<arbitrary>], iteration_bounds = array<i64: 1>, scalar_prefetch = 0 : i64, scratch_operands = 0 : i64, tpu.core_type = #tpu.core_type<tc>, window_params = [{transform_indices = @transform_0, window_bounds = array<i64: 8, 768>}, {pipeline_mode = #tpu.pipeline_mode<synchronous>, transform_indices = @transform_1, window_bounds = array<i64: 768, 768>}, {pipeline_mode = #tpu.pipeline_mode<synchronous>, transform_indices = @transform_2, window_bounds = array<i64: 1, 768>}, {pipeline_mode = #tpu.pipeline_mode<synchronous>, transform_indices = @transform_3, window_bounds = array<i64: 768, 1536>}, {pipeline_mode = #tpu.pipeline_mode<synchronous>, transform_indices = @transform_4, window_bounds = array<i64: 1, 1536>}, {pipeline_mode = #tpu.pipeline_mode<synchronous>, transform_indices = @transform_5, window_bounds = array<i64: 1536, 768>}, {pipeline_mode = #tpu.pipeline_mode<synchronous>, transform_indices = @transform_6, window_bounds = array<i64: 1, 768>}, {pipeline_mode = #tpu.pipeline_mode<synchronous>, transform_indices = @transform_7, window_bounds = array<i64: 768, 128>}, {pipeline_mode = #tpu.pipeline_mode<synchronous>, transform_indices = @transform_8, window_bounds = array<i64: 1, 128>}, {transform_indices = @transform_9, window_bounds = array<i64: 8, 128>}]} {
    %c0 = arith.constant 0 : index
    %c0_0 = arith.constant 0 : index
    %0 = vector.load %arg1[%c0, %c0_0] : memref<8x768xbf16, #tpu.memory_space<vmem>>, vector<8x768xbf16>
    %c0_1 = arith.constant 0 : index
    %c0_2 = arith.constant 0 : index
    %1 = vector.load %arg2[%c0_1, %c0_2] : memref<768x768xbf16, #tpu.memory_space<vmem>>, vector<768x768xbf16>
    %cst = arith.constant dense<0.000000e+00> : vector<8x768xf32>
    %2 = tpu.matmul %0, %1, %cst {dimension_numbers = #tpu.dot_dimension_numbers<[1], [0], [0], [1], [0, 0, 1, 1], [], []>} : vector<8x768xbf16>, vector<768x768xbf16>, vector<8x768xf32> -> vector<8x768xf32>
    %c0_3 = arith.constant 0 : index
    %c0_4 = arith.constant 0 : index
    %3 = vector.load %arg3[%c0_3, %c0_4] : memref<1x768xf32, #tpu.memory_space<vmem>>, vector<1x768xf32>
    %4 = vector.broadcast %3 : vector<1x768xf32> to vector<8x768xf32>
    %5 = arith.addf %2, %4 : vector<8x768xf32>
    %6 = math.tanh %5 : vector<8x768xf32>
    %7 = arith.truncf %6 : vector<8x768xf32> to vector<8x768xbf16>
    %c0_5 = arith.constant 0 : index
    %c0_6 = arith.constant 0 : index
    %8 = vector.load %arg4[%c0_5, %c0_6] : memref<768x1536xbf16, #tpu.memory_space<vmem>>, vector<768x1536xbf16>
    %cst_7 = arith.constant dense<0.000000e+00> : vector<8x1536xf32>
    %9 = tpu.matmul %7, %8, %cst_7 {dimension_numbers = #tpu.dot_dimension_numbers<[1], [0], [0], [1], [0, 0, 1, 1], [], []>} : vector<8x768xbf16>, vector<768x1536xbf16>, vector<8x1536xf32> -> vector<8x1536xf32>
    %c0_8 = arith.constant 0 : index
    %c0_9 = arith.constant 0 : index
    %10 = vector.load %arg5[%c0_8, %c0_9] : memref<1x1536xf32, #tpu.memory_space<vmem>>, vector<1x1536xf32>
    %11 = vector.broadcast %10 : vector<1x1536xf32> to vector<8x1536xf32>
    %12 = arith.addf %9, %11 : vector<8x1536xf32>
    %13 = math.tanh %12 : vector<8x1536xf32>
    %14 = arith.truncf %13 : vector<8x1536xf32> to vector<8x1536xbf16>
    %c0_10 = arith.constant 0 : index
    %c0_11 = arith.constant 0 : index
    %15 = vector.load %arg6[%c0_10, %c0_11] : memref<1536x768xbf16, #tpu.memory_space<vmem>>, vector<1536x768xbf16>
    %cst_12 = arith.constant dense<0.000000e+00> : vector<8x768xf32>
    %16 = tpu.matmul %14, %15, %cst_12 {dimension_numbers = #tpu.dot_dimension_numbers<[1], [0], [0], [1], [0, 0, 1, 1], [], []>} : vector<8x1536xbf16>, vector<1536x768xbf16>, vector<8x768xf32> -> vector<8x768xf32>
    %c0_13 = arith.constant 0 : index
    %c0_14 = arith.constant 0 : index
    %17 = vector.load %arg7[%c0_13, %c0_14] : memref<1x768xf32, #tpu.memory_space<vmem>>, vector<1x768xf32>
    %18 = vector.broadcast %17 : vector<1x768xf32> to vector<8x768xf32>
    %19 = arith.addf %16, %18 : vector<8x768xf32>
    %20 = math.tanh %19 : vector<8x768xf32>
    %21 = arith.truncf %20 : vector<8x768xf32> to vector<8x768xbf16>
    %c0_15 = arith.constant 0 : index
    %c0_16 = arith.constant 0 : index
    %22 = vector.load %arg8[%c0_15, %c0_16] : memref<768x128xbf16, #tpu.memory_space<vmem>>, vector<768x128xbf16>
    %cst_17 = arith.constant dense<0.000000e+00> : vector<8x128xf32>
    %23 = tpu.matmul %21, %22, %cst_17 {dimension_numbers = #tpu.dot_dimension_numbers<[1], [0], [0], [1], [0, 0, 1, 1], [], []>} : vector<8x768xbf16>, vector<768x128xbf16>, vector<8x128xf32> -> vector<8x128xf32>
    %c0_18 = arith.constant 0 : index
    %c0_19 = arith.constant 0 : index
    %24 = vector.load %arg9[%c0_18, %c0_19] : memref<1x128xf32, #tpu.memory_space<vmem>>, vector<1x128xf32>
    %25 = vector.broadcast %24 : vector<1x128xf32> to vector<8x128xf32>
    %26 = arith.addf %23, %25 : vector<8x128xf32>
    %c0_20 = arith.constant 0 : index
    %c0_21 = arith.constant 0 : index
    %27 = vector.load %arg10[%c0_20, %c0_21] : memref<8x128xf32, #tpu.memory_space<vmem>>, vector<8x128xf32>
    tpu.vector_store %arg10[%c0_20, %c0_21], %26 {strides = array<i32>} : memref<8x128xf32, #tpu.memory_space<vmem>>, vector<8x128xf32>,
    return
  }
  func.func @transform_0(%arg0: i32) -> (i32, i32) {
    %c0_i32 = arith.constant 0 : i32
    %c0_i32_0 = arith.constant 0 : i32
    return %arg0, %c0_i32 : i32, i32
  }
  func.func @transform_1(%arg0: i32) -> (i32, i32) {
    %c0_i32 = arith.constant 0 : i32
    %c0_i32_0 = arith.constant 0 : i32
    %c0_i32_1 = arith.constant 0 : i32
    return %c0_i32, %c0_i32_0 : i32, i32
  }
  func.func @transform_2(%arg0: i32) -> (i32, i32) {
    %c0_i32 = arith.constant 0 : i32
    %c0_i32_0 = arith.constant 0 : i32
    %c0_i32_1 = arith.constant 0 : i32
    return %c0_i32, %c0_i32_0 : i32, i32
  }
  func.func @transform_3(%arg0: i32) -> (i32, i32) {
    %c0_i32 = arith.constant 0 : i32
    %c0_i32_0 = arith.constant 0 : i32
    %c0_i32_1 = arith.constant 0 : i32
    return %c0_i32, %c0_i32_0 : i32, i32
  }
  func.func @transform_4(%arg0: i32) -> (i32, i32) {
    %c0_i32 = arith.constant 0 : i32
    %c0_i32_0 = arith.constant 0 : i32
    %c0_i32_1 = arith.constant 0 : i32
    return %c0_i32, %c0_i32_0 : i32, i32
  }
  func.func @transform_5(%arg0: i32) -> (i32, i32) {
    %c0_i32 = arith.constant 0 : i32
    %c0_i32_0 = arith.constant 0 : i32
    %c0_i32_1 = arith.constant 0 : i32
    return %c0_i32, %c0_i32_0 : i32, i32
  }
  func.func @transform_6(%arg0: i32) -> (i32, i32) {
    %c0_i32 = arith.constant 0 : i32
    %c0_i32_0 = arith.constant 0 : i32
    %c0_i32_1 = arith.constant 0 : i32
    return %c0_i32, %c0_i32_0 : i32, i32
  }
  func.func @transform_7(%arg0: i32) -> (i32, i32) {
    %c0_i32 = arith.constant 0 : i32
    %c0_i32_0 = arith.constant 0 : i32
    %c0_i32_1 = arith.constant 0 : i32
    return %c0_i32, %c0_i32_0 : i32, i32
  }
  func.func @transform_8(%arg0: i32) -> (i32, i32) {
    %c0_i32 = arith.constant 0 : i32
    %c0_i32_0 = arith.constant 0 : i32
    %c0_i32_1 = arith.constant 0 : i32
    return %c0_i32, %c0_i32_0 : i32, i32
  }
  func.func @transform_9(%arg0: i32) -> (i32, i32) {
    %c0_i32 = arith.constant 0 : i32
    %c0_i32_0 = arith.constant 0 : i32
    return %arg0, %c0_i32 : i32, i32
  }
}

</mosaic_0001>

<llo_original>
// kernel: hs_addn_discriminator.1
$region0: #{hs_addn_discriminator.1}
  #allocation0 [shape = 'u32[]', space=smem, size = 0x4, offset = 0x4, fixed_abs, tag = 'smem constant byte address 0x4 - core index']
  #allocation1 [shape = 'u32[72,128]{1,0:T(1,128)}', space=vmem, size = 0x9000, scoped, tag = 'internal scratch']
  %s0 = inlined_call_operand.vmem [shape: bf16[8,768], index: 0, kind: input, shape index: {}]
  %s1 = inlined_call_operand.hbm [shape: bf16[768,768], index: 1, kind: input, shape index: {}]
  %s2 = inlined_call_operand.hbm [shape: f32[1,768], index: 2, kind: input, shape index: {}]
  %s3 = inlined_call_operand.hbm [shape: bf16[768,1536], index: 3, kind: input, shape index: {}]
  %s4 = inlined_call_operand.hbm [shape: f32[1,1536], index: 4, kind: input, shape index: {}]
  %s5 = inlined_call_operand.hbm [shape: bf16[1536,768], index: 5, kind: input, shape index: {}]
  %s6 = inlined_call_operand.hbm [shape: f32[1,768], index: 6, kind: input, shape index: {}]
  %s7 = inlined_call_operand.hbm [shape: bf16[768,128], index: 7, kind: input, shape index: {}]
  %s8 = inlined_call_operand.hbm [shape: f32[1,128], index: 8, kind: input, shape index: {}]
  %s9 = inlined_call_operand.vmem [shape: f32[8,128], index: 9, kind: output, shape index: {}]
  %s10 = sld [smem:[#allocation0]]
  $region78: #{hs_addn_discriminator.1} parent=0
    _
  %s12 = ssub.s32 1, %s10
  %s13 = scalar_select 0, %s12, %s10
  $region1: #{hs_addn_discriminator.1} parent=0
    #allocation2 [shape = 'u8[1179648]{0}', space=vmem, size = 0x120000, scoped, tag = 'input window, operand 1, single buffered']
    #allocation3 [shape = 's32[1]{0}', space=sflag, size = 0x4, scoped, tag = 'scoped memory for hs_addn_discriminator.1']
    #allocation4 [shape = 'u8[3072]{0}', space=vmem, size = 0xc00, scoped, tag = 'input window, operand 2, single buffered']
    #allocation5 [shape = 's32[1]{0}', space=sflag, size = 0x4, scoped, tag = 'scoped memory for hs_addn_discriminator.1']
    #allocation6 [shape = 'u8[2359296]{0}', space=vmem, size = 0x240000, scoped, tag = 'input window, operand 3, single buffered']
    #allocation7 [shape = 'u8[6144]{0}', space=vmem, size = 0x1800, scoped, tag = 'input window, operand 4, single buffered']
    #allocation8 [shape = 's32[1]{0}', space=sflag, size = 0x4, scoped, tag = 'scoped memory for hs_addn_discriminator.1']
    #allocation9 [shape = 'u8[2359296]{0}', space=vmem, size = 0x240000, scoped, tag = 'input window, operand 5, single buffered']
    #allocation10 [shape = 'u8[3072]{0}', space=vmem, size = 0xc00, scoped, tag = 'input window, operand 6, single buffered']
    #allocation11 [shape = 's32[1]{0}', space=sflag, size = 0x4, scoped, tag = 'scoped memory for hs_addn_discriminator.1']
    #allocation12 [shape = 'u8[196608]{0}', space=vmem, size = 0x30000, scoped, tag = 'input window, operand 7, single buffered']
    #allocation13 [shape = 'u8[512]{0}', space=vmem, size = 0x400, scoped, tag = 'input window, operand 8, single buffered']
    #allocation14 [shape = 's32[1]{0}', space=sflag, size = 0x4, scoped, tag = 'scoped memory for hs_addn_discriminator.1']
    %14 = vsyncpa [#allocation3], 0
    %15 = vsyncpa [#allocation5], 0
    %16 = vsyncpa [#allocation8], 0
    %17 = vsyncpa [#allocation11], 0
    %18 = vsyncpa [#allocation14], 0
    // Predicated region
    $region2: #{hs_addn_discriminator.1} parent=1 // pred_check
      _
    $region3: #{hs_addn_discriminator.1} parent=1 // pred_check_branch
      %20 = sbr.rel (0) target = $region5
    $region4: #{hs_addn_discriminator.1} parent=1 // pred_region
      _
    $region5: #{hs_addn_discriminator.1} parent=1 // pred_fallthru
      _
    // Predicated region
    $region6: #{hs_addn_discriminator.1} parent=1 // pred_check
      _
    $region7: #{hs_addn_discriminator.1} parent=1 // pred_check_branch
      %22 = sbr.rel (0) target = $region9
    $region8: #{hs_addn_discriminator.1} parent=1 // pred_region
      %24 = vsyncadd [#allocation3], 0
      %s25 = sshll.u32 %s1, 4
      %s26 = int_to_ptr.hbm [resolvable:$true] %s25
      %s27 = sshll.u32 [#allocation2], 4
      %s28 = int_to_ptr.vmem [resolvable:$true] %s27
      %33 = dma.hbm_to_vmem [thread:$0]  %s26, 36864, %s28, [#allocation3], 384, 384, 24
    $region9: #{hs_addn_discriminator.1} parent=1 // pred_fallthru
      _
    // Predicated region
    $region10: #{hs_addn_discriminator.1} parent=1 // pred_check
      _
    $region11: #{hs_addn_discriminator.1} parent=1 // pred_check_branch
      %35 = sbr.rel (0) target = $region13
    $region12: #{hs_addn_discriminator.1} parent=1 // pred_region
      %37 = vsyncadd [#allocation5], 0
      %s39 = sshll.u32 %s2, 4
      %s40 = int_to_ptr.hbm [resolvable:$true] %s39
      %s41 = sshll.u32 [#allocation4], 4
      %s42 = int_to_ptr.vmem [resolvable:$true] %s41
      %44 = dma.hbm_to_vmem [thread:$0]  %s40, 96, %s42, [#allocation5]
    $region13: #{hs_addn_discriminator.1} parent=1 // pred_fallthru
      _
    // Predicated region
    $region14: #{hs_addn_discriminator.1} parent=1 // pred_check
      _
    $region15: #{hs_addn_discriminator.1} parent=1 // pred_check_branch
      %46 = sbr.rel (0) target = $region17
    $region16: #{hs_addn_discriminator.1} parent=1 // pred_region
      %48 = vsyncadd [#allocation5], 0
      %s49 = sshll.u32 %s3, 4
      %s50 = int_to_ptr.hbm [resolvable:$true] %s49
      %s51 = sshll.u32 [#allocation6], 4
      %s52 = int_to_ptr.vmem [resolvable:$true] %s51
      %57 = dma.hbm_to_vmem [thread:$0]  %s50, 73728, %s52, [#allocation5], 768, 768, 48
    $region17: #{hs_addn_discriminator.1} parent=1 // pred_fallthru
      _
    // Predicated region
    $region18: #{hs_addn_discriminator.1} parent=1 // pred_check
      _
    $region19: #{hs_addn_discriminator.1} parent=1 // pred_check_branch
      %59 = sbr.rel (0) target = $region21
    $region20: #{hs_addn_discriminator.1} parent=1 // pred_region
      %61 = vsyncadd [#allocation8], 0
      %s63 = sshll.u32 %s4, 4
      %s64 = int_to_ptr.hbm [resolvable:$true] %s63
      %s65 = sshll.u32 [#allocation7], 4
      %s66 = int_to_ptr.vmem [resolvable:$true] %s65
      %68 = dma.hbm_to_vmem [thread:$0]  %s64, 192, %s66, [#allocation8]
    $region21: #{hs_addn_discriminator.1} parent=1 // pred_fallthru
      _
    // Predicated region
    $region22: #{hs_addn_discriminator.1} parent=1 // pred_check
      _
    $region23: #{hs_addn_discriminator.1} parent=1 // pred_check_branch
      %70 = sbr.rel (0) target = $region25
    $region24: #{hs_addn_discriminator.1} parent=1 // pred_region
      %72 = vsyncadd [#allocation8], 0
      %s73 = sshll.u32 %s5, 4
      %s74 = int_to_ptr.hbm [resolvable:$true] %s73
      %s75 = sshll.u32 [#allocation9], 4
      %s76 = int_to_ptr.vmem [resolvable:$true] %s75
      %81 = dma.hbm_to_vmem [thread:$0]  %s74, 73728, %s76, [#allocation8], 384, 384, 24
    $region25: #{hs_addn_discriminator.1} parent=1 // pred_fallthru
      _
    // Predicated region
    $region26: #{hs_addn_discriminator.1} parent=1 // pred_check
      _
    $region27: #{hs_addn_discriminator.1} parent=1 // pred_check_branch
      %83 = sbr.rel (0) target = $region29
    $region28: #{hs_addn_discriminator.1} parent=1 // pred_region
      %85 = vsyncadd [#allocation11], 0
      %s87 = sshll.u32 %s6, 4
      %s88 = int_to_ptr.hbm [resolvable:$true] %s87
      %s89 = sshll.u32 [#allocation10], 4
      %s90 = int_to_ptr.vmem [resolvable:$true] %s89
      %92 = dma.hbm_to_vmem [thread:$0]  %s88, 96, %s90, [#allocation11]
    $region29: #{hs_addn_discriminator.1} parent=1 // pred_fallthru
      _
    // Predicated region
    $region30: #{hs_addn_discriminator.1} parent=1 // pred_check
      _
    $region31: #{hs_addn_discriminator.1} parent=1 // pred_check_branch
      %94 = sbr.rel (0) target = $region33
    $region32: #{hs_addn_discriminator.1} parent=1 // pred_region
      %96 = vsyncadd [#allocation11], 0
      %s97 = sshll.u32 %s7, 4
      %s98 = int_to_ptr.hbm [resolvable:$true] %s97
      %s99 = sshll.u32 [#allocation12], 4
      %s100 = int_to_ptr.vmem [resolvable:$true] %s99
      %105 = dma.hbm_to_vmem [thread:$0]  %s98, 6144, %s100, [#allocation11], 64, 64, 4
    $region33: #{hs_addn_discriminator.1} parent=1 // pred_fallthru
      _
    // Predicated region
    $region34: #{hs_addn_discriminator.1} parent=1 // pred_check
      _
    $region35: #{hs_addn_discriminator.1} parent=1 // pred_check_branch
      %107 = sbr.rel (0) target = $region37
    $region36: #{hs_addn_discriminator.1} parent=1 // pred_region
      %109 = vsyncadd [#allocation14], 0
      %s111 = sshll.u32 %s8, 4
      %s112 = int_to_ptr.hbm [resolvable:$true] %s111
      %s113 = sshll.u32 [#allocation13], 4
      %s114 = int_to_ptr.vmem [resolvable:$true] %s113
      %116 = dma.hbm_to_vmem [thread:$0]  %s112, 16, %s114, [#allocation14]
    $region37: #{hs_addn_discriminator.1} parent=1 // pred_fallthru
      _
    // Predicated region
    $region38: #{hs_addn_discriminator.1} parent=1 // pred_check
      _
    $region39: #{hs_addn_discriminator.1} parent=1 // pred_check_branch
      %118 = sbr.rel (0) target = $region41
    $region40: #{hs_addn_discriminator.1} parent=1 // pred_region
      %120 = dma.done [#allocation3], 36864
    $region41: #{hs_addn_discriminator.1} parent=1 // pred_fallthru
      _
    // Predicated region
    $region42: #{hs_addn_discriminator.1} parent=1 // pred_check
      _
    $region43: #{hs_addn_discriminator.1} parent=1 // pred_check_branch
      %122 = sbr.rel (0) target = $region45
    $region44: #{hs_addn_discriminator.1} parent=1 // pred_region
      %124 = dma.done [#allocation5], 96
    $region45: #{hs_addn_discriminator.1} parent=1 // pred_fallthru
      _
    // Predicated region
    $region46: #{hs_addn_discriminator.1} parent=1 // pred_check
      _
    $region47: #{hs_addn_discriminator.1} parent=1 // pred_check_branch
      %126 = sbr.rel (0) target = $region49
    $region48: #{hs_addn_discriminator.1} parent=1 // pred_region
      %128 = dma.done [#allocation5], 73728
    $region49: #{hs_addn_discriminator.1} parent=1 // pred_fallthru
      _
    // Predicated region
    $region50: #{hs_addn_discriminator.1} parent=1 // pred_check
      _
    $region51: #{hs_addn_discriminator.1} parent=1 // pred_check_branch
      %130 = sbr.rel (0) target = $region53
    $region52: #{hs_addn_discriminator.1} parent=1 // pred_region
      %132 = dma.done [#allocation8], 192
    $region53: #{hs_addn_discriminator.1} parent=1 // pred_fallthru
      _
    // Predicated region
    $region54: #{hs_addn_discriminator.1} parent=1 // pred_check
      _
    $region55: #{hs_addn_discriminator.1} parent=1 // pred_check_branch
      %134 = sbr.rel (0) target = $region57
    $region56: #{hs_addn_discriminator.1} parent=1 // pred_region
      %136 = dma.done [#allocation8], 73728
    $region57: #{hs_addn_discriminator.1} parent=1 // pred_fallthru
      _
    // Predicated region
    $region58: #{hs_addn_discriminator.1} parent=1 // pred_check
      _
    $region59: #{hs_addn_discriminator.1} parent=1 // pred_check_branch
      %138 = sbr.rel (0) target = $region61
    $region60: #{hs_addn_discriminator.1} parent=1 // pred_region
      %140 = dma.done [#allocation11], 96
    $region61: #{hs_addn_discriminator.1} parent=1 // pred_fallthru
      _
    // Predicated region
    $region62: #{hs_addn_discriminator.1} parent=1 // pred_check
      _
    $region63: #{hs_addn_discriminator.1} parent=1 // pred_check_branch
      %142 = sbr.rel (0) target = $region65
    $region64: #{hs_addn_discriminator.1} parent=1 // pred_region
      %144 = dma.done [#allocation11], 6144
    $region65: #{hs_addn_discriminator.1} parent=1 // pred_fallthru
      _
    // Predicated region
    $region66: #{hs_addn_discriminator.1} parent=1 // pred_check
      _
    $region67: #{hs_addn_discriminator.1} parent=1 // pred_check_branch
      %146 = sbr.rel (0) target = $region69
    $region68: #{hs_addn_discriminator.1} parent=1 // pred_region
      %148 = dma.done [#allocation14], 16
    $region69: #{hs_addn_discriminator.1} parent=1 // pred_fallthru
      _
    %v149 = vld [vmem:[%s0] sm:$0xff]
    %v150 = vld [vmem:[%s0 + $0x8] sm:$0xff]
    %v151 = vld [vmem:[%s0 + $0x10] sm:$0xff]
    %v152 = vld [vmem:[#allocation2] sm:$0xff]
    %v153 = vld [vmem:[#allocation2 + $0x8] sm:$0xff]
    %v154 = vld [vmem:[#allocation2 + $0x10] sm:$0xff]
    %v155 = vld [vmem:[#allocation2 + $0x18] sm:$0xff]
    %v156 = vld [vmem:[#allocation2 + $0x20] sm:$0xff]
    %v157 = vld [vmem:[#allocation2 + $0x28] sm:$0xff]
    %v158 = vld [vmem:[#allocation2 + $0x30] sm:$0xff]
    %v159 = vld [vmem:[#allocation2 + $0x38] sm:$0xff]
    %v160 = vld [vmem:[#allocation2 + $0x40] sm:$0xff]
    %v161 = vld [vmem:[#allocation2 + $0x48] sm:$0xff]
    %v162 = vld [vmem:[#allocation2 + $0x50] sm:$0xff]
    %v163 = vld [vmem:[#allocation2 + $0x58] sm:$0xff]
    %v164 = vld [vmem:[#allocation2 + $0x60] sm:$0xff]
    %v165 = vld [vmem:[#allocation2 + $0x68] sm:$0xff]
    %v166 = vld [vmem:[#allocation2 + $0x70] sm:$0xff]
    %v167 = vld [vmem:[#allocation2 + $0x78] sm:$0xff]
    %v168 = vld [vmem:[#allocation2 + $0x80] sm:$0xff]
    %v169 = vld [vmem:[#allocation2 + $0x88] sm:$0xff]
    %v170 = vld [vmem:[#allocation2 + $0x90] sm:$0xff]
    %v171 = vld [vmem:[#allocation2 + $0x98] sm:$0xff]
    %v172 = vld [vmem:[#allocation2 + $0xa0] sm:$0xff]
    %v173 = vld [vmem:[#allocation2 + $0xa8] sm:$0xff]
    %v174 = vld [vmem:[#allocation2 + $0xb0] sm:$0xff]
    %v175 = vld [vmem:[#allocation2 + $0xb8] sm:$0xff]
    %v176 = vld [vmem:[#allocation2 + $0xc0] sm:$0xff]
    %v177 = vld [vmem:[#allocation2 + $0xc8] sm:$0xff]
    %v178 = vld [vmem:[#allocation2 + $0xd0] sm:$0xff]
    %v179 = vld [vmem:[#allocation2 + $0xd8] sm:$0xff]
    %v180 = vld [vmem:[#allocation2 + $0xe0] sm:$0xff]
    %v181 = vld [vmem:[#allocation2 + $0xe8] sm:$0xff]
    %v182 = vld [vmem:[#allocation2 + $0xf0] sm:$0xff]
    %v183 = vld [vmem:[#allocation2 + $0xf8] sm:$0xff]
    %v184 = vld [vmem:[#allocation2 + $0x100] sm:$0xff]
    %v185 = vld [vmem:[#allocation2 + $0x108] sm:$0xff]
    %v186 = vld [vmem:[#allocation2 + $0x110] sm:$0xff]
    %v187 = vld [vmem:[#allocation2 + $0x118] sm:$0xff]
    %v188 = vld [vmem:[#allocation2 + $0x120] sm:$0xff]
    %v189 = vld [vmem:[#allocation2 + $0x128] sm:$0xff]
    %v190 = vld [vmem:[#allocation2 + $0x130] sm:$0xff]
    %v191 = vld [vmem:[#allocation2 + $0x138] sm:$0xff]
    %v192 = vld [vmem:[#allocation2 + $0x140] sm:$0xff]
    %v193 = vld [vmem:[#allocation2 + $0x148] sm:$0xff]
    %v194 = vld [vmem:[#allocation2 + $0x150] sm:$0xff]
    %v195 = vld [vmem:[#allocation2 + $0x158] sm:$0xff]
    %v196 = vld [vmem:[#allocation2 + $0x160] sm:$0xff]
    %v197 = vld [vmem:[#allocation2 + $0x168] sm:$0xff]
    %v198 = vld [vmem:[#allocation2 + $0x170] sm:$0xff]
    %v199 = vld [vmem:[#allocation2 + $0x178] sm:$0xff]
    %v200 = vld [vmem:[#allocation2 + $0x180] sm:$0xff]
    %v201 = vld [vmem:[#allocation2 + $0x188] sm:$0xff]
    %v202 = vld [vmem:[#allocation2 + $0x190] sm:$0xff]
    %v203 = vld [vmem:[#allocation2 + $0x198] sm:$0xff]
    %v204 = vld [vmem:[#allocation2 + $0x1a0] sm:$0xff]
    %v205 = vld [vmem:[#allocation2 + $0x1a8] sm:$0xff]
    %v206 = vld [vmem:[#allocation2 + $0x1b0] sm:$0xff]
    %v207 = vld [vmem:[#allocation2 + $0x1b8] sm:$0xff]
    %v208 = vld [vmem:[#allocation2 + $0x1c0] sm:$0xff]
    %v209 = vld [vmem:[#allocation2 + $0x1c8] sm:$0xff]
    %v210 = vld [vmem:[#allocation2 + $0x1d0] sm:$0xff]
    %v211 = vld [vmem:[#allocation2 + $0x1d8] sm:$0xff]
    %v212 = vld [vmem:[#allocation2 + $0x1e0] sm:$0xff]
    %v213 = vld [vmem:[#allocation2 + $0x1e8] sm:$0xff]
    %v214 = vld [vmem:[#allocation2 + $0x1f0] sm:$0xff]
    %v215 = vld [vmem:[#allocation2 + $0x1f8] sm:$0xff]
    %v216 = vld [vmem:[#allocation2 + $0x200] sm:$0xff]
    %v217 = vld [vmem:[#allocation2 + $0x208] sm:$0xff]
    %v218 = vld [vmem:[#allocation2 + $0x210] sm:$0xff]
    %v219 = vld [vmem:[#allocation2 + $0x218] sm:$0xff]
    %v220 = vld [vmem:[#allocation2 + $0x220] sm:$0xff]
    %v221 = vld [vmem:[#allocation2 + $0x228] sm:$0xff]
    %v222 = vld [vmem:[#allocation2 + $0x230] sm:$0xff]
    %v223 = vld [vmem:[#allocation2 + $0x238] sm:$0xff]
    %v224 = vld [vmem:[#allocation2 + $0x240] sm:$0xff]
    %v225 = vld [vmem:[#allocation2 + $0x248] sm:$0xff]
    %v226 = vld [vmem:[#allocation2 + $0x250] sm:$0xff]
    %v227 = vld [vmem:[#allocation2 + $0x258] sm:$0xff]
    %v228 = vld [vmem:[#allocation2 + $0x260] sm:$0xff]
    %v229 = vld [vmem:[#allocation2 + $0x268] sm:$0xff]
    %v230 = vld [vmem:[#allocation2 + $0x270] sm:$0xff]
    %v231 = vld [vmem:[#allocation2 + $0x278] sm:$0xff]
    %v232 = vld [vmem:[#allocation2 + $0x280] sm:$0xff]
    %v233 = vld [vmem:[#allocation2 + $0x288] sm:$0xff]
    %v234 = vld [vmem:[#allocation2 + $0x290] sm:$0xff]
    %v235 = vld [vmem:[#allocation2 + $0x298] sm:$0xff]
    %v236 = vld [vmem:[#allocation2 + $0x2a0] sm:$0xff]
    %v237 = vld [vmem:[#allocation2 + $0x2a8] sm:$0xff]
    %v238 = vld [vmem:[#allocation2 + $0x2b0] sm:$0xff]
    %v239 = vld [vmem:[#allocation2 + $0x2b8] sm:$0xff]
    %v240 = vld [vmem:[#allocation2 + $0x2c0] sm:$0xff]
    %v241 = vld [vmem:[#allocation2 + $0x2c8] sm:$0xff]
    %v242 = vld [vmem:[#allocation2 + $0x2d0] sm:$0xff]
    %v243 = vld [vmem:[#allocation2 + $0x2d8] sm:$0xff]
    %v244 = vld [vmem:[#allocation2 + $0x2e0] sm:$0xff]
    %v245 = vld [vmem:[#allocation2 + $0x2e8] sm:$0xff]
    %v246 = vld [vmem:[#allocation2 + $0x2f0] sm:$0xff]
    %v247 = vld [vmem:[#allocation2 + $0x2f8] sm:$0xff]
    %v248 = vld [vmem:[#allocation2 + $0x300] sm:$0xff]
    %v249 = vld [vmem:[#allocation2 + $0x308] sm:$0xff]
    %v250 = vld [vmem:[#allocation2 + $0x310] sm:$0xff]
    %v251 = vld [vmem:[#allocation2 + $0x318] sm:$0xff]
    %v252 = vld [vmem:[#allocation2 + $0x320] sm:$0xff]
    %v253 = vld [vmem:[#allocation2 + $0x328] sm:$0xff]
    %v254 = vld [vmem:[#allocation2 + $0x330] sm:$0xff]
    %v255 = vld [vmem:[#allocation2 + $0x338] sm:$0xff]
    %v256 = vld [vmem:[#allocation2 + $0x340] sm:$0xff]
    %v257 = vld [vmem:[#allocation2 + $0x348] sm:$0xff]
    %v258 = vld [vmem:[#allocation2 + $0x350] sm:$0xff]
    %v259 = vld [vmem:[#allocation2 + $0x358] sm:$0xff]
    %v260 = vld [vmem:[#allocation2 + $0x360] sm:$0xff]
    %v261 = vld [vmem:[#allocation2 + $0x368] sm:$0xff]
    %v262 = vld [vmem:[#allocation2 + $0x370] sm:$0xff]
    %v263 = vld [vmem:[#allocation2 + $0x378] sm:$0xff]
    %v264 = vld [vmem:[#allocation2 + $0x380] sm:$0xff]
    %v265 = vld [vmem:[#allocation2 + $0x388] sm:$0xff]
    %v266 = vld [vmem:[#allocation2 + $0x390] sm:$0xff]
    %v267 = vld [vmem:[#allocation2 + $0x398] sm:$0xff]
    %v268 = vld [vmem:[#allocation2 + $0x3a0] sm:$0xff]
    %v269 = vld [vmem:[#allocation2 + $0x3a8] sm:$0xff]
    %v270 = vld [vmem:[#allocation2 + $0x3b0] sm:$0xff]
    %v271 = vld [vmem:[#allocation2 + $0x3b8] sm:$0xff]
    %v272 = vld [vmem:[#allocation2 + $0x3c0] sm:$0xff]
    %v273 = vld [vmem:[#allocation2 + $0x3c8] sm:$0xff]
    %v274 = vld [vmem:[#allocation2 + $0x3d0] sm:$0xff]
    %v275 = vld [vmem:[#allocation2 + $0x3d8] sm:$0xff]
    %v276 = vld [vmem:[#allocation2 + $0x3e0] sm:$0xff]
    %v277 = vld [vmem:[#allocation2 + $0x3e8] sm:$0xff]
    %v278 = vld [vmem:[#allocation2 + $0x3f0] sm:$0xff]
    %v279 = vld [vmem:[#allocation2 + $0x3f8] sm:$0xff]
    %v280 = vld [vmem:[#allocation2 + $0x400] sm:$0xff]
    %v281 = vld [vmem:[#allocation2 + $0x408] sm:$0xff]
    %v282 = vld [vmem:[#allocation2 + $0x410] sm:$0xff]
    %v283 = vld [vmem:[#allocation2 + $0x418] sm:$0xff]
    %v284 = vld [vmem:[#allocation2 + $0x420] sm:$0xff]
    %v285 = vld [vmem:[#allocation2 + $0x428] sm:$0xff]
    %v286 = vld [vmem:[#allocation2 + $0x430] sm:$0xff]
    %v287 = vld [vmem:[#allocation2 + $0x438] sm:$0xff]
    %v288 = vld [vmem:[#allocation2 + $0x440] sm:$0xff]
    %v289 = vld [vmem:[#allocation2 + $0x448] sm:$0xff]
    %v290 = vld [vmem:[#allocation2 + $0x450] sm:$0xff]
    %v291 = vld [vmem:[#allocation2 + $0x458] sm:$0xff]
    %v292 = vld [vmem:[#allocation2 + $0x460] sm:$0xff]
    %v293 = vld [vmem:[#allocation2 + $0x468] sm:$0xff]
    %v294 = vld [vmem:[#allocation2 + $0x470] sm:$0xff]
    %v295 = vld [vmem:[#allocation2 + $0x478] sm:$0xff]
    %v296 = vld [vmem:[#allocation2 + $0x480] sm:$0xff]
    %v297 = vld [vmem:[#allocation2 + $0x488] sm:$0xff]
    %v298 = vld [vmem:[#allocation2 + $0x490] sm:$0xff]
    %v299 = vld [vmem:[#allocation2 + $0x498] sm:$0xff]
    %v300 = vld [vmem:[#allocation2 + $0x4a0] sm:$0xff]
    %v301 = vld [vmem:[#allocation2 + $0x4a8] sm:$0xff]
    %v302 = vld [vmem:[#allocation2 + $0x4b0] sm:$0xff]
    %v303 = vld [vmem:[#allocation2 + $0x4b8] sm:$0xff]
    %v304 = vld [vmem:[#allocation2 + $0x4c0] sm:$0xff]
    %v305 = vld [vmem:[#allocation2 + $0x4c8] sm:$0xff]
    %v306 = vld [vmem:[#allocation2 + $0x4d0] sm:$0xff]
    %v307 = vld [vmem:[#allocation2 + $0x4d8] sm:$0xff]
    %v308 = vld [vmem:[#allocation2 + $0x4e0] sm:$0xff]
    %v309 = vld [vmem:[#allocation2 + $0x4e8] sm:$0xff]
    %v310 = vld [vmem:[#allocation2 + $0x4f0] sm:$0xff]
    %v311 = vld [vmem:[#allocation2 + $0x4f8] sm:$0xff]
    %v312 = vld [vmem:[#allocation2 + $0x500] sm:$0xff]
    %v313 = vld [vmem:[#allocation2 + $0x508] sm:$0xff]
    %v314 = vld [vmem:[#allocation2 + $0x510] sm:$0xff]
    %v315 = vld [vmem:[#allocation2 + $0x518] sm:$0xff]
    %v316 = vld [vmem:[#allocation2 + $0x520] sm:$0xff]
    %v317 = vld [vmem:[#allocation2 + $0x528] sm:$0xff]
    %v318 = vld [vmem:[#allocation2 + $0x530] sm:$0xff]
    %v319 = vld [vmem:[#allocation2 + $0x538] sm:$0xff]
    %v320 = vld [vmem:[#allocation2 + $0x540] sm:$0xff]
    %v321 = vld [vmem:[#allocation2 + $0x548] sm:$0xff]
    %v322 = vld [vmem:[#allocation2 + $0x550] sm:$0xff]
    %v323 = vld [vmem:[#allocation2 + $0x558] sm:$0xff]
    %v324 = vld [vmem:[#allocation2 + $0x560] sm:$0xff]
    %v325 = vld [vmem:[#allocation2 + $0x568] sm:$0xff]
    %v326 = vld [vmem:[#allocation2 + $0x570] sm:$0xff]
    %v327 = vld [vmem:[#allocation2 + $0x578] sm:$0xff]
    %v328 = vld [vmem:[#allocation2 + $0x580] sm:$0xff]
    %v329 = vld [vmem:[#allocation2 + $0x588] sm:$0xff]
    %v330 = vld [vmem:[#allocation2 + $0x590] sm:$0xff]
    %v331 = vld [vmem:[#allocation2 + $0x598] sm:$0xff]
    %v332 = vld [vmem:[#allocation2 + $0x5a0] sm:$0xff]
    %v333 = vld [vmem:[#allocation2 + $0x5a8] sm:$0xff]
    %v334 = vld [vmem:[#allocation2 + $0x5b0] sm:$0xff]
    %v335 = vld [vmem:[#allocation2 + $0x5b8] sm:$0xff]
    %v336 = vld [vmem:[#allocation2 + $0x5c0] sm:$0xff]
    %v337 = vld [vmem:[#allocation2 + $0x5c8] sm:$0xff]
    %v338 = vld [vmem:[#allocation2 + $0x5d0] sm:$0xff]
    %v339 = vld [vmem:[#allocation2 + $0x5d8] sm:$0xff]
    %v340 = vld [vmem:[#allocation2 + $0x5e0] sm:$0xff]
    %v341 = vld [vmem:[#allocation2 + $0x5e8] sm:$0xff]
    %v342 = vld [vmem:[#allocation2 + $0x5f0] sm:$0xff]
    %v343 = vld [vmem:[#allocation2 + $0x5f8] sm:$0xff]
    %v344 = vld [vmem:[#allocation2 + $0x600] sm:$0xff]
    %v345 = vld [vmem:[#allocation2 + $0x608] sm:$0xff]
    %v346 = vld [vmem:[#allocation2 + $0x610] sm:$0xff]
    %v347 = vld [vmem:[#allocation2 + $0x618] sm:$0xff]
    %v348 = vld [vmem:[#allocation2 + $0x620] sm:$0xff]
    %v349 = vld [vmem:[#allocation2 + $0x628] sm:$0xff]
    %v350 = vld [vmem:[#allocation2 + $0x630] sm:$0xff]
    %v351 = vld [vmem:[#allocation2 + $0x638] sm:$0xff]
    %v352 = vld [vmem:[#allocation2 + $0x640] sm:$0xff]
    %v353 = vld [vmem:[#allocation2 + $0x648] sm:$0xff]
    %v354 = vld [vmem:[#allocation2 + $0x650] sm:$0xff]
    %v355 = vld [vmem:[#allocation2 + $0x658] sm:$0xff]
    %v356 = vld [vmem:[#allocation2 + $0x660] sm:$0xff]
    %v357 = vld [vmem:[#allocation2 + $0x668] sm:$0xff]
    %v358 = vld [vmem:[#allocation2 + $0x670] sm:$0xff]
    %v359 = vld [vmem:[#allocation2 + $0x678] sm:$0xff]
    %v360 = vld [vmem:[#allocation2 + $0x680] sm:$0xff]
    %v361 = vld [vmem:[#allocation2 + $0x688] sm:$0xff]
    %v362 = vld [vmem:[#allocation2 + $0x690] sm:$0xff]
    %v363 = vld [vmem:[#allocation2 + $0x698] sm:$0xff]
    %v364 = vld [vmem:[#allocation2 + $0x6a0] sm:$0xff]
    %v365 = vld [vmem:[#allocation2 + $0x6a8] sm:$0xff]
    %v366 = vld [vmem:[#allocation2 + $0x6b0] sm:$0xff]
    %v367 = vld [vmem:[#allocation2 + $0x6b8] sm:$0xff]
    %v368 = vld [vmem:[#allocation2 + $0x6c0] sm:$0xff]
    %v369 = vld [vmem:[#allocation2 + $0x6c8] sm:$0xff]
    %v370 = vld [vmem:[#allocation2 + $0x6d0] sm:$0xff]
    %v371 = vld [vmem:[#allocation2 + $0x6d8] sm:$0xff]
    %v372 = vld [vmem:[#allocation2 + $0x6e0] sm:$0xff]
    %v373 = vld [vmem:[#allocation2 + $0x6e8] sm:$0xff]
    %v374 = vld [vmem:[#allocation2 + $0x6f0] sm:$0xff]
    %v375 = vld [vmem:[#allocation2 + $0x6f8] sm:$0xff]
    %v376 = vld [vmem:[#allocation2 + $0x700] sm:$0xff]
    %v377 = vld [vmem:[#allocation2 + $0x708] sm:$0xff]
    %v378 = vld [vmem:[#allocation2 + $0x710] sm:$0xff]
    %v379 = vld [vmem:[#allocation2 + $0x718] sm:$0xff]
    %v380 = vld [vmem:[#allocation2 + $0x720] sm:$0xff]
    %v381 = vld [vmem:[#allocation2 + $0x728] sm:$0xff]
    %v382 = vld [vmem:[#allocation2 + $0x730] sm:$0xff]
    %v383 = vld [vmem:[#allocation2 + $0x738] sm:$0xff]
    %v384 = vld [vmem:[#allocation2 + $0x740] sm:$0xff]
    %v385 = vld [vmem:[#allocation2 + $0x748] sm:$0xff]
    %v386 = vld [vmem:[#allocation2 + $0x750] sm:$0xff]
    %v387 = vld [vmem:[#allocation2 + $0x758] sm:$0xff]
    %v388 = vld [vmem:[#allocation2 + $0x760] sm:$0xff]
    %v389 = vld [vmem:[#allocation2 + $0x768] sm:$0xff]
    %v390 = vld [vmem:[#allocation2 + $0x770] sm:$0xff]
    %v391 = vld [vmem:[#allocation2 + $0x778] sm:$0xff]
    %v392 = vld [vmem:[#allocation2 + $0x780] sm:$0xff]
    %v393 = vld [vmem:[#allocation2 + $0x788] sm:$0xff]
    %v394 = vld [vmem:[#allocation2 + $0x790] sm:$0xff]
    %v395 = vld [vmem:[#allocation2 + $0x798] sm:$0xff]
    %v396 = vld [vmem:[#allocation2 + $0x7a0] sm:$0xff]
    %v397 = vld [vmem:[#allocation2 + $0x7a8] sm:$0xff]
    %v398 = vld [vmem:[#allocation2 + $0x7b0] sm:$0xff]
    %v399 = vld [vmem:[#allocation2 + $0x7b8] sm:$0xff]
    %v400 = vld [vmem:[#allocation2 + $0x7c0] sm:$0xff]
    %v401 = vld [vmem:[#allocation2 + $0x7c8] sm:$0xff]
    %v402 = vld [vmem:[#allocation2 + $0x7d0] sm:$0xff]
    %v403 = vld [vmem:[#allocation2 + $0x7d8] sm:$0xff]
    %v404 = vld [vmem:[#allocation2 + $0x7e0] sm:$0xff]
    %v405 = vld [vmem:[#allocation2 + $0x7e8] sm:$0xff]
    %v406 = vld [vmem:[#allocation2 + $0x7f0] sm:$0xff]
    %v407 = vld [vmem:[#allocation2 + $0x7f8] sm:$0xff]
    %v408 = vld [vmem:[#allocation2 + $0x800] sm:$0xff]
    %v409 = vld [vmem:[#allocation2 + $0x808] sm:$0xff]
    %v410 = vld [vmem:[#allocation2 + $0x810] sm:$0xff]
    %v411 = vld [vmem:[#allocation2 + $0x818] sm:$0xff]
    %v412 = vld [vmem:[#allocation2 + $0x820] sm:$0xff]
    %v413 = vld [vmem:[#allocation2 + $0x828] sm:$0xff]
    %v414 = vld [vmem:[#allocation2 + $0x830] sm:$0xff]
    %v415 = vld [vmem:[#allocation2 + $0x838] sm:$0xff]
    %v416 = vld [vmem:[#allocation2 + $0x840] sm:$0xff]
    %v417 = vld [vmem:[#allocation2 + $0x848] sm:$0xff]
    %v418 = vld [vmem:[#allocation2 + $0x850] sm:$0xff]
    %v419 = vld [vmem:[#allocation2 + $0x858] sm:$0xff]
    %v420 = vld [vmem:[#allocation2 + $0x860] sm:$0xff]
    %v421 = vld [vmem:[#allocation2 + $0x868] sm:$0xff]
    %v422 = vld [vmem:[#allocation2 + $0x870] sm:$0xff]
    %v423 = vld [vmem:[#allocation2 + $0x878] sm:$0xff]
    %v424 = vld [vmem:[#allocation2 + $0x880] sm:$0xff]
    %v425 = vld [vmem:[#allocation2 + $0x888] sm:$0xff]
    %v426 = vld [vmem:[#allocation2 + $0x890] sm:$0xff]
    %v427 = vld [vmem:[#allocation2 + $0x898] sm:$0xff]
    %v428 = vld [vmem:[#allocation2 + $0x8a0] sm:$0xff]
    %v429 = vld [vmem:[#allocation2 + $0x8a8] sm:$0xff]
    %v430 = vld [vmem:[#allocation2 + $0x8b0] sm:$0xff]
    %v431 = vld [vmem:[#allocation2 + $0x8b8] sm:$0xff]
    %v432 = vld [vmem:[#allocation2 + $0x8c0] sm:$0xff]
    %v433 = vld [vmem:[#allocation2 + $0x8c8] sm:$0xff]
    %v434 = vld [vmem:[#allocation2 + $0x8d0] sm:$0xff]
    %v435 = vld [vmem:[#allocation2 + $0x8d8] sm:$0xff]
    %v436 = vld [vmem:[#allocation2 + $0x8e0] sm:$0xff]
    %v437 = vld [vmem:[#allocation2 + $0x8e8] sm:$0xff]
    %v438 = vld [vmem:[#allocation2 + $0x8f0] sm:$0xff]
    %v439 = vld [vmem:[#allocation2 + $0x8f8] sm:$0xff]
    %v440 = vld [vmem:[#allocation4] sm:$0x3f]
    %v442 = vperm.slane %v440, 0
    %v443 = vperm.slane %v440, 1
    %v444 = vperm.slane %v440, 2
    %v445 = vperm.slane %v440, 3
    %v446 = vperm.slane %v440, 4
    %v447 = vperm.slane %v440, 5
    %v457 = vunpack.c.l.b16 %v149
    %v458 = vunpack.c.h.b16 %v149
    %v459 = vunpack.c.l.b16 %v150
    %v460 = vunpack.c.h.b16 %v150
    %v461 = vunpack.c.l.b16 %v151
    %v462 = vunpack.c.h.b16 %v151
    %v463 = vpack.c.b16 %v457, %v457
    %v464 = vpack.c.b16 %v458, %v458
    %v465 = vpack.c.b16 %v459, %v459
    %v466 = vpack.c.b16 %v460, %v460
    %v467 = vpack.c.b16 %v461, %v461
    %v468 = vpack.c.b16 %v462, %v462
    %v763 = vunpack.c.l.b16 %v152
    %v764 = vunpack.c.h.b16 %v152
    %v765 = vunpack.c.l.b16 %v153
    %v766 = vunpack.c.h.b16 %v153
    %v767 = vunpack.c.l.b16 %v154
    %v768 = vunpack.c.h.b16 %v154
    %v769 = vunpack.c.l.b16 %v155
    %v770 = vunpack.c.h.b16 %v155
    %v771 = vunpack.c.l.b16 %v156
    %v772 = vunpack.c.h.b16 %v156
    %v773 = vunpack.c.l.b16 %v157
    %v774 = vunpack.c.h.b16 %v157
    %v775 = vunpack.c.l.b16 %v158
    %v776 = vunpack.c.h.b16 %v158
    %v777 = vunpack.c.l.b16 %v159
    %v778 = vunpack.c.h.b16 %v159
    %v779 = vunpack.c.l.b16 %v160
    %v780 = vunpack.c.h.b16 %v160
    %v781 = vunpack.c.l.b16 %v161
    %v782 = vunpack.c.h.b16 %v161
    %v783 = vunpack.c.l.b16 %v162
    %v784 = vunpack.c.h.b16 %v162
    %v785 = vunpack.c.l.b16 %v163
    %v786 = vunpack.c.h.b16 %v163
    %v787 = vunpack.c.l.b16 %v164
    %v788 = vunpack.c.h.b16 %v164
    %v789 = vunpack.c.l.b16 %v165
    %v790 = vunpack.c.h.b16 %v165
    %v791 = vunpack.c.l.b16 %v166
    %v792 = vunpack.c.h.b16 %v166
    %v793 = vunpack.c.l.b16 %v167
    %v794 = vunpack.c.h.b16 %v167
    %v795 = vunpack.c.l.b16 %v168
    %v796 = vunpack.c.h.b16 %v168
    %v797 = vunpack.c.l.b16 %v169
    %v798 = vunpack.c.h.b16 %v169
    %v799 = vunpack.c.l.b16 %v170
    %v800 = vunpack.c.h.b16 %v170
    %v801 = vunpack.c.l.b16 %v171
    %v802 = vunpack.c.h.b16 %v171
    %v803 = vunpack.c.l.b16 %v172
    %v804 = vunpack.c.h.b16 %v172
    %v805 = vunpack.c.l.b16 %v173
    %v806 = vunpack.c.h.b16 %v173
    %v807 = vunpack.c.l.b16 %v174
    %v808 = vunpack.c.h.b16 %v174
    %v809 = vunpack.c.l.b16 %v175
    %v810 = vunpack.c.h.b16 %v175
    %v811 = vunpack.c.l.b16 %v176
    %v812 = vunpack.c.h.b16 %v176
    %v813 = vunpack.c.l.b16 %v177
    %v814 = vunpack.c.h.b16 %v177
    %v815 = vunpack.c.l.b16 %v178
    %v816 = vunpack.c.h.b16 %v178
    %v817 = vunpack.c.l.b16 %v179
    %v818 = vunpack.c.h.b16 %v179
    %v819 = vunpack.c.l.b16 %v180
    %v820 = vunpack.c.h.b16 %v180
    %v821 = vunpack.c.l.b16 %v181
    %v822 = vunpack.c.h.b16 %v181
    %v823 = vunpack.c.l.b16 %v182
    %v824 = vunpack.c.h.b16 %v182
    %v825 = vunpack.c.l.b16 %v183
    %v826 = vunpack.c.h.b16 %v183
    %v827 = vunpack.c.l.b16 %v184
    %v828 = vunpack.c.h.b16 %v184
    %v829 = vunpack.c.l.b16 %v185
    %v830 = vunpack.c.h.b16 %v185
    %v831 = vunpack.c.l.b16 %v186
    %v832 = vunpack.c.h.b16 %v186
    %v833 = vunpack.c.l.b16 %v187
    %v834 = vunpack.c.h.b16 %v187
    %v835 = vunpack.c.l.b16 %v188
    %v836 = vunpack.c.h.b16 %v188
    %v837 = vunpack.c.l.b16 %v189
    %v838 = vunpack.c.h.b16 %v189
    %v839 = vunpack.c.l.b16 %v190
    %v840 = vunpack.c.h.b16 %v190
    %v841 = vunpack.c.l.b16 %v191
    %v842 = vunpack.c.h.b16 %v191
    %v843 = vunpack.c.l.b16 %v192
    %v844 = vunpack.c.h.b16 %v192
    %v845 = vunpack.c.l.b16 %v193
    %v846 = vunpack.c.h.b16 %v193
    %v847 = vunpack.c.l.b16 %v194
    %v848 = vunpack.c.h.b16 %v194
    %v849 = vunpack.c.l.b16 %v195
    %v850 = vunpack.c.h.b16 %v195
    %v851 = vunpack.c.l.b16 %v196
    %v852 = vunpack.c.h.b16 %v196
    %v853 = vunpack.c.l.b16 %v197
    %v854 = vunpack.c.h.b16 %v197
    %v855 = vunpack.c.l.b16 %v198
    %v856 = vunpack.c.h.b16 %v198
    %v857 = vunpack.c.l.b16 %v199
    %v858 = vunpack.c.h.b16 %v199
    %v859 = vunpack.c.l.b16 %v200
    %v860 = vunpack.c.h.b16 %v200
    %v861 = vunpack.c.l.b16 %v201
    %v862 = vunpack.c.h.b16 %v201
    %v863 = vunpack.c.l.b16 %v202
    %v864 = vunpack.c.h.b16 %v202
    %v865 = vunpack.c.l.b16 %v203
    %v866 = vunpack.c.h.b16 %v203
    %v867 = vunpack.c.l.b16 %v204
    %v868 = vunpack.c.h.b16 %v204
    %v869 = vunpack.c.l.b16 %v205
    %v870 = vunpack.c.h.b16 %v205
    %v871 = vunpack.c.l.b16 %v206
    %v872 = vunpack.c.h.b16 %v206
    %v873 = vunpack.c.l.b16 %v207
    %v874 = vunpack.c.h.b16 %v207
    %v875 = vunpack.c.l.b16 %v208
    %v876 = vunpack.c.h.b16 %v208
    %v877 = vunpack.c.l.b16 %v209
    %v878 = vunpack.c.h.b16 %v209
    %v879 = vunpack.c.l.b16 %v210
    %v880 = vunpack.c.h.b16 %v210
    %v881 = vunpack.c.l.b16 %v211
    %v882 = vunpack.c.h.b16 %v211
    %v883 = vunpack.c.l.b16 %v212
    %v884 = vunpack.c.h.b16 %v212
    %v885 = vunpack.c.l.b16 %v213
    %v886 = vunpack.c.h.b16 %v213
    %v887 = vunpack.c.l.b16 %v214
    %v888 = vunpack.c.h.b16 %v214
    %v889 = vunpack.c.l.b16 %v215
    %v890 = vunpack.c.h.b16 %v215
    %v891 = vunpack.c.l.b16 %v216
    %v892 = vunpack.c.h.b16 %v216
    %v893 = vunpack.c.l.b16 %v217
    %v894 = vunpack.c.h.b16 %v217
    %v895 = vunpack.c.l.b16 %v218
    %v896 = vunpack.c.h.b16 %v218
    %v897 = vunpack.c.l.b16 %v219
    %v898 = vunpack.c.h.b16 %v219
    %v899 = vunpack.c.l.b16 %v220
    %v900 = vunpack.c.h.b16 %v220
    %v901 = vunpack.c.l.b16 %v221
    %v902 = vunpack.c.h.b16 %v221
    %v903 = vunpack.c.l.b16 %v222
    %v904 = vunpack.c.h.b16 %v222
    %v905 = vunpack.c.l.b16 %v223
    %v906 = vunpack.c.h.b16 %v223
    %v907 = vunpack.c.l.b16 %v224
    %v908 = vunpack.c.h.b16 %v224
    %v909 = vunpack.c.l.b16 %v225
    %v910 = vunpack.c.h.b16 %v225
    %v911 = vunpack.c.l.b16 %v226
    %v912 = vunpack.c.h.b16 %v226
    %v913 = vunpack.c.l.b16 %v227
    %v914 = vunpack.c.h.b16 %v227
    %v915 = vunpack.c.l.b16 %v228
    %v916 = vunpack.c.h.b16 %v228
    %v917 = vunpack.c.l.b16 %v229
    %v918 = vunpack.c.h.b16 %v229
    %v919 = vunpack.c.l.b16 %v230
    %v920 = vunpack.c.h.b16 %v230
    %v921 = vunpack.c.l.b16 %v231
    %v922 = vunpack.c.h.b16 %v231
    %v923 = vunpack.c.l.b16 %v232
    %v924 = vunpack.c.h.b16 %v232
    %v925 = vunpack.c.l.b16 %v233
    %v926 = vunpack.c.h.b16 %v233
    %v927 = vunpack.c.l.b16 %v234
    %v928 = vunpack.c.h.b16 %v234
    %v929 = vunpack.c.l.b16 %v235
    %v930 = vunpack.c.h.b16 %v235
    %v931 = vunpack.c.l.b16 %v236
    %v932 = vunpack.c.h.b16 %v236
    %v933 = vunpack.c.l.b16 %v237
    %v934 = vunpack.c.h.b16 %v237
    %v935 = vunpack.c.l.b16 %v238
    %v936 = vunpack.c.h.b16 %v238
    %v937 = vunpack.c.l.b16 %v239
    %v938 = vunpack.c.h.b16 %v239
    %v939 = vunpack.c.l.b16 %v240
    %v940 = vunpack.c.h.b16 %v240
    %v941 = vunpack.c.l.b16 %v241
    %v942 = vunpack.c.h.b16 %v241
    %v943 = vunpack.c.l.b16 %v242
    %v944 = vunpack.c.h.b16 %v242
    %v945 = vunpack.c.l.b16 %v243
    %v946 = vunpack.c.h.b16 %v243
    %v947 = vunpack.c.l.b16 %v244
    %v948 = vunpack.c.h.b16 %v244
    %v949 = vunpack.c.l.b16 %v245
    %v950 = vunpack.c.h.b16 %v245
    %v951 = vunpack.c.l.b16 %v246
    %v952 = vunpack.c.h.b16 %v246
    %v953 = vunpack.c.l.b16 %v247
    %v954 = vunpack.c.h.b16 %v247
    %v955 = vunpack.c.l.b16 %v248
    %v956 = vunpack.c.h.b16 %v248
    %v957 = vunpack.c.l.b16 %v249
    %v958 = vunpack.c.h.b16 %v249
    %v959 = vunpack.c.l.b16 %v250
    %v960 = vunpack.c.h.b16 %v250
    %v961 = vunpack.c.l.b16 %v251
    %v962 = vunpack.c.h.b16 %v251
    %v963 = vunpack.c.l.b16 %v252
    %v964 = vunpack.c.h.b16 %v252
    %v965 = vunpack.c.l.b16 %v253
    %v966 = vunpack.c.h.b16 %v253
    %v967 = vunpack.c.l.b16 %v254
    %v968 = vunpack.c.h.b16 %v254
    %v969 = vunpack.c.l.b16 %v255
    %v970 = vunpack.c.h.b16 %v255
    %v971 = vunpack.c.l.b16 %v256
    %v972 = vunpack.c.h.b16 %v256
    %v973 = vunpack.c.l.b16 %v257
    %v974 = vunpack.c.h.b16 %v257
    %v975 = vunpack.c.l.b16 %v258
    %v976 = vunpack.c.h.b16 %v258
    %v977 = vunpack.c.l.b16 %v259
    %v978 = vunpack.c.h.b16 %v259
    %v979 = vunpack.c.l.b16 %v260
    %v980 = vunpack.c.h.b16 %v260
    %v981 = vunpack.c.l.b16 %v261
    %v982 = vunpack.c.h.b16 %v261
    %v983 = vunpack.c.l.b16 %v262
    %v984 = vunpack.c.h.b16 %v262
    %v985 = vunpack.c.l.b16 %v263
    %v986 = vunpack.c.h.b16 %v263
    %v987 = vunpack.c.l.b16 %v264
    %v988 = vunpack.c.h.b16 %v264
    %v989 = vunpack.c.l.b16 %v265
    %v990 = vunpack.c.h.b16 %v265
    %v991 = vunpack.c.l.b16 %v266
    %v992 = vunpack.c.h.b16 %v266
    %v993 = vunpack.c.l.b16 %v267
    %v994 = vunpack.c.h.b16 %v267
    %v995 = vunpack.c.l.b16 %v268
    %v996 = vunpack.c.h.b16 %v268
    %v997 = vunpack.c.l.b16 %v269
    %v998 = vunpack.c.h.b16 %v269
    %v999 = vunpack.c.l.b16 %v270
    %v1000 = vunpack.c.h.b16 %v270
    %v1001 = vunpack.c.l.b16 %v271
    %v1002 = vunpack.c.h.b16 %v271
    %v1003 = vunpack.c.l.b16 %v272
    %v1004 = vunpack.c.h.b16 %v272
    %v1005 = vunpack.c.l.b16 %v273
    %v1006 = vunpack.c.h.b16 %v273
    %v1007 = vunpack.c.l.b16 %v274
    %v1008 = vunpack.c.h.b16 %v274
    %v1009 = vunpack.c.l.b16 %v275
    %v1010 = vunpack.c.h.b16 %v275
    %v1011 = vunpack.c.l.b16 %v276
    %v1012 = vunpack.c.h.b16 %v276
    %v1013 = vunpack.c.l.b16 %v277
    %v1014 = vunpack.c.h.b16 %v277
    %v1015 = vunpack.c.l.b16 %v278
    %v1016 = vunpack.c.h.b16 %v278
    %v1017 = vunpack.c.l.b16 %v279
    %v1018 = vunpack.c.h.b16 %v279
    %v1019 = vunpack.c.l.b16 %v280
    %v1020 = vunpack.c.h.b16 %v280
    %v1021 = vunpack.c.l.b16 %v281
    %v1022 = vunpack.c.h.b16 %v281
    %v1023 = vunpack.c.l.b16 %v282
    %v1024 = vunpack.c.h.b16 %v282
    %v1025 = vunpack.c.l.b16 %v283
    %v1026 = vunpack.c.h.b16 %v283
    %v1027 = vunpack.c.l.b16 %v284
    %v1028 = vunpack.c.h.b16 %v284
    %v1029 = vunpack.c.l.b16 %v285
    %v1030 = vunpack.c.h.b16 %v285
    %v1031 = vunpack.c.l.b16 %v286
    %v1032 = vunpack.c.h.b16 %v286
    %v1033 = vunpack.c.l.b16 %v287
    %v1034 = vunpack.c.h.b16 %v287
    %v1035 = vunpack.c.l.b16 %v288
    %v1036 = vunpack.c.h.b16 %v288
    %v1037 = vunpack.c.l.b16 %v289
    %v1038 = vunpack.c.h.b16 %v289
    %v1039 = vunpack.c.l.b16 %v290
    %v1040 = vunpack.c.h.b16 %v290
    %v1041 = vunpack.c.l.b16 %v291
    %v1042 = vunpack.c.h.b16 %v291
    %v1043 = vunpack.c.l.b16 %v292
    %v1044 = vunpack.c.h.b16 %v292
    %v1045 = vunpack.c.l.b16 %v293
    %v1046 = vunpack.c.h.b16 %v293
    %v1047 = vunpack.c.l.b16 %v294
    %v1048 = vunpack.c.h.b16 %v294
    %v1049 = vunpack.c.l.b16 %v295
    %v1050 = vunpack.c.h.b16 %v295
    %v1051 = vunpack.c.l.b16 %v296
    %v1052 = vunpack.c.h.b16 %v296
    %v1053 = vunpack.c.l.b16 %v297
    %v1054 = vunpack.c.h.b16 %v297
    %v1055 = vunpack.c.l.b16 %v298
    %v1056 = vunpack.c.h.b16 %v298
    %v1057 = vunpack.c.l.b16 %v299
    %v1058 = vunpack.c.h.b16 %v299
    %v1059 = vunpack.c.l.b16 %v300
    %v1060 = vunpack.c.h.b16 %v300
    %v1061 = vunpack.c.l.b16 %v301
    %v1062 = vunpack.c.h.b16 %v301
    %v1063 = vunpack.c.l.b16 %v302
    %v1064 = vunpack.c.h.b16 %v302
    %v1065 = vunpack.c.l.b16 %v303
    %v1066 = vunpack.c.h.b16 %v303
    %v1067 = vunpack.c.l.b16 %v304
    %v1068 = vunpack.c.h.b16 %v304
    %v1069 = vunpack.c.l.b16 %v305
    %v1070 = vunpack.c.h.b16 %v305
    %v1071 = vunpack.c.l.b16 %v306
    %v1072 = vunpack.c.h.b16 %v306
    %v1073 = vunpack.c.l.b16 %v307
    %v1074 = vunpack.c.h.b16 %v307
    %v1075 = vunpack.c.l.b16 %v308
    %v1076 = vunpack.c.h.b16 %v308
    %v1077 = vunpack.c.l.b16 %v309
    %v1078 = vunpack.c.h.b16 %v309
    %v1079 = vunpack.c.l.b16 %v310
    %v1080 = vunpack.c.h.b16 %v310
    %v1081 = vunpack.c.l.b16 %v311
    %v1082 = vunpack.c.h.b16 %v311
    %v1083 = vunpack.c.l.b16 %v312
    %v1084 = vunpack.c.h.b16 %v312
    %v1085 = vunpack.c.l.b16 %v313
    %v1086 = vunpack.c.h.b16 %v313
    %v1087 = vunpack.c.l.b16 %v314
    %v1088 = vunpack.c.h.b16 %v314
    %v1089 = vunpack.c.l.b16 %v315
    %v1090 = vunpack.c.h.b16 %v315
    %v1091 = vunpack.c.l.b16 %v316
    %v1092 = vunpack.c.h.b16 %v316
    %v1093 = vunpack.c.l.b16 %v317
    %v1094 = vunpack.c.h.b16 %v317
    %v1095 = vunpack.c.l.b16 %v318
    %v1096 = vunpack.c.h.b16 %v318
    %v1097 = vunpack.c.l.b16 %v319
    %v1098 = vunpack.c.h.b16 %v319
    %v1099 = vunpack.c.l.b16 %v320
    %v1100 = vunpack.c.h.b16 %v320
    %v1101 = vunpack.c.l.b16 %v321
    %v1102 = vunpack.c.h.b16 %v321
    %v1103 = vunpack.c.l.b16 %v322
    %v1104 = vunpack.c.h.b16 %v322
    %v1105 = vunpack.c.l.b16 %v323
    %v1106 = vunpack.c.h.b16 %v323
    %v1107 = vunpack.c.l.b16 %v324
    %v1108 = vunpack.c.h.b16 %v324
    %v1109 = vunpack.c.l.b16 %v325
    %v1110 = vunpack.c.h.b16 %v325
    %v1111 = vunpack.c.l.b16 %v326
    %v1112 = vunpack.c.h.b16 %v326
    %v1113 = vunpack.c.l.b16 %v327
    %v1114 = vunpack.c.h.b16 %v327
    %v1115 = vunpack.c.l.b16 %v328
    %v1116 = vunpack.c.h.b16 %v328
    %v1117 = vunpack.c.l.b16 %v329
    %v1118 = vunpack.c.h.b16 %v329
    %v1119 = vunpack.c.l.b16 %v330
    %v1120 = vunpack.c.h.b16 %v330
    %v1121 = vunpack.c.l.b16 %v331
    %v1122 = vunpack.c.h.b16 %v331
    %v1123 = vunpack.c.l.b16 %v332
    %v1124 = vunpack.c.h.b16 %v332
    %v1125 = vunpack.c.l.b16 %v333
    %v1126 = vunpack.c.h.b16 %v333
    %v1127 = vunpack.c.l.b16 %v334
    %v1128 = vunpack.c.h.b16 %v334
    %v1129 = vunpack.c.l.b16 %v335
    %v1130 = vunpack.c.h.b16 %v335
    %v1131 = vunpack.c.l.b16 %v336
    %v1132 = vunpack.c.h.b16 %v336
    %v1133 = vunpack.c.l.b16 %v337
    %v1134 = vunpack.c.h.b16 %v337
    %v1135 = vunpack.c.l.b16 %v338
    %v1136 = vunpack.c.h.b16 %v338
    %v1137 = vunpack.c.l.b16 %v339
    %v1138 = vunpack.c.h.b16 %v339
    %v1139 = vunpack.c.l.b16 %v340
    %v1140 = vunpack.c.h.b16 %v340
    %v1141 = vunpack.c.l.b16 %v341
    %v1142 = vunpack.c.h.b16 %v341
    %v1143 = vunpack.c.l.b16 %v342
    %v1144 = vunpack.c.h.b16 %v342
    %v1145 = vunpack.c.l.b16 %v343
    %v1146 = vunpack.c.h.b16 %v343
    %v1147 = vunpack.c.l.b16 %v344
    %v1148 = vunpack.c.h.b16 %v344
    %v1149 = vunpack.c.l.b16 %v345
    %v1150 = vunpack.c.h.b16 %v345
    %v1151 = vunpack.c.l.b16 %v346
    %v1152 = vunpack.c.h.b16 %v346
    %v1153 = vunpack.c.l.b16 %v347
    %v1154 = vunpack.c.h.b16 %v347
    %v1155 = vunpack.c.l.b16 %v348
    %v1156 = vunpack.c.h.b16 %v348
    %v1157 = vunpack.c.l.b16 %v349
    %v1158 = vunpack.c.h.b16 %v349
    %v1159 = vunpack.c.l.b16 %v350
    %v1160 = vunpack.c.h.b16 %v350
    %v1161 = vunpack.c.l.b16 %v351
    %v1162 = vunpack.c.h.b16 %v351
    %v1163 = vunpack.c.l.b16 %v352
    %v1164 = vunpack.c.h.b16 %v352
    %v1165 = vunpack.c.l.b16 %v353
    %v1166 = vunpack.c.h.b16 %v353
    %v1167 = vunpack.c.l.b16 %v354
    %v1168 = vunpack.c.h.b16 %v354
    %v1169 = vunpack.c.l.b16 %v355
    %v1170 = vunpack.c.h.b16 %v355
    %v1171 = vunpack.c.l.b16 %v356
    %v1172 = vunpack.c.h.b16 %v356
    %v1173 = vunpack.c.l.b16 %v357
    %v1174 = vunpack.c.h.b16 %v357
    %v1175 = vunpack.c.l.b16 %v358
    %v1176 = vunpack.c.h.b16 %v358
    %v1177 = vunpack.c.l.b16 %v359
    %v1178 = vunpack.c.h.b16 %v359
    %v1179 = vunpack.c.l.b16 %v360
    %v1180 = vunpack.c.h.b16 %v360
    %v1181 = vunpack.c.l.b16 %v361
    %v1182 = vunpack.c.h.b16 %v361
    %v1183 = vunpack.c.l.b16 %v362
    %v1184 = vunpack.c.h.b16 %v362
    %v1185 = vunpack.c.l.b16 %v363
    %v1186 = vunpack.c.h.b16 %v363
    %v1187 = vunpack.c.l.b16 %v364
    %v1188 = vunpack.c.h.b16 %v364
    %v1189 = vunpack.c.l.b16 %v365
    %v1190 = vunpack.c.h.b16 %v365
    %v1191 = vunpack.c.l.b16 %v366
    %v1192 = vunpack.c.h.b16 %v366
    %v1193 = vunpack.c.l.b16 %v367
    %v1194 = vunpack.c.h.b16 %v367
    %v1195 = vunpack.c.l.b16 %v368
    %v1196 = vunpack.c.h.b16 %v368
    %v1197 = vunpack.c.l.b16 %v369
    %v1198 = vunpack.c.h.b16 %v369
    %v1199 = vunpack.c.l.b16 %v370
    %v1200 = vunpack.c.h.b16 %v370
    %v1201 = vunpack.c.l.b16 %v371
    %v1202 = vunpack.c.h.b16 %v371
    %v1203 = vunpack.c.l.b16 %v372
    %v1204 = vunpack.c.h.b16 %v372
    %v1205 = vunpack.c.l.b16 %v373
    %v1206 = vunpack.c.h.b16 %v373
    %v1207 = vunpack.c.l.b16 %v374
    %v1208 = vunpack.c.h.b16 %v374
    %v1209 = vunpack.c.l.b16 %v375
    %v1210 = vunpack.c.h.b16 %v375
    %v1211 = vunpack.c.l.b16 %v376
    %v1212 = vunpack.c.h.b16 %v376
    %v1213 = vunpack.c.l.b16 %v377
    %v1214 = vunpack.c.h.b16 %v377
    %v1215 = vunpack.c.l.b16 %v378
    %v1216 = vunpack.c.h.b16 %v378
    %v1217 = vunpack.c.l.b16 %v379
    %v1218 = vunpack.c.h.b16 %v379
    %v1219 = vunpack.c.l.b16 %v380
    %v1220 = vunpack.c.h.b16 %v380
    %v1221 = vunpack.c.l.b16 %v381
    %v1222 = vunpack.c.h.b16 %v381
    %v1223 = vunpack.c.l.b16 %v382
    %v1224 = vunpack.c.h.b16 %v382
    %v1225 = vunpack.c.l.b16 %v383
    %v1226 = vunpack.c.h.b16 %v383
    %v1227 = vunpack.c.l.b16 %v384
    %v1228 = vunpack.c.h.b16 %v384
    %v1229 = vunpack.c.l.b16 %v385
    %v1230 = vunpack.c.h.b16 %v385
    %v1231 = vunpack.c.l.b16 %v386
    %v1232 = vunpack.c.h.b16 %v386
    %v1233 = vunpack.c.l.b16 %v387
    %v1234 = vunpack.c.h.b16 %v387
    %v1235 = vunpack.c.l.b16 %v388
    %v1236 = vunpack.c.h.b16 %v388
    %v1237 = vunpack.c.l.b16 %v389
    %v1238 = vunpack.c.h.b16 %v389
    %v1239 = vunpack.c.l.b16 %v390
    %v1240 = vunpack.c.h.b16 %v390
    %v1241 = vunpack.c.l.b16 %v391
    %v1242 = vunpack.c.h.b16 %v391
    %v1243 = vunpack.c.l.b16 %v392
    %v1244 = vunpack.c.h.b16 %v392
    %v1245 = vunpack.c.l.b16 %v393
    %v1246 = vunpack.c.h.b16 %v393
    %v1247 = vunpack.c.l.b16 %v394
    %v1248 = vunpack.c.h.b16 %v394
    %v1249 = vunpack.c.l.b16 %v395
    %v1250 = vunpack.c.h.b16 %v395
    %v1251 = vunpack.c.l.b16 %v396
    %v1252 = vunpack.c.h.b16 %v396
    %v1253 = vunpack.c.l.b16 %v397
    %v1254 = vunpack.c.h.b16 %v397
    %v1255 = vunpack.c.l.b16 %v398
    %v1256 = vunpack.c.h.b16 %v398
    %v1257 = vunpack.c.l.b16 %v399
    %v1258 = vunpack.c.h.b16 %v399
    %v1259 = vunpack.c.l.b16 %v400
    %v1260 = vunpack.c.h.b16 %v400
    %v1261 = vunpack.c.l.b16 %v401
    %v1262 = vunpack.c.h.b16 %v401
    %v1263 = vunpack.c.l.b16 %v402
    %v1264 = vunpack.c.h.b16 %v402
    %v1265 = vunpack.c.l.b16 %v403
    %v1266 = vunpack.c.h.b16 %v403
    %v1267 = vunpack.c.l.b16 %v404
    %v1268 = vunpack.c.h.b16 %v404
    %v1269 = vunpack.c.l.b16 %v405
    %v1270 = vunpack.c.h.b16 %v405
    %v1271 = vunpack.c.l.b16 %v406
    %v1272 = vunpack.c.h.b16 %v406
    %v1273 = vunpack.c.l.b16 %v407
    %v1274 = vunpack.c.h.b16 %v407
    %v1275 = vunpack.c.l.b16 %v408
    %v1276 = vunpack.c.h.b16 %v408
    %v1277 = vunpack.c.l.b16 %v409
    %v1278 = vunpack.c.h.b16 %v409
    %v1279 = vunpack.c.l.b16 %v410
    %v1280 = vunpack.c.h.b16 %v410
    %v1281 = vunpack.c.l.b16 %v411
    %v1282 = vunpack.c.h.b16 %v411
    %v1283 = vunpack.c.l.b16 %v412
    %v1284 = vunpack.c.h.b16 %v412
    %v1285 = vunpack.c.l.b16 %v413
    %v1286 = vunpack.c.h.b16 %v413
    %v1287 = vunpack.c.l.b16 %v414
    %v1288 = vunpack.c.h.b16 %v414
    %v1289 = vunpack.c.l.b16 %v415
    %v1290 = vunpack.c.h.b16 %v415
    %v1291 = vunpack.c.l.b16 %v416
    %v1292 = vunpack.c.h.b16 %v416
    %v1293 = vunpack.c.l.b16 %v417
    %v1294 = vunpack.c.h.b16 %v417
    %v1295 = vunpack.c.l.b16 %v418
    %v1296 = vunpack.c.h.b16 %v418
    %v1297 = vunpack.c.l.b16 %v419
    %v1298 = vunpack.c.h.b16 %v419
    %v1299 = vunpack.c.l.b16 %v420
    %v1300 = vunpack.c.h.b16 %v420
    %v1301 = vunpack.c.l.b16 %v421
    %v1302 = vunpack.c.h.b16 %v421
    %v1303 = vunpack.c.l.b16 %v422
    %v1304 = vunpack.c.h.b16 %v422
    %v1305 = vunpack.c.l.b16 %v423
    %v1306 = vunpack.c.h.b16 %v423
    %v1307 = vunpack.c.l.b16 %v424
    %v1308 = vunpack.c.h.b16 %v424
    %v1309 = vunpack.c.l.b16 %v425
    %v1310 = vunpack.c.h.b16 %v425
    %v1311 = vunpack.c.l.b16 %v426
    %v1312 = vunpack.c.h.b16 %v426
    %v1313 = vunpack.c.l.b16 %v427
    %v1314 = vunpack.c.h.b16 %v427
    %v1315 = vunpack.c.l.b16 %v428
    %v1316 = vunpack.c.h.b16 %v428
    %v1317 = vunpack.c.l.b16 %v429
    %v1318 = vunpack.c.h.b16 %v429
    %v1319 = vunpack.c.l.b16 %v430
    %v1320 = vunpack.c.h.b16 %v430
    %v1321 = vunpack.c.l.b16 %v431
    %v1322 = vunpack.c.h.b16 %v431
    %v1323 = vunpack.c.l.b16 %v432
    %v1324 = vunpack.c.h.b16 %v432
    %v1325 = vunpack.c.l.b16 %v433
    %v1326 = vunpack.c.h.b16 %v433
    %v1327 = vunpack.c.l.b16 %v434
    %v1328 = vunpack.c.h.b16 %v434
    %v1329 = vunpack.c.l.b16 %v435
    %v1330 = vunpack.c.h.b16 %v435
    %v1331 = vunpack.c.l.b16 %v436
    %v1332 = vunpack.c.h.b16 %v436
    %v1333 = vunpack.c.l.b16 %v437
    %v1334 = vunpack.c.h.b16 %v437
    %v1335 = vunpack.c.l.b16 %v438
    %v1336 = vunpack.c.h.b16 %v438
    %v1337 = vunpack.c.l.b16 %v439
    %v1338 = vunpack.c.h.b16 %v439
    %v1339 = vpack.c.b16 %v769, %v763
    %v1340 = vpack.c.b16 %v770, %v764
    %v1341 = vpack.c.b16 %v771, %v765
    %v1342 = vpack.c.b16 %v772, %v766
    %v1343 = vpack.c.b16 %v773, %v767
    %v1344 = vpack.c.b16 %v774, %v768
    %v1345 = vpack.c.b16 %v781, %v775
    %v1346 = vpack.c.b16 %v782, %v776
    %v1347 = vpack.c.b16 %v783, %v777
    %v1348 = vpack.c.b16 %v784, %v778
    %v1349 = vpack.c.b16 %v785, %v779
    %v1350 = vpack.c.b16 %v786, %v780
    %v1351 = vpack.c.b16 %v793, %v787
    %v1352 = vpack.c.b16 %v794, %v788
    %v1353 = vpack.c.b16 %v795, %v789
    %v1354 = vpack.c.b16 %v796, %v790
    %v1355 = vpack.c.b16 %v797, %v791
    %v1356 = vpack.c.b16 %v798, %v792
    %v1357 = vpack.c.b16 %v805, %v799
    %v1358 = vpack.c.b16 %v806, %v800
    %v1359 = vpack.c.b16 %v807, %v801
    %v1360 = vpack.c.b16 %v808, %v802
    %v1361 = vpack.c.b16 %v809, %v803
    %v1362 = vpack.c.b16 %v810, %v804
    %v1363 = vpack.c.b16 %v817, %v811
    %v1364 = vpack.c.b16 %v818, %v812
    %v1365 = vpack.c.b16 %v819, %v813
    %v1366 = vpack.c.b16 %v820, %v814
    %v1367 = vpack.c.b16 %v821, %v815
    %v1368 = vpack.c.b16 %v822, %v816
    %v1369 = vpack.c.b16 %v829, %v823
    %v1370 = vpack.c.b16 %v830, %v824
    %v1371 = vpack.c.b16 %v831, %v825
    %v1372 = vpack.c.b16 %v832, %v826
    %v1373 = vpack.c.b16 %v833, %v827
    %v1374 = vpack.c.b16 %v834, %v828
    %v1375 = vpack.c.b16 %v841, %v835
    %v1376 = vpack.c.b16 %v842, %v836
    %v1377 = vpack.c.b16 %v843, %v837
    %v1378 = vpack.c.b16 %v844, %v838
    %v1379 = vpack.c.b16 %v845, %v839
    %v1380 = vpack.c.b16 %v846, %v840
    %v1381 = vpack.c.b16 %v853, %v847
    %v1382 = vpack.c.b16 %v854, %v848
    %v1383 = vpack.c.b16 %v855, %v849
    %v1384 = vpack.c.b16 %v856, %v850
    %v1385 = vpack.c.b16 %v857, %v851
    %v1386 = vpack.c.b16 %v858, %v852
    %v1387 = vpack.c.b16 %v865, %v859
    %v1388 = vpack.c.b16 %v866, %v860
    %v1389 = vpack.c.b16 %v867, %v861
    %v1390 = vpack.c.b16 %v868, %v862
    %v1391 = vpack.c.b16 %v869, %v863
    %v1392 = vpack.c.b16 %v870, %v864
    %v1393 = vpack.c.b16 %v877, %v871
    %v1394 = vpack.c.b16 %v878, %v872
    %v1395 = vpack.c.b16 %v879, %v873
    %v1396 = vpack.c.b16 %v880, %v874
    %v1397 = vpack.c.b16 %v881, %v875
    %v1398 = vpack.c.b16 %v882, %v876
    %v1399 = vpack.c.b16 %v889, %v883
    %v1400 = vpack.c.b16 %v890, %v884
    %v1401 = vpack.c.b16 %v891, %v885
    %v1402 = vpack.c.b16 %v892, %v886
    %v1403 = vpack.c.b16 %v893, %v887
    %v1404 = vpack.c.b16 %v894, %v888
    %v1405 = vpack.c.b16 %v901, %v895
    %v1406 = vpack.c.b16 %v902, %v896
    %v1407 = vpack.c.b16 %v903, %v897
    %v1408 = vpack.c.b16 %v904, %v898
    %v1409 = vpack.c.b16 %v905, %v899
    %v1410 = vpack.c.b16 %v906, %v900
    %v1411 = vpack.c.b16 %v913, %v907
    %v1412 = vpack.c.b16 %v914, %v908
    %v1413 = vpack.c.b16 %v915, %v909
    %v1414 = vpack.c.b16 %v916, %v910
    %v1415 = vpack.c.b16 %v917, %v911
    %v1416 = vpack.c.b16 %v918, %v912
    %v1417 = vpack.c.b16 %v925, %v919
    %v1418 = vpack.c.b16 %v926, %v920
    %v1419 = vpack.c.b16 %v927, %v921
    %v1420 = vpack.c.b16 %v928, %v922
    %v1421 = vpack.c.b16 %v929, %v923
    %v1422 = vpack.c.b16 %v930, %v924
    %v1423 = vpack.c.b16 %v937, %v931
    %v1424 = vpack.c.b16 %v938, %v932
    %v1425 = vpack.c.b16 %v939, %v933
    %v1426 = vpack.c.b16 %v940, %v934
    %v1427 = vpack.c.b16 %v941, %v935
    %v1428 = vpack.c.b16 %v942, %v936
    %v1429 = vpack.c.b16 %v949, %v943
    %v1430 = vpack.c.b16 %v950, %v944
    %v1431 = vpack.c.b16 %v951, %v945
    %v1432 = vpack.c.b16 %v952, %v946
    %v1433 = vpack.c.b16 %v953, %v947
    %v1434 = vpack.c.b16 %v954, %v948
    %v1435 = vpack.c.b16 %v961, %v955
    %v1436 = vpack.c.b16 %v962, %v956
    %v1437 = vpack.c.b16 %v963, %v957
    %v1438 = vpack.c.b16 %v964, %v958
    %v1439 = vpack.c.b16 %v965, %v959
    %v1440 = vpack.c.b16 %v966, %v960
    %v1441 = vpack.c.b16 %v973, %v967
    %v1442 = vpack.c.b16 %v974, %v968
    %v1443 = vpack.c.b16 %v975, %v969
    %v1444 = vpack.c.b16 %v976, %v970
    %v1445 = vpack.c.b16 %v977, %v971
    %v1446 = vpack.c.b16 %v978, %v972
    %v1447 = vpack.c.b16 %v985, %v979
    %v1448 = vpack.c.b16 %v986, %v980
    %v1449 = vpack.c.b16 %v987, %v981
    %v1450 = vpack.c.b16 %v988, %v982
    %v1451 = vpack.c.b16 %v989, %v983
    %v1452 = vpack.c.b16 %v990, %v984
    %v1453 = vpack.c.b16 %v997, %v991
    %v1454 = vpack.c.b16 %v998, %v992
    %v1455 = vpack.c.b16 %v999, %v993
    %v1456 = vpack.c.b16 %v1000, %v994
    %v1457 = vpack.c.b16 %v1001, %v995
    %v1458 = vpack.c.b16 %v1002, %v996
    %v1459 = vpack.c.b16 %v1009, %v1003
    %v1460 = vpack.c.b16 %v1010, %v1004
    %v1461 = vpack.c.b16 %v1011, %v1005
    %v1462 = vpack.c.b16 %v1012, %v1006
    %v1463 = vpack.c.b16 %v1013, %v1007
    %v1464 = vpack.c.b16 %v1014, %v1008
    %v1465 = vpack.c.b16 %v1021, %v1015
    %v1466 = vpack.c.b16 %v1022, %v1016
    %v1467 = vpack.c.b16 %v1023, %v1017
    %v1468 = vpack.c.b16 %v1024, %v1018
    %v1469 = vpack.c.b16 %v1025, %v1019
    %v1470 = vpack.c.b16 %v1026, %v1020
    %v1471 = vpack.c.b16 %v1033, %v1027
    %v1472 = vpack.c.b16 %v1034, %v1028
    %v1473 = vpack.c.b16 %v1035, %v1029
    %v1474 = vpack.c.b16 %v1036, %v1030
    %v1475 = vpack.c.b16 %v1037, %v1031
    %v1476 = vpack.c.b16 %v1038, %v1032
    %v1477 = vpack.c.b16 %v1045, %v1039
    %v1478 = vpack.c.b16 %v1046, %v1040
    %v1479 = vpack.c.b16 %v1047, %v1041
    %v1480 = vpack.c.b16 %v1048, %v1042
    %v1481 = vpack.c.b16 %v1049, %v1043
    %v1482 = vpack.c.b16 %v1050, %v1044
    %v1483 = vpack.c.b16 %v1057, %v1051
    %v1484 = vpack.c.b16 %v1058, %v1052
    %v1485 = vpack.c.b16 %v1059, %v1053
    %v1486 = vpack.c.b16 %v1060, %v1054
    %v1487 = vpack.c.b16 %v1061, %v1055
    %v1488 = vpack.c.b16 %v1062, %v1056
    %v1489 = vpack.c.b16 %v1069, %v1063
    %v1490 = vpack.c.b16 %v1070, %v1064
    %v1491 = vpack.c.b16 %v1071, %v1065
    %v1492 = vpack.c.b16 %v1072, %v1066
    %v1493 = vpack.c.b16 %v1073, %v1067
    %v1494 = vpack.c.b16 %v1074, %v1068
    %v1495 = vpack.c.b16 %v1081, %v1075
    %v1496 = vpack.c.b16 %v1082, %v1076
    %v1497 = vpack.c.b16 %v1083, %v1077
    %v1498 = vpack.c.b16 %v1084, %v1078
    %v1499 = vpack.c.b16 %v1085, %v1079
    %v1500 = vpack.c.b16 %v1086, %v1080
    %v1501 = vpack.c.b16 %v1093, %v1087
    %v1502 = vpack.c.b16 %v1094, %v1088
    %v1503 = vpack.c.b16 %v1095, %v1089
    %v1504 = vpack.c.b16 %v1096, %v1090
    %v1505 = vpack.c.b16 %v1097, %v1091
    %v1506 = vpack.c.b16 %v1098, %v1092
    %v1507 = vpack.c.b16 %v1105, %v1099
    %v1508 = vpack.c.b16 %v1106, %v1100
    %v1509 = vpack.c.b16 %v1107, %v1101
    %v1510 = vpack.c.b16 %v1108, %v1102
    %v1511 = vpack.c.b16 %v1109, %v1103
    %v1512 = vpack.c.b16 %v1110, %v1104
    %v1513 = vpack.c.b16 %v1117, %v1111
    %v1514 = vpack.c.b16 %v1118, %v1112
    %v1515 = vpack.c.b16 %v1119, %v1113
    %v1516 = vpack.c.b16 %v1120, %v1114
    %v1517 = vpack.c.b16 %v1121, %v1115
    %v1518 = vpack.c.b16 %v1122, %v1116
    %v1519 = vpack.c.b16 %v1129, %v1123
    %v1520 = vpack.c.b16 %v1130, %v1124
    %v1521 = vpack.c.b16 %v1131, %v1125
    %v1522 = vpack.c.b16 %v1132, %v1126
    %v1523 = vpack.c.b16 %v1133, %v1127
    %v1524 = vpack.c.b16 %v1134, %v1128
    %v1525 = vpack.c.b16 %v1141, %v1135
    %v1526 = vpack.c.b16 %v1142, %v1136
    %v1527 = vpack.c.b16 %v1143, %v1137
    %v1528 = vpack.c.b16 %v1144, %v1138
    %v1529 = vpack.c.b16 %v1145, %v1139
    %v1530 = vpack.c.b16 %v1146, %v1140
    %v1531 = vpack.c.b16 %v1153, %v1147
    %v1532 = vpack.c.b16 %v1154, %v1148
    %v1533 = vpack.c.b16 %v1155, %v1149
    %v1534 = vpack.c.b16 %v1156, %v1150
    %v1535 = vpack.c.b16 %v1157, %v1151
    %v1536 = vpack.c.b16 %v1158, %v1152
    %v1537 = vpack.c.b16 %v1165, %v1159
    %v1538 = vpack.c.b16 %v1166, %v1160
    %v1539 = vpack.c.b16 %v1167, %v1161
    %v1540 = vpack.c.b16 %v1168, %v1162
    %v1541 = vpack.c.b16 %v1169, %v1163
    %v1542 = vpack.c.b16 %v1170, %v1164
    %v1543 = vpack.c.b16 %v1177, %v1171
    %v1544 = vpack.c.b16 %v1178, %v1172
    %v1545 = vpack.c.b16 %v1179, %v1173
    %v1546 = vpack.c.b16 %v1180, %v1174
    %v1547 = vpack.c.b16 %v1181, %v1175
    %v1548 = vpack.c.b16 %v1182, %v1176
    %v1549 = vpack.c.b16 %v1189, %v1183
    %v1550 = vpack.c.b16 %v1190, %v1184
    %v1551 = vpack.c.b16 %v1191, %v1185
    %v1552 = vpack.c.b16 %v1192, %v1186
    %v1553 = vpack.c.b16 %v1193, %v1187
    %v1554 = vpack.c.b16 %v1194, %v1188
    %v1555 = vpack.c.b16 %v1201, %v1195
    %v1556 = vpack.c.b16 %v1202, %v1196
    %v1557 = vpack.c.b16 %v1203, %v1197
    %v1558 = vpack.c.b16 %v1204, %v1198
    %v1559 = vpack.c.b16 %v1205, %v1199
    %v1560 = vpack.c.b16 %v1206, %v1200
    %v1561 = vpack.c.b16 %v1213, %v1207
    %v1562 = vpack.c.b16 %v1214, %v1208
    %v1563 = vpack.c.b16 %v1215, %v1209
    %v1564 = vpack.c.b16 %v1216, %v1210
    %v1565 = vpack.c.b16 %v1217, %v1211
    %v1566 = vpack.c.b16 %v1218, %v1212
    %v1567 = vpack.c.b16 %v1225, %v1219
    %v1568 = vpack.c.b16 %v1226, %v1220
    %v1569 = vpack.c.b16 %v1227, %v1221
    %v1570 = vpack.c.b16 %v1228, %v1222
    %v1571 = vpack.c.b16 %v1229, %v1223
    %v1572 = vpack.c.b16 %v1230, %v1224
    %v1573 = vpack.c.b16 %v1237, %v1231
    %v1574 = vpack.c.b16 %v1238, %v1232
    %v1575 = vpack.c.b16 %v1239, %v1233
    %v1576 = vpack.c.b16 %v1240, %v1234
    %v1577 = vpack.c.b16 %v1241, %v1235
    %v1578 = vpack.c.b16 %v1242, %v1236
    %v1579 = vpack.c.b16 %v1249, %v1243
    %v1580 = vpack.c.b16 %v1250, %v1244
    %v1581 = vpack.c.b16 %v1251, %v1245
    %v1582 = vpack.c.b16 %v1252, %v1246
    %v1583 = vpack.c.b16 %v1253, %v1247
    %v1584 = vpack.c.b16 %v1254, %v1248
    %v1585 = vpack.c.b16 %v1261, %v1255
    %v1586 = vpack.c.b16 %v1262, %v1256
    %v1587 = vpack.c.b16 %v1263, %v1257
    %v1588 = vpack.c.b16 %v1264, %v1258
    %v1589 = vpack.c.b16 %v1265, %v1259
    %v1590 = vpack.c.b16 %v1266, %v1260
    %v1591 = vpack.c.b16 %v1273, %v1267
    %v1592 = vpack.c.b16 %v1274, %v1268
    %v1593 = vpack.c.b16 %v1275, %v1269
    %v1594 = vpack.c.b16 %v1276, %v1270
    %v1595 = vpack.c.b16 %v1277, %v1271
    %v1596 = vpack.c.b16 %v1278, %v1272
    %v1597 = vpack.c.b16 %v1285, %v1279
    %v1598 = vpack.c.b16 %v1286, %v1280
    %v1599 = vpack.c.b16 %v1287, %v1281
    %v1600 = vpack.c.b16 %v1288, %v1282
    %v1601 = vpack.c.b16 %v1289, %v1283
    %v1602 = vpack.c.b16 %v1290, %v1284
    %v1603 = vpack.c.b16 %v1297, %v1291
    %v1604 = vpack.c.b16 %v1298, %v1292
    %v1605 = vpack.c.b16 %v1299, %v1293
    %v1606 = vpack.c.b16 %v1300, %v1294
    %v1607 = vpack.c.b16 %v1301, %v1295
    %v1608 = vpack.c.b16 %v1302, %v1296
    %v1609 = vpack.c.b16 %v1309, %v1303
    %v1610 = vpack.c.b16 %v1310, %v1304
    %v1611 = vpack.c.b16 %v1311, %v1305
    %v1612 = vpack.c.b16 %v1312, %v1306
    %v1613 = vpack.c.b16 %v1313, %v1307
    %v1614 = vpack.c.b16 %v1314, %v1308
    %v1615 = vpack.c.b16 %v1321, %v1315
    %v1616 = vpack.c.b16 %v1322, %v1316
    %v1617 = vpack.c.b16 %v1323, %v1317
    %v1618 = vpack.c.b16 %v1324, %v1318
    %v1619 = vpack.c.b16 %v1325, %v1319
    %v1620 = vpack.c.b16 %v1326, %v1320
    %v1621 = vpack.c.b16 %v1333, %v1327
    %v1622 = vpack.c.b16 %v1334, %v1328
    %v1623 = vpack.c.b16 %v1335, %v1329
    %v1624 = vpack.c.b16 %v1336, %v1330
    %v1625 = vpack.c.b16 %v1337, %v1331
    %v1626 = vpack.c.b16 %v1338, %v1332
    %1915 = vmatpush.bf16.msra.mxu0 %v1381
    %1916 = vmatpush.bf16.msra.mxu0 %v1375
    %1917 = vmatpush.bf16.msra.mxu0 %v1369
    %1918 = vmatpush.bf16.msra.mxu0 %v1363
    %1919 = vmatpush.bf16.msra.mxu0 %v1357
    %1920 = vmatpush.bf16.msra.mxu0 %v1351
    %1921 = vmatpush.bf16.msra.mxu0 %v1345
    %1922 = vmatpush.bf16.msra.mxu0 %v1339
    %1923 = vmatmul.bf16.gmra.mxu0 %v463
    %v1924 = vpop.f32.mrf.mxu0
    %v1925 = vadd.f32 %v442, %v1924
    %v1926 = vpop.f32.mrf.mxu0
    %1927 = vdwg.mxu0
    %1928 = vmatpush.bf16.msra.mxu0 %v1429
    %1929 = vmatpush.bf16.msra.mxu0 %v1423
    %1930 = vmatpush.bf16.msra.mxu0 %v1417
    %1931 = vmatpush.bf16.msra.mxu0 %v1411
    %1932 = vmatpush.bf16.msra.mxu0 %v1405
    %1933 = vmatpush.bf16.msra.mxu0 %v1399
    %1934 = vmatpush.bf16.msra.mxu0 %v1393
    %1935 = vmatpush.bf16.msra.mxu0 %v1387
    %1936 = vmatmul.bf16.gmra.mxu0 %v464
    %v1937 = vpop.f32.mrf.mxu0
    %v1938 = vadd.f32 %v1925, %v1937
    %v1939 = vpop.f32.mrf.mxu0
    %1940 = vdwg.mxu0
    %1941 = vmatpush.bf16.msra.mxu0 %v1477
    %1942 = vmatpush.bf16.msra.mxu0 %v1471
    %1943 = vmatpush.bf16.msra.mxu0 %v1465
    %1944 = vmatpush.bf16.msra.mxu0 %v1459
    %1945 = vmatpush.bf16.msra.mxu0 %v1453
    %1946 = vmatpush.bf16.msra.mxu0 %v1447
    %1947 = vmatpush.bf16.msra.mxu0 %v1441
    %1948 = vmatpush.bf16.msra.mxu0 %v1435
    %1949 = vmatmul.bf16.gmra.mxu0 %v465
    %v1950 = vpop.f32.mrf.mxu0
    %v1951 = vadd.f32 %v1938, %v1950
    %v1952 = vpop.f32.mrf.mxu0
    %1953 = vdwg.mxu0
    %1954 = vmatpush.bf16.msra.mxu0 %v1525
    %1955 = vmatpush.bf16.msra.mxu0 %v1519
    %1956 = vmatpush.bf16.msra.mxu0 %v1513
    %1957 = vmatpush.bf16.msra.mxu0 %v1507
    %1958 = vmatpush.bf16.msra.mxu0 %v1501
    %1959 = vmatpush.bf16.msra.mxu0 %v1495
    %1960 = vmatpush.bf16.msra.mxu0 %v1489
    %1961 = vmatpush.bf16.msra.mxu0 %v1483
    %1962 = vmatmul.bf16.gmra.mxu0 %v466
    %v1963 = vpop.f32.mrf.mxu0
    %v1964 = vadd.f32 %v1951, %v1963
    %v1965 = vpop.f32.mrf.mxu0
    %1966 = vdwg.mxu0
    %1967 = vmatpush.bf16.msra.mxu0 %v1573
    %1968 = vmatpush.bf16.msra.mxu0 %v1567
    %1969 = vmatpush.bf16.msra.mxu0 %v1561
    %1970 = vmatpush.bf16.msra.mxu0 %v1555
    %1971 = vmatpush.bf16.msra.mxu0 %v1549
    %1972 = vmatpush.bf16.msra.mxu0 %v1543
    %1973 = vmatpush.bf16.msra.mxu0 %v1537
    %1974 = vmatpush.bf16.msra.mxu0 %v1531
    %1975 = vmatmul.bf16.gmra.mxu0 %v467
    %v1976 = vpop.f32.mrf.mxu0
    %v1977 = vadd.f32 %v1964, %v1976
    %v1978 = vpop.f32.mrf.mxu0
    %1979 = vdwg.mxu0
    %1980 = vmatpush.bf16.msra.mxu0 %v1621
    %1981 = vmatpush.bf16.msra.mxu0 %v1615
    %1982 = vmatpush.bf16.msra.mxu0 %v1609
    %1983 = vmatpush.bf16.msra.mxu0 %v1603
    %1984 = vmatpush.bf16.msra.mxu0 %v1597
    %1985 = vmatpush.bf16.msra.mxu0 %v1591
    %1986 = vmatpush.bf16.msra.mxu0 %v1585
    %1987 = vmatpush.bf16.msra.mxu0 %v1579
    %1988 = vmatmul.bf16.gmra.mxu0 %v468
    %v1989 = vpop.f32.mrf.mxu0
    %v1990 = vadd.f32 %v1977, %v1989
    %v1991 = vpop.f32.mrf.mxu0
    %1992 = vdwg.mxu0
    %1993 = vmatpush.bf16.msra.mxu0 %v1382
    %1994 = vmatpush.bf16.msra.mxu0 %v1376
    %1995 = vmatpush.bf16.msra.mxu0 %v1370
    %1996 = vmatpush.bf16.msra.mxu0 %v1364
    %1997 = vmatpush.bf16.msra.mxu0 %v1358
    %1998 = vmatpush.bf16.msra.mxu0 %v1352
    %1999 = vmatpush.bf16.msra.mxu0 %v1346
    %2000 = vmatpush.bf16.msra.mxu0 %v1340
    %2001 = vmatmul.bf16.gmra.mxu0 %v463
    %v2002 = vpop.f32.mrf.mxu0
    %v2003 = vadd.f32 %v443, %v2002
    %v2004 = vpop.f32.mrf.mxu0
    %2005 = vdwg.mxu0
    %2006 = vmatpush.bf16.msra.mxu0 %v1430
    %2007 = vmatpush.bf16.msra.mxu0 %v1424
    %2008 = vmatpush.bf16.msra.mxu0 %v1418
    %2009 = vmatpush.bf16.msra.mxu0 %v1412
    %2010 = vmatpush.bf16.msra.mxu0 %v1406
    %2011 = vmatpush.bf16.msra.mxu0 %v1400
    %2012 = vmatpush.bf16.msra.mxu0 %v1394
    %2013 = vmatpush.bf16.msra.mxu0 %v1388
    %2014 = vmatmul.bf16.gmra.mxu0 %v464
    %v2015 = vpop.f32.mrf.mxu0
    %v2016 = vadd.f32 %v2003, %v2015
    %v2017 = vpop.f32.mrf.mxu0
    %2018 = vdwg.mxu0
    %2019 = vmatpush.bf16.msra.mxu0 %v1478
    %2020 = vmatpush.bf16.msra.mxu0 %v1472
    %2021 = vmatpush.bf16.msra.mxu0 %v1466
    %2022 = vmatpush.bf16.msra.mxu0 %v1460
    %2023 = vmatpush.bf16.msra.mxu0 %v1454
    %2024 = vmatpush.bf16.msra.mxu0 %v1448
    %2025 = vmatpush.bf16.msra.mxu0 %v1442
    %2026 = vmatpush.bf16.msra.mxu0 %v1436
    %2027 = vmatmul.bf16.gmra.mxu0 %v465
    %v2028 = vpop.f32.mrf.mxu0
    %v2029 = vadd.f32 %v2016, %v2028
    %v2030 = vpop.f32.mrf.mxu0
    %2031 = vdwg.mxu0
    %2032 = vmatpush.bf16.msra.mxu0 %v1526
    %2033 = vmatpush.bf16.msra.mxu0 %v1520
    %2034 = vmatpush.bf16.msra.mxu0 %v1514
    %2035 = vmatpush.bf16.msra.mxu0 %v1508
    %2036 = vmatpush.bf16.msra.mxu0 %v1502
    %2037 = vmatpush.bf16.msra.mxu0 %v1496
    %2038 = vmatpush.bf16.msra.mxu0 %v1490
    %2039 = vmatpush.bf16.msra.mxu0 %v1484
    %2040 = vmatmul.bf16.gmra.mxu0 %v466
    %v2041 = vpop.f32.mrf.mxu0
    %v2042 = vadd.f32 %v2029, %v2041
    %v2043 = vpop.f32.mrf.mxu0
    %2044 = vdwg.mxu0
    %2045 = vmatpush.bf16.msra.mxu0 %v1574
    %2046 = vmatpush.bf16.msra.mxu0 %v1568
    %2047 = vmatpush.bf16.msra.mxu0 %v1562
    %2048 = vmatpush.bf16.msra.mxu0 %v1556
    %2049 = vmatpush.bf16.msra.mxu0 %v1550
    %2050 = vmatpush.bf16.msra.mxu0 %v1544
    %2051 = vmatpush.bf16.msra.mxu0 %v1538
    %2052 = vmatpush.bf16.msra.mxu0 %v1532
    %2053 = vmatmul.bf16.gmra.mxu0 %v467
    %v2054 = vpop.f32.mrf.mxu0
    %v2055 = vadd.f32 %v2042, %v2054
    %v2056 = vpop.f32.mrf.mxu0
    %2057 = vdwg.mxu0
    %2058 = vmatpush.bf16.msra.mxu0 %v1622
    %2059 = vmatpush.bf16.msra.mxu0 %v1616
    %2060 = vmatpush.bf16.msra.mxu0 %v1610
    %2061 = vmatpush.bf16.msra.mxu0 %v1604
    %2062 = vmatpush.bf16.msra.mxu0 %v1598
    %2063 = vmatpush.bf16.msra.mxu0 %v1592
    %2064 = vmatpush.bf16.msra.mxu0 %v1586
    %2065 = vmatpush.bf16.msra.mxu0 %v1580
    %2066 = vmatmul.bf16.gmra.mxu0 %v468
    %v2067 = vpop.f32.mrf.mxu0
    %v2068 = vadd.f32 %v2055, %v2067
    %v2069 = vpop.f32.mrf.mxu0
    %2070 = vdwg.mxu0
    %2071 = vmatpush.bf16.msra.mxu0 %v1383
    %2072 = vmatpush.bf16.msra.mxu0 %v1377
    %2073 = vmatpush.bf16.msra.mxu0 %v1371
    %2074 = vmatpush.bf16.msra.mxu0 %v1365
    %2075 = vmatpush.bf16.msra.mxu0 %v1359
    %2076 = vmatpush.bf16.msra.mxu0 %v1353
    %2077 = vmatpush.bf16.msra.mxu0 %v1347
    %2078 = vmatpush.bf16.msra.mxu0 %v1341
    %2079 = vmatmul.bf16.gmra.mxu0 %v463
    %v2080 = vpop.f32.mrf.mxu0
    %v2081 = vadd.f32 %v444, %v2080
    %v2082 = vpop.f32.mrf.mxu0
    %2083 = vdwg.mxu0
    %2084 = vmatpush.bf16.msra.mxu0 %v1431
    %2085 = vmatpush.bf16.msra.mxu0 %v1425
    %2086 = vmatpush.bf16.msra.mxu0 %v1419
    %2087 = vmatpush.bf16.msra.mxu0 %v1413
    %2088 = vmatpush.bf16.msra.mxu0 %v1407
    %2089 = vmatpush.bf16.msra.mxu0 %v1401
    %2090 = vmatpush.bf16.msra.mxu0 %v1395
    %2091 = vmatpush.bf16.msra.mxu0 %v1389
    %2092 = vmatmul.bf16.gmra.mxu0 %v464
    %v2093 = vpop.f32.mrf.mxu0
    %v2094 = vadd.f32 %v2081, %v2093
    %v2095 = vpop.f32.mrf.mxu0
    %2096 = vdwg.mxu0
    %2097 = vmatpush.bf16.msra.mxu0 %v1479
    %2098 = vmatpush.bf16.msra.mxu0 %v1473
    %2099 = vmatpush.bf16.msra.mxu0 %v1467
    %2100 = vmatpush.bf16.msra.mxu0 %v1461
    %2101 = vmatpush.bf16.msra.mxu0 %v1455
    %2102 = vmatpush.bf16.msra.mxu0 %v1449
    %2103 = vmatpush.bf16.msra.mxu0 %v1443
    %2104 = vmatpush.bf16.msra.mxu0 %v1437
    %2105 = vmatmul.bf16.gmra.mxu0 %v465
    %v2106 = vpop.f32.mrf.mxu0
    %v2107 = vadd.f32 %v2094, %v2106
    %v2108 = vpop.f32.mrf.mxu0
    %2109 = vdwg.mxu0
    %2110 = vmatpush.bf16.msra.mxu0 %v1527
    %2111 = vmatpush.bf16.msra.mxu0 %v1521
    %2112 = vmatpush.bf16.msra.mxu0 %v1515
    %2113 = vmatpush.bf16.msra.mxu0 %v1509
    %2114 = vmatpush.bf16.msra.mxu0 %v1503
    %2115 = vmatpush.bf16.msra.mxu0 %v1497
    %2116 = vmatpush.bf16.msra.mxu0 %v1491
    %2117 = vmatpush.bf16.msra.mxu0 %v1485
    %2118 = vmatmul.bf16.gmra.mxu0 %v466
    %v2119 = vpop.f32.mrf.mxu0
    %v2120 = vadd.f32 %v2107, %v2119
    %v2121 = vpop.f32.mrf.mxu0
    %2122 = vdwg.mxu0
    %2123 = vmatpush.bf16.msra.mxu0 %v1575
    %2124 = vmatpush.bf16.msra.mxu0 %v1569
    %2125 = vmatpush.bf16.msra.mxu0 %v1563
    %2126 = vmatpush.bf16.msra.mxu0 %v1557
    %2127 = vmatpush.bf16.msra.mxu0 %v1551
    %2128 = vmatpush.bf16.msra.mxu0 %v1545
    %2129 = vmatpush.bf16.msra.mxu0 %v1539
    %2130 = vmatpush.bf16.msra.mxu0 %v1533
    %2131 = vmatmul.bf16.gmra.mxu0 %v467
    %v2132 = vpop.f32.mrf.mxu0
    %v2133 = vadd.f32 %v2120, %v2132
    %v2134 = vpop.f32.mrf.mxu0
    %2135 = vdwg.mxu0
    %2136 = vmatpush.bf16.msra.mxu0 %v1623
    %2137 = vmatpush.bf16.msra.mxu0 %v1617
    %2138 = vmatpush.bf16.msra.mxu0 %v1611
    %2139 = vmatpush.bf16.msra.mxu0 %v1605
    %2140 = vmatpush.bf16.msra.mxu0 %v1599
    %2141 = vmatpush.bf16.msra.mxu0 %v1593
    %2142 = vmatpush.bf16.msra.mxu0 %v1587
    %2143 = vmatpush.bf16.msra.mxu0 %v1581
    %2144 = vmatmul.bf16.gmra.mxu0 %v468
    %v2145 = vpop.f32.mrf.mxu0
    %v2146 = vadd.f32 %v2133, %v2145
    %v2147 = vpop.f32.mrf.mxu0
    %2148 = vdwg.mxu0
    %2149 = vmatpush.bf16.msra.mxu0 %v1384
    %2150 = vmatpush.bf16.msra.mxu0 %v1378
    %2151 = vmatpush.bf16.msra.mxu0 %v1372
    %2152 = vmatpush.bf16.msra.mxu0 %v1366
    %2153 = vmatpush.bf16.msra.mxu0 %v1360
    %2154 = vmatpush.bf16.msra.mxu0 %v1354
    %2155 = vmatpush.bf16.msra.mxu0 %v1348
    %2156 = vmatpush.bf16.msra.mxu0 %v1342
    %2157 = vmatmul.bf16.gmra.mxu0 %v463
    %v2158 = vpop.f32.mrf.mxu0
    %v2159 = vadd.f32 %v445, %v2158
    %v2160 = vpop.f32.mrf.mxu0
    %2161 = vdwg.mxu0
    %2162 = vmatpush.bf16.msra.mxu0 %v1432
    %2163 = vmatpush.bf16.msra.mxu0 %v1426
    %2164 = vmatpush.bf16.msra.mxu0 %v1420
    %2165 = vmatpush.bf16.msra.mxu0 %v1414
    %2166 = vmatpush.bf16.msra.mxu0 %v1408
    %2167 = vmatpush.bf16.msra.mxu0 %v1402
    %2168 = vmatpush.bf16.msra.mxu0 %v1396
    %2169 = vmatpush.bf16.msra.mxu0 %v1390
    %2170 = vmatmul.bf16.gmra.mxu0 %v464
    %v2171 = vpop.f32.mrf.mxu0
    %v2172 = vadd.f32 %v2159, %v2171
    %v2173 = vpop.f32.mrf.mxu0
    %2174 = vdwg.mxu0
    %2175 = vmatpush.bf16.msra.mxu0 %v1480
    %2176 = vmatpush.bf16.msra.mxu0 %v1474
    %2177 = vmatpush.bf16.msra.mxu0 %v1468
    %2178 = vmatpush.bf16.msra.mxu0 %v1462
    %2179 = vmatpush.bf16.msra.mxu0 %v1456
    %2180 = vmatpush.bf16.msra.mxu0 %v1450
    %2181 = vmatpush.bf16.msra.mxu0 %v1444
    %2182 = vmatpush.bf16.msra.mxu0 %v1438
    %2183 = vmatmul.bf16.gmra.mxu0 %v465
    %v2184 = vpop.f32.mrf.mxu0
    %v2185 = vadd.f32 %v2172, %v2184
    %v2186 = vpop.f32.mrf.mxu0
    %2187 = vdwg.mxu0
    %2188 = vmatpush.bf16.msra.mxu0 %v1528
    %2189 = vmatpush.bf16.msra.mxu0 %v1522
    %2190 = vmatpush.bf16.msra.mxu0 %v1516
    %2191 = vmatpush.bf16.msra.mxu0 %v1510
    %2192 = vmatpush.bf16.msra.mxu0 %v1504
    %2193 = vmatpush.bf16.msra.mxu0 %v1498
    %2194 = vmatpush.bf16.msra.mxu0 %v1492
    %2195 = vmatpush.bf16.msra.mxu0 %v1486
    %2196 = vmatmul.bf16.gmra.mxu0 %v466
    %v2197 = vpop.f32.mrf.mxu0
    %v2198 = vadd.f32 %v2185, %v2197
    %v2199 = vpop.f32.mrf.mxu0
    %2200 = vdwg.mxu0
    %2201 = vmatpush.bf16.msra.mxu0 %v1576
    %2202 = vmatpush.bf16.msra.mxu0 %v1570
    %2203 = vmatpush.bf16.msra.mxu0 %v1564
    %2204 = vmatpush.bf16.msra.mxu0 %v1558
    %2205 = vmatpush.bf16.msra.mxu0 %v1552
    %2206 = vmatpush.bf16.msra.mxu0 %v1546
    %2207 = vmatpush.bf16.msra.mxu0 %v1540
    %2208 = vmatpush.bf16.msra.mxu0 %v1534
    %2209 = vmatmul.bf16.gmra.mxu0 %v467
    %v2210 = vpop.f32.mrf.mxu0
    %v2211 = vadd.f32 %v2198, %v2210
    %v2212 = vpop.f32.mrf.mxu0
    %2213 = vdwg.mxu0
    %2214 = vmatpush.bf16.msra.mxu0 %v1624
    %2215 = vmatpush.bf16.msra.mxu0 %v1618
    %2216 = vmatpush.bf16.msra.mxu0 %v1612
    %2217 = vmatpush.bf16.msra.mxu0 %v1606
    %2218 = vmatpush.bf16.msra.mxu0 %v1600
    %2219 = vmatpush.bf16.msra.mxu0 %v1594
    %2220 = vmatpush.bf16.msra.mxu0 %v1588
    %2221 = vmatpush.bf16.msra.mxu0 %v1582
    %2222 = vmatmul.bf16.gmra.mxu0 %v468
    %v2223 = vpop.f32.mrf.mxu0
    %v2224 = vadd.f32 %v2211, %v2223
    %v2225 = vpop.f32.mrf.mxu0
    %2226 = vdwg.mxu0
    %2227 = vmatpush.bf16.msra.mxu0 %v1385
    %2228 = vmatpush.bf16.msra.mxu0 %v1379
    %2229 = vmatpush.bf16.msra.mxu0 %v1373
    %2230 = vmatpush.bf16.msra.mxu0 %v1367
    %2231 = vmatpush.bf16.msra.mxu0 %v1361
    %2232 = vmatpush.bf16.msra.mxu0 %v1355
    %2233 = vmatpush.bf16.msra.mxu0 %v1349
    %2234 = vmatpush.bf16.msra.mxu0 %v1343
    %2235 = vmatmul.bf16.gmra.mxu0 %v463
    %v2236 = vpop.f32.mrf.mxu0
    %v2237 = vadd.f32 %v446, %v2236
    %v2238 = vpop.f32.mrf.mxu0
    %2239 = vdwg.mxu0
    %2240 = vmatpush.bf16.msra.mxu0 %v1433
    %2241 = vmatpush.bf16.msra.mxu0 %v1427
    %2242 = vmatpush.bf16.msra.mxu0 %v1421
    %2243 = vmatpush.bf16.msra.mxu0 %v1415
    %2244 = vmatpush.bf16.msra.mxu0 %v1409
    %2245 = vmatpush.bf16.msra.mxu0 %v1403
    %2246 = vmatpush.bf16.msra.mxu0 %v1397
    %2247 = vmatpush.bf16.msra.mxu0 %v1391
    %2248 = vmatmul.bf16.gmra.mxu0 %v464
    %v2249 = vpop.f32.mrf.mxu0
    %v2250 = vadd.f32 %v2237, %v2249
    %v2251 = vpop.f32.mrf.mxu0
    %2252 = vdwg.mxu0
    %2253 = vmatpush.bf16.msra.mxu0 %v1481
    %2254 = vmatpush.bf16.msra.mxu0 %v1475
    %2255 = vmatpush.bf16.msra.mxu0 %v1469
    %2256 = vmatpush.bf16.msra.mxu0 %v1463
    %2257 = vmatpush.bf16.msra.mxu0 %v1457
    %2258 = vmatpush.bf16.msra.mxu0 %v1451
    %2259 = vmatpush.bf16.msra.mxu0 %v1445
    %2260 = vmatpush.bf16.msra.mxu0 %v1439
    %2261 = vmatmul.bf16.gmra.mxu0 %v465
    %v2262 = vpop.f32.mrf.mxu0
    %v2263 = vadd.f32 %v2250, %v2262
    %v2264 = vpop.f32.mrf.mxu0
    %2265 = vdwg.mxu0
    %2266 = vmatpush.bf16.msra.mxu0 %v1529
    %2267 = vmatpush.bf16.msra.mxu0 %v1523
    %2268 = vmatpush.bf16.msra.mxu0 %v1517
    %2269 = vmatpush.bf16.msra.mxu0 %v1511
    %2270 = vmatpush.bf16.msra.mxu0 %v1505
    %2271 = vmatpush.bf16.msra.mxu0 %v1499
    %2272 = vmatpush.bf16.msra.mxu0 %v1493
    %2273 = vmatpush.bf16.msra.mxu0 %v1487
    %2274 = vmatmul.bf16.gmra.mxu0 %v466
    %v2275 = vpop.f32.mrf.mxu0
    %v2276 = vadd.f32 %v2263, %v2275
    %v2277 = vpop.f32.mrf.mxu0
    %2278 = vdwg.mxu0
    %2279 = vmatpush.bf16.msra.mxu0 %v1577
    %2280 = vmatpush.bf16.msra.mxu0 %v1571
    %2281 = vmatpush.bf16.msra.mxu0 %v1565
    %2282 = vmatpush.bf16.msra.mxu0 %v1559
    %2283 = vmatpush.bf16.msra.mxu0 %v1553
    %2284 = vmatpush.bf16.msra.mxu0 %v1547
    %2285 = vmatpush.bf16.msra.mxu0 %v1541
    %2286 = vmatpush.bf16.msra.mxu0 %v1535
    %2287 = vmatmul.bf16.gmra.mxu0 %v467
    %v2288 = vpop.f32.mrf.mxu0
    %v2289 = vadd.f32 %v2276, %v2288
    %v2290 = vpop.f32.mrf.mxu0
    %2291 = vdwg.mxu0
    %2292 = vmatpush.bf16.msra.mxu0 %v1625
    %2293 = vmatpush.bf16.msra.mxu0 %v1619
    %2294 = vmatpush.bf16.msra.mxu0 %v1613
    %2295 = vmatpush.bf16.msra.mxu0 %v1607
    %2296 = vmatpush.bf16.msra.mxu0 %v1601
    %2297 = vmatpush.bf16.msra.mxu0 %v1595
    %2298 = vmatpush.bf16.msra.mxu0 %v1589
    %2299 = vmatpush.bf16.msra.mxu0 %v1583
    %2300 = vmatmul.bf16.gmra.mxu0 %v468
    %v2301 = vpop.f32.mrf.mxu0
    %v2302 = vadd.f32 %v2289, %v2301
    %v2303 = vpop.f32.mrf.mxu0
    %2304 = vdwg.mxu0
    %2305 = vmatpush.bf16.msra.mxu0 %v1386
    %2306 = vmatpush.bf16.msra.mxu0 %v1380
    %2307 = vmatpush.bf16.msra.mxu0 %v1374
    %2308 = vmatpush.bf16.msra.mxu0 %v1368
    %2309 = vmatpush.bf16.msra.mxu0 %v1362
    %2310 = vmatpush.bf16.msra.mxu0 %v1356
    %2311 = vmatpush.bf16.msra.mxu0 %v1350
    %2312 = vmatpush.bf16.msra.mxu0 %v1344
    %2313 = vmatmul.bf16.gmra.mxu0 %v463
    %v2314 = vpop.f32.mrf.mxu0
    %v2315 = vadd.f32 %v447, %v2314
    %v2316 = vpop.f32.mrf.mxu0
    %2317 = vdwg.mxu0
    %2318 = vmatpush.bf16.msra.mxu0 %v1434
    %2319 = vmatpush.bf16.msra.mxu0 %v1428
    %2320 = vmatpush.bf16.msra.mxu0 %v1422
    %2321 = vmatpush.bf16.msra.mxu0 %v1416
    %2322 = vmatpush.bf16.msra.mxu0 %v1410
    %2323 = vmatpush.bf16.msra.mxu0 %v1404
    %2324 = vmatpush.bf16.msra.mxu0 %v1398
    %2325 = vmatpush.bf16.msra.mxu0 %v1392
    %2326 = vmatmul.bf16.gmra.mxu0 %v464
    %v2327 = vpop.f32.mrf.mxu0
    %v2328 = vadd.f32 %v2315, %v2327
    %v2329 = vpop.f32.mrf.mxu0
    %2330 = vdwg.mxu0
    %2331 = vmatpush.bf16.msra.mxu0 %v1482
    %2332 = vmatpush.bf16.msra.mxu0 %v1476
    %2333 = vmatpush.bf16.msra.mxu0 %v1470
    %2334 = vmatpush.bf16.msra.mxu0 %v1464
    %2335 = vmatpush.bf16.msra.mxu0 %v1458
    %2336 = vmatpush.bf16.msra.mxu0 %v1452
    %2337 = vmatpush.bf16.msra.mxu0 %v1446
    %2338 = vmatpush.bf16.msra.mxu0 %v1440
    %2339 = vmatmul.bf16.gmra.mxu0 %v465
    %v2340 = vpop.f32.mrf.mxu0
    %v2341 = vadd.f32 %v2328, %v2340
    %v2342 = vpop.f32.mrf.mxu0
    %2343 = vdwg.mxu0
    %2344 = vmatpush.bf16.msra.mxu0 %v1530
    %2345 = vmatpush.bf16.msra.mxu0 %v1524
    %2346 = vmatpush.bf16.msra.mxu0 %v1518
    %2347 = vmatpush.bf16.msra.mxu0 %v1512
    %2348 = vmatpush.bf16.msra.mxu0 %v1506
    %2349 = vmatpush.bf16.msra.mxu0 %v1500
    %2350 = vmatpush.bf16.msra.mxu0 %v1494
    %2351 = vmatpush.bf16.msra.mxu0 %v1488
    %2352 = vmatmul.bf16.gmra.mxu0 %v466
    %v2353 = vpop.f32.mrf.mxu0
    %v2354 = vadd.f32 %v2341, %v2353
    %v2355 = vpop.f32.mrf.mxu0
    %2356 = vdwg.mxu0
    %2357 = vmatpush.bf16.msra.mxu0 %v1578
    %2358 = vmatpush.bf16.msra.mxu0 %v1572
    %2359 = vmatpush.bf16.msra.mxu0 %v1566
    %2360 = vmatpush.bf16.msra.mxu0 %v1560
    %2361 = vmatpush.bf16.msra.mxu0 %v1554
    %2362 = vmatpush.bf16.msra.mxu0 %v1548
    %2363 = vmatpush.bf16.msra.mxu0 %v1542
    %2364 = vmatpush.bf16.msra.mxu0 %v1536
    %2365 = vmatmul.bf16.gmra.mxu0 %v467
    %v2366 = vpop.f32.mrf.mxu0
    %v2367 = vadd.f32 %v2354, %v2366
    %v2368 = vpop.f32.mrf.mxu0
    %2369 = vdwg.mxu0
    %2370 = vmatpush.bf16.msra.mxu0 %v1626
    %2371 = vmatpush.bf16.msra.mxu0 %v1620
    %2372 = vmatpush.bf16.msra.mxu0 %v1614
    %2373 = vmatpush.bf16.msra.mxu0 %v1608
    %2374 = vmatpush.bf16.msra.mxu0 %v1602
    %2375 = vmatpush.bf16.msra.mxu0 %v1596
    %2376 = vmatpush.bf16.msra.mxu0 %v1590
    %2377 = vmatpush.bf16.msra.mxu0 %v1584
    %2378 = vmatmul.bf16.gmra.mxu0 %v468
    %v2379 = vpop.f32.mrf.mxu0
    %v2380 = vadd.f32 %v2367, %v2379
    %v2381 = vpop.f32.mrf.mxu0
    %2382 = vdwg.mxu0
    %v2383 = vtanh.pop %v1990
    %v2384 = vtanh.pop %v2068
    %v2385 = vtanh.pop %v2146
    %v2386 = vtanh.pop %v2224
    %v2387 = vtanh.pop %v2302
    %v2388 = vtanh.pop %v2380
    %v2389 = vpack.c.bf16 %v2383, %v2383
    %v2390 = vpack.c.bf16 %v2384, %v2384
    %v2391 = vpack.c.bf16 %v2385, %v2385
    %v2392 = vpack.c.bf16 %v2386, %v2386
    %v2393 = vpack.c.bf16 %v2387, %v2387
    %v2394 = vpack.c.bf16 %v2388, %v2388
    %v2395 = vld [vmem:[#allocation6] sm:$0xff]
    %v2396 = vld [vmem:[#allocation6 + $0x8] sm:$0xff]
    %v2397 = vld [vmem:[#allocation6 + $0x10] sm:$0xff]
    %v2398 = vld [vmem:[#allocation6 + $0x18] sm:$0xff]
    %v2399 = vld [vmem:[#allocation6 + $0x20] sm:$0xff]
    %v2400 = vld [vmem:[#allocation6 + $0x28] sm:$0xff]
    %v2401 = vld [vmem:[#allocation6 + $0x30] sm:$0xff]
    %v2402 = vld [vmem:[#allocation6 + $0x38] sm:$0xff]
    %v2403 = vld [vmem:[#allocation6 + $0x40] sm:$0xff]
    %v2404 = vld [vmem:[#allocation6 + $0x48] sm:$0xff]
    %v2405 = vld [vmem:[#allocation6 + $0x50] sm:$0xff]
    %v2406 = vld [vmem:[#allocation6 + $0x58] sm:$0xff]
    %v2407 = vld [vmem:[#allocation6 + $0x60] sm:$0xff]
    %v2408 = vld [vmem:[#allocation6 + $0x68] sm:$0xff]
    %v2409 = vld [vmem:[#allocation6 + $0x70] sm:$0xff]
    %v2410 = vld [vmem:[#allocation6 + $0x78] sm:$0xff]
    %v2411 = vld [vmem:[#allocation6 + $0x80] sm:$0xff]
    %v2412 = vld [vmem:[#allocation6 + $0x88] sm:$0xff]
    %v2413 = vld [vmem:[#allocation6 + $0x90] sm:$0xff]
    %v2414 = vld [vmem:[#allocation6 + $0x98] sm:$0xff]
    %v2415 = vld [vmem:[#allocation6 + $0xa0] sm:$0xff]
    %v2416 = vld [vmem:[#allocation6 + $0xa8] sm:$0xff]
    %v2417 = vld [vmem:[#allocation6 + $0xb0] sm:$0xff]
    %v2418 = vld [vmem:[#allocation6 + $0xb8] sm:$0xff]
    %v2419 = vld [vmem:[#allocation6 + $0xc0] sm:$0xff]
    %v2420 = vld [vmem:[#allocation6 + $0xc8] sm:$0xff]
    %v2421 = vld [vmem:[#allocation6 + $0xd0] sm:$0xff]
    %v2422 = vld [vmem:[#allocation6 + $0xd8] sm:$0xff]
    %v2423 = vld [vmem:[#allocation6 + $0xe0] sm:$0xff]
    %v2424 = vld [vmem:[#allocation6 + $0xe8] sm:$0xff]
    %v2425 = vld [vmem:[#allocation6 + $0xf0] sm:$0xff]
    %v2426 = vld [vmem:[#allocation6 + $0xf8] sm:$0xff]
    %v2427 = vld [vmem:[#allocation6 + $0x100] sm:$0xff]
    %v2428 = vld [vmem:[#allocation6 + $0x108] sm:$0xff]
    %v2429 = vld [vmem:[#allocation6 + $0x110] sm:$0xff]
    %v2430 = vld [vmem:[#allocation6 + $0x118] sm:$0xff]
    %v2431 = vld [vmem:[#allocation6 + $0x120] sm:$0xff]
    %v2432 = vld [vmem:[#allocation6 + $0x128] sm:$0xff]
    %v2433 = vld [vmem:[#allocation6 + $0x130] sm:$0xff]
    %v2434 = vld [vmem:[#allocation6 + $0x138] sm:$0xff]
    %v2435 = vld [vmem:[#allocation6 + $0x140] sm:$0xff]
    %v2436 = vld [vmem:[#allocation6 + $0x148] sm:$0xff]
    %v2437 = vld [vmem:[#allocation6 + $0x150] sm:$0xff]
    %v2438 = vld [vmem:[#allocation6 + $0x158] sm:$0xff]
    %v2439 = vld [vmem:[#allocation6 + $0x160] sm:$0xff]
    %v2440 = vld [vmem:[#allocation6 + $0x168] sm:$0xff]
    %v2441 = vld [vmem:[#allocation6 + $0x170] sm:$0xff]
    %v2442 = vld [vmem:[#allocation6 + $0x178] sm:$0xff]
    %v2443 = vld [vmem:[#allocation6 + $0x180] sm:$0xff]
    %v2444 = vld [vmem:[#allocation6 + $0x188] sm:$0xff]
    %v2445 = vld [vmem:[#allocation6 + $0x190] sm:$0xff]
    %v2446 = vld [vmem:[#allocation6 + $0x198] sm:$0xff]
    %v2447 = vld [vmem:[#allocation6 + $0x1a0] sm:$0xff]
    %v2448 = vld [vmem:[#allocation6 + $0x1a8] sm:$0xff]
    %v2449 = vld [vmem:[#allocation6 + $0x1b0] sm:$0xff]
    %v2450 = vld [vmem:[#allocation6 + $0x1b8] sm:$0xff]
    %v2451 = vld [vmem:[#allocation6 + $0x1c0] sm:$0xff]
    %v2452 = vld [vmem:[#allocation6 + $0x1c8] sm:$0xff]
    %v2453 = vld [vmem:[#allocation6 + $0x1d0] sm:$0xff]
    %v2454 = vld [vmem:[#allocation6 + $0x1d8] sm:$0xff]
    %v2455 = vld [vmem:[#allocation6 + $0x1e0] sm:$0xff]
    %v2456 = vld [vmem:[#allocation6 + $0x1e8] sm:$0xff]
    %v2457 = vld [vmem:[#allocation6 + $0x1f0] sm:$0xff]
    %v2458 = vld [vmem:[#allocation6 + $0x1f8] sm:$0xff]
    %v2459 = vld [vmem:[#allocation6 + $0x200] sm:$0xff]
    %v2460 = vld [vmem:[#allocation6 + $0x208] sm:$0xff]
    %v2461 = vld [vmem:[#allocation6 + $0x210] sm:$0xff]
    %v2462 = vld [vmem:[#allocation6 + $0x218] sm:$0xff]
    %v2463 = vld [vmem:[#allocation6 + $0x220] sm:$0xff]
    %v2464 = vld [vmem:[#allocation6 + $0x228] sm:$0xff]
    %v2465 = vld [vmem:[#allocation6 + $0x230] sm:$0xff]
    %v2466 = vld [vmem:[#allocation6 + $0x238] sm:$0xff]
    %v2467 = vld [vmem:[#allocation6 + $0x240] sm:$0xff]
    %v2468 = vld [vmem:[#allocation6 + $0x248] sm:$0xff]
    %v2469 = vld [vmem:[#allocation6 + $0x250] sm:$0xff]
    %v2470 = vld [vmem:[#allocation6 + $0x258] sm:$0xff]
    %v2471 = vld [vmem:[#allocation6 + $0x260] sm:$0xff]
    %v2472 = vld [vmem:[#allocation6 + $0x268] sm:$0xff]
    %v2473 = vld [vmem:[#allocation6 + $0x270] sm:$0xff]
    %v2474 = vld [vmem:[#allocation6 + $0x278] sm:$0xff]
    %v2475 = vld [vmem:[#allocation6 + $0x280] sm:$0xff]
    %v2476 = vld [vmem:[#allocation6 + $0x288] sm:$0xff]
    %v2477 = vld [vmem:[#allocation6 + $0x290] sm:$0xff]
    %v2478 = vld [vmem:[#allocation6 + $0x298] sm:$0xff]
    %v2479 = vld [vmem:[#allocation6 + $0x2a0] sm:$0xff]
    %v2480 = vld [vmem:[#allocation6 + $0x2a8] sm:$0xff]
    %v2481 = vld [vmem:[#allocation6 + $0x2b0] sm:$0xff]
    %v2482 = vld [vmem:[#allocation6 + $0x2b8] sm:$0xff]
    %v2483 = vld [vmem:[#allocation6 + $0x2c0] sm:$0xff]
    %v2484 = vld [vmem:[#allocation6 + $0x2c8] sm:$0xff]
    %v2485 = vld [vmem:[#allocation6 + $0x2d0] sm:$0xff]
    %v2486 = vld [vmem:[#allocation6 + $0x2d8] sm:$0xff]
    %v2487 = vld [vmem:[#allocation6 + $0x2e0] sm:$0xff]
    %v2488 = vld [vmem:[#allocation6 + $0x2e8] sm:$0xff]
    %v2489 = vld [vmem:[#allocation6 + $0x2f0] sm:$0xff]
    %v2490 = vld [vmem:[#allocation6 + $0x2f8] sm:$0xff]
    %v2491 = vld [vmem:[#allocation6 + $0x300] sm:$0xff]
    %v2492 = vld [vmem:[#allocation6 + $0x308] sm:$0xff]
    %v2493 = vld [vmem:[#allocation6 + $0x310] sm:$0xff]
    %v2494 = vld [vmem:[#allocation6 + $0x318] sm:$0xff]
    %v2495 = vld [vmem:[#allocation6 + $0x320] sm:$0xff]
    %v2496 = vld [vmem:[#allocation6 + $0x328] sm:$0xff]
    %v2497 = vld [vmem:[#allocation6 + $0x330] sm:$0xff]
    %v2498 = vld [vmem:[#allocation6 + $0x338] sm:$0xff]
    %v2499 = vld [vmem:[#allocation6 + $0x340] sm:$0xff]
    %v2500 = vld [vmem:[#allocation6 + $0x348] sm:$0xff]
    %v2501 = vld [vmem:[#allocation6 + $0x350] sm:$0xff]
    %v2502 = vld [vmem:[#allocation6 + $0x358] sm:$0xff]
    %v2503 = vld [vmem:[#allocation6 + $0x360] sm:$0xff]
    %v2504 = vld [vmem:[#allocation6 + $0x368] sm:$0xff]
    %v2505 = vld [vmem:[#allocation6 + $0x370] sm:$0xff]
    %v2506 = vld [vmem:[#allocation6 + $0x378] sm:$0xff]
    %v2507 = vld [vmem:[#allocation6 + $0x380] sm:$0xff]
    %v2508 = vld [vmem:[#allocation6 + $0x388] sm:$0xff]
    %v2509 = vld [vmem:[#allocation6 + $0x390] sm:$0xff]
    %v2510 = vld [vmem:[#allocation6 + $0x398] sm:$0xff]
    %v2511 = vld [vmem:[#allocation6 + $0x3a0] sm:$0xff]
    %v2512 = vld [vmem:[#allocation6 + $0x3a8] sm:$0xff]
    %v2513 = vld [vmem:[#allocation6 + $0x3b0] sm:$0xff]
    %v2514 = vld [vmem:[#allocation6 + $0x3b8] sm:$0xff]
    %v2515 = vld [vmem:[#allocation6 + $0x3c0] sm:$0xff]
    %v2516 = vld [vmem:[#allocation6 + $0x3c8] sm:$0xff]
    %v2517 = vld [vmem:[#allocation6 + $0x3d0] sm:$0xff]
    %v2518 = vld [vmem:[#allocation6 + $0x3d8] sm:$0xff]
    %v2519 = vld [vmem:[#allocation6 + $0x3e0] sm:$0xff]
    %v2520 = vld [vmem:[#allocation6 + $0x3e8] sm:$0xff]
    %v2521 = vld [vmem:[#allocation6 + $0x3f0] sm:$0xff]
    %v2522 = vld [vmem:[#allocation6 + $0x3f8] sm:$0xff]
    %v2523 = vld [vmem:[#allocation6 + $0x400] sm:$0xff]
    %v2524 = vld [vmem:[#allocation6 + $0x408] sm:$0xff]
    %v2525 = vld [vmem:[#allocation6 + $0x410] sm:$0xff]
    %v2526 = vld [vmem:[#allocation6 + $0x418] sm:$0xff]
    %v2527 = vld [vmem:[#allocation6 + $0x420] sm:$0xff]
    %v2528 = vld [vmem:[#allocation6 + $0x428] sm:$0xff]
    %v2529 = vld [vmem:[#allocation6 + $0x430] sm:$0xff]
    %v2530 = vld [vmem:[#allocation6 + $0x438] sm:$0xff]
    %v2531 = vld [vmem:[#allocation6 + $0x440] sm:$0xff]
    %v2532 = vld [vmem:[#allocation6 + $0x448] sm:$0xff]
    %v2533 = vld [vmem:[#allocation6 + $0x450] sm:$0xff]
    %v2534 = vld [vmem:[#allocation6 + $0x458] sm:$0xff]
    %v2535 = vld [vmem:[#allocation6 + $0x460] sm:$0xff]
    %v2536 = vld [vmem:[#allocation6 + $0x468] sm:$0xff]
    %v2537 = vld [vmem:[#allocation6 + $0x470] sm:$0xff]
    %v2538 = vld [vmem:[#allocation6 + $0x478] sm:$0xff]
    %v2539 = vld [vmem:[#allocation6 + $0x480] sm:$0xff]
    %v2540 = vld [vmem:[#allocation6 + $0x488] sm:$0xff]
    %v2541 = vld [vmem:[#allocation6 + $0x490] sm:$0xff]
    %v2542 = vld [vmem:[#allocation6 + $0x498] sm:$0xff]
    %v2543 = vld [vmem:[#allocation6 + $0x4a0] sm:$0xff]
    %v2544 = vld [vmem:[#allocation6 + $0x4a8] sm:$0xff]
    %v2545 = vld [vmem:[#allocation6 + $0x4b0] sm:$0xff]
    %v2546 = vld [vmem:[#allocation6 + $0x4b8] sm:$0xff]
    %v2547 = vld [vmem:[#allocation6 + $0x4c0] sm:$0xff]
    %v2548 = vld [vmem:[#allocation6 + $0x4c8] sm:$0xff]
    %v2549 = vld [vmem:[#allocation6 + $0x4d0] sm:$0xff]
    %v2550 = vld [vmem:[#allocation6 + $0x4d8] sm:$0xff]
    %v2551 = vld [vmem:[#allocation6 + $0x4e0] sm:$0xff]
    %v2552 = vld [vmem:[#allocation6 + $0x4e8] sm:$0xff]
    %v2553 = vld [vmem:[#allocation6 + $0x4f0] sm:$0xff]
    %v2554 = vld [vmem:[#allocation6 + $0x4f8] sm:$0xff]
    %v2555 = vld [vmem:[#allocation6 + $0x500] sm:$0xff]
    %v2556 = vld [vmem:[#allocation6 + $0x508] sm:$0xff]
    %v2557 = vld [vmem:[#allocation6 + $0x510] sm:$0xff]
    %v2558 = vld [vmem:[#allocation6 + $0x518] sm:$0xff]
    %v2559 = vld [vmem:[#allocation6 + $0x520] sm:$0xff]
    %v2560 = vld [vmem:[#allocation6 + $0x528] sm:$0xff]
    %v2561 = vld [vmem:[#allocation6 + $0x530] sm:$0xff]
    %v2562 = vld [vmem:[#allocation6 + $0x538] sm:$0xff]
    %v2563 = vld [vmem:[#allocation6 + $0x540] sm:$0xff]
    %v2564 = vld [vmem:[#allocation6 + $0x548] sm:$0xff]
    %v2565 = vld [vmem:[#allocation6 + $0x550] sm:$0xff]
    %v2566 = vld [vmem:[#allocation6 + $0x558] sm:$0xff]
    %v2567 = vld [vmem:[#allocation6 + $0x560] sm:$0xff]
    %v2568 = vld [vmem:[#allocation6 + $0x568] sm:$0xff]
    %v2569 = vld [vmem:[#allocation6 + $0x570] sm:$0xff]
    %v2570 = vld [vmem:[#allocation6 + $0x578] sm:$0xff]
    %v2571 = vld [vmem:[#allocation6 + $0x580] sm:$0xff]
    %v2572 = vld [vmem:[#allocation6 + $0x588] sm:$0xff]
    %v2573 = vld [vmem:[#allocation6 + $0x590] sm:$0xff]
    %v2574 = vld [vmem:[#allocation6 + $0x598] sm:$0xff]
    %v2575 = vld [vmem:[#allocation6 + $0x5a0] sm:$0xff]
    %v2576 = vld [vmem:[#allocation6 + $0x5a8] sm:$0xff]
    %v2577 = vld [vmem:[#allocation6 + $0x5b0] sm:$0xff]
    %v2578 = vld [vmem:[#allocation6 + $0x5b8] sm:$0xff]
    %v2579 = vld [vmem:[#allocation6 + $0x5c0] sm:$0xff]
    %v2580 = vld [vmem:[#allocation6 + $0x5c8] sm:$0xff]
    %v2581 = vld [vmem:[#allocation6 + $0x5d0] sm:$0xff]
    %v2582 = vld [vmem:[#allocation6 + $0x5d8] sm:$0xff]
    %v2583 = vld [vmem:[#allocation6 + $0x5e0] sm:$0xff]
    %v2584 = vld [vmem:[#allocation6 + $0x5e8] sm:$0xff]
    %v2585 = vld [vmem:[#allocation6 + $0x5f0] sm:$0xff]
    %v2586 = vld [vmem:[#allocation6 + $0x5f8] sm:$0xff]
    %v2587 = vld [vmem:[#allocation6 + $0x600] sm:$0xff]
    %v2588 = vld [vmem:[#allocation6 + $0x608] sm:$0xff]
    %v2589 = vld [vmem:[#allocation6 + $0x610] sm:$0xff]
    %v2590 = vld [vmem:[#allocation6 + $0x618] sm:$0xff]
    %v2591 = vld [vmem:[#allocation6 + $0x620] sm:$0xff]
    %v2592 = vld [vmem:[#allocation6 + $0x628] sm:$0xff]
    %v2593 = vld [vmem:[#allocation6 + $0x630] sm:$0xff]
    %v2594 = vld [vmem:[#allocation6 + $0x638] sm:$0xff]
    %v2595 = vld [vmem:[#allocation6 + $0x640] sm:$0xff]
    %v2596 = vld [vmem:[#allocation6 + $0x648] sm:$0xff]
    %v2597 = vld [vmem:[#allocation6 + $0x650] sm:$0xff]
    %v2598 = vld [vmem:[#allocation6 + $0x658] sm:$0xff]
    %v2599 = vld [vmem:[#allocation6 + $0x660] sm:$0xff]
    %v2600 = vld [vmem:[#allocation6 + $0x668] sm:$0xff]
    %v2601 = vld [vmem:[#allocation6 + $0x670] sm:$0xff]
    %v2602 = vld [vmem:[#allocation6 + $0x678] sm:$0xff]
    %v2603 = vld [vmem:[#allocation6 + $0x680] sm:$0xff]
    %v2604 = vld [vmem:[#allocation6 + $0x688] sm:$0xff]
    %v2605 = vld [vmem:[#allocation6 + $0x690] sm:$0xff]
    %v2606 = vld [vmem:[#allocation6 + $0x698] sm:$0xff]
    %v2607 = vld [vmem:[#allocation6 + $0x6a0] sm:$0xff]
    %v2608 = vld [vmem:[#allocation6 + $0x6a8] sm:$0xff]
    %v2609 = vld [vmem:[#allocation6 + $0x6b0] sm:$0xff]
    %v2610 = vld [vmem:[#allocation6 + $0x6b8] sm:$0xff]
    %v2611 = vld [vmem:[#allocation6 + $0x6c0] sm:$0xff]
    %v2612 = vld [vmem:[#allocation6 + $0x6c8] sm:$0xff]
    %v2613 = vld [vmem:[#allocation6 + $0x6d0] sm:$0xff]
    %v2614 = vld [vmem:[#allocation6 + $0x6d8] sm:$0xff]
    %v2615 = vld [vmem:[#allocation6 + $0x6e0] sm:$0xff]
    %v2616 = vld [vmem:[#allocation6 + $0x6e8] sm:$0xff]
    %v2617 = vld [vmem:[#allocation6 + $0x6f0] sm:$0xff]
    %v2618 = vld [vmem:[#allocation6 + $0x6f8] sm:$0xff]
    %v2619 = vld [vmem:[#allocation6 + $0x700] sm:$0xff]
    %v2620 = vld [vmem:[#allocation6 + $0x708] sm:$0xff]
    %v2621 = vld [vmem:[#allocation6 + $0x710] sm:$0xff]
    %v2622 = vld [vmem:[#allocation6 + $0x718] sm:$0xff]
    %v2623 = vld [vmem:[#allocation6 + $0x720] sm:$0xff]
    %v2624 = vld [vmem:[#allocation6 + $0x728] sm:$0xff]
    %v2625 = vld [vmem:[#allocation6 + $0x730] sm:$0xff]
    %v2626 = vld [vmem:[#allocation6 + $0x738] sm:$0xff]
    %v2627 = vld [vmem:[#allocation6 + $0x740] sm:$0xff]
    %v2628 = vld [vmem:[#allocation6 + $0x748] sm:$0xff]
    %v2629 = vld [vmem:[#allocation6 + $0x750] sm:$0xff]
    %v2630 = vld [vmem:[#allocation6 + $0x758] sm:$0xff]
    %v2631 = vld [vmem:[#allocation6 + $0x760] sm:$0xff]
    %v2632 = vld [vmem:[#allocation6 + $0x768] sm:$0xff]
    %v2633 = vld [vmem:[#allocation6 + $0x770] sm:$0xff]
    %v2634 = vld [vmem:[#allocation6 + $0x778] sm:$0xff]
    %v2635 = vld [vmem:[#allocation6 + $0x780] sm:$0xff]
    %v2636 = vld [vmem:[#allocation6 + $0x788] sm:$0xff]
    %v2637 = vld [vmem:[#allocation6 + $0x790] sm:$0xff]
    %v2638 = vld [vmem:[#allocation6 + $0x798] sm:$0xff]
    %v2639 = vld [vmem:[#allocation6 + $0x7a0] sm:$0xff]
    %v2640 = vld [vmem:[#allocation6 + $0x7a8] sm:$0xff]
    %v2641 = vld [vmem:[#allocation6 + $0x7b0] sm:$0xff]
    %v2642 = vld [vmem:[#allocation6 + $0x7b8] sm:$0xff]
    %v2643 = vld [vmem:[#allocation6 + $0x7c0] sm:$0xff]
    %v2644 = vld [vmem:[#allocation6 + $0x7c8] sm:$0xff]
    %v2645 = vld [vmem:[#allocation6 + $0x7d0] sm:$0xff]
    %v2646 = vld [vmem:[#allocation6 + $0x7d8] sm:$0xff]
    %v2647 = vld [vmem:[#allocation6 + $0x7e0] sm:$0xff]
    %v2648 = vld [vmem:[#allocation6 + $0x7e8] sm:$0xff]
    %v2649 = vld [vmem:[#allocation6 + $0x7f0] sm:$0xff]
    %v2650 = vld [vmem:[#allocation6 + $0x7f8] sm:$0xff]
    %v2651 = vld [vmem:[#allocation6 + $0x800] sm:$0xff]
    %v2652 = vld [vmem:[#allocation6 + $0x808] sm:$0xff]
    %v2653 = vld [vmem:[#allocation6 + $0x810] sm:$0xff]
    %v2654 = vld [vmem:[#allocation6 + $0x818] sm:$0xff]
    %v2655 = vld [vmem:[#allocation6 + $0x820] sm:$0xff]
    %v2656 = vld [vmem:[#allocation6 + $0x828] sm:$0xff]
    %v2657 = vld [vmem:[#allocation6 + $0x830] sm:$0xff]
    %v2658 = vld [vmem:[#allocation6 + $0x838] sm:$0xff]
    %v2659 = vld [vmem:[#allocation6 + $0x840] sm:$0xff]
    %v2660 = vld [vmem:[#allocation6 + $0x848] sm:$0xff]
    %v2661 = vld [vmem:[#allocation6 + $0x850] sm:$0xff]
    %v2662 = vld [vmem:[#allocation6 + $0x858] sm:$0xff]
    %v2663 = vld [vmem:[#allocation6 + $0x860] sm:$0xff]
    %v2664 = vld [vmem:[#allocation6 + $0x868] sm:$0xff]
    %v2665 = vld [vmem:[#allocation6 + $0x870] sm:$0xff]
    %v2666 = vld [vmem:[#allocation6 + $0x878] sm:$0xff]
    %v2667 = vld [vmem:[#allocation6 + $0x880] sm:$0xff]
    %v2668 = vld [vmem:[#allocation6 + $0x888] sm:$0xff]
    %v2669 = vld [vmem:[#allocation6 + $0x890] sm:$0xff]
    %v2670 = vld [vmem:[#allocation6 + $0x898] sm:$0xff]
    %v2671 = vld [vmem:[#allocation6 + $0x8a0] sm:$0xff]
    %v2672 = vld [vmem:[#allocation6 + $0x8a8] sm:$0xff]
    %v2673 = vld [vmem:[#allocation6 + $0x8b0] sm:$0xff]
    %v2674 = vld [vmem:[#allocation6 + $0x8b8] sm:$0xff]
    %v2675 = vld [vmem:[#allocation6 + $0x8c0] sm:$0xff]
    %v2676 = vld [vmem:[#allocation6 + $0x8c8] sm:$0xff]
    %v2677 = vld [vmem:[#allocation6 + $0x8d0] sm:$0xff]
    %v2678 = vld [vmem:[#allocation6 + $0x8d8] sm:$0xff]
    %v2679 = vld [vmem:[#allocation6 + $0x8e0] sm:$0xff]
    %v2680 = vld [vmem:[#allocation6 + $0x8e8] sm:$0xff]
    %v2681 = vld [vmem:[#allocation6 + $0x8f0] sm:$0xff]
    %v2682 = vld [vmem:[#allocation6 + $0x8f8] sm:$0xff]
    %v2683 = vld [vmem:[#allocation6 + $0x900] sm:$0xff]
    %v2684 = vld [vmem:[#allocation6 + $0x908] sm:$0xff]
    %v2685 = vld [vmem:[#allocation6 + $0x910] sm:$0xff]
    %v2686 = vld [vmem:[#allocation6 + $0x918] sm:$0xff]
    %v2687 = vld [vmem:[#allocation6 + $0x920] sm:$0xff]
    %v2688 = vld [vmem:[#allocation6 + $0x928] sm:$0xff]
    %v2689 = vld [vmem:[#allocation6 + $0x930] sm:$0xff]
    %v2690 = vld [vmem:[#allocation6 + $0x938] sm:$0xff]
    %v2691 = vld [vmem:[#allocation6 + $0x940] sm:$0xff]
    %v2692 = vld [vmem:[#allocation6 + $0x948] sm:$0xff]
    %v2693 = vld [vmem:[#allocation6 + $0x950] sm:$0xff]
    %v2694 = vld [vmem:[#allocation6 + $0x958] sm:$0xff]
    %v2695 = vld [vmem:[#allocation6 + $0x960] sm:$0xff]
    %v2696 = vld [vmem:[#allocation6 + $0x968] sm:$0xff]
    %v2697 = vld [vmem:[#allocation6 + $0x970] sm:$0xff]
    %v2698 = vld [vmem:[#allocation6 + $0x978] sm:$0xff]
    %v2699 = vld [vmem:[#allocation6 + $0x980] sm:$0xff]
    %v2700 = vld [vmem:[#allocation6 + $0x988] sm:$0xff]
    %v2701 = vld [vmem:[#allocation6 + $0x990] sm:$0xff]
    %v2702 = vld [vmem:[#allocation6 + $0x998] sm:$0xff]
    %v2703 = vld [vmem:[#allocation6 + $0x9a0] sm:$0xff]
    %v2704 = vld [vmem:[#allocation6 + $0x9a8] sm:$0xff]
    %v2705 = vld [vmem:[#allocation6 + $0x9b0] sm:$0xff]
    %v2706 = vld [vmem:[#allocation6 + $0x9b8] sm:$0xff]
    %v2707 = vld [vmem:[#allocation6 + $0x9c0] sm:$0xff]
    %v2708 = vld [vmem:[#allocation6 + $0x9c8] sm:$0xff]
    %v2709 = vld [vmem:[#allocation6 + $0x9d0] sm:$0xff]
    %v2710 = vld [vmem:[#allocation6 + $0x9d8] sm:$0xff]
    %v2711 = vld [vmem:[#allocation6 + $0x9e0] sm:$0xff]
    %v2712 = vld [vmem:[#allocation6 + $0x9e8] sm:$0xff]
    %v2713 = vld [vmem:[#allocation6 + $0x9f0] sm:$0xff]
    %v2714 = vld [vmem:[#allocation6 + $0x9f8] sm:$0xff]
    %v2715 = vld [vmem:[#allocation6 + $0xa00] sm:$0xff]
    %v2716 = vld [vmem:[#allocation6 + $0xa08] sm:$0xff]
    %v2717 = vld [vmem:[#allocation6 + $0xa10] sm:$0xff]
    %v2718 = vld [vmem:[#allocation6 + $0xa18] sm:$0xff]
    %v2719 = vld [vmem:[#allocation6 + $0xa20] sm:$0xff]
    %v2720 = vld [vmem:[#allocation6 + $0xa28] sm:$0xff]
    %v2721 = vld [vmem:[#allocation6 + $0xa30] sm:$0xff]
    %v2722 = vld [vmem:[#allocation6 + $0xa38] sm:$0xff]
    %v2723 = vld [vmem:[#allocation6 + $0xa40] sm:$0xff]
    %v2724 = vld [vmem:[#allocation6 + $0xa48] sm:$0xff]
    %v2725 = vld [vmem:[#allocation6 + $0xa50] sm:$0xff]
    %v2726 = vld [vmem:[#allocation6 + $0xa58] sm:$0xff]
    %v2727 = vld [vmem:[#allocation6 + $0xa60] sm:$0xff]
    %v2728 = vld [vmem:[#allocation6 + $0xa68] sm:$0xff]
    %v2729 = vld [vmem:[#allocation6 + $0xa70] sm:$0xff]
    %v2730 = vld [vmem:[#allocation6 + $0xa78] sm:$0xff]
    %v2731 = vld [vmem:[#allocation6 + $0xa80] sm:$0xff]
    %v2732 = vld [vmem:[#allocation6 + $0xa88] sm:$0xff]
    %v2733 = vld [vmem:[#allocation6 + $0xa90] sm:$0xff]
    %v2734 = vld [vmem:[#allocation6 + $0xa98] sm:$0xff]
    %v2735 = vld [vmem:[#allocation6 + $0xaa0] sm:$0xff]
    %v2736 = vld [vmem:[#allocation6 + $0xaa8] sm:$0xff]
    %v2737 = vld [vmem:[#allocation6 + $0xab0] sm:$0xff]
    %v2738 = vld [vmem:[#allocation6 + $0xab8] sm:$0xff]
    %v2739 = vld [vmem:[#allocation6 + $0xac0] sm:$0xff]
    %v2740 = vld [vmem:[#allocation6 + $0xac8] sm:$0xff]
    %v2741 = vld [vmem:[#allocation6 + $0xad0] sm:$0xff]
    %v2742 = vld [vmem:[#allocation6 + $0xad8] sm:$0xff]
    %v2743 = vld [vmem:[#allocation6 + $0xae0] sm:$0xff]
    %v2744 = vld [vmem:[#allocation6 + $0xae8] sm:$0xff]
    %v2745 = vld [vmem:[#allocation6 + $0xaf0] sm:$0xff]
    %v2746 = vld [vmem:[#allocation6 + $0xaf8] sm:$0xff]
    %v2747 = vld [vmem:[#allocation6 + $0xb00] sm:$0xff]
    %v2748 = vld [vmem:[#allocation6 + $0xb08] sm:$0xff]
    %v2749 = vld [vmem:[#allocation6 + $0xb10] sm:$0xff]
    %v2750 = vld [vmem:[#allocation6 + $0xb18] sm:$0xff]
    %v2751 = vld [vmem:[#allocation6 + $0xb20] sm:$0xff]
    %v2752 = vld [vmem:[#allocation6 + $0xb28] sm:$0xff]
    %v2753 = vld [vmem:[#allocation6 + $0xb30] sm:$0xff]
    %v2754 = vld [vmem:[#allocation6 + $0xb38] sm:$0xff]
    %v2755 = vld [vmem:[#allocation6 + $0xb40] sm:$0xff]
    %v2756 = vld [vmem:[#allocation6 + $0xb48] sm:$0xff]
    %v2757 = vld [vmem:[#allocation6 + $0xb50] sm:$0xff]
    %v2758 = vld [vmem:[#allocation6 + $0xb58] sm:$0xff]
    %v2759 = vld [vmem:[#allocation6 + $0xb60] sm:$0xff]
    %v2760 = vld [vmem:[#allocation6 + $0xb68] sm:$0xff]
    %v2761 = vld [vmem:[#allocation6 + $0xb70] sm:$0xff]
    %v2762 = vld [vmem:[#allocation6 + $0xb78] sm:$0xff]
    %v2763 = vld [vmem:[#allocation6 + $0xb80] sm:$0xff]
    %v2764 = vld [vmem:[#allocation6 + $0xb88] sm:$0xff]
    %v2765 = vld [vmem:[#allocation6 + $0xb90] sm:$0xff]
    %v2766 = vld [vmem:[#allocation6 + $0xb98] sm:$0xff]
    %v2767 = vld [vmem:[#allocation6 + $0xba0] sm:$0xff]
    %v2768 = vld [vmem:[#allocation6 + $0xba8] sm:$0xff]
    %v2769 = vld [vmem:[#allocation6 + $0xbb0] sm:$0xff]
    %v2770 = vld [vmem:[#allocation6 + $0xbb8] sm:$0xff]
    %v2771 = vld [vmem:[#allocation6 + $0xbc0] sm:$0xff]
    %v2772 = vld [vmem:[#allocation6 + $0xbc8] sm:$0xff]
    %v2773 = vld [vmem:[#allocation6 + $0xbd0] sm:$0xff]
    %v2774 = vld [vmem:[#allocation6 + $0xbd8] sm:$0xff]
    %v2775 = vld [vmem:[#allocation6 + $0xbe0] sm:$0xff]
    %v2776 = vld [vmem:[#allocation6 + $0xbe8] sm:$0xff]
    %v2777 = vld [vmem:[#allocation6 + $0xbf0] sm:$0xff]
    %v2778 = vld [vmem:[#allocation6 + $0xbf8] sm:$0xff]
    %v2779 = vld [vmem:[#allocation6 + $0xc00] sm:$0xff]
    %v2780 = vld [vmem:[#allocation6 + $0xc08] sm:$0xff]
    %v2781 = vld [vmem:[#allocation6 + $0xc10] sm:$0xff]
    %v2782 = vld [vmem:[#allocation6 + $0xc18] sm:$0xff]
    %v2783 = vld [vmem:[#allocation6 + $0xc20] sm:$0xff]
    %v2784 = vld [vmem:[#allocation6 + $0xc28] sm:$0xff]
    %v2785 = vld [vmem:[#allocation6 + $0xc30] sm:$0xff]
    %v2786 = vld [vmem:[#allocation6 + $0xc38] sm:$0xff]
    %v2787 = vld [vmem:[#allocation6 + $0xc40] sm:$0xff]
    %v2788 = vld [vmem:[#allocation6 + $0xc48] sm:$0xff]
    %v2789 = vld [vmem:[#allocation6 + $0xc50] sm:$0xff]
    %v2790 = vld [vmem:[#allocation6 + $0xc58] sm:$0xff]
    %v2791 = vld [vmem:[#allocation6 + $0xc60] sm:$0xff]
    %v2792 = vld [vmem:[#allocation6 + $0xc68] sm:$0xff]
    %v2793 = vld [vmem:[#allocation6 + $0xc70] sm:$0xff]
    %v2794 = vld [vmem:[#allocation6 + $0xc78] sm:$0xff]
    %v2795 = vld [vmem:[#allocation6 + $0xc80] sm:$0xff]
    %v2796 = vld [vmem:[#allocation6 + $0xc88] sm:$0xff]
    %v2797 = vld [vmem:[#allocation6 + $0xc90] sm:$0xff]
    %v2798 = vld [vmem:[#allocation6 + $0xc98] sm:$0xff]
    %v2799 = vld [vmem:[#allocation6 + $0xca0] sm:$0xff]
    %v2800 = vld [vmem:[#allocation6 + $0xca8] sm:$0xff]
    %v2801 = vld [vmem:[#allocation6 + $0xcb0] sm:$0xff]
    %v2802 = vld [vmem:[#allocation6 + $0xcb8] sm:$0xff]
    %v2803 = vld [vmem:[#allocation6 + $0xcc0] sm:$0xff]
    %v2804 = vld [vmem:[#allocation6 + $0xcc8] sm:$0xff]
    %v2805 = vld [vmem:[#allocation6 + $0xcd0] sm:$0xff]
    %v2806 = vld [vmem:[#allocation6 + $0xcd8] sm:$0xff]
    %v2807 = vld [vmem:[#allocation6 + $0xce0] sm:$0xff]
    %v2808 = vld [vmem:[#allocation6 + $0xce8] sm:$0xff]
    %v2809 = vld [vmem:[#allocation6 + $0xcf0] sm:$0xff]
    %v2810 = vld [vmem:[#allocation6 + $0xcf8] sm:$0xff]
    %v2811 = vld [vmem:[#allocation6 + $0xd00] sm:$0xff]
    %v2812 = vld [vmem:[#allocation6 + $0xd08] sm:$0xff]
    %v2813 = vld [vmem:[#allocation6 + $0xd10] sm:$0xff]
    %v2814 = vld [vmem:[#allocation6 + $0xd18] sm:$0xff]
    %v2815 = vld [vmem:[#allocation6 + $0xd20] sm:$0xff]
    %v2816 = vld [vmem:[#allocation6 + $0xd28] sm:$0xff]
    %v2817 = vld [vmem:[#allocation6 + $0xd30] sm:$0xff]
    %v2818 = vld [vmem:[#allocation6 + $0xd38] sm:$0xff]
    %v2819 = vld [vmem:[#allocation6 + $0xd40] sm:$0xff]
    %v2820 = vld [vmem:[#allocation6 + $0xd48] sm:$0xff]
    %v2821 = vld [vmem:[#allocation6 + $0xd50] sm:$0xff]
    %v2822 = vld [vmem:[#allocation6 + $0xd58] sm:$0xff]
    %v2823 = vld [vmem:[#allocation6 + $0xd60] sm:$0xff]
    %v2824 = vld [vmem:[#allocation6 + $0xd68] sm:$0xff]
    %v2825 = vld [vmem:[#allocation6 + $0xd70] sm:$0xff]
    %v2826 = vld [vmem:[#allocation6 + $0xd78] sm:$0xff]
    %v2827 = vld [vmem:[#allocation6 + $0xd80] sm:$0xff]
    %v2828 = vld [vmem:[#allocation6 + $0xd88] sm:$0xff]
    %v2829 = vld [vmem:[#allocation6 + $0xd90] sm:$0xff]
    %v2830 = vld [vmem:[#allocation6 + $0xd98] sm:$0xff]
    %v2831 = vld [vmem:[#allocation6 + $0xda0] sm:$0xff]
    %v2832 = vld [vmem:[#allocation6 + $0xda8] sm:$0xff]
    %v2833 = vld [vmem:[#allocation6 + $0xdb0] sm:$0xff]
    %v2834 = vld [vmem:[#allocation6 + $0xdb8] sm:$0xff]
    %v2835 = vld [vmem:[#allocation6 + $0xdc0] sm:$0xff]
    %v2836 = vld [vmem:[#allocation6 + $0xdc8] sm:$0xff]
    %v2837 = vld [vmem:[#allocation6 + $0xdd0] sm:$0xff]
    %v2838 = vld [vmem:[#allocation6 + $0xdd8] sm:$0xff]
    %v2839 = vld [vmem:[#allocation6 + $0xde0] sm:$0xff]
    %v2840 = vld [vmem:[#allocation6 + $0xde8] sm:$0xff]
    %v2841 = vld [vmem:[#allocation6 + $0xdf0] sm:$0xff]
    %v2842 = vld [vmem:[#allocation6 + $0xdf8] sm:$0xff]
    %v2843 = vld [vmem:[#allocation6 + $0xe00] sm:$0xff]
    %v2844 = vld [vmem:[#allocation6 + $0xe08] sm:$0xff]
    %v2845 = vld [vmem:[#allocation6 + $0xe10] sm:$0xff]
    %v2846 = vld [vmem:[#allocation6 + $0xe18] sm:$0xff]
    %v2847 = vld [vmem:[#allocation6 + $0xe20] sm:$0xff]
    %v2848 = vld [vmem:[#allocation6 + $0xe28] sm:$0xff]
    %v2849 = vld [vmem:[#allocation6 + $0xe30] sm:$0xff]
    %v2850 = vld [vmem:[#allocation6 + $0xe38] sm:$0xff]
    %v2851 = vld [vmem:[#allocation6 + $0xe40] sm:$0xff]
    %v2852 = vld [vmem:[#allocation6 + $0xe48] sm:$0xff]
    %v2853 = vld [vmem:[#allocation6 + $0xe50] sm:$0xff]
    %v2854 = vld [vmem:[#allocation6 + $0xe58] sm:$0xff]
    %v2855 = vld [vmem:[#allocation6 + $0xe60] sm:$0xff]
    %v2856 = vld [vmem:[#allocation6 + $0xe68] sm:$0xff]
    %v2857 = vld [vmem:[#allocation6 + $0xe70] sm:$0xff]
    %v2858 = vld [vmem:[#allocation6 + $0xe78] sm:$0xff]
    %v2859 = vld [vmem:[#allocation6 + $0xe80] sm:$0xff]
    %v2860 = vld [vmem:[#allocation6 + $0xe88] sm:$0xff]
    %v2861 = vld [vmem:[#allocation6 + $0xe90] sm:$0xff]
    %v2862 = vld [vmem:[#allocation6 + $0xe98] sm:$0xff]
    %v2863 = vld [vmem:[#allocation6 + $0xea0] sm:$0xff]
    %v2864 = vld [vmem:[#allocation6 + $0xea8] sm:$0xff]
    %v2865 = vld [vmem:[#allocation6 + $0xeb0] sm:$0xff]
    %v2866 = vld [vmem:[#allocation6 + $0xeb8] sm:$0xff]
    %v2867 = vld [vmem:[#allocation6 + $0xec0] sm:$0xff]
    %v2868 = vld [vmem:[#allocation6 + $0xec8] sm:$0xff]
    %v2869 = vld [vmem:[#allocation6 + $0xed0] sm:$0xff]
    %v2870 = vld [vmem:[#allocation6 + $0xed8] sm:$0xff]
    %v2871 = vld [vmem:[#allocation6 + $0xee0] sm:$0xff]
    %v2872 = vld [vmem:[#allocation6 + $0xee8] sm:$0xff]
    %v2873 = vld [vmem:[#allocation6 + $0xef0] sm:$0xff]
    %v2874 = vld [vmem:[#allocation6 + $0xef8] sm:$0xff]
    %v2875 = vld [vmem:[#allocation6 + $0xf00] sm:$0xff]
    %v2876 = vld [vmem:[#allocation6 + $0xf08] sm:$0xff]
    %v2877 = vld [vmem:[#allocation6 + $0xf10] sm:$0xff]
    %v2878 = vld [vmem:[#allocation6 + $0xf18] sm:$0xff]
    %v2879 = vld [vmem:[#allocation6 + $0xf20] sm:$0xff]
    %v2880 = vld [vmem:[#allocation6 + $0xf28] sm:$0xff]
    %v2881 = vld [vmem:[#allocation6 + $0xf30] sm:$0xff]
    %v2882 = vld [vmem:[#allocation6 + $0xf38] sm:$0xff]
    %v2883 = vld [vmem:[#allocation6 + $0xf40] sm:$0xff]
    %v2884 = vld [vmem:[#allocation6 + $0xf48] sm:$0xff]
    %v2885 = vld [vmem:[#allocation6 + $0xf50] sm:$0xff]
    %v2886 = vld [vmem:[#allocation6 + $0xf58] sm:$0xff]
    %v2887 = vld [vmem:[#allocation6 + $0xf60] sm:$0xff]
    %v2888 = vld [vmem:[#allocation6 + $0xf68] sm:$0xff]
    %v2889 = vld [vmem:[#allocation6 + $0xf70] sm:$0xff]
    %v2890 = vld [vmem:[#allocation6 + $0xf78] sm:$0xff]
    %v2891 = vld [vmem:[#allocation6 + $0xf80] sm:$0xff]
    %v2892 = vld [vmem:[#allocation6 + $0xf88] sm:$0xff]
    %v2893 = vld [vmem:[#allocation6 + $0xf90] sm:$0xff]
    %v2894 = vld [vmem:[#allocation6 + $0xf98] sm:$0xff]
    %v2895 = vld [vmem:[#allocation6 + $0xfa0] sm:$0xff]
    %v2896 = vld [vmem:[#allocation6 + $0xfa8] sm:$0xff]
    %v2897 = vld [vmem:[#allocation6 + $0xfb0] sm:$0xff]
    %v2898 = vld [vmem:[#allocation6 + $0xfb8] sm:$0xff]
    %v2899 = vld [vmem:[#allocation6 + $0xfc0] sm:$0xff]
    %v2900 = vld [vmem:[#allocation6 + $0xfc8] sm:$0xff]
    %v2901 = vld [vmem:[#allocation6 + $0xfd0] sm:$0xff]
    %v2902 = vld [vmem:[#allocation6 + $0xfd8] sm:$0xff]
    %v2903 = vld [vmem:[#allocation6 + $0xfe0] sm:$0xff]
    %v2904 = vld [vmem:[#allocation6 + $0xfe8] sm:$0xff]
    %v2905 = vld [vmem:[#allocation6 + $0xff0] sm:$0xff]
    %v2906 = vld [vmem:[#allocation6 + $0xff8] sm:$0xff]
    %v2907 = vld [vmem:[#allocation6 + $0x1000] sm:$0xff]
    %v2908 = vld [vmem:[#allocation6 + $0x1008] sm:$0xff]
    %v2909 = vld [vmem:[#allocation6 + $0x1010] sm:$0xff]
    %v2910 = vld [vmem:[#allocation6 + $0x1018] sm:$0xff]
    %v2911 = vld [vmem:[#allocation6 + $0x1020] sm:$0xff]
    %v2912 = vld [vmem:[#allocation6 + $0x1028] sm:$0xff]
    %v2913 = vld [vmem:[#allocation6 + $0x1030] sm:$0xff]
    %v2914 = vld [vmem:[#allocation6 + $0x1038] sm:$0xff]
    %v2915 = vld [vmem:[#allocation6 + $0x1040] sm:$0xff]
    %v2916 = vld [vmem:[#allocation6 + $0x1048] sm:$0xff]
    %v2917 = vld [vmem:[#allocation6 + $0x1050] sm:$0xff]
    %v2918 = vld [vmem:[#allocation6 + $0x1058] sm:$0xff]
    %v2919 = vld [vmem:[#allocation6 + $0x1060] sm:$0xff]
    %v2920 = vld [vmem:[#allocation6 + $0x1068] sm:$0xff]
    %v2921 = vld [vmem:[#allocation6 + $0x1070] sm:$0xff]
    %v2922 = vld [vmem:[#allocation6 + $0x1078] sm:$0xff]
    %v2923 = vld [vmem:[#allocation6 + $0x1080] sm:$0xff]
    %v2924 = vld [vmem:[#allocation6 + $0x1088] sm:$0xff]
    %v2925 = vld [vmem:[#allocation6 + $0x1090] sm:$0xff]
    %v2926 = vld [vmem:[#allocation6 + $0x1098] sm:$0xff]
    %v2927 = vld [vmem:[#allocation6 + $0x10a0] sm:$0xff]
    %v2928 = vld [vmem:[#allocation6 + $0x10a8] sm:$0xff]
    %v2929 = vld [vmem:[#allocation6 + $0x10b0] sm:$0xff]
    %v2930 = vld [vmem:[#allocation6 + $0x10b8] sm:$0xff]
    %v2931 = vld [vmem:[#allocation6 + $0x10c0] sm:$0xff]
    %v2932 = vld [vmem:[#allocation6 + $0x10c8] sm:$0xff]
    %v2933 = vld [vmem:[#allocation6 + $0x10d0] sm:$0xff]
    %v2934 = vld [vmem:[#allocation6 + $0x10d8] sm:$0xff]
    %v2935 = vld [vmem:[#allocation6 + $0x10e0] sm:$0xff]
    %v2936 = vld [vmem:[#allocation6 + $0x10e8] sm:$0xff]
    %v2937 = vld [vmem:[#allocation6 + $0x10f0] sm:$0xff]
    %v2938 = vld [vmem:[#allocation6 + $0x10f8] sm:$0xff]
    %v2939 = vld [vmem:[#allocation6 + $0x1100] sm:$0xff]
    %v2940 = vld [vmem:[#allocation6 + $0x1108] sm:$0xff]
    %v2941 = vld [vmem:[#allocation6 + $0x1110] sm:$0xff]
    %v2942 = vld [vmem:[#allocation6 + $0x1118] sm:$0xff]
    %v2943 = vld [vmem:[#allocation6 + $0x1120] sm:$0xff]
    %v2944 = vld [vmem:[#allocation6 + $0x1128] sm:$0xff]
    %v2945 = vld [vmem:[#allocation6 + $0x1130] sm:$0xff]
    %v2946 = vld [vmem:[#allocation6 + $0x1138] sm:$0xff]
    %v2947 = vld [vmem:[#allocation6 + $0x1140] sm:$0xff]
    %v2948 = vld [vmem:[#allocation6 + $0x1148] sm:$0xff]
    %v2949 = vld [vmem:[#allocation6 + $0x1150] sm:$0xff]
    %v2950 = vld [vmem:[#allocation6 + $0x1158] sm:$0xff]
    %v2951 = vld [vmem:[#allocation6 + $0x1160] sm:$0xff]
    %v2952 = vld [vmem:[#allocation6 + $0x1168] sm:$0xff]
    %v2953 = vld [vmem:[#allocation6 + $0x1170] sm:$0xff]
    %v2954 = vld [vmem:[#allocation6 + $0x1178] sm:$0xff]
    %v2955 = vld [vmem:[#allocation6 + $0x1180] sm:$0xff]
    %v2956 = vld [vmem:[#allocation6 + $0x1188] sm:$0xff]
    %v2957 = vld [vmem:[#allocation6 + $0x1190] sm:$0xff]
    %v2958 = vld [vmem:[#allocation6 + $0x1198] sm:$0xff]
    %v2959 = vld [vmem:[#allocation6 + $0x11a0] sm:$0xff]
    %v2960 = vld [vmem:[#allocation6 + $0x11a8] sm:$0xff]
    %v2961 = vld [vmem:[#allocation6 + $0x11b0] sm:$0xff]
    %v2962 = vld [vmem:[#allocation6 + $0x11b8] sm:$0xff]
    %v2963 = vld [vmem:[#allocation6 + $0x11c0] sm:$0xff]
    %v2964 = vld [vmem:[#allocation6 + $0x11c8] sm:$0xff]
    %v2965 = vld [vmem:[#allocation6 + $0x11d0] sm:$0xff]
    %v2966 = vld [vmem:[#allocation6 + $0x11d8] sm:$0xff]
    %v2967 = vld [vmem:[#allocation6 + $0x11e0] sm:$0xff]
    %v2968 = vld [vmem:[#allocation6 + $0x11e8] sm:$0xff]
    %v2969 = vld [vmem:[#allocation6 + $0x11f0] sm:$0xff]
    %v2970 = vld [vmem:[#allocation6 + $0x11f8] sm:$0xff]
    %v2971 = vld [vmem:[#allocation7] sm:$0xff]
    %v2972 = vld [vmem:[#allocation7 + $0x8] sm:$0xf]
    %v2975 = vperm.slane %v2971, 0
    %v2976 = vperm.slane %v2971, 1
    %v2977 = vperm.slane %v2971, 2
    %v2978 = vperm.slane %v2971, 3
    %v2979 = vperm.slane %v2971, 4
    %v2980 = vperm.slane %v2971, 5
    %v2981 = vperm.slane %v2971, 6
    %v2982 = vperm.slane %v2971, 7
    %v2983 = vperm.slane %v2972, 0
    %v2984 = vperm.slane %v2972, 1
    %v2985 = vperm.slane %v2972, 2
    %v2986 = vperm.slane %v2972, 3
    %v3575 = vunpack.c.l.b16 %v2395
    %v3576 = vunpack.c.h.b16 %v2395
    %v3577 = vunpack.c.l.b16 %v2396
    %v3578 = vunpack.c.h.b16 %v2396
    %v3579 = vunpack.c.l.b16 %v2397
    %v3580 = vunpack.c.h.b16 %v2397
    %v3581 = vunpack.c.l.b16 %v2398
    %v3582 = vunpack.c.h.b16 %v2398
    %v3583 = vunpack.c.l.b16 %v2399
    %v3584 = vunpack.c.h.b16 %v2399
    %v3585 = vunpack.c.l.b16 %v2400
    %v3586 = vunpack.c.h.b16 %v2400
    %v3587 = vunpack.c.l.b16 %v2401
    %v3588 = vunpack.c.h.b16 %v2401
    %v3589 = vunpack.c.l.b16 %v2402
    %v3590 = vunpack.c.h.b16 %v2402
    %v3591 = vunpack.c.l.b16 %v2403
    %v3592 = vunpack.c.h.b16 %v2403
    %v3593 = vunpack.c.l.b16 %v2404
    %v3594 = vunpack.c.h.b16 %v2404
    %v3595 = vunpack.c.l.b16 %v2405
    %v3596 = vunpack.c.h.b16 %v2405
    %v3597 = vunpack.c.l.b16 %v2406
    %v3598 = vunpack.c.h.b16 %v2406
    %v3599 = vunpack.c.l.b16 %v2407
    %v3600 = vunpack.c.h.b16 %v2407
    %v3601 = vunpack.c.l.b16 %v2408
    %v3602 = vunpack.c.h.b16 %v2408
    %v3603 = vunpack.c.l.b16 %v2409
    %v3604 = vunpack.c.h.b16 %v2409
    %v3605 = vunpack.c.l.b16 %v2410
    %v3606 = vunpack.c.h.b16 %v2410
    %v3607 = vunpack.c.l.b16 %v2411
    %v3608 = vunpack.c.h.b16 %v2411
    %v3609 = vunpack.c.l.b16 %v2412
    %v3610 = vunpack.c.h.b16 %v2412
    %v3611 = vunpack.c.l.b16 %v2413
    %v3612 = vunpack.c.h.b16 %v2413
    %v3613 = vunpack.c.l.b16 %v2414
    %v3614 = vunpack.c.h.b16 %v2414
    %v3615 = vunpack.c.l.b16 %v2415
    %v3616 = vunpack.c.h.b16 %v2415
    %v3617 = vunpack.c.l.b16 %v2416
    %v3618 = vunpack.c.h.b16 %v2416
    %v3619 = vunpack.c.l.b16 %v2417
    %v3620 = vunpack.c.h.b16 %v2417
    %v3621 = vunpack.c.l.b16 %v2418
    %v3622 = vunpack.c.h.b16 %v2418
    %v3623 = vunpack.c.l.b16 %v2419
    %v3624 = vunpack.c.h.b16 %v2419
    %v3625 = vunpack.c.l.b16 %v2420
    %v3626 = vunpack.c.h.b16 %v2420
    %v3627 = vunpack.c.l.b16 %v2421
    %v3628 = vunpack.c.h.b16 %v2421
    %v3629 = vunpack.c.l.b16 %v2422
    %v3630 = vunpack.c.h.b16 %v2422
    %v3631 = vunpack.c.l.b16 %v2423
    %v3632 = vunpack.c.h.b16 %v2423
    %v3633 = vunpack.c.l.b16 %v2424
    %v3634 = vunpack.c.h.b16 %v2424
    %v3635 = vunpack.c.l.b16 %v2425
    %v3636 = vunpack.c.h.b16 %v2425
    %v3637 = vunpack.c.l.b16 %v2426
    %v3638 = vunpack.c.h.b16 %v2426
    %v3639 = vunpack.c.l.b16 %v2427
    %v3640 = vunpack.c.h.b16 %v2427
    %v3641 = vunpack.c.l.b16 %v2428
    %v3642 = vunpack.c.h.b16 %v2428
    %v3643 = vunpack.c.l.b16 %v2429
    %v3644 = vunpack.c.h.b16 %v2429
    %v3645 = vunpack.c.l.b16 %v2430
    %v3646 = vunpack.c.h.b16 %v2430
    %v3647 = vunpack.c.l.b16 %v2431
    %v3648 = vunpack.c.h.b16 %v2431
    %v3649 = vunpack.c.l.b16 %v2432
    %v3650 = vunpack.c.h.b16 %v2432
    %v3651 = vunpack.c.l.b16 %v2433
    %v3652 = vunpack.c.h.b16 %v2433
    %v3653 = vunpack.c.l.b16 %v2434
    %v3654 = vunpack.c.h.b16 %v2434
    %v3655 = vunpack.c.l.b16 %v2435
    %v3656 = vunpack.c.h.b16 %v2435
    %v3657 = vunpack.c.l.b16 %v2436
    %v3658 = vunpack.c.h.b16 %v2436
    %v3659 = vunpack.c.l.b16 %v2437
    %v3660 = vunpack.c.h.b16 %v2437
    %v3661 = vunpack.c.l.b16 %v2438
    %v3662 = vunpack.c.h.b16 %v2438
    %v3663 = vunpack.c.l.b16 %v2439
    %v3664 = vunpack.c.h.b16 %v2439
    %v3665 = vunpack.c.l.b16 %v2440
    %v3666 = vunpack.c.h.b16 %v2440
    %v3667 = vunpack.c.l.b16 %v2441
    %v3668 = vunpack.c.h.b16 %v2441
    %v3669 = vunpack.c.l.b16 %v2442
    %v3670 = vunpack.c.h.b16 %v2442
    %v3671 = vunpack.c.l.b16 %v2443
    %v3672 = vunpack.c.h.b16 %v2443
    %v3673 = vunpack.c.l.b16 %v2444
    %v3674 = vunpack.c.h.b16 %v2444
    %v3675 = vunpack.c.l.b16 %v2445
    %v3676 = vunpack.c.h.b16 %v2445
    %v3677 = vunpack.c.l.b16 %v2446
    %v3678 = vunpack.c.h.b16 %v2446
    %v3679 = vunpack.c.l.b16 %v2447
    %v3680 = vunpack.c.h.b16 %v2447
    %v3681 = vunpack.c.l.b16 %v2448
    %v3682 = vunpack.c.h.b16 %v2448
    %v3683 = vunpack.c.l.b16 %v2449
    %v3684 = vunpack.c.h.b16 %v2449
    %v3685 = vunpack.c.l.b16 %v2450
    %v3686 = vunpack.c.h.b16 %v2450
    %v3687 = vunpack.c.l.b16 %v2451
    %v3688 = vunpack.c.h.b16 %v2451
    %v3689 = vunpack.c.l.b16 %v2452
    %v3690 = vunpack.c.h.b16 %v2452
    %v3691 = vunpack.c.l.b16 %v2453
    %v3692 = vunpack.c.h.b16 %v2453
    %v3693 = vunpack.c.l.b16 %v2454
    %v3694 = vunpack.c.h.b16 %v2454
    %v3695 = vunpack.c.l.b16 %v2455
    %v3696 = vunpack.c.h.b16 %v2455
    %v3697 = vunpack.c.l.b16 %v2456
    %v3698 = vunpack.c.h.b16 %v2456
    %v3699 = vunpack.c.l.b16 %v2457
    %v3700 = vunpack.c.h.b16 %v2457
    %v3701 = vunpack.c.l.b16 %v2458
    %v3702 = vunpack.c.h.b16 %v2458
    %v3703 = vunpack.c.l.b16 %v2459
    %v3704 = vunpack.c.h.b16 %v2459
    %v3705 = vunpack.c.l.b16 %v2460
    %v3706 = vunpack.c.h.b16 %v2460
    %v3707 = vunpack.c.l.b16 %v2461
    %v3708 = vunpack.c.h.b16 %v2461
    %v3709 = vunpack.c.l.b16 %v2462
    %v3710 = vunpack.c.h.b16 %v2462
    %v3711 = vunpack.c.l.b16 %v2463
    %v3712 = vunpack.c.h.b16 %v2463
    %v3713 = vunpack.c.l.b16 %v2464
    %v3714 = vunpack.c.h.b16 %v2464
    %v3715 = vunpack.c.l.b16 %v2465
    %v3716 = vunpack.c.h.b16 %v2465
    %v3717 = vunpack.c.l.b16 %v2466
    %v3718 = vunpack.c.h.b16 %v2466
    %v3719 = vunpack.c.l.b16 %v2467
    %v3720 = vunpack.c.h.b16 %v2467
    %v3721 = vunpack.c.l.b16 %v2468
    %v3722 = vunpack.c.h.b16 %v2468
    %v3723 = vunpack.c.l.b16 %v2469
    %v3724 = vunpack.c.h.b16 %v2469
    %v3725 = vunpack.c.l.b16 %v2470
    %v3726 = vunpack.c.h.b16 %v2470
    %v3727 = vunpack.c.l.b16 %v2471
    %v3728 = vunpack.c.h.b16 %v2471
    %v3729 = vunpack.c.l.b16 %v2472
    %v3730 = vunpack.c.h.b16 %v2472
    %v3731 = vunpack.c.l.b16 %v2473
    %v3732 = vunpack.c.h.b16 %v2473
    %v3733 = vunpack.c.l.b16 %v2474
    %v3734 = vunpack.c.h.b16 %v2474
    %v3735 = vunpack.c.l.b16 %v2475
    %v3736 = vunpack.c.h.b16 %v2475
    %v3737 = vunpack.c.l.b16 %v2476
    %v3738 = vunpack.c.h.b16 %v2476
    %v3739 = vunpack.c.l.b16 %v2477
    %v3740 = vunpack.c.h.b16 %v2477
    %v3741 = vunpack.c.l.b16 %v2478
    %v3742 = vunpack.c.h.b16 %v2478
    %v3743 = vunpack.c.l.b16 %v2479
    %v3744 = vunpack.c.h.b16 %v2479
    %v3745 = vunpack.c.l.b16 %v2480
    %v3746 = vunpack.c.h.b16 %v2480
    %v3747 = vunpack.c.l.b16 %v2481
    %v3748 = vunpack.c.h.b16 %v2481
    %v3749 = vunpack.c.l.b16 %v2482
    %v3750 = vunpack.c.h.b16 %v2482
    %v3751 = vunpack.c.l.b16 %v2483
    %v3752 = vunpack.c.h.b16 %v2483
    %v3753 = vunpack.c.l.b16 %v2484
    %v3754 = vunpack.c.h.b16 %v2484
    %v3755 = vunpack.c.l.b16 %v2485
    %v3756 = vunpack.c.h.b16 %v2485
    %v3757 = vunpack.c.l.b16 %v2486
    %v3758 = vunpack.c.h.b16 %v2486
    %v3759 = vunpack.c.l.b16 %v2487
    %v3760 = vunpack.c.h.b16 %v2487
    %v3761 = vunpack.c.l.b16 %v2488
    %v3762 = vunpack.c.h.b16 %v2488
    %v3763 = vunpack.c.l.b16 %v2489
    %v3764 = vunpack.c.h.b16 %v2489
    %v3765 = vunpack.c.l.b16 %v2490
    %v3766 = vunpack.c.h.b16 %v2490
    %v3767 = vunpack.c.l.b16 %v2491
    %v3768 = vunpack.c.h.b16 %v2491
    %v3769 = vunpack.c.l.b16 %v2492
    %v3770 = vunpack.c.h.b16 %v2492
    %v3771 = vunpack.c.l.b16 %v2493
    %v3772 = vunpack.c.h.b16 %v2493
    %v3773 = vunpack.c.l.b16 %v2494
    %v3774 = vunpack.c.h.b16 %v2494
    %v3775 = vunpack.c.l.b16 %v2495
    %v3776 = vunpack.c.h.b16 %v2495
    %v3777 = vunpack.c.l.b16 %v2496
    %v3778 = vunpack.c.h.b16 %v2496
    %v3779 = vunpack.c.l.b16 %v2497
    %v3780 = vunpack.c.h.b16 %v2497
    %v3781 = vunpack.c.l.b16 %v2498
    %v3782 = vunpack.c.h.b16 %v2498
    %v3783 = vunpack.c.l.b16 %v2499
    %v3784 = vunpack.c.h.b16 %v2499
    %v3785 = vunpack.c.l.b16 %v2500
    %v3786 = vunpack.c.h.b16 %v2500
    %v3787 = vunpack.c.l.b16 %v2501
    %v3788 = vunpack.c.h.b16 %v2501
    %v3789 = vunpack.c.l.b16 %v2502
    %v3790 = vunpack.c.h.b16 %v2502
    %v3791 = vunpack.c.l.b16 %v2503
    %v3792 = vunpack.c.h.b16 %v2503
    %v3793 = vunpack.c.l.b16 %v2504
    %v3794 = vunpack.c.h.b16 %v2504
    %v3795 = vunpack.c.l.b16 %v2505
    %v3796 = vunpack.c.h.b16 %v2505
    %v3797 = vunpack.c.l.b16 %v2506
    %v3798 = vunpack.c.h.b16 %v2506
    %v3799 = vunpack.c.l.b16 %v2507
    %v3800 = vunpack.c.h.b16 %v2507
    %v3801 = vunpack.c.l.b16 %v2508
    %v3802 = vunpack.c.h.b16 %v2508
    %v3803 = vunpack.c.l.b16 %v2509
    %v3804 = vunpack.c.h.b16 %v2509
    %v3805 = vunpack.c.l.b16 %v2510
    %v3806 = vunpack.c.h.b16 %v2510
    %v3807 = vunpack.c.l.b16 %v2511
    %v3808 = vunpack.c.h.b16 %v2511
    %v3809 = vunpack.c.l.b16 %v2512
    %v3810 = vunpack.c.h.b16 %v2512
    %v3811 = vunpack.c.l.b16 %v2513
    %v3812 = vunpack.c.h.b16 %v2513
    %v3813 = vunpack.c.l.b16 %v2514
    %v3814 = vunpack.c.h.b16 %v2514
    %v3815 = vunpack.c.l.b16 %v2515
    %v3816 = vunpack.c.h.b16 %v2515
    %v3817 = vunpack.c.l.b16 %v2516
    %v3818 = vunpack.c.h.b16 %v2516
    %v3819 = vunpack.c.l.b16 %v2517
    %v3820 = vunpack.c.h.b16 %v2517
    %v3821 = vunpack.c.l.b16 %v2518
    %v3822 = vunpack.c.h.b16 %v2518
    %v3823 = vunpack.c.l.b16 %v2519
    %v3824 = vunpack.c.h.b16 %v2519
    %v3825 = vunpack.c.l.b16 %v2520
    %v3826 = vunpack.c.h.b16 %v2520
    %v3827 = vunpack.c.l.b16 %v2521
    %v3828 = vunpack.c.h.b16 %v2521
    %v3829 = vunpack.c.l.b16 %v2522
    %v3830 = vunpack.c.h.b16 %v2522
    %v3831 = vunpack.c.l.b16 %v2523
    %v3832 = vunpack.c.h.b16 %v2523
    %v3833 = vunpack.c.l.b16 %v2524
    %v3834 = vunpack.c.h.b16 %v2524
    %v3835 = vunpack.c.l.b16 %v2525
    %v3836 = vunpack.c.h.b16 %v2525
    %v3837 = vunpack.c.l.b16 %v2526
    %v3838 = vunpack.c.h.b16 %v2526
    %v3839 = vunpack.c.l.b16 %v2527
    %v3840 = vunpack.c.h.b16 %v2527
    %v3841 = vunpack.c.l.b16 %v2528
    %v3842 = vunpack.c.h.b16 %v2528
    %v3843 = vunpack.c.l.b16 %v2529
    %v3844 = vunpack.c.h.b16 %v2529
    %v3845 = vunpack.c.l.b16 %v2530
    %v3846 = vunpack.c.h.b16 %v2530
    %v3847 = vunpack.c.l.b16 %v2531
    %v3848 = vunpack.c.h.b16 %v2531
    %v3849 = vunpack.c.l.b16 %v2532
    %v3850 = vunpack.c.h.b16 %v2532
    %v3851 = vunpack.c.l.b16 %v2533
    %v3852 = vunpack.c.h.b16 %v2533
    %v3853 = vunpack.c.l.b16 %v2534
    %v3854 = vunpack.c.h.b16 %v2534
    %v3855 = vunpack.c.l.b16 %v2535
    %v3856 = vunpack.c.h.b16 %v2535
    %v3857 = vunpack.c.l.b16 %v2536
    %v3858 = vunpack.c.h.b16 %v2536
    %v3859 = vunpack.c.l.b16 %v2537
    %v3860 = vunpack.c.h.b16 %v2537
    %v3861 = vunpack.c.l.b16 %v2538
    %v3862 = vunpack.c.h.b16 %v2538
    %v3863 = vunpack.c.l.b16 %v2539
    %v3864 = vunpack.c.h.b16 %v2539
    %v3865 = vunpack.c.l.b16 %v2540
    %v3866 = vunpack.c.h.b16 %v2540
    %v3867 = vunpack.c.l.b16 %v2541
    %v3868 = vunpack.c.h.b16 %v2541
    %v3869 = vunpack.c.l.b16 %v2542
    %v3870 = vunpack.c.h.b16 %v2542
    %v3871 = vunpack.c.l.b16 %v2543
    %v3872 = vunpack.c.h.b16 %v2543
    %v3873 = vunpack.c.l.b16 %v2544
    %v3874 = vunpack.c.h.b16 %v2544
    %v3875 = vunpack.c.l.b16 %v2545
    %v3876 = vunpack.c.h.b16 %v2545
    %v3877 = vunpack.c.l.b16 %v2546
    %v3878 = vunpack.c.h.b16 %v2546
    %v3879 = vunpack.c.l.b16 %v2547
    %v3880 = vunpack.c.h.b16 %v2547
    %v3881 = vunpack.c.l.b16 %v2548
    %v3882 = vunpack.c.h.b16 %v2548
    %v3883 = vunpack.c.l.b16 %v2549
    %v3884 = vunpack.c.h.b16 %v2549
    %v3885 = vunpack.c.l.b16 %v2550
    %v3886 = vunpack.c.h.b16 %v2550
    %v3887 = vunpack.c.l.b16 %v2551
    %v3888 = vunpack.c.h.b16 %v2551
    %v3889 = vunpack.c.l.b16 %v2552
    %v3890 = vunpack.c.h.b16 %v2552
    %v3891 = vunpack.c.l.b16 %v2553
    %v3892 = vunpack.c.h.b16 %v2553
    %v3893 = vunpack.c.l.b16 %v2554
    %v3894 = vunpack.c.h.b16 %v2554
    %v3895 = vunpack.c.l.b16 %v2555
    %v3896 = vunpack.c.h.b16 %v2555
    %v3897 = vunpack.c.l.b16 %v2556
    %v3898 = vunpack.c.h.b16 %v2556
    %v3899 = vunpack.c.l.b16 %v2557
    %v3900 = vunpack.c.h.b16 %v2557
    %v3901 = vunpack.c.l.b16 %v2558
    %v3902 = vunpack.c.h.b16 %v2558
    %v3903 = vunpack.c.l.b16 %v2559
    %v3904 = vunpack.c.h.b16 %v2559
    %v3905 = vunpack.c.l.b16 %v2560
    %v3906 = vunpack.c.h.b16 %v2560
    %v3907 = vunpack.c.l.b16 %v2561
    %v3908 = vunpack.c.h.b16 %v2561
    %v3909 = vunpack.c.l.b16 %v2562
    %v3910 = vunpack.c.h.b16 %v2562
    %v3911 = vunpack.c.l.b16 %v2563
    %v3912 = vunpack.c.h.b16 %v2563
    %v3913 = vunpack.c.l.b16 %v2564
    %v3914 = vunpack.c.h.b16 %v2564
    %v3915 = vunpack.c.l.b16 %v2565
    %v3916 = vunpack.c.h.b16 %v2565
    %v3917 = vunpack.c.l.b16 %v2566
    %v3918 = vunpack.c.h.b16 %v2566
    %v3919 = vunpack.c.l.b16 %v2567
    %v3920 = vunpack.c.h.b16 %v2567
    %v3921 = vunpack.c.l.b16 %v2568
    %v3922 = vunpack.c.h.b16 %v2568
    %v3923 = vunpack.c.l.b16 %v2569
    %v3924 = vunpack.c.h.b16 %v2569
    %v3925 = vunpack.c.l.b16 %v2570
    %v3926 = vunpack.c.h.b16 %v2570
    %v3927 = vunpack.c.l.b16 %v2571
    %v3928 = vunpack.c.h.b16 %v2571
    %v3929 = vunpack.c.l.b16 %v2572
    %v3930 = vunpack.c.h.b16 %v2572
    %v3931 = vunpack.c.l.b16 %v2573
    %v3932 = vunpack.c.h.b16 %v2573
    %v3933 = vunpack.c.l.b16 %v2574
    %v3934 = vunpack.c.h.b16 %v2574
    %v3935 = vunpack.c.l.b16 %v2575
    %v3936 = vunpack.c.h.b16 %v2575
    %v3937 = vunpack.c.l.b16 %v2576
    %v3938 = vunpack.c.h.b16 %v2576
    %v3939 = vunpack.c.l.b16 %v2577
    %v3940 = vunpack.c.h.b16 %v2577
    %v3941 = vunpack.c.l.b16 %v2578
    %v3942 = vunpack.c.h.b16 %v2578
    %v3943 = vunpack.c.l.b16 %v2579
    %v3944 = vunpack.c.h.b16 %v2579
    %v3945 = vunpack.c.l.b16 %v2580
    %v3946 = vunpack.c.h.b16 %v2580
    %v3947 = vunpack.c.l.b16 %v2581
    %v3948 = vunpack.c.h.b16 %v2581
    %v3949 = vunpack.c.l.b16 %v2582
    %v3950 = vunpack.c.h.b16 %v2582
    %v3951 = vunpack.c.l.b16 %v2583
    %v3952 = vunpack.c.h.b16 %v2583
    %v3953 = vunpack.c.l.b16 %v2584
    %v3954 = vunpack.c.h.b16 %v2584
    %v3955 = vunpack.c.l.b16 %v2585
    %v3956 = vunpack.c.h.b16 %v2585
    %v3957 = vunpack.c.l.b16 %v2586
    %v3958 = vunpack.c.h.b16 %v2586
    %v3959 = vunpack.c.l.b16 %v2587
    %v3960 = vunpack.c.h.b16 %v2587
    %v3961 = vunpack.c.l.b16 %v2588
    %v3962 = vunpack.c.h.b16 %v2588
    %v3963 = vunpack.c.l.b16 %v2589
    %v3964 = vunpack.c.h.b16 %v2589
    %v3965 = vunpack.c.l.b16 %v2590
    %v3966 = vunpack.c.h.b16 %v2590
    %v3967 = vunpack.c.l.b16 %v2591
    %v3968 = vunpack.c.h.b16 %v2591
    %v3969 = vunpack.c.l.b16 %v2592
    %v3970 = vunpack.c.h.b16 %v2592
    %v3971 = vunpack.c.l.b16 %v2593
    %v3972 = vunpack.c.h.b16 %v2593
    %v3973 = vunpack.c.l.b16 %v2594
    %v3974 = vunpack.c.h.b16 %v2594
    %v3975 = vunpack.c.l.b16 %v2595
    %v3976 = vunpack.c.h.b16 %v2595
    %v3977 = vunpack.c.l.b16 %v2596
    %v3978 = vunpack.c.h.b16 %v2596
    %v3979 = vunpack.c.l.b16 %v2597
    %v3980 = vunpack.c.h.b16 %v2597
    %v3981 = vunpack.c.l.b16 %v2598
    %v3982 = vunpack.c.h.b16 %v2598
    %v3983 = vunpack.c.l.b16 %v2599
    %v3984 = vunpack.c.h.b16 %v2599
    %v3985 = vunpack.c.l.b16 %v2600
    %v3986 = vunpack.c.h.b16 %v2600
    %v3987 = vunpack.c.l.b16 %v2601
    %v3988 = vunpack.c.h.b16 %v2601
    %v3989 = vunpack.c.l.b16 %v2602
    %v3990 = vunpack.c.h.b16 %v2602
    %v3991 = vunpack.c.l.b16 %v2603
    %v3992 = vunpack.c.h.b16 %v2603
    %v3993 = vunpack.c.l.b16 %v2604
    %v3994 = vunpack.c.h.b16 %v2604
    %v3995 = vunpack.c.l.b16 %v2605
    %v3996 = vunpack.c.h.b16 %v2605
    %v3997 = vunpack.c.l.b16 %v2606
    %v3998 = vunpack.c.h.b16 %v2606
    %v3999 = vunpack.c.l.b16 %v2607
    %v4000 = vunpack.c.h.b16 %v2607
    %v4001 = vunpack.c.l.b16 %v2608
    %v4002 = vunpack.c.h.b16 %v2608
    %v4003 = vunpack.c.l.b16 %v2609
    %v4004 = vunpack.c.h.b16 %v2609
    %v4005 = vunpack.c.l.b16 %v2610
    %v4006 = vunpack.c.h.b16 %v2610
    %v4007 = vunpack.c.l.b16 %v2611
    %v4008 = vunpack.c.h.b16 %v2611
    %v4009 = vunpack.c.l.b16 %v2612
    %v4010 = vunpack.c.h.b16 %v2612
    %v4011 = vunpack.c.l.b16 %v2613
    %v4012 = vunpack.c.h.b16 %v2613
    %v4013 = vunpack.c.l.b16 %v2614
    %v4014 = vunpack.c.h.b16 %v2614
    %v4015 = vunpack.c.l.b16 %v2615
    %v4016 = vunpack.c.h.b16 %v2615
    %v4017 = vunpack.c.l.b16 %v2616
    %v4018 = vunpack.c.h.b16 %v2616
    %v4019 = vunpack.c.l.b16 %v2617
    %v4020 = vunpack.c.h.b16 %v2617
    %v4021 = vunpack.c.l.b16 %v2618
    %v4022 = vunpack.c.h.b16 %v2618
    %v4023 = vunpack.c.l.b16 %v2619
    %v4024 = vunpack.c.h.b16 %v2619
    %v4025 = vunpack.c.l.b16 %v2620
    %v4026 = vunpack.c.h.b16 %v2620
    %v4027 = vunpack.c.l.b16 %v2621
    %v4028 = vunpack.c.h.b16 %v2621
    %v4029 = vunpack.c.l.b16 %v2622
    %v4030 = vunpack.c.h.b16 %v2622
    %v4031 = vunpack.c.l.b16 %v2623
    %v4032 = vunpack.c.h.b16 %v2623
    %v4033 = vunpack.c.l.b16 %v2624
    %v4034 = vunpack.c.h.b16 %v2624
    %v4035 = vunpack.c.l.b16 %v2625
    %v4036 = vunpack.c.h.b16 %v2625
    %v4037 = vunpack.c.l.b16 %v2626
    %v4038 = vunpack.c.h.b16 %v2626
    %v4039 = vunpack.c.l.b16 %v2627
    %v4040 = vunpack.c.h.b16 %v2627
    %v4041 = vunpack.c.l.b16 %v2628
    %v4042 = vunpack.c.h.b16 %v2628
    %v4043 = vunpack.c.l.b16 %v2629
    %v4044 = vunpack.c.h.b16 %v2629
    %v4045 = vunpack.c.l.b16 %v2630
    %v4046 = vunpack.c.h.b16 %v2630
    %v4047 = vunpack.c.l.b16 %v2631
    %v4048 = vunpack.c.h.b16 %v2631
    %v4049 = vunpack.c.l.b16 %v2632
    %v4050 = vunpack.c.h.b16 %v2632
    %v4051 = vunpack.c.l.b16 %v2633
    %v4052 = vunpack.c.h.b16 %v2633
    %v4053 = vunpack.c.l.b16 %v2634
    %v4054 = vunpack.c.h.b16 %v2634
    %v4055 = vunpack.c.l.b16 %v2635
    %v4056 = vunpack.c.h.b16 %v2635
    %v4057 = vunpack.c.l.b16 %v2636
    %v4058 = vunpack.c.h.b16 %v2636
    %v4059 = vunpack.c.l.b16 %v2637
    %v4060 = vunpack.c.h.b16 %v2637
    %v4061 = vunpack.c.l.b16 %v2638
    %v4062 = vunpack.c.h.b16 %v2638
    %v4063 = vunpack.c.l.b16 %v2639
    %v4064 = vunpack.c.h.b16 %v2639
    %v4065 = vunpack.c.l.b16 %v2640
    %v4066 = vunpack.c.h.b16 %v2640
    %v4067 = vunpack.c.l.b16 %v2641
    %v4068 = vunpack.c.h.b16 %v2641
    %v4069 = vunpack.c.l.b16 %v2642
    %v4070 = vunpack.c.h.b16 %v2642
    %v4071 = vunpack.c.l.b16 %v2643
    %v4072 = vunpack.c.h.b16 %v2643
    %v4073 = vunpack.c.l.b16 %v2644
    %v4074 = vunpack.c.h.b16 %v2644
    %v4075 = vunpack.c.l.b16 %v2645
    %v4076 = vunpack.c.h.b16 %v2645
    %v4077 = vunpack.c.l.b16 %v2646
    %v4078 = vunpack.c.h.b16 %v2646
    %v4079 = vunpack.c.l.b16 %v2647
    %v4080 = vunpack.c.h.b16 %v2647
    %v4081 = vunpack.c.l.b16 %v2648
    %v4082 = vunpack.c.h.b16 %v2648
    %v4083 = vunpack.c.l.b16 %v2649
    %v4084 = vunpack.c.h.b16 %v2649
    %v4085 = vunpack.c.l.b16 %v2650
    %v4086 = vunpack.c.h.b16 %v2650
    %v4087 = vunpack.c.l.b16 %v2651
    %v4088 = vunpack.c.h.b16 %v2651
    %v4089 = vunpack.c.l.b16 %v2652
    %v4090 = vunpack.c.h.b16 %v2652
    %v4091 = vunpack.c.l.b16 %v2653
    %v4092 = vunpack.c.h.b16 %v2653
    %v4093 = vunpack.c.l.b16 %v2654
    %v4094 = vunpack.c.h.b16 %v2654
    %v4095 = vunpack.c.l.b16 %v2655
    %v4096 = vunpack.c.h.b16 %v2655
    %v4097 = vunpack.c.l.b16 %v2656
    %v4098 = vunpack.c.h.b16 %v2656
    %v4099 = vunpack.c.l.b16 %v2657
    %v4100 = vunpack.c.h.b16 %v2657
    %v4101 = vunpack.c.l.b16 %v2658
    %v4102 = vunpack.c.h.b16 %v2658
    %v4103 = vunpack.c.l.b16 %v2659
    %v4104 = vunpack.c.h.b16 %v2659
    %v4105 = vunpack.c.l.b16 %v2660
    %v4106 = vunpack.c.h.b16 %v2660
    %v4107 = vunpack.c.l.b16 %v2661
    %v4108 = vunpack.c.h.b16 %v2661
    %v4109 = vunpack.c.l.b16 %v2662
    %v4110 = vunpack.c.h.b16 %v2662
    %v4111 = vunpack.c.l.b16 %v2663
    %v4112 = vunpack.c.h.b16 %v2663
    %v4113 = vunpack.c.l.b16 %v2664
    %v4114 = vunpack.c.h.b16 %v2664
    %v4115 = vunpack.c.l.b16 %v2665
    %v4116 = vunpack.c.h.b16 %v2665
    %v4117 = vunpack.c.l.b16 %v2666
    %v4118 = vunpack.c.h.b16 %v2666
    %v4119 = vunpack.c.l.b16 %v2667
    %v4120 = vunpack.c.h.b16 %v2667
    %v4121 = vunpack.c.l.b16 %v2668
    %v4122 = vunpack.c.h.b16 %v2668
    %v4123 = vunpack.c.l.b16 %v2669
    %v4124 = vunpack.c.h.b16 %v2669
    %v4125 = vunpack.c.l.b16 %v2670
    %v4126 = vunpack.c.h.b16 %v2670
    %v4127 = vunpack.c.l.b16 %v2671
    %v4128 = vunpack.c.h.b16 %v2671
    %v4129 = vunpack.c.l.b16 %v2672
    %v4130 = vunpack.c.h.b16 %v2672
    %v4131 = vunpack.c.l.b16 %v2673
    %v4132 = vunpack.c.h.b16 %v2673
    %v4133 = vunpack.c.l.b16 %v2674
    %v4134 = vunpack.c.h.b16 %v2674
    %v4135 = vunpack.c.l.b16 %v2675
    %v4136 = vunpack.c.h.b16 %v2675
    %v4137 = vunpack.c.l.b16 %v2676
    %v4138 = vunpack.c.h.b16 %v2676
    %v4139 = vunpack.c.l.b16 %v2677
    %v4140 = vunpack.c.h.b16 %v2677
    %v4141 = vunpack.c.l.b16 %v2678
    %v4142 = vunpack.c.h.b16 %v2678
    %v4143 = vunpack.c.l.b16 %v2679
    %v4144 = vunpack.c.h.b16 %v2679
    %v4145 = vunpack.c.l.b16 %v2680
    %v4146 = vunpack.c.h.b16 %v2680
    %v4147 = vunpack.c.l.b16 %v2681
    %v4148 = vunpack.c.h.b16 %v2681
    %v4149 = vunpack.c.l.b16 %v2682
    %v4150 = vunpack.c.h.b16 %v2682
    %v4151 = vunpack.c.l.b16 %v2683
    %v4152 = vunpack.c.h.b16 %v2683
    %v4153 = vunpack.c.l.b16 %v2684
    %v4154 = vunpack.c.h.b16 %v2684
    %v4155 = vunpack.c.l.b16 %v2685
    %v4156 = vunpack.c.h.b16 %v2685
    %v4157 = vunpack.c.l.b16 %v2686
    %v4158 = vunpack.c.h.b16 %v2686
    %v4159 = vunpack.c.l.b16 %v2687
    %v4160 = vunpack.c.h.b16 %v2687
    %v4161 = vunpack.c.l.b16 %v2688
    %v4162 = vunpack.c.h.b16 %v2688
    %v4163 = vunpack.c.l.b16 %v2689
    %v4164 = vunpack.c.h.b16 %v2689
    %v4165 = vunpack.c.l.b16 %v2690
    %v4166 = vunpack.c.h.b16 %v2690
    %v4167 = vunpack.c.l.b16 %v2691
    %v4168 = vunpack.c.h.b16 %v2691
    %v4169 = vunpack.c.l.b16 %v2692
    %v4170 = vunpack.c.h.b16 %v2692
    %v4171 = vunpack.c.l.b16 %v2693
    %v4172 = vunpack.c.h.b16 %v2693
    %v4173 = vunpack.c.l.b16 %v2694
    %v4174 = vunpack.c.h.b16 %v2694
    %v4175 = vunpack.c.l.b16 %v2695
    %v4176 = vunpack.c.h.b16 %v2695
    %v4177 = vunpack.c.l.b16 %v2696
    %v4178 = vunpack.c.h.b16 %v2696
    %v4179 = vunpack.c.l.b16 %v2697
    %v4180 = vunpack.c.h.b16 %v2697
    %v4181 = vunpack.c.l.b16 %v2698
    %v4182 = vunpack.c.h.b16 %v2698
    %v4183 = vunpack.c.l.b16 %v2699
    %v4184 = vunpack.c.h.b16 %v2699
    %v4185 = vunpack.c.l.b16 %v2700
    %v4186 = vunpack.c.h.b16 %v2700
    %v4187 = vunpack.c.l.b16 %v2701
    %v4188 = vunpack.c.h.b16 %v2701
    %v4189 = vunpack.c.l.b16 %v2702
    %v4190 = vunpack.c.h.b16 %v2702
    %v4191 = vunpack.c.l.b16 %v2703
    %v4192 = vunpack.c.h.b16 %v2703
    %v4193 = vunpack.c.l.b16 %v2704
    %v4194 = vunpack.c.h.b16 %v2704
    %v4195 = vunpack.c.l.b16 %v2705
    %v4196 = vunpack.c.h.b16 %v2705
    %v4197 = vunpack.c.l.b16 %v2706
    %v4198 = vunpack.c.h.b16 %v2706
    %v4199 = vunpack.c.l.b16 %v2707
    %v4200 = vunpack.c.h.b16 %v2707
    %v4201 = vunpack.c.l.b16 %v2708
    %v4202 = vunpack.c.h.b16 %v2708
    %v4203 = vunpack.c.l.b16 %v2709
    %v4204 = vunpack.c.h.b16 %v2709
    %v4205 = vunpack.c.l.b16 %v2710
    %v4206 = vunpack.c.h.b16 %v2710
    %v4207 = vunpack.c.l.b16 %v2711
    %v4208 = vunpack.c.h.b16 %v2711
    %v4209 = vunpack.c.l.b16 %v2712
    %v4210 = vunpack.c.h.b16 %v2712
    %v4211 = vunpack.c.l.b16 %v2713
    %v4212 = vunpack.c.h.b16 %v2713
    %v4213 = vunpack.c.l.b16 %v2714
    %v4214 = vunpack.c.h.b16 %v2714
    %v4215 = vunpack.c.l.b16 %v2715
    %v4216 = vunpack.c.h.b16 %v2715
    %v4217 = vunpack.c.l.b16 %v2716
    %v4218 = vunpack.c.h.b16 %v2716
    %v4219 = vunpack.c.l.b16 %v2717
    %v4220 = vunpack.c.h.b16 %v2717
    %v4221 = vunpack.c.l.b16 %v2718
    %v4222 = vunpack.c.h.b16 %v2718
    %v4223 = vunpack.c.l.b16 %v2719
    %v4224 = vunpack.c.h.b16 %v2719
    %v4225 = vunpack.c.l.b16 %v2720
    %v4226 = vunpack.c.h.b16 %v2720
    %v4227 = vunpack.c.l.b16 %v2721
    %v4228 = vunpack.c.h.b16 %v2721
    %v4229 = vunpack.c.l.b16 %v2722
    %v4230 = vunpack.c.h.b16 %v2722
    %v4231 = vunpack.c.l.b16 %v2723
    %v4232 = vunpack.c.h.b16 %v2723
    %v4233 = vunpack.c.l.b16 %v2724
    %v4234 = vunpack.c.h.b16 %v2724
    %v4235 = vunpack.c.l.b16 %v2725
    %v4236 = vunpack.c.h.b16 %v2725
    %v4237 = vunpack.c.l.b16 %v2726
    %v4238 = vunpack.c.h.b16 %v2726
    %v4239 = vunpack.c.l.b16 %v2727
    %v4240 = vunpack.c.h.b16 %v2727
    %v4241 = vunpack.c.l.b16 %v2728
    %v4242 = vunpack.c.h.b16 %v2728
    %v4243 = vunpack.c.l.b16 %v2729
    %v4244 = vunpack.c.h.b16 %v2729
    %v4245 = vunpack.c.l.b16 %v2730
    %v4246 = vunpack.c.h.b16 %v2730
    %v4247 = vunpack.c.l.b16 %v2731
    %v4248 = vunpack.c.h.b16 %v2731
    %v4249 = vunpack.c.l.b16 %v2732
    %v4250 = vunpack.c.h.b16 %v2732
    %v4251 = vunpack.c.l.b16 %v2733
    %v4252 = vunpack.c.h.b16 %v2733
    %v4253 = vunpack.c.l.b16 %v2734
    %v4254 = vunpack.c.h.b16 %v2734
    %v4255 = vunpack.c.l.b16 %v2735
    %v4256 = vunpack.c.h.b16 %v2735
    %v4257 = vunpack.c.l.b16 %v2736
    %v4258 = vunpack.c.h.b16 %v2736
    %v4259 = vunpack.c.l.b16 %v2737
    %v4260 = vunpack.c.h.b16 %v2737
    %v4261 = vunpack.c.l.b16 %v2738
    %v4262 = vunpack.c.h.b16 %v2738
    %v4263 = vunpack.c.l.b16 %v2739
    %v4264 = vunpack.c.h.b16 %v2739
    %v4265 = vunpack.c.l.b16 %v2740
    %v4266 = vunpack.c.h.b16 %v2740
    %v4267 = vunpack.c.l.b16 %v2741
    %v4268 = vunpack.c.h.b16 %v2741
    %v4269 = vunpack.c.l.b16 %v2742
    %v4270 = vunpack.c.h.b16 %v2742
    %v4271 = vunpack.c.l.b16 %v2743
    %v4272 = vunpack.c.h.b16 %v2743
    %v4273 = vunpack.c.l.b16 %v2744
    %v4274 = vunpack.c.h.b16 %v2744
    %v4275 = vunpack.c.l.b16 %v2745
    %v4276 = vunpack.c.h.b16 %v2745
    %v4277 = vunpack.c.l.b16 %v2746
    %v4278 = vunpack.c.h.b16 %v2746
    %v4279 = vunpack.c.l.b16 %v2747
    %v4280 = vunpack.c.h.b16 %v2747
    %v4281 = vunpack.c.l.b16 %v2748
    %v4282 = vunpack.c.h.b16 %v2748
    %v4283 = vunpack.c.l.b16 %v2749
    %v4284 = vunpack.c.h.b16 %v2749
    %v4285 = vunpack.c.l.b16 %v2750
    %v4286 = vunpack.c.h.b16 %v2750
    %v4287 = vunpack.c.l.b16 %v2751
    %v4288 = vunpack.c.h.b16 %v2751
    %v4289 = vunpack.c.l.b16 %v2752
    %v4290 = vunpack.c.h.b16 %v2752
    %v4291 = vunpack.c.l.b16 %v2753
    %v4292 = vunpack.c.h.b16 %v2753
    %v4293 = vunpack.c.l.b16 %v2754
    %v4294 = vunpack.c.h.b16 %v2754
    %v4295 = vunpack.c.l.b16 %v2755
    %v4296 = vunpack.c.h.b16 %v2755
    %v4297 = vunpack.c.l.b16 %v2756
    %v4298 = vunpack.c.h.b16 %v2756
    %v4299 = vunpack.c.l.b16 %v2757
    %v4300 = vunpack.c.h.b16 %v2757
    %v4301 = vunpack.c.l.b16 %v2758
    %v4302 = vunpack.c.h.b16 %v2758
    %v4303 = vunpack.c.l.b16 %v2759
    %v4304 = vunpack.c.h.b16 %v2759
    %v4305 = vunpack.c.l.b16 %v2760
    %v4306 = vunpack.c.h.b16 %v2760
    %v4307 = vunpack.c.l.b16 %v2761
    %v4308 = vunpack.c.h.b16 %v2761
    %v4309 = vunpack.c.l.b16 %v2762
    %v4310 = vunpack.c.h.b16 %v2762
    %v4311 = vunpack.c.l.b16 %v2763
    %v4312 = vunpack.c.h.b16 %v2763
    %v4313 = vunpack.c.l.b16 %v2764
    %v4314 = vunpack.c.h.b16 %v2764
    %v4315 = vunpack.c.l.b16 %v2765
    %v4316 = vunpack.c.h.b16 %v2765
    %v4317 = vunpack.c.l.b16 %v2766
    %v4318 = vunpack.c.h.b16 %v2766
    %v4319 = vunpack.c.l.b16 %v2767
    %v4320 = vunpack.c.h.b16 %v2767
    %v4321 = vunpack.c.l.b16 %v2768
    %v4322 = vunpack.c.h.b16 %v2768
    %v4323 = vunpack.c.l.b16 %v2769
    %v4324 = vunpack.c.h.b16 %v2769
    %v4325 = vunpack.c.l.b16 %v2770
    %v4326 = vunpack.c.h.b16 %v2770
    %v4327 = vunpack.c.l.b16 %v2771
    %v4328 = vunpack.c.h.b16 %v2771
    %v4329 = vunpack.c.l.b16 %v2772
    %v4330 = vunpack.c.h.b16 %v2772
    %v4331 = vunpack.c.l.b16 %v2773
    %v4332 = vunpack.c.h.b16 %v2773
    %v4333 = vunpack.c.l.b16 %v2774
    %v4334 = vunpack.c.h.b16 %v2774
    %v4335 = vunpack.c.l.b16 %v2775
    %v4336 = vunpack.c.h.b16 %v2775
    %v4337 = vunpack.c.l.b16 %v2776
    %v4338 = vunpack.c.h.b16 %v2776
    %v4339 = vunpack.c.l.b16 %v2777
    %v4340 = vunpack.c.h.b16 %v2777
    %v4341 = vunpack.c.l.b16 %v2778
    %v4342 = vunpack.c.h.b16 %v2778
    %v4343 = vunpack.c.l.b16 %v2779
    %v4344 = vunpack.c.h.b16 %v2779
    %v4345 = vunpack.c.l.b16 %v2780
    %v4346 = vunpack.c.h.b16 %v2780
    %v4347 = vunpack.c.l.b16 %v2781
    %v4348 = vunpack.c.h.b16 %v2781
    %v4349 = vunpack.c.l.b16 %v2782
    %v4350 = vunpack.c.h.b16 %v2782
    %v4351 = vunpack.c.l.b16 %v2783
    %v4352 = vunpack.c.h.b16 %v2783
    %v4353 = vunpack.c.l.b16 %v2784
    %v4354 = vunpack.c.h.b16 %v2784
    %v4355 = vunpack.c.l.b16 %v2785
    %v4356 = vunpack.c.h.b16 %v2785
    %v4357 = vunpack.c.l.b16 %v2786
    %v4358 = vunpack.c.h.b16 %v2786
    %v4359 = vunpack.c.l.b16 %v2787
    %v4360 = vunpack.c.h.b16 %v2787
    %v4361 = vunpack.c.l.b16 %v2788
    %v4362 = vunpack.c.h.b16 %v2788
    %v4363 = vunpack.c.l.b16 %v2789
    %v4364 = vunpack.c.h.b16 %v2789
    %v4365 = vunpack.c.l.b16 %v2790
    %v4366 = vunpack.c.h.b16 %v2790
    %v4367 = vunpack.c.l.b16 %v2791
    %v4368 = vunpack.c.h.b16 %v2791
    %v4369 = vunpack.c.l.b16 %v2792
    %v4370 = vunpack.c.h.b16 %v2792
    %v4371 = vunpack.c.l.b16 %v2793
    %v4372 = vunpack.c.h.b16 %v2793
    %v4373 = vunpack.c.l.b16 %v2794
    %v4374 = vunpack.c.h.b16 %v2794
    %v4375 = vunpack.c.l.b16 %v2795
    %v4376 = vunpack.c.h.b16 %v2795
    %v4377 = vunpack.c.l.b16 %v2796
    %v4378 = vunpack.c.h.b16 %v2796
    %v4379 = vunpack.c.l.b16 %v2797
    %v4380 = vunpack.c.h.b16 %v2797
    %v4381 = vunpack.c.l.b16 %v2798
    %v4382 = vunpack.c.h.b16 %v2798
    %v4383 = vunpack.c.l.b16 %v2799
    %v4384 = vunpack.c.h.b16 %v2799
    %v4385 = vunpack.c.l.b16 %v2800
    %v4386 = vunpack.c.h.b16 %v2800
    %v4387 = vunpack.c.l.b16 %v2801
    %v4388 = vunpack.c.h.b16 %v2801
    %v4389 = vunpack.c.l.b16 %v2802
    %v4390 = vunpack.c.h.b16 %v2802
    %v4391 = vunpack.c.l.b16 %v2803
    %v4392 = vunpack.c.h.b16 %v2803
    %v4393 = vunpack.c.l.b16 %v2804
    %v4394 = vunpack.c.h.b16 %v2804
    %v4395 = vunpack.c.l.b16 %v2805
    %v4396 = vunpack.c.h.b16 %v2805
    %v4397 = vunpack.c.l.b16 %v2806
    %v4398 = vunpack.c.h.b16 %v2806
    %v4399 = vunpack.c.l.b16 %v2807
    %v4400 = vunpack.c.h.b16 %v2807
    %v4401 = vunpack.c.l.b16 %v2808
    %v4402 = vunpack.c.h.b16 %v2808
    %v4403 = vunpack.c.l.b16 %v2809
    %v4404 = vunpack.c.h.b16 %v2809
    %v4405 = vunpack.c.l.b16 %v2810
    %v4406 = vunpack.c.h.b16 %v2810
    %v4407 = vunpack.c.l.b16 %v2811
    %v4408 = vunpack.c.h.b16 %v2811
    %v4409 = vunpack.c.l.b16 %v2812
    %v4410 = vunpack.c.h.b16 %v2812
    %v4411 = vunpack.c.l.b16 %v2813
    %v4412 = vunpack.c.h.b16 %v2813
    %v4413 = vunpack.c.l.b16 %v2814
    %v4414 = vunpack.c.h.b16 %v2814
    %v4415 = vunpack.c.l.b16 %v2815
    %v4416 = vunpack.c.h.b16 %v2815
    %v4417 = vunpack.c.l.b16 %v2816
    %v4418 = vunpack.c.h.b16 %v2816
    %v4419 = vunpack.c.l.b16 %v2817
    %v4420 = vunpack.c.h.b16 %v2817
    %v4421 = vunpack.c.l.b16 %v2818
    %v4422 = vunpack.c.h.b16 %v2818
    %v4423 = vunpack.c.l.b16 %v2819
    %v4424 = vunpack.c.h.b16 %v2819
    %v4425 = vunpack.c.l.b16 %v2820
    %v4426 = vunpack.c.h.b16 %v2820
    %v4427 = vunpack.c.l.b16 %v2821
    %v4428 = vunpack.c.h.b16 %v2821
    %v4429 = vunpack.c.l.b16 %v2822
    %v4430 = vunpack.c.h.b16 %v2822
    %v4431 = vunpack.c.l.b16 %v2823
    %v4432 = vunpack.c.h.b16 %v2823
    %v4433 = vunpack.c.l.b16 %v2824
    %v4434 = vunpack.c.h.b16 %v2824
    %v4435 = vunpack.c.l.b16 %v2825
    %v4436 = vunpack.c.h.b16 %v2825
    %v4437 = vunpack.c.l.b16 %v2826
    %v4438 = vunpack.c.h.b16 %v2826
    %v4439 = vunpack.c.l.b16 %v2827
    %v4440 = vunpack.c.h.b16 %v2827
    %v4441 = vunpack.c.l.b16 %v2828
    %v4442 = vunpack.c.h.b16 %v2828
    %v4443 = vunpack.c.l.b16 %v2829
    %v4444 = vunpack.c.h.b16 %v2829
    %v4445 = vunpack.c.l.b16 %v2830
    %v4446 = vunpack.c.h.b16 %v2830
    %v4447 = vunpack.c.l.b16 %v2831
    %v4448 = vunpack.c.h.b16 %v2831
    %v4449 = vunpack.c.l.b16 %v2832
    %v4450 = vunpack.c.h.b16 %v2832
    %v4451 = vunpack.c.l.b16 %v2833
    %v4452 = vunpack.c.h.b16 %v2833
    %v4453 = vunpack.c.l.b16 %v2834
    %v4454 = vunpack.c.h.b16 %v2834
    %v4455 = vunpack.c.l.b16 %v2835
    %v4456 = vunpack.c.h.b16 %v2835
    %v4457 = vunpack.c.l.b16 %v2836
    %v4458 = vunpack.c.h.b16 %v2836
    %v4459 = vunpack.c.l.b16 %v2837
    %v4460 = vunpack.c.h.b16 %v2837
    %v4461 = vunpack.c.l.b16 %v2838
    %v4462 = vunpack.c.h.b16 %v2838
    %v4463 = vunpack.c.l.b16 %v2839
    %v4464 = vunpack.c.h.b16 %v2839
    %v4465 = vunpack.c.l.b16 %v2840
    %v4466 = vunpack.c.h.b16 %v2840
    %v4467 = vunpack.c.l.b16 %v2841
    %v4468 = vunpack.c.h.b16 %v2841
    %v4469 = vunpack.c.l.b16 %v2842
    %v4470 = vunpack.c.h.b16 %v2842
    %v4471 = vunpack.c.l.b16 %v2843
    %v4472 = vunpack.c.h.b16 %v2843
    %v4473 = vunpack.c.l.b16 %v2844
    %v4474 = vunpack.c.h.b16 %v2844
    %v4475 = vunpack.c.l.b16 %v2845
    %v4476 = vunpack.c.h.b16 %v2845
    %v4477 = vunpack.c.l.b16 %v2846
    %v4478 = vunpack.c.h.b16 %v2846
    %v4479 = vunpack.c.l.b16 %v2847
    %v4480 = vunpack.c.h.b16 %v2847
    %v4481 = vunpack.c.l.b16 %v2848
    %v4482 = vunpack.c.h.b16 %v2848
    %v4483 = vunpack.c.l.b16 %v2849
    %v4484 = vunpack.c.h.b16 %v2849
    %v4485 = vunpack.c.l.b16 %v2850
    %v4486 = vunpack.c.h.b16 %v2850
    %v4487 = vunpack.c.l.b16 %v2851
    %v4488 = vunpack.c.h.b16 %v2851
    %v4489 = vunpack.c.l.b16 %v2852
    %v4490 = vunpack.c.h.b16 %v2852
    %v4491 = vunpack.c.l.b16 %v2853
    %v4492 = vunpack.c.h.b16 %v2853
    %v4493 = vunpack.c.l.b16 %v2854
    %v4494 = vunpack.c.h.b16 %v2854
    %v4495 = vunpack.c.l.b16 %v2855
    %v4496 = vunpack.c.h.b16 %v2855
    %v4497 = vunpack.c.l.b16 %v2856
    %v4498 = vunpack.c.h.b16 %v2856
    %v4499 = vunpack.c.l.b16 %v2857
    %v4500 = vunpack.c.h.b16 %v2857
    %v4501 = vunpack.c.l.b16 %v2858
    %v4502 = vunpack.c.h.b16 %v2858
    %v4503 = vunpack.c.l.b16 %v2859
    %v4504 = vunpack.c.h.b16 %v2859
    %v4505 = vunpack.c.l.b16 %v2860
    %v4506 = vunpack.c.h.b16 %v2860
    %v4507 = vunpack.c.l.b16 %v2861
    %v4508 = vunpack.c.h.b16 %v2861
    %v4509 = vunpack.c.l.b16 %v2862
    %v4510 = vunpack.c.h.b16 %v2862
    %v4511 = vunpack.c.l.b16 %v2863
    %v4512 = vunpack.c.h.b16 %v2863
    %v4513 = vunpack.c.l.b16 %v2864
    %v4514 = vunpack.c.h.b16 %v2864
    %v4515 = vunpack.c.l.b16 %v2865
    %v4516 = vunpack.c.h.b16 %v2865
    %v4517 = vunpack.c.l.b16 %v2866
    %v4518 = vunpack.c.h.b16 %v2866
    %v4519 = vunpack.c.l.b16 %v2867
    %v4520 = vunpack.c.h.b16 %v2867
    %v4521 = vunpack.c.l.b16 %v2868
    %v4522 = vunpack.c.h.b16 %v2868
    %v4523 = vunpack.c.l.b16 %v2869
    %v4524 = vunpack.c.h.b16 %v2869
    %v4525 = vunpack.c.l.b16 %v2870
    %v4526 = vunpack.c.h.b16 %v2870
    %v4527 = vunpack.c.l.b16 %v2871
    %v4528 = vunpack.c.h.b16 %v2871
    %v4529 = vunpack.c.l.b16 %v2872
    %v4530 = vunpack.c.h.b16 %v2872
    %v4531 = vunpack.c.l.b16 %v2873
    %v4532 = vunpack.c.h.b16 %v2873
    %v4533 = vunpack.c.l.b16 %v2874
    %v4534 = vunpack.c.h.b16 %v2874
    %v4535 = vunpack.c.l.b16 %v2875
    %v4536 = vunpack.c.h.b16 %v2875
    %v4537 = vunpack.c.l.b16 %v2876
    %v4538 = vunpack.c.h.b16 %v2876
    %v4539 = vunpack.c.l.b16 %v2877
    %v4540 = vunpack.c.h.b16 %v2877
    %v4541 = vunpack.c.l.b16 %v2878
    %v4542 = vunpack.c.h.b16 %v2878
    %v4543 = vunpack.c.l.b16 %v2879
    %v4544 = vunpack.c.h.b16 %v2879
    %v4545 = vunpack.c.l.b16 %v2880
    %v4546 = vunpack.c.h.b16 %v2880
    %v4547 = vunpack.c.l.b16 %v2881
    %v4548 = vunpack.c.h.b16 %v2881
    %v4549 = vunpack.c.l.b16 %v2882
    %v4550 = vunpack.c.h.b16 %v2882
    %v4551 = vunpack.c.l.b16 %v2883
    %v4552 = vunpack.c.h.b16 %v2883
    %v4553 = vunpack.c.l.b16 %v2884
    %v4554 = vunpack.c.h.b16 %v2884
    %v4555 = vunpack.c.l.b16 %v2885
    %v4556 = vunpack.c.h.b16 %v2885
    %v4557 = vunpack.c.l.b16 %v2886
    %v4558 = vunpack.c.h.b16 %v2886
    %v4559 = vunpack.c.l.b16 %v2887
    %v4560 = vunpack.c.h.b16 %v2887
    %v4561 = vunpack.c.l.b16 %v2888
    %v4562 = vunpack.c.h.b16 %v2888
    %v4563 = vunpack.c.l.b16 %v2889
    %v4564 = vunpack.c.h.b16 %v2889
    %v4565 = vunpack.c.l.b16 %v2890
    %v4566 = vunpack.c.h.b16 %v2890
    %v4567 = vunpack.c.l.b16 %v2891
    %v4568 = vunpack.c.h.b16 %v2891
    %v4569 = vunpack.c.l.b16 %v2892
    %v4570 = vunpack.c.h.b16 %v2892
    %v4571 = vunpack.c.l.b16 %v2893
    %v4572 = vunpack.c.h.b16 %v2893
    %v4573 = vunpack.c.l.b16 %v2894
    %v4574 = vunpack.c.h.b16 %v2894
    %v4575 = vunpack.c.l.b16 %v2895
    %v4576 = vunpack.c.h.b16 %v2895
    %v4577 = vunpack.c.l.b16 %v2896
    %v4578 = vunpack.c.h.b16 %v2896
    %v4579 = vunpack.c.l.b16 %v2897
    %v4580 = vunpack.c.h.b16 %v2897
    %v4581 = vunpack.c.l.b16 %v2898
    %v4582 = vunpack.c.h.b16 %v2898
    %v4583 = vunpack.c.l.b16 %v2899
    %v4584 = vunpack.c.h.b16 %v2899
    %v4585 = vunpack.c.l.b16 %v2900
    %v4586 = vunpack.c.h.b16 %v2900
    %v4587 = vunpack.c.l.b16 %v2901
    %v4588 = vunpack.c.h.b16 %v2901
    %v4589 = vunpack.c.l.b16 %v2902
    %v4590 = vunpack.c.h.b16 %v2902
    %v4591 = vunpack.c.l.b16 %v2903
    %v4592 = vunpack.c.h.b16 %v2903
    %v4593 = vunpack.c.l.b16 %v2904
    %v4594 = vunpack.c.h.b16 %v2904
    %v4595 = vunpack.c.l.b16 %v2905
    %v4596 = vunpack.c.h.b16 %v2905
    %v4597 = vunpack.c.l.b16 %v2906
    %v4598 = vunpack.c.h.b16 %v2906
    %v4599 = vunpack.c.l.b16 %v2907
    %v4600 = vunpack.c.h.b16 %v2907
    %v4601 = vunpack.c.l.b16 %v2908
    %v4602 = vunpack.c.h.b16 %v2908
    %v4603 = vunpack.c.l.b16 %v2909
    %v4604 = vunpack.c.h.b16 %v2909
    %v4605 = vunpack.c.l.b16 %v2910
    %v4606 = vunpack.c.h.b16 %v2910
    %v4607 = vunpack.c.l.b16 %v2911
    %v4608 = vunpack.c.h.b16 %v2911
    %v4609 = vunpack.c.l.b16 %v2912
    %v4610 = vunpack.c.h.b16 %v2912
    %v4611 = vunpack.c.l.b16 %v2913
    %v4612 = vunpack.c.h.b16 %v2913
    %v4613 = vunpack.c.l.b16 %v2914
    %v4614 = vunpack.c.h.b16 %v2914
    %v4615 = vunpack.c.l.b16 %v2915
    %v4616 = vunpack.c.h.b16 %v2915
    %v4617 = vunpack.c.l.b16 %v2916
    %v4618 = vunpack.c.h.b16 %v2916
    %v4619 = vunpack.c.l.b16 %v2917
    %v4620 = vunpack.c.h.b16 %v2917
    %v4621 = vunpack.c.l.b16 %v2918
    %v4622 = vunpack.c.h.b16 %v2918
    %v4623 = vunpack.c.l.b16 %v2919
    %v4624 = vunpack.c.h.b16 %v2919
    %v4625 = vunpack.c.l.b16 %v2920
    %v4626 = vunpack.c.h.b16 %v2920
    %v4627 = vunpack.c.l.b16 %v2921
    %v4628 = vunpack.c.h.b16 %v2921
    %v4629 = vunpack.c.l.b16 %v2922
    %v4630 = vunpack.c.h.b16 %v2922
    %v4631 = vunpack.c.l.b16 %v2923
    %v4632 = vunpack.c.h.b16 %v2923
    %v4633 = vunpack.c.l.b16 %v2924
    %v4634 = vunpack.c.h.b16 %v2924
    %v4635 = vunpack.c.l.b16 %v2925
    %v4636 = vunpack.c.h.b16 %v2925
    %v4637 = vunpack.c.l.b16 %v2926
    %v4638 = vunpack.c.h.b16 %v2926
    %v4639 = vunpack.c.l.b16 %v2927
    %v4640 = vunpack.c.h.b16 %v2927
    %v4641 = vunpack.c.l.b16 %v2928
    %v4642 = vunpack.c.h.b16 %v2928
    %v4643 = vunpack.c.l.b16 %v2929
    %v4644 = vunpack.c.h.b16 %v2929
    %v4645 = vunpack.c.l.b16 %v2930
    %v4646 = vunpack.c.h.b16 %v2930
    %v4647 = vunpack.c.l.b16 %v2931
    %v4648 = vunpack.c.h.b16 %v2931
    %v4649 = vunpack.c.l.b16 %v2932
    %v4650 = vunpack.c.h.b16 %v2932
    %v4651 = vunpack.c.l.b16 %v2933
    %v4652 = vunpack.c.h.b16 %v2933
    %v4653 = vunpack.c.l.b16 %v2934
    %v4654 = vunpack.c.h.b16 %v2934
    %v4655 = vunpack.c.l.b16 %v2935
    %v4656 = vunpack.c.h.b16 %v2935
    %v4657 = vunpack.c.l.b16 %v2936
    %v4658 = vunpack.c.h.b16 %v2936
    %v4659 = vunpack.c.l.b16 %v2937
    %v4660 = vunpack.c.h.b16 %v2937
    %v4661 = vunpack.c.l.b16 %v2938
    %v4662 = vunpack.c.h.b16 %v2938
    %v4663 = vunpack.c.l.b16 %v2939
    %v4664 = vunpack.c.h.b16 %v2939
    %v4665 = vunpack.c.l.b16 %v2940
    %v4666 = vunpack.c.h.b16 %v2940
    %v4667 = vunpack.c.l.b16 %v2941
    %v4668 = vunpack.c.h.b16 %v2941
    %v4669 = vunpack.c.l.b16 %v2942
    %v4670 = vunpack.c.h.b16 %v2942
    %v4671 = vunpack.c.l.b16 %v2943
    %v4672 = vunpack.c.h.b16 %v2943
    %v4673 = vunpack.c.l.b16 %v2944
    %v4674 = vunpack.c.h.b16 %v2944
    %v4675 = vunpack.c.l.b16 %v2945
    %v4676 = vunpack.c.h.b16 %v2945
    %v4677 = vunpack.c.l.b16 %v2946
    %v4678 = vunpack.c.h.b16 %v2946
    %v4679 = vunpack.c.l.b16 %v2947
    %v4680 = vunpack.c.h.b16 %v2947
    %v4681 = vunpack.c.l.b16 %v2948
    %v4682 = vunpack.c.h.b16 %v2948
    %v4683 = vunpack.c.l.b16 %v2949
    %v4684 = vunpack.c.h.b16 %v2949
    %v4685 = vunpack.c.l.b16 %v2950
    %v4686 = vunpack.c.h.b16 %v2950
    %v4687 = vunpack.c.l.b16 %v2951
    %v4688 = vunpack.c.h.b16 %v2951
    %v4689 = vunpack.c.l.b16 %v2952
    %v4690 = vunpack.c.h.b16 %v2952
    %v4691 = vunpack.c.l.b16 %v2953
    %v4692 = vunpack.c.h.b16 %v2953
    %v4693 = vunpack.c.l.b16 %v2954
    %v4694 = vunpack.c.h.b16 %v2954
    %v4695 = vunpack.c.l.b16 %v2955
    %v4696 = vunpack.c.h.b16 %v2955
    %v4697 = vunpack.c.l.b16 %v2956
    %v4698 = vunpack.c.h.b16 %v2956
    %v4699 = vunpack.c.l.b16 %v2957
    %v4700 = vunpack.c.h.b16 %v2957
    %v4701 = vunpack.c.l.b16 %v2958
    %v4702 = vunpack.c.h.b16 %v2958
    %v4703 = vunpack.c.l.b16 %v2959
    %v4704 = vunpack.c.h.b16 %v2959
    %v4705 = vunpack.c.l.b16 %v2960
    %v4706 = vunpack.c.h.b16 %v2960
    %v4707 = vunpack.c.l.b16 %v2961
    %v4708 = vunpack.c.h.b16 %v2961
    %v4709 = vunpack.c.l.b16 %v2962
    %v4710 = vunpack.c.h.b16 %v2962
    %v4711 = vunpack.c.l.b16 %v2963
    %v4712 = vunpack.c.h.b16 %v2963
    %v4713 = vunpack.c.l.b16 %v2964
    %v4714 = vunpack.c.h.b16 %v2964
    %v4715 = vunpack.c.l.b16 %v2965
    %v4716 = vunpack.c.h.b16 %v2965
    %v4717 = vunpack.c.l.b16 %v2966
    %v4718 = vunpack.c.h.b16 %v2966
    %v4719 = vunpack.c.l.b16 %v2967
    %v4720 = vunpack.c.h.b16 %v2967
    %v4721 = vunpack.c.l.b16 %v2968
    %v4722 = vunpack.c.h.b16 %v2968
    %v4723 = vunpack.c.l.b16 %v2969
    %v4724 = vunpack.c.h.b16 %v2969
    %v4725 = vunpack.c.l.b16 %v2970
    %v4726 = vunpack.c.h.b16 %v2970
    %v4727 = vpack.c.b16 %v3587, %v3575
    %v4728 = vpack.c.b16 %v3588, %v3576
    %v4729 = vpack.c.b16 %v3589, %v3577
    %v4730 = vpack.c.b16 %v3590, %v3578
    %v4731 = vpack.c.b16 %v3591, %v3579
    %v4732 = vpack.c.b16 %v3592, %v3580
    %v4733 = vpack.c.b16 %v3593, %v3581
    %v4734 = vpack.c.b16 %v3594, %v3582
    %v4735 = vpack.c.b16 %v3595, %v3583
    %v4736 = vpack.c.b16 %v3596, %v3584
    %v4737 = vpack.c.b16 %v3597, %v3585
    %v4738 = vpack.c.b16 %v3598, %v3586
    %v4739 = vpack.c.b16 %v3611, %v3599
    %v4740 = vpack.c.b16 %v3612, %v3600
    %v4741 = vpack.c.b16 %v3613, %v3601
    %v4742 = vpack.c.b16 %v3614, %v3602
    %v4743 = vpack.c.b16 %v3615, %v3603
    %v4744 = vpack.c.b16 %v3616, %v3604
    %v4745 = vpack.c.b16 %v3617, %v3605
    %v4746 = vpack.c.b16 %v3618, %v3606
    %v4747 = vpack.c.b16 %v3619, %v3607
    %v4748 = vpack.c.b16 %v3620, %v3608
    %v4749 = vpack.c.b16 %v3621, %v3609
    %v4750 = vpack.c.b16 %v3622, %v3610
    %v4751 = vpack.c.b16 %v3635, %v3623
    %v4752 = vpack.c.b16 %v3636, %v3624
    %v4753 = vpack.c.b16 %v3637, %v3625
    %v4754 = vpack.c.b16 %v3638, %v3626
    %v4755 = vpack.c.b16 %v3639, %v3627
    %v4756 = vpack.c.b16 %v3640, %v3628
    %v4757 = vpack.c.b16 %v3641, %v3629
    %v4758 = vpack.c.b16 %v3642, %v3630
    %v4759 = vpack.c.b16 %v3643, %v3631
    %v4760 = vpack.c.b16 %v3644, %v3632
    %v4761 = vpack.c.b16 %v3645, %v3633
    %v4762 = vpack.c.b16 %v3646, %v3634
    %v4763 = vpack.c.b16 %v3659, %v3647
    %v4764 = vpack.c.b16 %v3660, %v3648
    %v4765 = vpack.c.b16 %v3661, %v3649
    %v4766 = vpack.c.b16 %v3662, %v3650
    %v4767 = vpack.c.b16 %v3663, %v3651
    %v4768 = vpack.c.b16 %v3664, %v3652
    %v4769 = vpack.c.b16 %v3665, %v3653
    %v4770 = vpack.c.b16 %v3666, %v3654
    %v4771 = vpack.c.b16 %v3667, %v3655
    %v4772 = vpack.c.b16 %v3668, %v3656
    %v4773 = vpack.c.b16 %v3669, %v3657
    %v4774 = vpack.c.b16 %v3670, %v3658
    %v4775 = vpack.c.b16 %v3683, %v3671
    %v4776 = vpack.c.b16 %v3684, %v3672
    %v4777 = vpack.c.b16 %v3685, %v3673
    %v4778 = vpack.c.b16 %v3686, %v3674
    %v4779 = vpack.c.b16 %v3687, %v3675
    %v4780 = vpack.c.b16 %v3688, %v3676
    %v4781 = vpack.c.b16 %v3689, %v3677
    %v4782 = vpack.c.b16 %v3690, %v3678
    %v4783 = vpack.c.b16 %v3691, %v3679
    %v4784 = vpack.c.b16 %v3692, %v3680
    %v4785 = vpack.c.b16 %v3693, %v3681
    %v4786 = vpack.c.b16 %v3694, %v3682
    %v4787 = vpack.c.b16 %v3707, %v3695
    %v4788 = vpack.c.b16 %v3708, %v3696
    %v4789 = vpack.c.b16 %v3709, %v3697
    %v4790 = vpack.c.b16 %v3710, %v3698
    %v4791 = vpack.c.b16 %v3711, %v3699
    %v4792 = vpack.c.b16 %v3712, %v3700
    %v4793 = vpack.c.b16 %v3713, %v3701
    %v4794 = vpack.c.b16 %v3714, %v3702
    %v4795 = vpack.c.b16 %v3715, %v3703
    %v4796 = vpack.c.b16 %v3716, %v3704
    %v4797 = vpack.c.b16 %v3717, %v3705
    %v4798 = vpack.c.b16 %v3718, %v3706
    %v4799 = vpack.c.b16 %v3731, %v3719
    %v4800 = vpack.c.b16 %v3732, %v3720
    %v4801 = vpack.c.b16 %v3733, %v3721
    %v4802 = vpack.c.b16 %v3734, %v3722
    %v4803 = vpack.c.b16 %v3735, %v3723
    %v4804 = vpack.c.b16 %v3736, %v3724
    %v4805 = vpack.c.b16 %v3737, %v3725
    %v4806 = vpack.c.b16 %v3738, %v3726
    %v4807 = vpack.c.b16 %v3739, %v3727
    %v4808 = vpack.c.b16 %v3740, %v3728
    %v4809 = vpack.c.b16 %v3741, %v3729
    %v4810 = vpack.c.b16 %v3742, %v3730
    %v4811 = vpack.c.b16 %v3755, %v3743
    %v4812 = vpack.c.b16 %v3756, %v3744
    %v4813 = vpack.c.b16 %v3757, %v3745
    %v4814 = vpack.c.b16 %v3758, %v3746
    %v4815 = vpack.c.b16 %v3759, %v3747
    %v4816 = vpack.c.b16 %v3760, %v3748
    %v4817 = vpack.c.b16 %v3761, %v3749
    %v4818 = vpack.c.b16 %v3762, %v3750
    %v4819 = vpack.c.b16 %v3763, %v3751
    %v4820 = vpack.c.b16 %v3764, %v3752
    %v4821 = vpack.c.b16 %v3765, %v3753
    %v4822 = vpack.c.b16 %v3766, %v3754
    %v4823 = vpack.c.b16 %v3779, %v3767
    %v4824 = vpack.c.b16 %v3780, %v3768
    %v4825 = vpack.c.b16 %v3781, %v3769
    %v4826 = vpack.c.b16 %v3782, %v3770
    %v4827 = vpack.c.b16 %v3783, %v3771
    %v4828 = vpack.c.b16 %v3784, %v3772
    %v4829 = vpack.c.b16 %v3785, %v3773
    %v4830 = vpack.c.b16 %v3786, %v3774
    %v4831 = vpack.c.b16 %v3787, %v3775
    %v4832 = vpack.c.b16 %v3788, %v3776
    %v4833 = vpack.c.b16 %v3789, %v3777
    %v4834 = vpack.c.b16 %v3790, %v3778
    %v4835 = vpack.c.b16 %v3803, %v3791
    %v4836 = vpack.c.b16 %v3804, %v3792
    %v4837 = vpack.c.b16 %v3805, %v3793
    %v4838 = vpack.c.b16 %v3806, %v3794
    %v4839 = vpack.c.b16 %v3807, %v3795
    %v4840 = vpack.c.b16 %v3808, %v3796
    %v4841 = vpack.c.b16 %v3809, %v3797
    %v4842 = vpack.c.b16 %v3810, %v3798
    %v4843 = vpack.c.b16 %v3811, %v3799
    %v4844 = vpack.c.b16 %v3812, %v3800
    %v4845 = vpack.c.b16 %v3813, %v3801
    %v4846 = vpack.c.b16 %v3814, %v3802
    %v4847 = vpack.c.b16 %v3827, %v3815
    %v4848 = vpack.c.b16 %v3828, %v3816
    %v4849 = vpack.c.b16 %v3829, %v3817
    %v4850 = vpack.c.b16 %v3830, %v3818
    %v4851 = vpack.c.b16 %v3831, %v3819
    %v4852 = vpack.c.b16 %v3832, %v3820
    %v4853 = vpack.c.b16 %v3833, %v3821
    %v4854 = vpack.c.b16 %v3834, %v3822
    %v4855 = vpack.c.b16 %v3835, %v3823
    %v4856 = vpack.c.b16 %v3836, %v3824
    %v4857 = vpack.c.b16 %v3837, %v3825
    %v4858 = vpack.c.b16 %v3838, %v3826
    %v4859 = vpack.c.b16 %v3851, %v3839
    %v4860 = vpack.c.b16 %v3852, %v3840
    %v4861 = vpack.c.b16 %v3853, %v3841
    %v4862 = vpack.c.b16 %v3854, %v3842
    %v4863 = vpack.c.b16 %v3855, %v3843
    %v4864 = vpack.c.b16 %v3856, %v3844
    %v4865 = vpack.c.b16 %v3857, %v3845
    %v4866 = vpack.c.b16 %v3858, %v3846
    %v4867 = vpack.c.b16 %v3859, %v3847
    %v4868 = vpack.c.b16 %v3860, %v3848
    %v4869 = vpack.c.b16 %v3861, %v3849
    %v4870 = vpack.c.b16 %v3862, %v3850
    %v4871 = vpack.c.b16 %v3875, %v3863
    %v4872 = vpack.c.b16 %v3876, %v3864
    %v4873 = vpack.c.b16 %v3877, %v3865
    %v4874 = vpack.c.b16 %v3878, %v3866
    %v4875 = vpack.c.b16 %v3879, %v3867
    %v4876 = vpack.c.b16 %v3880, %v3868
    %v4877 = vpack.c.b16 %v3881, %v3869
    %v4878 = vpack.c.b16 %v3882, %v3870
    %v4879 = vpack.c.b16 %v3883, %v3871
    %v4880 = vpack.c.b16 %v3884, %v3872
    %v4881 = vpack.c.b16 %v3885, %v3873
    %v4882 = vpack.c.b16 %v3886, %v3874
    %v4883 = vpack.c.b16 %v3899, %v3887
    %v4884 = vpack.c.b16 %v3900, %v3888
    %v4885 = vpack.c.b16 %v3901, %v3889
    %v4886 = vpack.c.b16 %v3902, %v3890
    %v4887 = vpack.c.b16 %v3903, %v3891
    %v4888 = vpack.c.b16 %v3904, %v3892
    %v4889 = vpack.c.b16 %v3905, %v3893
    %v4890 = vpack.c.b16 %v3906, %v3894
    %v4891 = vpack.c.b16 %v3907, %v3895
    %v4892 = vpack.c.b16 %v3908, %v3896
    %v4893 = vpack.c.b16 %v3909, %v3897
    %v4894 = vpack.c.b16 %v3910, %v3898
    %v4895 = vpack.c.b16 %v3923, %v3911
    %v4896 = vpack.c.b16 %v3924, %v3912
    %v4897 = vpack.c.b16 %v3925, %v3913
    %v4898 = vpack.c.b16 %v3926, %v3914
    %v4899 = vpack.c.b16 %v3927, %v3915
    %v4900 = vpack.c.b16 %v3928, %v3916
    %v4901 = vpack.c.b16 %v3929, %v3917
    %v4902 = vpack.c.b16 %v3930, %v3918
    %v4903 = vpack.c.b16 %v3931, %v3919
    %v4904 = vpack.c.b16 %v3932, %v3920
    %v4905 = vpack.c.b16 %v3933, %v3921
    %v4906 = vpack.c.b16 %v3934, %v3922
    %v4907 = vpack.c.b16 %v3947, %v3935
    %v4908 = vpack.c.b16 %v3948, %v3936
    %v4909 = vpack.c.b16 %v3949, %v3937
    %v4910 = vpack.c.b16 %v3950, %v3938
    %v4911 = vpack.c.b16 %v3951, %v3939
    %v4912 = vpack.c.b16 %v3952, %v3940
    %v4913 = vpack.c.b16 %v3953, %v3941
    %v4914 = vpack.c.b16 %v3954, %v3942
    %v4915 = vpack.c.b16 %v3955, %v3943
    %v4916 = vpack.c.b16 %v3956, %v3944
    %v4917 = vpack.c.b16 %v3957, %v3945
    %v4918 = vpack.c.b16 %v3958, %v3946
    %v4919 = vpack.c.b16 %v3971, %v3959
    %v4920 = vpack.c.b16 %v3972, %v3960
    %v4921 = vpack.c.b16 %v3973, %v3961
    %v4922 = vpack.c.b16 %v3974, %v3962
    %v4923 = vpack.c.b16 %v3975, %v3963
    %v4924 = vpack.c.b16 %v3976, %v3964
    %v4925 = vpack.c.b16 %v3977, %v3965
    %v4926 = vpack.c.b16 %v3978, %v3966
    %v4927 = vpack.c.b16 %v3979, %v3967
    %v4928 = vpack.c.b16 %v3980, %v3968
    %v4929 = vpack.c.b16 %v3981, %v3969
    %v4930 = vpack.c.b16 %v3982, %v3970
    %v4931 = vpack.c.b16 %v3995, %v3983
    %v4932 = vpack.c.b16 %v3996, %v3984
    %v4933 = vpack.c.b16 %v3997, %v3985
    %v4934 = vpack.c.b16 %v3998, %v3986
    %v4935 = vpack.c.b16 %v3999, %v3987
    %v4936 = vpack.c.b16 %v4000, %v3988
    %v4937 = vpack.c.b16 %v4001, %v3989
    %v4938 = vpack.c.b16 %v4002, %v3990
    %v4939 = vpack.c.b16 %v4003, %v3991
    %v4940 = vpack.c.b16 %v4004, %v3992
    %v4941 = vpack.c.b16 %v4005, %v3993
    %v4942 = vpack.c.b16 %v4006, %v3994
    %v4943 = vpack.c.b16 %v4019, %v4007
    %v4944 = vpack.c.b16 %v4020, %v4008
    %v4945 = vpack.c.b16 %v4021, %v4009
    %v4946 = vpack.c.b16 %v4022, %v4010
    %v4947 = vpack.c.b16 %v4023, %v4011
    %v4948 = vpack.c.b16 %v4024, %v4012
    %v4949 = vpack.c.b16 %v4025, %v4013
    %v4950 = vpack.c.b16 %v4026, %v4014
    %v4951 = vpack.c.b16 %v4027, %v4015
    %v4952 = vpack.c.b16 %v4028, %v4016
    %v4953 = vpack.c.b16 %v4029, %v4017
    %v4954 = vpack.c.b16 %v4030, %v4018
    %v4955 = vpack.c.b16 %v4043, %v4031
    %v4956 = vpack.c.b16 %v4044, %v4032
    %v4957 = vpack.c.b16 %v4045, %v4033
    %v4958 = vpack.c.b16 %v4046, %v4034
    %v4959 = vpack.c.b16 %v4047, %v4035
    %v4960 = vpack.c.b16 %v4048, %v4036
    %v4961 = vpack.c.b16 %v4049, %v4037
    %v4962 = vpack.c.b16 %v4050, %v4038
    %v4963 = vpack.c.b16 %v4051, %v4039
    %v4964 = vpack.c.b16 %v4052, %v4040
    %v4965 = vpack.c.b16 %v4053, %v4041
    %v4966 = vpack.c.b16 %v4054, %v4042
    %v4967 = vpack.c.b16 %v4067, %v4055
    %v4968 = vpack.c.b16 %v4068, %v4056
    %v4969 = vpack.c.b16 %v4069, %v4057
    %v4970 = vpack.c.b16 %v4070, %v4058
    %v4971 = vpack.c.b16 %v4071, %v4059
    %v4972 = vpack.c.b16 %v4072, %v4060
    %v4973 = vpack.c.b16 %v4073, %v4061
    %v4974 = vpack.c.b16 %v4074, %v4062
    %v4975 = vpack.c.b16 %v4075, %v4063
    %v4976 = vpack.c.b16 %v4076, %v4064
    %v4977 = vpack.c.b16 %v4077, %v4065
    %v4978 = vpack.c.b16 %v4078, %v4066
    %v4979 = vpack.c.b16 %v4091, %v4079
    %v4980 = vpack.c.b16 %v4092, %v4080
    %v4981 = vpack.c.b16 %v4093, %v4081
    %v4982 = vpack.c.b16 %v4094, %v4082
    %v4983 = vpack.c.b16 %v4095, %v4083
    %v4984 = vpack.c.b16 %v4096, %v4084
    %v4985 = vpack.c.b16 %v4097, %v4085
    %v4986 = vpack.c.b16 %v4098, %v4086
    %v4987 = vpack.c.b16 %v4099, %v4087
    %v4988 = vpack.c.b16 %v4100, %v4088
    %v4989 = vpack.c.b16 %v4101, %v4089
    %v4990 = vpack.c.b16 %v4102, %v4090
    %v4991 = vpack.c.b16 %v4115, %v4103
    %v4992 = vpack.c.b16 %v4116, %v4104
    %v4993 = vpack.c.b16 %v4117, %v4105
    %v4994 = vpack.c.b16 %v4118, %v4106
    %v4995 = vpack.c.b16 %v4119, %v4107
    %v4996 = vpack.c.b16 %v4120, %v4108
    %v4997 = vpack.c.b16 %v4121, %v4109
    %v4998 = vpack.c.b16 %v4122, %v4110
    %v4999 = vpack.c.b16 %v4123, %v4111
    %v5000 = vpack.c.b16 %v4124, %v4112
    %v5001 = vpack.c.b16 %v4125, %v4113
    %v5002 = vpack.c.b16 %v4126, %v4114
    %v5003 = vpack.c.b16 %v4139, %v4127
    %v5004 = vpack.c.b16 %v4140, %v4128
    %v5005 = vpack.c.b16 %v4141, %v4129
    %v5006 = vpack.c.b16 %v4142, %v4130
    %v5007 = vpack.c.b16 %v4143, %v4131
    %v5008 = vpack.c.b16 %v4144, %v4132
    %v5009 = vpack.c.b16 %v4145, %v4133
    %v5010 = vpack.c.b16 %v4146, %v4134
    %v5011 = vpack.c.b16 %v4147, %v4135
    %v5012 = vpack.c.b16 %v4148, %v4136
    %v5013 = vpack.c.b16 %v4149, %v4137
    %v5014 = vpack.c.b16 %v4150, %v4138
    %v5015 = vpack.c.b16 %v4163, %v4151
    %v5016 = vpack.c.b16 %v4164, %v4152
    %v5017 = vpack.c.b16 %v4165, %v4153
    %v5018 = vpack.c.b16 %v4166, %v4154
    %v5019 = vpack.c.b16 %v4167, %v4155
    %v5020 = vpack.c.b16 %v4168, %v4156
    %v5021 = vpack.c.b16 %v4169, %v4157
    %v5022 = vpack.c.b16 %v4170, %v4158
    %v5023 = vpack.c.b16 %v4171, %v4159
    %v5024 = vpack.c.b16 %v4172, %v4160
    %v5025 = vpack.c.b16 %v4173, %v4161
    %v5026 = vpack.c.b16 %v4174, %v4162
    %v5027 = vpack.c.b16 %v4187, %v4175
    %v5028 = vpack.c.b16 %v4188, %v4176
    %v5029 = vpack.c.b16 %v4189, %v4177
    %v5030 = vpack.c.b16 %v4190, %v4178
    %v5031 = vpack.c.b16 %v4191, %v4179
    %v5032 = vpack.c.b16 %v4192, %v4180
    %v5033 = vpack.c.b16 %v4193, %v4181
    %v5034 = vpack.c.b16 %v4194, %v4182
    %v5035 = vpack.c.b16 %v4195, %v4183
    %v5036 = vpack.c.b16 %v4196, %v4184
    %v5037 = vpack.c.b16 %v4197, %v4185
    %v5038 = vpack.c.b16 %v4198, %v4186
    %v5039 = vpack.c.b16 %v4211, %v4199
    %v5040 = vpack.c.b16 %v4212, %v4200
    %v5041 = vpack.c.b16 %v4213, %v4201
    %v5042 = vpack.c.b16 %v4214, %v4202
    %v5043 = vpack.c.b16 %v4215, %v4203
    %v5044 = vpack.c.b16 %v4216, %v4204
    %v5045 = vpack.c.b16 %v4217, %v4205
    %v5046 = vpack.c.b16 %v4218, %v4206
    %v5047 = vpack.c.b16 %v4219, %v4207
    %v5048 = vpack.c.b16 %v4220, %v4208
    %v5049 = vpack.c.b16 %v4221, %v4209
    %v5050 = vpack.c.b16 %v4222, %v4210
    %v5051 = vpack.c.b16 %v4235, %v4223
    %v5052 = vpack.c.b16 %v4236, %v4224
    %v5053 = vpack.c.b16 %v4237, %v4225
    %v5054 = vpack.c.b16 %v4238, %v4226
    %v5055 = vpack.c.b16 %v4239, %v4227
    %v5056 = vpack.c.b16 %v4240, %v4228
    %v5057 = vpack.c.b16 %v4241, %v4229
    %v5058 = vpack.c.b16 %v4242, %v4230
    %v5059 = vpack.c.b16 %v4243, %v4231
    %v5060 = vpack.c.b16 %v4244, %v4232
    %v5061 = vpack.c.b16 %v4245, %v4233
    %v5062 = vpack.c.b16 %v4246, %v4234
    %v5063 = vpack.c.b16 %v4259, %v4247
    %v5064 = vpack.c.b16 %v4260, %v4248
    %v5065 = vpack.c.b16 %v4261, %v4249
    %v5066 = vpack.c.b16 %v4262, %v4250
    %v5067 = vpack.c.b16 %v4263, %v4251
    %v5068 = vpack.c.b16 %v4264, %v4252
    %v5069 = vpack.c.b16 %v4265, %v4253
    %v5070 = vpack.c.b16 %v4266, %v4254
    %v5071 = vpack.c.b16 %v4267, %v4255
    %v5072 = vpack.c.b16 %v4268, %v4256
    %v5073 = vpack.c.b16 %v4269, %v4257
    %v5074 = vpack.c.b16 %v4270, %v4258
    %v5075 = vpack.c.b16 %v4283, %v4271
    %v5076 = vpack.c.b16 %v4284, %v4272
    %v5077 = vpack.c.b16 %v4285, %v4273
    %v5078 = vpack.c.b16 %v4286, %v4274
    %v5079 = vpack.c.b16 %v4287, %v4275
    %v5080 = vpack.c.b16 %v4288, %v4276
    %v5081 = vpack.c.b16 %v4289, %v4277
    %v5082 = vpack.c.b16 %v4290, %v4278
    %v5083 = vpack.c.b16 %v4291, %v4279
    %v5084 = vpack.c.b16 %v4292, %v4280
    %v5085 = vpack.c.b16 %v4293, %v4281
    %v5086 = vpack.c.b16 %v4294, %v4282
    %v5087 = vpack.c.b16 %v4307, %v4295
    %v5088 = vpack.c.b16 %v4308, %v4296
    %v5089 = vpack.c.b16 %v4309, %v4297
    %v5090 = vpack.c.b16 %v4310, %v4298
    %v5091 = vpack.c.b16 %v4311, %v4299
    %v5092 = vpack.c.b16 %v4312, %v4300
    %v5093 = vpack.c.b16 %v4313, %v4301
    %v5094 = vpack.c.b16 %v4314, %v4302
    %v5095 = vpack.c.b16 %v4315, %v4303
    %v5096 = vpack.c.b16 %v4316, %v4304
    %v5097 = vpack.c.b16 %v4317, %v4305
    %v5098 = vpack.c.b16 %v4318, %v4306
    %v5099 = vpack.c.b16 %v4331, %v4319
    %v5100 = vpack.c.b16 %v4332, %v4320
    %v5101 = vpack.c.b16 %v4333, %v4321
    %v5102 = vpack.c.b16 %v4334, %v4322
    %v5103 = vpack.c.b16 %v4335, %v4323
    %v5104 = vpack.c.b16 %v4336, %v4324
    %v5105 = vpack.c.b16 %v4337, %v4325
    %v5106 = vpack.c.b16 %v4338, %v4326
    %v5107 = vpack.c.b16 %v4339, %v4327
    %v5108 = vpack.c.b16 %v4340, %v4328
    %v5109 = vpack.c.b16 %v4341, %v4329
    %v5110 = vpack.c.b16 %v4342, %v4330
    %v5111 = vpack.c.b16 %v4355, %v4343
    %v5112 = vpack.c.b16 %v4356, %v4344
    %v5113 = vpack.c.b16 %v4357, %v4345
    %v5114 = vpack.c.b16 %v4358, %v4346
    %v5115 = vpack.c.b16 %v4359, %v4347
    %v5116 = vpack.c.b16 %v4360, %v4348
    %v5117 = vpack.c.b16 %v4361, %v4349
    %v5118 = vpack.c.b16 %v4362, %v4350
    %v5119 = vpack.c.b16 %v4363, %v4351
    %v5120 = vpack.c.b16 %v4364, %v4352
    %v5121 = vpack.c.b16 %v4365, %v4353
    %v5122 = vpack.c.b16 %v4366, %v4354
    %v5123 = vpack.c.b16 %v4379, %v4367
    %v5124 = vpack.c.b16 %v4380, %v4368
    %v5125 = vpack.c.b16 %v4381, %v4369
    %v5126 = vpack.c.b16 %v4382, %v4370
    %v5127 = vpack.c.b16 %v4383, %v4371
    %v5128 = vpack.c.b16 %v4384, %v4372
    %v5129 = vpack.c.b16 %v4385, %v4373
    %v5130 = vpack.c.b16 %v4386, %v4374
    %v5131 = vpack.c.b16 %v4387, %v4375
    %v5132 = vpack.c.b16 %v4388, %v4376
    %v5133 = vpack.c.b16 %v4389, %v4377
    %v5134 = vpack.c.b16 %v4390, %v4378
    %v5135 = vpack.c.b16 %v4403, %v4391
    %v5136 = vpack.c.b16 %v4404, %v4392
    %v5137 = vpack.c.b16 %v4405, %v4393
    %v5138 = vpack.c.b16 %v4406, %v4394
    %v5139 = vpack.c.b16 %v4407, %v4395
    %v5140 = vpack.c.b16 %v4408, %v4396
    %v5141 = vpack.c.b16 %v4409, %v4397
    %v5142 = vpack.c.b16 %v4410, %v4398
    %v5143 = vpack.c.b16 %v4411, %v4399
    %v5144 = vpack.c.b16 %v4412, %v4400
    %v5145 = vpack.c.b16 %v4413, %v4401
    %v5146 = vpack.c.b16 %v4414, %v4402
    %v5147 = vpack.c.b16 %v4427, %v4415
    %v5148 = vpack.c.b16 %v4428, %v4416
    %v5149 = vpack.c.b16 %v4429, %v4417
    %v5150 = vpack.c.b16 %v4430, %v4418
    %v5151 = vpack.c.b16 %v4431, %v4419
    %v5152 = vpack.c.b16 %v4432, %v4420
    %v5153 = vpack.c.b16 %v4433, %v4421
    %v5154 = vpack.c.b16 %v4434, %v4422
    %v5155 = vpack.c.b16 %v4435, %v4423
    %v5156 = vpack.c.b16 %v4436, %v4424
    %v5157 = vpack.c.b16 %v4437, %v4425
    %v5158 = vpack.c.b16 %v4438, %v4426
    %v5159 = vpack.c.b16 %v4451, %v4439
    %v5160 = vpack.c.b16 %v4452, %v4440
    %v5161 = vpack.c.b16 %v4453, %v4441
    %v5162 = vpack.c.b16 %v4454, %v4442
    %v5163 = vpack.c.b16 %v4455, %v4443
    %v5164 = vpack.c.b16 %v4456, %v4444
    %v5165 = vpack.c.b16 %v4457, %v4445
    %v5166 = vpack.c.b16 %v4458, %v4446
    %v5167 = vpack.c.b16 %v4459, %v4447
    %v5168 = vpack.c.b16 %v4460, %v4448
    %v5169 = vpack.c.b16 %v4461, %v4449
    %v5170 = vpack.c.b16 %v4462, %v4450
    %v5171 = vpack.c.b16 %v4475, %v4463
    %v5172 = vpack.c.b16 %v4476, %v4464
    %v5173 = vpack.c.b16 %v4477, %v4465
    %v5174 = vpack.c.b16 %v4478, %v4466
    %v5175 = vpack.c.b16 %v4479, %v4467
    %v5176 = vpack.c.b16 %v4480, %v4468
    %v5177 = vpack.c.b16 %v4481, %v4469
    %v5178 = vpack.c.b16 %v4482, %v4470
    %v5179 = vpack.c.b16 %v4483, %v4471
    %v5180 = vpack.c.b16 %v4484, %v4472
    %v5181 = vpack.c.b16 %v4485, %v4473
    %v5182 = vpack.c.b16 %v4486, %v4474
    %v5183 = vpack.c.b16 %v4499, %v4487
    %v5184 = vpack.c.b16 %v4500, %v4488
    %v5185 = vpack.c.b16 %v4501, %v4489
    %v5186 = vpack.c.b16 %v4502, %v4490
    %v5187 = vpack.c.b16 %v4503, %v4491
    %v5188 = vpack.c.b16 %v4504, %v4492
    %v5189 = vpack.c.b16 %v4505, %v4493
    %v5190 = vpack.c.b16 %v4506, %v4494
    %v5191 = vpack.c.b16 %v4507, %v4495
    %v5192 = vpack.c.b16 %v4508, %v4496
    %v5193 = vpack.c.b16 %v4509, %v4497
    %v5194 = vpack.c.b16 %v4510, %v4498
    %v5195 = vpack.c.b16 %v4523, %v4511
    %v5196 = vpack.c.b16 %v4524, %v4512
    %v5197 = vpack.c.b16 %v4525, %v4513
    %v5198 = vpack.c.b16 %v4526, %v4514
    %v5199 = vpack.c.b16 %v4527, %v4515
    %v5200 = vpack.c.b16 %v4528, %v4516
    %v5201 = vpack.c.b16 %v4529, %v4517
    %v5202 = vpack.c.b16 %v4530, %v4518
    %v5203 = vpack.c.b16 %v4531, %v4519
    %v5204 = vpack.c.b16 %v4532, %v4520
    %v5205 = vpack.c.b16 %v4533, %v4521
    %v5206 = vpack.c.b16 %v4534, %v4522
    %v5207 = vpack.c.b16 %v4547, %v4535
    %v5208 = vpack.c.b16 %v4548, %v4536
    %v5209 = vpack.c.b16 %v4549, %v4537
    %v5210 = vpack.c.b16 %v4550, %v4538
    %v5211 = vpack.c.b16 %v4551, %v4539
    %v5212 = vpack.c.b16 %v4552, %v4540
    %v5213 = vpack.c.b16 %v4553, %v4541
    %v5214 = vpack.c.b16 %v4554, %v4542
    %v5215 = vpack.c.b16 %v4555, %v4543
    %v5216 = vpack.c.b16 %v4556, %v4544
    %v5217 = vpack.c.b16 %v4557, %v4545
    %v5218 = vpack.c.b16 %v4558, %v4546
    %v5219 = vpack.c.b16 %v4571, %v4559
    %v5220 = vpack.c.b16 %v4572, %v4560
    %v5221 = vpack.c.b16 %v4573, %v4561
    %v5222 = vpack.c.b16 %v4574, %v4562
    %v5223 = vpack.c.b16 %v4575, %v4563
    %v5224 = vpack.c.b16 %v4576, %v4564
    %v5225 = vpack.c.b16 %v4577, %v4565
    %v5226 = vpack.c.b16 %v4578, %v4566
    %v5227 = vpack.c.b16 %v4579, %v4567
    %v5228 = vpack.c.b16 %v4580, %v4568
    %v5229 = vpack.c.b16 %v4581, %v4569
    %v5230 = vpack.c.b16 %v4582, %v4570
    %v5231 = vpack.c.b16 %v4595, %v4583
    %v5232 = vpack.c.b16 %v4596, %v4584
    %v5233 = vpack.c.b16 %v4597, %v4585
    %v5234 = vpack.c.b16 %v4598, %v4586
    %v5235 = vpack.c.b16 %v4599, %v4587
    %v5236 = vpack.c.b16 %v4600, %v4588
    %v5237 = vpack.c.b16 %v4601, %v4589
    %v5238 = vpack.c.b16 %v4602, %v4590
    %v5239 = vpack.c.b16 %v4603, %v4591
    %v5240 = vpack.c.b16 %v4604, %v4592
    %v5241 = vpack.c.b16 %v4605, %v4593
    %v5242 = vpack.c.b16 %v4606, %v4594
    %v5243 = vpack.c.b16 %v4619, %v4607
    %v5244 = vpack.c.b16 %v4620, %v4608
    %v5245 = vpack.c.b16 %v4621, %v4609
    %v5246 = vpack.c.b16 %v4622, %v4610
    %v5247 = vpack.c.b16 %v4623, %v4611
    %v5248 = vpack.c.b16 %v4624, %v4612
    %v5249 = vpack.c.b16 %v4625, %v4613
    %v5250 = vpack.c.b16 %v4626, %v4614
    %v5251 = vpack.c.b16 %v4627, %v4615
    %v5252 = vpack.c.b16 %v4628, %v4616
    %v5253 = vpack.c.b16 %v4629, %v4617
    %v5254 = vpack.c.b16 %v4630, %v4618
    %v5255 = vpack.c.b16 %v4643, %v4631
    %v5256 = vpack.c.b16 %v4644, %v4632
    %v5257 = vpack.c.b16 %v4645, %v4633
    %v5258 = vpack.c.b16 %v4646, %v4634
    %v5259 = vpack.c.b16 %v4647, %v4635
    %v5260 = vpack.c.b16 %v4648, %v4636
    %v5261 = vpack.c.b16 %v4649, %v4637
    %v5262 = vpack.c.b16 %v4650, %v4638
    %v5263 = vpack.c.b16 %v4651, %v4639
    %v5264 = vpack.c.b16 %v4652, %v4640
    %v5265 = vpack.c.b16 %v4653, %v4641
    %v5266 = vpack.c.b16 %v4654, %v4642
    %v5267 = vpack.c.b16 %v4667, %v4655
    %v5268 = vpack.c.b16 %v4668, %v4656
    %v5269 = vpack.c.b16 %v4669, %v4657
    %v5270 = vpack.c.b16 %v4670, %v4658
    %v5271 = vpack.c.b16 %v4671, %v4659
    %v5272 = vpack.c.b16 %v4672, %v4660
    %v5273 = vpack.c.b16 %v4673, %v4661
    %v5274 = vpack.c.b16 %v4674, %v4662
    %v5275 = vpack.c.b16 %v4675, %v4663
    %v5276 = vpack.c.b16 %v4676, %v4664
    %v5277 = vpack.c.b16 %v4677, %v4665
    %v5278 = vpack.c.b16 %v4678, %v4666
    %v5279 = vpack.c.b16 %v4691, %v4679
    %v5280 = vpack.c.b16 %v4692, %v4680
    %v5281 = vpack.c.b16 %v4693, %v4681
    %v5282 = vpack.c.b16 %v4694, %v4682
    %v5283 = vpack.c.b16 %v4695, %v4683
    %v5284 = vpack.c.b16 %v4696, %v4684
    %v5285 = vpack.c.b16 %v4697, %v4685
    %v5286 = vpack.c.b16 %v4698, %v4686
    %v5287 = vpack.c.b16 %v4699, %v4687
    %v5288 = vpack.c.b16 %v4700, %v4688
    %v5289 = vpack.c.b16 %v4701, %v4689
    %v5290 = vpack.c.b16 %v4702, %v4690
    %v5291 = vpack.c.b16 %v4715, %v4703
    %v5292 = vpack.c.b16 %v4716, %v4704
    %v5293 = vpack.c.b16 %v4717, %v4705
    %v5294 = vpack.c.b16 %v4718, %v4706
    %v5295 = vpack.c.b16 %v4719, %v4707
    %v5296 = vpack.c.b16 %v4720, %v4708
    %v5297 = vpack.c.b16 %v4721, %v4709
    %v5298 = vpack.c.b16 %v4722, %v4710
    %v5299 = vpack.c.b16 %v4723, %v4711
    %v5300 = vpack.c.b16 %v4724, %v4712
    %v5301 = vpack.c.b16 %v4725, %v4713
    %v5302 = vpack.c.b16 %v4726, %v4714
    %5879 = vmatpush.bf16.msra.mxu0 %v4811
    %5880 = vmatpush.bf16.msra.mxu0 %v4799
    %5881 = vmatpush.bf16.msra.mxu0 %v4787
    %5882 = vmatpush.bf16.msra.mxu0 %v4775
    %5883 = vmatpush.bf16.msra.mxu0 %v4763
    %5884 = vmatpush.bf16.msra.mxu0 %v4751
    %5885 = vmatpush.bf16.msra.mxu0 %v4739
    %5886 = vmatpush.bf16.msra.mxu0 %v4727
    %5887 = vmatmul.bf16.gmra.mxu0 %v2389
    %v5888 = vpop.f32.mrf.mxu0
    %v5889 = vadd.f32 %v2975, %v5888
    %v5890 = vpop.f32.mrf.mxu0
    %5891 = vdwg.mxu0
    %5892 = vmatpush.bf16.msra.mxu0 %v4907
    %5893 = vmatpush.bf16.msra.mxu0 %v4895
    %5894 = vmatpush.bf16.msra.mxu0 %v4883
    %5895 = vmatpush.bf16.msra.mxu0 %v4871
    %5896 = vmatpush.bf16.msra.mxu0 %v4859
    %5897 = vmatpush.bf16.msra.mxu0 %v4847
    %5898 = vmatpush.bf16.msra.mxu0 %v4835
    %5899 = vmatpush.bf16.msra.mxu0 %v4823
    %5900 = vmatmul.bf16.gmra.mxu0 %v2390
    %v5901 = vpop.f32.mrf.mxu0
    %v5902 = vadd.f32 %v5889, %v5901
    %v5903 = vpop.f32.mrf.mxu0
    %5904 = vdwg.mxu0
    %5905 = vmatpush.bf16.msra.mxu0 %v5003
    %5906 = vmatpush.bf16.msra.mxu0 %v4991
    %5907 = vmatpush.bf16.msra.mxu0 %v4979
    %5908 = vmatpush.bf16.msra.mxu0 %v4967
    %5909 = vmatpush.bf16.msra.mxu0 %v4955
    %5910 = vmatpush.bf16.msra.mxu0 %v4943
    %5911 = vmatpush.bf16.msra.mxu0 %v4931
    %5912 = vmatpush.bf16.msra.mxu0 %v4919
    %5913 = vmatmul.bf16.gmra.mxu0 %v2391
    %v5914 = vpop.f32.mrf.mxu0
    %v5915 = vadd.f32 %v5902, %v5914
    %v5916 = vpop.f32.mrf.mxu0
    %5917 = vdwg.mxu0
    %5918 = vmatpush.bf16.msra.mxu0 %v5099
    %5919 = vmatpush.bf16.msra.mxu0 %v5087
    %5920 = vmatpush.bf16.msra.mxu0 %v5075
    %5921 = vmatpush.bf16.msra.mxu0 %v5063
    %5922 = vmatpush.bf16.msra.mxu0 %v5051
    %5923 = vmatpush.bf16.msra.mxu0 %v5039
    %5924 = vmatpush.bf16.msra.mxu0 %v5027
    %5925 = vmatpush.bf16.msra.mxu0 %v5015
    %5926 = vmatmul.bf16.gmra.mxu0 %v2392
    %v5927 = vpop.f32.mrf.mxu0
    %v5928 = vadd.f32 %v5915, %v5927
    %v5929 = vpop.f32.mrf.mxu0
    %5930 = vdwg.mxu0
    %5931 = vmatpush.bf16.msra.mxu0 %v5195
    %5932 = vmatpush.bf16.msra.mxu0 %v5183
    %5933 = vmatpush.bf16.msra.mxu0 %v5171
    %5934 = vmatpush.bf16.msra.mxu0 %v5159
    %5935 = vmatpush.bf16.msra.mxu0 %v5147
    %5936 = vmatpush.bf16.msra.mxu0 %v5135
    %5937 = vmatpush.bf16.msra.mxu0 %v5123
    %5938 = vmatpush.bf16.msra.mxu0 %v5111
    %5939 = vmatmul.bf16.gmra.mxu0 %v2393
    %v5940 = vpop.f32.mrf.mxu0
    %v5941 = vadd.f32 %v5928, %v5940
    %v5942 = vpop.f32.mrf.mxu0
    %5943 = vdwg.mxu0
    %5944 = vmatpush.bf16.msra.mxu0 %v5291
    %5945 = vmatpush.bf16.msra.mxu0 %v5279
    %5946 = vmatpush.bf16.msra.mxu0 %v5267
    %5947 = vmatpush.bf16.msra.mxu0 %v5255
    %5948 = vmatpush.bf16.msra.mxu0 %v5243
    %5949 = vmatpush.bf16.msra.mxu0 %v5231
    %5950 = vmatpush.bf16.msra.mxu0 %v5219
    %5951 = vmatpush.bf16.msra.mxu0 %v5207
    %5952 = vmatmul.bf16.gmra.mxu0 %v2394
    %v5953 = vpop.f32.mrf.mxu0
    %v5954 = vadd.f32 %v5941, %v5953
    %v5955 = vpop.f32.mrf.mxu0
    %5956 = vdwg.mxu0
    %5957 = vmatpush.bf16.msra.mxu0 %v4812
    %5958 = vmatpush.bf16.msra.mxu0 %v4800
    %5959 = vmatpush.bf16.msra.mxu0 %v4788
    %5960 = vmatpush.bf16.msra.mxu0 %v4776
    %5961 = vmatpush.bf16.msra.mxu0 %v4764
    %5962 = vmatpush.bf16.msra.mxu0 %v4752
    %5963 = vmatpush.bf16.msra.mxu0 %v4740
    %5964 = vmatpush.bf16.msra.mxu0 %v4728
    %5965 = vmatmul.bf16.gmra.mxu0 %v2389
    %v5966 = vpop.f32.mrf.mxu0
    %v5967 = vadd.f32 %v2976, %v5966
    %v5968 = vpop.f32.mrf.mxu0
    %5969 = vdwg.mxu0
    %5970 = vmatpush.bf16.msra.mxu0 %v4908
    %5971 = vmatpush.bf16.msra.mxu0 %v4896
    %5972 = vmatpush.bf16.msra.mxu0 %v4884
    %5973 = vmatpush.bf16.msra.mxu0 %v4872
    %5974 = vmatpush.bf16.msra.mxu0 %v4860
    %5975 = vmatpush.bf16.msra.mxu0 %v4848
    %5976 = vmatpush.bf16.msra.mxu0 %v4836
    %5977 = vmatpush.bf16.msra.mxu0 %v4824
    %5978 = vmatmul.bf16.gmra.mxu0 %v2390
    %v5979 = vpop.f32.mrf.mxu0
    %v5980 = vadd.f32 %v5967, %v5979
    %v5981 = vpop.f32.mrf.mxu0
    %5982 = vdwg.mxu0
    %5983 = vmatpush.bf16.msra.mxu0 %v5004
    %5984 = vmatpush.bf16.msra.mxu0 %v4992
    %5985 = vmatpush.bf16.msra.mxu0 %v4980
    %5986 = vmatpush.bf16.msra.mxu0 %v4968
    %5987 = vmatpush.bf16.msra.mxu0 %v4956
    %5988 = vmatpush.bf16.msra.mxu0 %v4944
    %5989 = vmatpush.bf16.msra.mxu0 %v4932
    %5990 = vmatpush.bf16.msra.mxu0 %v4920
    %5991 = vmatmul.bf16.gmra.mxu0 %v2391
    %v5992 = vpop.f32.mrf.mxu0
    %v5993 = vadd.f32 %v5980, %v5992
    %v5994 = vpop.f32.mrf.mxu0
    %5995 = vdwg.mxu0
    %5996 = vmatpush.bf16.msra.mxu0 %v5100
    %5997 = vmatpush.bf16.msra.mxu0 %v5088
    %5998 = vmatpush.bf16.msra.mxu0 %v5076
    %5999 = vmatpush.bf16.msra.mxu0 %v5064
    %6000 = vmatpush.bf16.msra.mxu0 %v5052
    %6001 = vmatpush.bf16.msra.mxu0 %v5040
    %6002 = vmatpush.bf16.msra.mxu0 %v5028
    %6003 = vmatpush.bf16.msra.mxu0 %v5016
    %6004 = vmatmul.bf16.gmra.mxu0 %v2392
    %v6005 = vpop.f32.mrf.mxu0
    %v6006 = vadd.f32 %v5993, %v6005
    %v6007 = vpop.f32.mrf.mxu0
    %6008 = vdwg.mxu0
    %6009 = vmatpush.bf16.msra.mxu0 %v5196
    %6010 = vmatpush.bf16.msra.mxu0 %v5184
    %6011 = vmatpush.bf16.msra.mxu0 %v5172
    %6012 = vmatpush.bf16.msra.mxu0 %v5160
    %6013 = vmatpush.bf16.msra.mxu0 %v5148
    %6014 = vmatpush.bf16.msra.mxu0 %v5136
    %6015 = vmatpush.bf16.msra.mxu0 %v5124
    %6016 = vmatpush.bf16.msra.mxu0 %v5112
    %6017 = vmatmul.bf16.gmra.mxu0 %v2393
    %v6018 = vpop.f32.mrf.mxu0
    %v6019 = vadd.f32 %v6006, %v6018
    %v6020 = vpop.f32.mrf.mxu0
    %6021 = vdwg.mxu0
    %6022 = vmatpush.bf16.msra.mxu0 %v5292
    %6023 = vmatpush.bf16.msra.mxu0 %v5280
    %6024 = vmatpush.bf16.msra.mxu0 %v5268
    %6025 = vmatpush.bf16.msra.mxu0 %v5256
    %6026 = vmatpush.bf16.msra.mxu0 %v5244
    %6027 = vmatpush.bf16.msra.mxu0 %v5232
    %6028 = vmatpush.bf16.msra.mxu0 %v5220
    %6029 = vmatpush.bf16.msra.mxu0 %v5208
    %6030 = vmatmul.bf16.gmra.mxu0 %v2394
    %v6031 = vpop.f32.mrf.mxu0
    %v6032 = vadd.f32 %v6019, %v6031
    %v6033 = vpop.f32.mrf.mxu0
    %6034 = vdwg.mxu0
    %6035 = vmatpush.bf16.msra.mxu0 %v4813
    %6036 = vmatpush.bf16.msra.mxu0 %v4801
    %6037 = vmatpush.bf16.msra.mxu0 %v4789
    %6038 = vmatpush.bf16.msra.mxu0 %v4777
    %6039 = vmatpush.bf16.msra.mxu0 %v4765
    %6040 = vmatpush.bf16.msra.mxu0 %v4753
    %6041 = vmatpush.bf16.msra.mxu0 %v4741
    %6042 = vmatpush.bf16.msra.mxu0 %v4729
    %6043 = vmatmul.bf16.gmra.mxu0 %v2389
    %v6044 = vpop.f32.mrf.mxu0
    %v6045 = vadd.f32 %v2977, %v6044
    %v6046 = vpop.f32.mrf.mxu0
    %6047 = vdwg.mxu0
    %6048 = vmatpush.bf16.msra.mxu0 %v4909
    %6049 = vmatpush.bf16.msra.mxu0 %v4897
    %6050 = vmatpush.bf16.msra.mxu0 %v4885
    %6051 = vmatpush.bf16.msra.mxu0 %v4873
    %6052 = vmatpush.bf16.msra.mxu0 %v4861
    %6053 = vmatpush.bf16.msra.mxu0 %v4849
    %6054 = vmatpush.bf16.msra.mxu0 %v4837
    %6055 = vmatpush.bf16.msra.mxu0 %v4825
    %6056 = vmatmul.bf16.gmra.mxu0 %v2390
    %v6057 = vpop.f32.mrf.mxu0
    %v6058 = vadd.f32 %v6045, %v6057
    %v6059 = vpop.f32.mrf.mxu0
    %6060 = vdwg.mxu0
    %6061 = vmatpush.bf16.msra.mxu0 %v5005
    %6062 = vmatpush.bf16.msra.mxu0 %v4993
    %6063 = vmatpush.bf16.msra.mxu0 %v4981
    %6064 = vmatpush.bf16.msra.mxu0 %v4969
    %6065 = vmatpush.bf16.msra.mxu0 %v4957
    %6066 = vmatpush.bf16.msra.mxu0 %v4945
    %6067 = vmatpush.bf16.msra.mxu0 %v4933
    %6068 = vmatpush.bf16.msra.mxu0 %v4921
    %6069 = vmatmul.bf16.gmra.mxu0 %v2391
    %v6070 = vpop.f32.mrf.mxu0
    %v6071 = vadd.f32 %v6058, %v6070
    %v6072 = vpop.f32.mrf.mxu0
    %6073 = vdwg.mxu0
    %6074 = vmatpush.bf16.msra.mxu0 %v5101
    %6075 = vmatpush.bf16.msra.mxu0 %v5089
    %6076 = vmatpush.bf16.msra.mxu0 %v5077
    %6077 = vmatpush.bf16.msra.mxu0 %v5065
    %6078 = vmatpush.bf16.msra.mxu0 %v5053
    %6079 = vmatpush.bf16.msra.mxu0 %v5041
    %6080 = vmatpush.bf16.msra.mxu0 %v5029
    %6081 = vmatpush.bf16.msra.mxu0 %v5017
    %6082 = vmatmul.bf16.gmra.mxu0 %v2392
    %v6083 = vpop.f32.mrf.mxu0
    %v6084 = vadd.f32 %v6071, %v6083
    %v6085 = vpop.f32.mrf.mxu0
    %6086 = vdwg.mxu0
    %6087 = vmatpush.bf16.msra.mxu0 %v5197
    %6088 = vmatpush.bf16.msra.mxu0 %v5185
    %6089 = vmatpush.bf16.msra.mxu0 %v5173
    %6090 = vmatpush.bf16.msra.mxu0 %v5161
    %6091 = vmatpush.bf16.msra.mxu0 %v5149
    %6092 = vmatpush.bf16.msra.mxu0 %v5137
    %6093 = vmatpush.bf16.msra.mxu0 %v5125
    %6094 = vmatpush.bf16.msra.mxu0 %v5113
    %6095 = vmatmul.bf16.gmra.mxu0 %v2393
    %v6096 = vpop.f32.mrf.mxu0
    %v6097 = vadd.f32 %v6084, %v6096
    %v6098 = vpop.f32.mrf.mxu0
    %6099 = vdwg.mxu0
    %6100 = vmatpush.bf16.msra.mxu0 %v5293
    %6101 = vmatpush.bf16.msra.mxu0 %v5281
    %6102 = vmatpush.bf16.msra.mxu0 %v5269
    %6103 = vmatpush.bf16.msra.mxu0 %v5257
    %6104 = vmatpush.bf16.msra.mxu0 %v5245
    %6105 = vmatpush.bf16.msra.mxu0 %v5233
    %6106 = vmatpush.bf16.msra.mxu0 %v5221
    %6107 = vmatpush.bf16.msra.mxu0 %v5209
    %6108 = vmatmul.bf16.gmra.mxu0 %v2394
    %v6109 = vpop.f32.mrf.mxu0
    %v6110 = vadd.f32 %v6097, %v6109
    %v6111 = vpop.f32.mrf.mxu0
    %6112 = vdwg.mxu0
    %6113 = vmatpush.bf16.msra.mxu0 %v4814
    %6114 = vmatpush.bf16.msra.mxu0 %v4802
    %6115 = vmatpush.bf16.msra.mxu0 %v4790
    %6116 = vmatpush.bf16.msra.mxu0 %v4778
    %6117 = vmatpush.bf16.msra.mxu0 %v4766
    %6118 = vmatpush.bf16.msra.mxu0 %v4754
    %6119 = vmatpush.bf16.msra.mxu0 %v4742
    %6120 = vmatpush.bf16.msra.mxu0 %v4730
    %6121 = vmatmul.bf16.gmra.mxu0 %v2389
    %v6122 = vpop.f32.mrf.mxu0
    %v6123 = vadd.f32 %v2978, %v6122
    %v6124 = vpop.f32.mrf.mxu0
    %6125 = vdwg.mxu0
    %6126 = vmatpush.bf16.msra.mxu0 %v4910
    %6127 = vmatpush.bf16.msra.mxu0 %v4898
    %6128 = vmatpush.bf16.msra.mxu0 %v4886
    %6129 = vmatpush.bf16.msra.mxu0 %v4874
    %6130 = vmatpush.bf16.msra.mxu0 %v4862
    %6131 = vmatpush.bf16.msra.mxu0 %v4850
    %6132 = vmatpush.bf16.msra.mxu0 %v4838
    %6133 = vmatpush.bf16.msra.mxu0 %v4826
    %6134 = vmatmul.bf16.gmra.mxu0 %v2390
    %v6135 = vpop.f32.mrf.mxu0
    %v6136 = vadd.f32 %v6123, %v6135
    %v6137 = vpop.f32.mrf.mxu0
    %6138 = vdwg.mxu0
    %6139 = vmatpush.bf16.msra.mxu0 %v5006
    %6140 = vmatpush.bf16.msra.mxu0 %v4994
    %6141 = vmatpush.bf16.msra.mxu0 %v4982
    %6142 = vmatpush.bf16.msra.mxu0 %v4970
    %6143 = vmatpush.bf16.msra.mxu0 %v4958
    %6144 = vmatpush.bf16.msra.mxu0 %v4946
    %6145 = vmatpush.bf16.msra.mxu0 %v4934
    %6146 = vmatpush.bf16.msra.mxu0 %v4922
    %6147 = vmatmul.bf16.gmra.mxu0 %v2391
    %v6148 = vpop.f32.mrf.mxu0
    %v6149 = vadd.f32 %v6136, %v6148
    %v6150 = vpop.f32.mrf.mxu0
    %6151 = vdwg.mxu0
    %6152 = vmatpush.bf16.msra.mxu0 %v5102
    %6153 = vmatpush.bf16.msra.mxu0 %v5090
    %6154 = vmatpush.bf16.msra.mxu0 %v5078
    %6155 = vmatpush.bf16.msra.mxu0 %v5066
    %6156 = vmatpush.bf16.msra.mxu0 %v5054
    %6157 = vmatpush.bf16.msra.mxu0 %v5042
    %6158 = vmatpush.bf16.msra.mxu0 %v5030
    %6159 = vmatpush.bf16.msra.mxu0 %v5018
    %6160 = vmatmul.bf16.gmra.mxu0 %v2392
    %v6161 = vpop.f32.mrf.mxu0
    %v6162 = vadd.f32 %v6149, %v6161
    %v6163 = vpop.f32.mrf.mxu0
    %6164 = vdwg.mxu0
    %6165 = vmatpush.bf16.msra.mxu0 %v5198
    %6166 = vmatpush.bf16.msra.mxu0 %v5186
    %6167 = vmatpush.bf16.msra.mxu0 %v5174
    %6168 = vmatpush.bf16.msra.mxu0 %v5162
    %6169 = vmatpush.bf16.msra.mxu0 %v5150
    %6170 = vmatpush.bf16.msra.mxu0 %v5138
    %6171 = vmatpush.bf16.msra.mxu0 %v5126
    %6172 = vmatpush.bf16.msra.mxu0 %v5114
    %6173 = vmatmul.bf16.gmra.mxu0 %v2393
    %v6174 = vpop.f32.mrf.mxu0
    %v6175 = vadd.f32 %v6162, %v6174
    %v6176 = vpop.f32.mrf.mxu0
    %6177 = vdwg.mxu0
    %6178 = vmatpush.bf16.msra.mxu0 %v5294
    %6179 = vmatpush.bf16.msra.mxu0 %v5282
    %6180 = vmatpush.bf16.msra.mxu0 %v5270
    %6181 = vmatpush.bf16.msra.mxu0 %v5258
    %6182 = vmatpush.bf16.msra.mxu0 %v5246
    %6183 = vmatpush.bf16.msra.mxu0 %v5234
    %6184 = vmatpush.bf16.msra.mxu0 %v5222
    %6185 = vmatpush.bf16.msra.mxu0 %v5210
    %6186 = vmatmul.bf16.gmra.mxu0 %v2394
    %v6187 = vpop.f32.mrf.mxu0
    %v6188 = vadd.f32 %v6175, %v6187
    %v6189 = vpop.f32.mrf.mxu0
    %6190 = vdwg.mxu0
    %6191 = vmatpush.bf16.msra.mxu0 %v4815
    %6192 = vmatpush.bf16.msra.mxu0 %v4803
    %6193 = vmatpush.bf16.msra.mxu0 %v4791
    %6194 = vmatpush.bf16.msra.mxu0 %v4779
    %6195 = vmatpush.bf16.msra.mxu0 %v4767
    %6196 = vmatpush.bf16.msra.mxu0 %v4755
    %6197 = vmatpush.bf16.msra.mxu0 %v4743
    %6198 = vmatpush.bf16.msra.mxu0 %v4731
    %6199 = vmatmul.bf16.gmra.mxu0 %v2389
    %v6200 = vpop.f32.mrf.mxu0
    %v6201 = vadd.f32 %v2979, %v6200
    %v6202 = vpop.f32.mrf.mxu0
    %6203 = vdwg.mxu0
    %6204 = vmatpush.bf16.msra.mxu0 %v4911
    %6205 = vmatpush.bf16.msra.mxu0 %v4899
    %6206 = vmatpush.bf16.msra.mxu0 %v4887
    %6207 = vmatpush.bf16.msra.mxu0 %v4875
    %6208 = vmatpush.bf16.msra.mxu0 %v4863
    %6209 = vmatpush.bf16.msra.mxu0 %v4851
    %6210 = vmatpush.bf16.msra.mxu0 %v4839
    %6211 = vmatpush.bf16.msra.mxu0 %v4827
    %6212 = vmatmul.bf16.gmra.mxu0 %v2390
    %v6213 = vpop.f32.mrf.mxu0
    %v6214 = vadd.f32 %v6201, %v6213
    %v6215 = vpop.f32.mrf.mxu0
    %6216 = vdwg.mxu0
    %6217 = vmatpush.bf16.msra.mxu0 %v5007
    %6218 = vmatpush.bf16.msra.mxu0 %v4995
    %6219 = vmatpush.bf16.msra.mxu0 %v4983
    %6220 = vmatpush.bf16.msra.mxu0 %v4971
    %6221 = vmatpush.bf16.msra.mxu0 %v4959
    %6222 = vmatpush.bf16.msra.mxu0 %v4947
    %6223 = vmatpush.bf16.msra.mxu0 %v4935
    %6224 = vmatpush.bf16.msra.mxu0 %v4923
    %6225 = vmatmul.bf16.gmra.mxu0 %v2391
    %v6226 = vpop.f32.mrf.mxu0
    %v6227 = vadd.f32 %v6214, %v6226
    %v6228 = vpop.f32.mrf.mxu0
    %6229 = vdwg.mxu0
    %6230 = vmatpush.bf16.msra.mxu0 %v5103
    %6231 = vmatpush.bf16.msra.mxu0 %v5091
    %6232 = vmatpush.bf16.msra.mxu0 %v5079
    %6233 = vmatpush.bf16.msra.mxu0 %v5067
    %6234 = vmatpush.bf16.msra.mxu0 %v5055
    %6235 = vmatpush.bf16.msra.mxu0 %v5043
    %6236 = vmatpush.bf16.msra.mxu0 %v5031
    %6237 = vmatpush.bf16.msra.mxu0 %v5019
    %6238 = vmatmul.bf16.gmra.mxu0 %v2392
    %v6239 = vpop.f32.mrf.mxu0
    %v6240 = vadd.f32 %v6227, %v6239
    %v6241 = vpop.f32.mrf.mxu0
    %6242 = vdwg.mxu0
    %6243 = vmatpush.bf16.msra.mxu0 %v5199
    %6244 = vmatpush.bf16.msra.mxu0 %v5187
    %6245 = vmatpush.bf16.msra.mxu0 %v5175
    %6246 = vmatpush.bf16.msra.mxu0 %v5163
    %6247 = vmatpush.bf16.msra.mxu0 %v5151
    %6248 = vmatpush.bf16.msra.mxu0 %v5139
    %6249 = vmatpush.bf16.msra.mxu0 %v5127
    %6250 = vmatpush.bf16.msra.mxu0 %v5115
    %6251 = vmatmul.bf16.gmra.mxu0 %v2393
    %v6252 = vpop.f32.mrf.mxu0
    %v6253 = vadd.f32 %v6240, %v6252
    %v6254 = vpop.f32.mrf.mxu0
    %6255 = vdwg.mxu0
    %6256 = vmatpush.bf16.msra.mxu0 %v5295
    %6257 = vmatpush.bf16.msra.mxu0 %v5283
    %6258 = vmatpush.bf16.msra.mxu0 %v5271
    %6259 = vmatpush.bf16.msra.mxu0 %v5259
    %6260 = vmatpush.bf16.msra.mxu0 %v5247
    %6261 = vmatpush.bf16.msra.mxu0 %v5235
    %6262 = vmatpush.bf16.msra.mxu0 %v5223
    %6263 = vmatpush.bf16.msra.mxu0 %v5211
    %6264 = vmatmul.bf16.gmra.mxu0 %v2394
    %v6265 = vpop.f32.mrf.mxu0
    %v6266 = vadd.f32 %v6253, %v6265
    %v6267 = vpop.f32.mrf.mxu0
    %6268 = vdwg.mxu0
    %6269 = vmatpush.bf16.msra.mxu0 %v4816
    %6270 = vmatpush.bf16.msra.mxu0 %v4804
    %6271 = vmatpush.bf16.msra.mxu0 %v4792
    %6272 = vmatpush.bf16.msra.mxu0 %v4780
    %6273 = vmatpush.bf16.msra.mxu0 %v4768
    %6274 = vmatpush.bf16.msra.mxu0 %v4756
    %6275 = vmatpush.bf16.msra.mxu0 %v4744
    %6276 = vmatpush.bf16.msra.mxu0 %v4732
    %6277 = vmatmul.bf16.gmra.mxu0 %v2389
    %v6278 = vpop.f32.mrf.mxu0
    %v6279 = vadd.f32 %v2980, %v6278
    %v6280 = vpop.f32.mrf.mxu0
    %6281 = vdwg.mxu0
    %6282 = vmatpush.bf16.msra.mxu0 %v4912
    %6283 = vmatpush.bf16.msra.mxu0 %v4900
    %6284 = vmatpush.bf16.msra.mxu0 %v4888
    %6285 = vmatpush.bf16.msra.mxu0 %v4876
    %6286 = vmatpush.bf16.msra.mxu0 %v4864
    %6287 = vmatpush.bf16.msra.mxu0 %v4852
    %6288 = vmatpush.bf16.msra.mxu0 %v4840
    %6289 = vmatpush.bf16.msra.mxu0 %v4828
    %6290 = vmatmul.bf16.gmra.mxu0 %v2390
    %v6291 = vpop.f32.mrf.mxu0
    %v6292 = vadd.f32 %v6279, %v6291
    %v6293 = vpop.f32.mrf.mxu0
    %6294 = vdwg.mxu0
    %6295 = vmatpush.bf16.msra.mxu0 %v5008
    %6296 = vmatpush.bf16.msra.mxu0 %v4996
    %6297 = vmatpush.bf16.msra.mxu0 %v4984
    %6298 = vmatpush.bf16.msra.mxu0 %v4972
    %6299 = vmatpush.bf16.msra.mxu0 %v4960
    %6300 = vmatpush.bf16.msra.mxu0 %v4948
    %6301 = vmatpush.bf16.msra.mxu0 %v4936
    %6302 = vmatpush.bf16.msra.mxu0 %v4924
    %6303 = vmatmul.bf16.gmra.mxu0 %v2391
    %v6304 = vpop.f32.mrf.mxu0
    %v6305 = vadd.f32 %v6292, %v6304
    %v6306 = vpop.f32.mrf.mxu0
    %6307 = vdwg.mxu0
    %6308 = vmatpush.bf16.msra.mxu0 %v5104
    %6309 = vmatpush.bf16.msra.mxu0 %v5092
    %6310 = vmatpush.bf16.msra.mxu0 %v5080
    %6311 = vmatpush.bf16.msra.mxu0 %v5068
    %6312 = vmatpush.bf16.msra.mxu0 %v5056
    %6313 = vmatpush.bf16.msra.mxu0 %v5044
    %6314 = vmatpush.bf16.msra.mxu0 %v5032
    %6315 = vmatpush.bf16.msra.mxu0 %v5020
    %6316 = vmatmul.bf16.gmra.mxu0 %v2392
    %v6317 = vpop.f32.mrf.mxu0
    %v6318 = vadd.f32 %v6305, %v6317
    %v6319 = vpop.f32.mrf.mxu0
    %6320 = vdwg.mxu0
    %6321 = vmatpush.bf16.msra.mxu0 %v5200
    %6322 = vmatpush.bf16.msra.mxu0 %v5188
    %6323 = vmatpush.bf16.msra.mxu0 %v5176
    %6324 = vmatpush.bf16.msra.mxu0 %v5164
    %6325 = vmatpush.bf16.msra.mxu0 %v5152
    %6326 = vmatpush.bf16.msra.mxu0 %v5140
    %6327 = vmatpush.bf16.msra.mxu0 %v5128
    %6328 = vmatpush.bf16.msra.mxu0 %v5116
    %6329 = vmatmul.bf16.gmra.mxu0 %v2393
    %v6330 = vpop.f32.mrf.mxu0
    %v6331 = vadd.f32 %v6318, %v6330
    %v6332 = vpop.f32.mrf.mxu0
    %6333 = vdwg.mxu0
    %6334 = vmatpush.bf16.msra.mxu0 %v5296
    %6335 = vmatpush.bf16.msra.mxu0 %v5284
    %6336 = vmatpush.bf16.msra.mxu0 %v5272
    %6337 = vmatpush.bf16.msra.mxu0 %v5260
    %6338 = vmatpush.bf16.msra.mxu0 %v5248
    %6339 = vmatpush.bf16.msra.mxu0 %v5236
    %6340 = vmatpush.bf16.msra.mxu0 %v5224
    %6341 = vmatpush.bf16.msra.mxu0 %v5212
    %6342 = vmatmul.bf16.gmra.mxu0 %v2394
    %v6343 = vpop.f32.mrf.mxu0
    %v6344 = vadd.f32 %v6331, %v6343
    %v6345 = vpop.f32.mrf.mxu0
    %6346 = vdwg.mxu0
    %6347 = vmatpush.bf16.msra.mxu0 %v4817
    %6348 = vmatpush.bf16.msra.mxu0 %v4805
    %6349 = vmatpush.bf16.msra.mxu0 %v4793
    %6350 = vmatpush.bf16.msra.mxu0 %v4781
    %6351 = vmatpush.bf16.msra.mxu0 %v4769
    %6352 = vmatpush.bf16.msra.mxu0 %v4757
    %6353 = vmatpush.bf16.msra.mxu0 %v4745
    %6354 = vmatpush.bf16.msra.mxu0 %v4733
    %6355 = vmatmul.bf16.gmra.mxu0 %v2389
    %v6356 = vpop.f32.mrf.mxu0
    %v6357 = vadd.f32 %v2981, %v6356
    %v6358 = vpop.f32.mrf.mxu0
    %6359 = vdwg.mxu0
    %6360 = vmatpush.bf16.msra.mxu0 %v4913
    %6361 = vmatpush.bf16.msra.mxu0 %v4901
    %6362 = vmatpush.bf16.msra.mxu0 %v4889
    %6363 = vmatpush.bf16.msra.mxu0 %v4877
    %6364 = vmatpush.bf16.msra.mxu0 %v4865
    %6365 = vmatpush.bf16.msra.mxu0 %v4853
    %6366 = vmatpush.bf16.msra.mxu0 %v4841
    %6367 = vmatpush.bf16.msra.mxu0 %v4829
    %6368 = vmatmul.bf16.gmra.mxu0 %v2390
    %v6369 = vpop.f32.mrf.mxu0
    %v6370 = vadd.f32 %v6357, %v6369
    %v6371 = vpop.f32.mrf.mxu0
    %6372 = vdwg.mxu0
    %6373 = vmatpush.bf16.msra.mxu0 %v5009
    %6374 = vmatpush.bf16.msra.mxu0 %v4997
    %6375 = vmatpush.bf16.msra.mxu0 %v4985
    %6376 = vmatpush.bf16.msra.mxu0 %v4973
    %6377 = vmatpush.bf16.msra.mxu0 %v4961
    %6378 = vmatpush.bf16.msra.mxu0 %v4949
    %6379 = vmatpush.bf16.msra.mxu0 %v4937
    %6380 = vmatpush.bf16.msra.mxu0 %v4925
    %6381 = vmatmul.bf16.gmra.mxu0 %v2391
    %v6382 = vpop.f32.mrf.mxu0
    %v6383 = vadd.f32 %v6370, %v6382
    %v6384 = vpop.f32.mrf.mxu0
    %6385 = vdwg.mxu0
    %6386 = vmatpush.bf16.msra.mxu0 %v5105
    %6387 = vmatpush.bf16.msra.mxu0 %v5093
    %6388 = vmatpush.bf16.msra.mxu0 %v5081
    %6389 = vmatpush.bf16.msra.mxu0 %v5069
    %6390 = vmatpush.bf16.msra.mxu0 %v5057
    %6391 = vmatpush.bf16.msra.mxu0 %v5045
    %6392 = vmatpush.bf16.msra.mxu0 %v5033
    %6393 = vmatpush.bf16.msra.mxu0 %v5021
    %6394 = vmatmul.bf16.gmra.mxu0 %v2392
    %v6395 = vpop.f32.mrf.mxu0
    %v6396 = vadd.f32 %v6383, %v6395
    %v6397 = vpop.f32.mrf.mxu0
    %6398 = vdwg.mxu0
    %6399 = vmatpush.bf16.msra.mxu0 %v5201
    %6400 = vmatpush.bf16.msra.mxu0 %v5189
    %6401 = vmatpush.bf16.msra.mxu0 %v5177
    %6402 = vmatpush.bf16.msra.mxu0 %v5165
    %6403 = vmatpush.bf16.msra.mxu0 %v5153
    %6404 = vmatpush.bf16.msra.mxu0 %v5141
    %6405 = vmatpush.bf16.msra.mxu0 %v5129
    %6406 = vmatpush.bf16.msra.mxu0 %v5117
    %6407 = vmatmul.bf16.gmra.mxu0 %v2393
    %v6408 = vpop.f32.mrf.mxu0
    %v6409 = vadd.f32 %v6396, %v6408
    %v6410 = vpop.f32.mrf.mxu0
    %6411 = vdwg.mxu0
    %6412 = vmatpush.bf16.msra.mxu0 %v5297
    %6413 = vmatpush.bf16.msra.mxu0 %v5285
    %6414 = vmatpush.bf16.msra.mxu0 %v5273
    %6415 = vmatpush.bf16.msra.mxu0 %v5261
    %6416 = vmatpush.bf16.msra.mxu0 %v5249
    %6417 = vmatpush.bf16.msra.mxu0 %v5237
    %6418 = vmatpush.bf16.msra.mxu0 %v5225
    %6419 = vmatpush.bf16.msra.mxu0 %v5213
    %6420 = vmatmul.bf16.gmra.mxu0 %v2394
    %v6421 = vpop.f32.mrf.mxu0
    %v6422 = vadd.f32 %v6409, %v6421
    %v6423 = vpop.f32.mrf.mxu0
    %6424 = vdwg.mxu0
    %6425 = vmatpush.bf16.msra.mxu0 %v4818
    %6426 = vmatpush.bf16.msra.mxu0 %v4806
    %6427 = vmatpush.bf16.msra.mxu0 %v4794
    %6428 = vmatpush.bf16.msra.mxu0 %v4782
    %6429 = vmatpush.bf16.msra.mxu0 %v4770
    %6430 = vmatpush.bf16.msra.mxu0 %v4758
    %6431 = vmatpush.bf16.msra.mxu0 %v4746
    %6432 = vmatpush.bf16.msra.mxu0 %v4734
    %6433 = vmatmul.bf16.gmra.mxu0 %v2389
    %v6434 = vpop.f32.mrf.mxu0
    %v6435 = vadd.f32 %v2982, %v6434
    %v6436 = vpop.f32.mrf.mxu0
    %6437 = vdwg.mxu0
    %6438 = vmatpush.bf16.msra.mxu0 %v4914
    %6439 = vmatpush.bf16.msra.mxu0 %v4902
    %6440 = vmatpush.bf16.msra.mxu0 %v4890
    %6441 = vmatpush.bf16.msra.mxu0 %v4878
    %6442 = vmatpush.bf16.msra.mxu0 %v4866
    %6443 = vmatpush.bf16.msra.mxu0 %v4854
    %6444 = vmatpush.bf16.msra.mxu0 %v4842
    %6445 = vmatpush.bf16.msra.mxu0 %v4830
    %6446 = vmatmul.bf16.gmra.mxu0 %v2390
    %v6447 = vpop.f32.mrf.mxu0
    %v6448 = vadd.f32 %v6435, %v6447
    %v6449 = vpop.f32.mrf.mxu0
    %6450 = vdwg.mxu0
    %6451 = vmatpush.bf16.msra.mxu0 %v5010
    %6452 = vmatpush.bf16.msra.mxu0 %v4998
    %6453 = vmatpush.bf16.msra.mxu0 %v4986
    %6454 = vmatpush.bf16.msra.mxu0 %v4974
    %6455 = vmatpush.bf16.msra.mxu0 %v4962
    %6456 = vmatpush.bf16.msra.mxu0 %v4950
    %6457 = vmatpush.bf16.msra.mxu0 %v4938
    %6458 = vmatpush.bf16.msra.mxu0 %v4926
    %6459 = vmatmul.bf16.gmra.mxu0 %v2391
    %v6460 = vpop.f32.mrf.mxu0
    %v6461 = vadd.f32 %v6448, %v6460
    %v6462 = vpop.f32.mrf.mxu0
    %6463 = vdwg.mxu0
    %6464 = vmatpush.bf16.msra.mxu0 %v5106
    %6465 = vmatpush.bf16.msra.mxu0 %v5094
    %6466 = vmatpush.bf16.msra.mxu0 %v5082
    %6467 = vmatpush.bf16.msra.mxu0 %v5070
    %6468 = vmatpush.bf16.msra.mxu0 %v5058
    %6469 = vmatpush.bf16.msra.mxu0 %v5046
    %6470 = vmatpush.bf16.msra.mxu0 %v5034
    %6471 = vmatpush.bf16.msra.mxu0 %v5022
    %6472 = vmatmul.bf16.gmra.mxu0 %v2392
    %v6473 = vpop.f32.mrf.mxu0
    %v6474 = vadd.f32 %v6461, %v6473
    %v6475 = vpop.f32.mrf.mxu0
    %6476 = vdwg.mxu0
    %6477 = vmatpush.bf16.msra.mxu0 %v5202
    %6478 = vmatpush.bf16.msra.mxu0 %v5190
    %6479 = vmatpush.bf16.msra.mxu0 %v5178
    %6480 = vmatpush.bf16.msra.mxu0 %v5166
    %6481 = vmatpush.bf16.msra.mxu0 %v5154
    %6482 = vmatpush.bf16.msra.mxu0 %v5142
    %6483 = vmatpush.bf16.msra.mxu0 %v5130
    %6484 = vmatpush.bf16.msra.mxu0 %v5118
    %6485 = vmatmul.bf16.gmra.mxu0 %v2393
    %v6486 = vpop.f32.mrf.mxu0
    %v6487 = vadd.f32 %v6474, %v6486
    %v6488 = vpop.f32.mrf.mxu0
    %6489 = vdwg.mxu0
    %6490 = vmatpush.bf16.msra.mxu0 %v5298
    %6491 = vmatpush.bf16.msra.mxu0 %v5286
    %6492 = vmatpush.bf16.msra.mxu0 %v5274
    %6493 = vmatpush.bf16.msra.mxu0 %v5262
    %6494 = vmatpush.bf16.msra.mxu0 %v5250
    %6495 = vmatpush.bf16.msra.mxu0 %v5238
    %6496 = vmatpush.bf16.msra.mxu0 %v5226
    %6497 = vmatpush.bf16.msra.mxu0 %v5214
    %6498 = vmatmul.bf16.gmra.mxu0 %v2394
    %v6499 = vpop.f32.mrf.mxu0
    %v6500 = vadd.f32 %v6487, %v6499
    %v6501 = vpop.f32.mrf.mxu0
    %6502 = vdwg.mxu0
    %6503 = vmatpush.bf16.msra.mxu0 %v4819
    %6504 = vmatpush.bf16.msra.mxu0 %v4807
    %6505 = vmatpush.bf16.msra.mxu0 %v4795
    %6506 = vmatpush.bf16.msra.mxu0 %v4783
    %6507 = vmatpush.bf16.msra.mxu0 %v4771
    %6508 = vmatpush.bf16.msra.mxu0 %v4759
    %6509 = vmatpush.bf16.msra.mxu0 %v4747
    %6510 = vmatpush.bf16.msra.mxu0 %v4735
    %6511 = vmatmul.bf16.gmra.mxu0 %v2389
    %v6512 = vpop.f32.mrf.mxu0
    %v6513 = vadd.f32 %v2983, %v6512
    %v6514 = vpop.f32.mrf.mxu0
    %6515 = vdwg.mxu0
    %6516 = vmatpush.bf16.msra.mxu0 %v4915
    %6517 = vmatpush.bf16.msra.mxu0 %v4903
    %6518 = vmatpush.bf16.msra.mxu0 %v4891
    %6519 = vmatpush.bf16.msra.mxu0 %v4879
    %6520 = vmatpush.bf16.msra.mxu0 %v4867
    %6521 = vmatpush.bf16.msra.mxu0 %v4855
    %6522 = vmatpush.bf16.msra.mxu0 %v4843
    %6523 = vmatpush.bf16.msra.mxu0 %v4831
    %6524 = vmatmul.bf16.gmra.mxu0 %v2390
    %v6525 = vpop.f32.mrf.mxu0
    %v6526 = vadd.f32 %v6513, %v6525
    %v6527 = vpop.f32.mrf.mxu0
    %6528 = vdwg.mxu0
    %6529 = vmatpush.bf16.msra.mxu0 %v5011
    %6530 = vmatpush.bf16.msra.mxu0 %v4999
    %6531 = vmatpush.bf16.msra.mxu0 %v4987
    %6532 = vmatpush.bf16.msra.mxu0 %v4975
    %6533 = vmatpush.bf16.msra.mxu0 %v4963
    %6534 = vmatpush.bf16.msra.mxu0 %v4951
    %6535 = vmatpush.bf16.msra.mxu0 %v4939
    %6536 = vmatpush.bf16.msra.mxu0 %v4927
    %6537 = vmatmul.bf16.gmra.mxu0 %v2391
    %v6538 = vpop.f32.mrf.mxu0
    %v6539 = vadd.f32 %v6526, %v6538
    %v6540 = vpop.f32.mrf.mxu0
    %6541 = vdwg.mxu0
    %6542 = vmatpush.bf16.msra.mxu0 %v5107
    %6543 = vmatpush.bf16.msra.mxu0 %v5095
    %6544 = vmatpush.bf16.msra.mxu0 %v5083
    %6545 = vmatpush.bf16.msra.mxu0 %v5071
    %6546 = vmatpush.bf16.msra.mxu0 %v5059
    %6547 = vmatpush.bf16.msra.mxu0 %v5047
    %6548 = vmatpush.bf16.msra.mxu0 %v5035
    %6549 = vmatpush.bf16.msra.mxu0 %v5023
    %6550 = vmatmul.bf16.gmra.mxu0 %v2392
    %v6551 = vpop.f32.mrf.mxu0
    %v6552 = vadd.f32 %v6539, %v6551
    %v6553 = vpop.f32.mrf.mxu0
    %6554 = vdwg.mxu0
    %6555 = vmatpush.bf16.msra.mxu0 %v5203
    %6556 = vmatpush.bf16.msra.mxu0 %v5191
    %6557 = vmatpush.bf16.msra.mxu0 %v5179
    %6558 = vmatpush.bf16.msra.mxu0 %v5167
    %6559 = vmatpush.bf16.msra.mxu0 %v5155
    %6560 = vmatpush.bf16.msra.mxu0 %v5143
    %6561 = vmatpush.bf16.msra.mxu0 %v5131
    %6562 = vmatpush.bf16.msra.mxu0 %v5119
    %6563 = vmatmul.bf16.gmra.mxu0 %v2393
    %v6564 = vpop.f32.mrf.mxu0
    %v6565 = vadd.f32 %v6552, %v6564
    %v6566 = vpop.f32.mrf.mxu0
    %6567 = vdwg.mxu0
    %6568 = vmatpush.bf16.msra.mxu0 %v5299
    %6569 = vmatpush.bf16.msra.mxu0 %v5287
    %6570 = vmatpush.bf16.msra.mxu0 %v5275
    %6571 = vmatpush.bf16.msra.mxu0 %v5263
    %6572 = vmatpush.bf16.msra.mxu0 %v5251
    %6573 = vmatpush.bf16.msra.mxu0 %v5239
    %6574 = vmatpush.bf16.msra.mxu0 %v5227
    %6575 = vmatpush.bf16.msra.mxu0 %v5215
    %6576 = vmatmul.bf16.gmra.mxu0 %v2394
    %v6577 = vpop.f32.mrf.mxu0
    %v6578 = vadd.f32 %v6565, %v6577
    %v6579 = vpop.f32.mrf.mxu0
    %6580 = vdwg.mxu0
    %6581 = vmatpush.bf16.msra.mxu0 %v4820
    %6582 = vmatpush.bf16.msra.mxu0 %v4808
    %6583 = vmatpush.bf16.msra.mxu0 %v4796
    %6584 = vmatpush.bf16.msra.mxu0 %v4784
    %6585 = vmatpush.bf16.msra.mxu0 %v4772
    %6586 = vmatpush.bf16.msra.mxu0 %v4760
    %6587 = vmatpush.bf16.msra.mxu0 %v4748
    %6588 = vmatpush.bf16.msra.mxu0 %v4736
    %6589 = vmatmul.bf16.gmra.mxu0 %v2389
    %v6590 = vpop.f32.mrf.mxu0
    %v6591 = vadd.f32 %v2984, %v6590
    %v6592 = vpop.f32.mrf.mxu0
    %6593 = vdwg.mxu0
    %6594 = vmatpush.bf16.msra.mxu0 %v4916
    %6595 = vmatpush.bf16.msra.mxu0 %v4904
    %6596 = vmatpush.bf16.msra.mxu0 %v4892
    %6597 = vmatpush.bf16.msra.mxu0 %v4880
    %6598 = vmatpush.bf16.msra.mxu0 %v4868
    %6599 = vmatpush.bf16.msra.mxu0 %v4856
    %6600 = vmatpush.bf16.msra.mxu0 %v4844
    %6601 = vmatpush.bf16.msra.mxu0 %v4832
    %6602 = vmatmul.bf16.gmra.mxu0 %v2390
    %v6603 = vpop.f32.mrf.mxu0
    %v6604 = vadd.f32 %v6591, %v6603
    %v6605 = vpop.f32.mrf.mxu0
    %6606 = vdwg.mxu0
    %6607 = vmatpush.bf16.msra.mxu0 %v5012
    %6608 = vmatpush.bf16.msra.mxu0 %v5000
    %6609 = vmatpush.bf16.msra.mxu0 %v4988
    %6610 = vmatpush.bf16.msra.mxu0 %v4976
    %6611 = vmatpush.bf16.msra.mxu0 %v4964
    %6612 = vmatpush.bf16.msra.mxu0 %v4952
    %6613 = vmatpush.bf16.msra.mxu0 %v4940
    %6614 = vmatpush.bf16.msra.mxu0 %v4928
    %6615 = vmatmul.bf16.gmra.mxu0 %v2391
    %v6616 = vpop.f32.mrf.mxu0
    %v6617 = vadd.f32 %v6604, %v6616
    %v6618 = vpop.f32.mrf.mxu0
    %6619 = vdwg.mxu0
    %6620 = vmatpush.bf16.msra.mxu0 %v5108
    %6621 = vmatpush.bf16.msra.mxu0 %v5096
    %6622 = vmatpush.bf16.msra.mxu0 %v5084
    %6623 = vmatpush.bf16.msra.mxu0 %v5072
    %6624 = vmatpush.bf16.msra.mxu0 %v5060
    %6625 = vmatpush.bf16.msra.mxu0 %v5048
    %6626 = vmatpush.bf16.msra.mxu0 %v5036
    %6627 = vmatpush.bf16.msra.mxu0 %v5024
    %6628 = vmatmul.bf16.gmra.mxu0 %v2392
    %v6629 = vpop.f32.mrf.mxu0
    %v6630 = vadd.f32 %v6617, %v6629
    %v6631 = vpop.f32.mrf.mxu0
    %6632 = vdwg.mxu0
    %6633 = vmatpush.bf16.msra.mxu0 %v5204
    %6634 = vmatpush.bf16.msra.mxu0 %v5192
    %6635 = vmatpush.bf16.msra.mxu0 %v5180
    %6636 = vmatpush.bf16.msra.mxu0 %v5168
    %6637 = vmatpush.bf16.msra.mxu0 %v5156
    %6638 = vmatpush.bf16.msra.mxu0 %v5144
    %6639 = vmatpush.bf16.msra.mxu0 %v5132
    %6640 = vmatpush.bf16.msra.mxu0 %v5120
    %6641 = vmatmul.bf16.gmra.mxu0 %v2393
    %v6642 = vpop.f32.mrf.mxu0
    %v6643 = vadd.f32 %v6630, %v6642
    %v6644 = vpop.f32.mrf.mxu0
    %6645 = vdwg.mxu0
    %6646 = vmatpush.bf16.msra.mxu0 %v5300
    %6647 = vmatpush.bf16.msra.mxu0 %v5288
    %6648 = vmatpush.bf16.msra.mxu0 %v5276
    %6649 = vmatpush.bf16.msra.mxu0 %v5264
    %6650 = vmatpush.bf16.msra.mxu0 %v5252
    %6651 = vmatpush.bf16.msra.mxu0 %v5240
    %6652 = vmatpush.bf16.msra.mxu0 %v5228
    %6653 = vmatpush.bf16.msra.mxu0 %v5216
    %6654 = vmatmul.bf16.gmra.mxu0 %v2394
    %v6655 = vpop.f32.mrf.mxu0
    %v6656 = vadd.f32 %v6643, %v6655
    %v6657 = vpop.f32.mrf.mxu0
    %6658 = vdwg.mxu0
    %6659 = vmatpush.bf16.msra.mxu0 %v4821
    %6660 = vmatpush.bf16.msra.mxu0 %v4809
    %6661 = vmatpush.bf16.msra.mxu0 %v4797
    %6662 = vmatpush.bf16.msra.mxu0 %v4785
    %6663 = vmatpush.bf16.msra.mxu0 %v4773
    %6664 = vmatpush.bf16.msra.mxu0 %v4761
    %6665 = vmatpush.bf16.msra.mxu0 %v4749
    %6666 = vmatpush.bf16.msra.mxu0 %v4737
    %6667 = vmatmul.bf16.gmra.mxu0 %v2389
    %v6668 = vpop.f32.mrf.mxu0
    %v6669 = vadd.f32 %v2985, %v6668
    %v6670 = vpop.f32.mrf.mxu0
    %6671 = vdwg.mxu0
    %6672 = vmatpush.bf16.msra.mxu0 %v4917
    %6673 = vmatpush.bf16.msra.mxu0 %v4905
    %6674 = vmatpush.bf16.msra.mxu0 %v4893
    %6675 = vmatpush.bf16.msra.mxu0 %v4881
    %6676 = vmatpush.bf16.msra.mxu0 %v4869
    %6677 = vmatpush.bf16.msra.mxu0 %v4857
    %6678 = vmatpush.bf16.msra.mxu0 %v4845
    %6679 = vmatpush.bf16.msra.mxu0 %v4833
    %6680 = vmatmul.bf16.gmra.mxu0 %v2390
    %v6681 = vpop.f32.mrf.mxu0
    %v6682 = vadd.f32 %v6669, %v6681
    %v6683 = vpop.f32.mrf.mxu0
    %6684 = vdwg.mxu0
    %6685 = vmatpush.bf16.msra.mxu0 %v5013
    %6686 = vmatpush.bf16.msra.mxu0 %v5001
    %6687 = vmatpush.bf16.msra.mxu0 %v4989
    %6688 = vmatpush.bf16.msra.mxu0 %v4977
    %6689 = vmatpush.bf16.msra.mxu0 %v4965
    %6690 = vmatpush.bf16.msra.mxu0 %v4953
    %6691 = vmatpush.bf16.msra.mxu0 %v4941
    %6692 = vmatpush.bf16.msra.mxu0 %v4929
    %6693 = vmatmul.bf16.gmra.mxu0 %v2391
    %v6694 = vpop.f32.mrf.mxu0
    %v6695 = vadd.f32 %v6682, %v6694
    %v6696 = vpop.f32.mrf.mxu0
    %6697 = vdwg.mxu0
    %6698 = vmatpush.bf16.msra.mxu0 %v5109
    %6699 = vmatpush.bf16.msra.mxu0 %v5097
    %6700 = vmatpush.bf16.msra.mxu0 %v5085
    %6701 = vmatpush.bf16.msra.mxu0 %v5073
    %6702 = vmatpush.bf16.msra.mxu0 %v5061
    %6703 = vmatpush.bf16.msra.mxu0 %v5049
    %6704 = vmatpush.bf16.msra.mxu0 %v5037
    %6705 = vmatpush.bf16.msra.mxu0 %v5025
    %6706 = vmatmul.bf16.gmra.mxu0 %v2392
    %v6707 = vpop.f32.mrf.mxu0
    %v6708 = vadd.f32 %v6695, %v6707
    %v6709 = vpop.f32.mrf.mxu0
    %6710 = vdwg.mxu0
    %6711 = vmatpush.bf16.msra.mxu0 %v5205
    %6712 = vmatpush.bf16.msra.mxu0 %v5193
    %6713 = vmatpush.bf16.msra.mxu0 %v5181
    %6714 = vmatpush.bf16.msra.mxu0 %v5169
    %6715 = vmatpush.bf16.msra.mxu0 %v5157
    %6716 = vmatpush.bf16.msra.mxu0 %v5145
    %6717 = vmatpush.bf16.msra.mxu0 %v5133
    %6718 = vmatpush.bf16.msra.mxu0 %v5121
    %6719 = vmatmul.bf16.gmra.mxu0 %v2393
    %v6720 = vpop.f32.mrf.mxu0
    %v6721 = vadd.f32 %v6708, %v6720
    %v6722 = vpop.f32.mrf.mxu0
    %6723 = vdwg.mxu0
    %6724 = vmatpush.bf16.msra.mxu0 %v5301
    %6725 = vmatpush.bf16.msra.mxu0 %v5289
    %6726 = vmatpush.bf16.msra.mxu0 %v5277
    %6727 = vmatpush.bf16.msra.mxu0 %v5265
    %6728 = vmatpush.bf16.msra.mxu0 %v5253
    %6729 = vmatpush.bf16.msra.mxu0 %v5241
    %6730 = vmatpush.bf16.msra.mxu0 %v5229
    %6731 = vmatpush.bf16.msra.mxu0 %v5217
    %6732 = vmatmul.bf16.gmra.mxu0 %v2394
    %v6733 = vpop.f32.mrf.mxu0
    %v6734 = vadd.f32 %v6721, %v6733
    %v6735 = vpop.f32.mrf.mxu0
    %6736 = vdwg.mxu0
    %6737 = vmatpush.bf16.msra.mxu0 %v4822
    %6738 = vmatpush.bf16.msra.mxu0 %v4810
    %6739 = vmatpush.bf16.msra.mxu0 %v4798
    %6740 = vmatpush.bf16.msra.mxu0 %v4786
    %6741 = vmatpush.bf16.msra.mxu0 %v4774
    %6742 = vmatpush.bf16.msra.mxu0 %v4762
    %6743 = vmatpush.bf16.msra.mxu0 %v4750
    %6744 = vmatpush.bf16.msra.mxu0 %v4738
    %6745 = vmatmul.bf16.gmra.mxu0 %v2389
    %v6746 = vpop.f32.mrf.mxu0
    %v6747 = vadd.f32 %v2986, %v6746
    %v6748 = vpop.f32.mrf.mxu0
    %6749 = vdwg.mxu0
    %6750 = vmatpush.bf16.msra.mxu0 %v4918
    %6751 = vmatpush.bf16.msra.mxu0 %v4906
    %6752 = vmatpush.bf16.msra.mxu0 %v4894
    %6753 = vmatpush.bf16.msra.mxu0 %v4882
    %6754 = vmatpush.bf16.msra.mxu0 %v4870
    %6755 = vmatpush.bf16.msra.mxu0 %v4858
    %6756 = vmatpush.bf16.msra.mxu0 %v4846
    %6757 = vmatpush.bf16.msra.mxu0 %v4834
    %6758 = vmatmul.bf16.gmra.mxu0 %v2390
    %v6759 = vpop.f32.mrf.mxu0
    %v6760 = vadd.f32 %v6747, %v6759
    %v6761 = vpop.f32.mrf.mxu0
    %6762 = vdwg.mxu0
    %6763 = vmatpush.bf16.msra.mxu0 %v5014
    %6764 = vmatpush.bf16.msra.mxu0 %v5002
    %6765 = vmatpush.bf16.msra.mxu0 %v4990
    %6766 = vmatpush.bf16.msra.mxu0 %v4978
    %6767 = vmatpush.bf16.msra.mxu0 %v4966
    %6768 = vmatpush.bf16.msra.mxu0 %v4954
    %6769 = vmatpush.bf16.msra.mxu0 %v4942
    %6770 = vmatpush.bf16.msra.mxu0 %v4930
    %6771 = vmatmul.bf16.gmra.mxu0 %v2391
    %v6772 = vpop.f32.mrf.mxu0
    %v6773 = vadd.f32 %v6760, %v6772
    %v6774 = vpop.f32.mrf.mxu0
    %6775 = vdwg.mxu0
    %6776 = vmatpush.bf16.msra.mxu0 %v5110
    %6777 = vmatpush.bf16.msra.mxu0 %v5098
    %6778 = vmatpush.bf16.msra.mxu0 %v5086
    %6779 = vmatpush.bf16.msra.mxu0 %v5074
    %6780 = vmatpush.bf16.msra.mxu0 %v5062
    %6781 = vmatpush.bf16.msra.mxu0 %v5050
    %6782 = vmatpush.bf16.msra.mxu0 %v5038
    %6783 = vmatpush.bf16.msra.mxu0 %v5026
    %6784 = vmatmul.bf16.gmra.mxu0 %v2392
    %v6785 = vpop.f32.mrf.mxu0
    %v6786 = vadd.f32 %v6773, %v6785
    %v6787 = vpop.f32.mrf.mxu0
    %6788 = vdwg.mxu0
    %6789 = vmatpush.bf16.msra.mxu0 %v5206
    %6790 = vmatpush.bf16.msra.mxu0 %v5194
    %6791 = vmatpush.bf16.msra.mxu0 %v5182
    %6792 = vmatpush.bf16.msra.mxu0 %v5170
    %6793 = vmatpush.bf16.msra.mxu0 %v5158
    %6794 = vmatpush.bf16.msra.mxu0 %v5146
    %6795 = vmatpush.bf16.msra.mxu0 %v5134
    %6796 = vmatpush.bf16.msra.mxu0 %v5122
    %6797 = vmatmul.bf16.gmra.mxu0 %v2393
    %v6798 = vpop.f32.mrf.mxu0
    %v6799 = vadd.f32 %v6786, %v6798
    %v6800 = vpop.f32.mrf.mxu0
    %6801 = vdwg.mxu0
    %6802 = vmatpush.bf16.msra.mxu0 %v5302
    %6803 = vmatpush.bf16.msra.mxu0 %v5290
    %6804 = vmatpush.bf16.msra.mxu0 %v5278
    %6805 = vmatpush.bf16.msra.mxu0 %v5266
    %6806 = vmatpush.bf16.msra.mxu0 %v5254
    %6807 = vmatpush.bf16.msra.mxu0 %v5242
    %6808 = vmatpush.bf16.msra.mxu0 %v5230
    %6809 = vmatpush.bf16.msra.mxu0 %v5218
    %6810 = vmatmul.bf16.gmra.mxu0 %v2394
    %v6811 = vpop.f32.mrf.mxu0
    %v6812 = vadd.f32 %v6799, %v6811
    %v6813 = vpop.f32.mrf.mxu0
    %6814 = vdwg.mxu0
    %v6815 = vtanh.pop %v5954
    %v6816 = vtanh.pop %v6032
    %v6817 = vtanh.pop %v6110
    %v6818 = vtanh.pop %v6188
    %v6819 = vtanh.pop %v6266
    %v6820 = vtanh.pop %v6344
    %v6821 = vtanh.pop %v6422
    %v6822 = vtanh.pop %v6500
    %v6823 = vtanh.pop %v6578
    %v6824 = vtanh.pop %v6656
    %v6825 = vtanh.pop %v6734
    %v6826 = vtanh.pop %v6812
    %v6827 = vpack.c.bf16 %v6815, %v6815
    %v6828 = vpack.c.bf16 %v6816, %v6816
    %v6829 = vpack.c.bf16 %v6817, %v6817
    %v6830 = vpack.c.bf16 %v6818, %v6818
    %v6831 = vpack.c.bf16 %v6819, %v6819
    %v6832 = vpack.c.bf16 %v6820, %v6820
    %v6833 = vpack.c.bf16 %v6821, %v6821
    %v6834 = vpack.c.bf16 %v6822, %v6822
    %v6835 = vpack.c.bf16 %v6823, %v6823
    %v6836 = vpack.c.bf16 %v6824, %v6824
    %v6837 = vpack.c.bf16 %v6825, %v6825
    %v6838 = vpack.c.bf16 %v6826, %v6826
    %v6839 = vld [vmem:[#allocation9] sm:$0xff]
    %v6840 = vld [vmem:[#allocation9 + $0x8] sm:$0xff]
    %v6841 = vld [vmem:[#allocation9 + $0x10] sm:$0xff]
    %v6842 = vld [vmem:[#allocation9 + $0x18] sm:$0xff]
    %v6843 = vld [vmem:[#allocation9 + $0x20] sm:$0xff]
    %v6844 = vld [vmem:[#allocation9 + $0x28] sm:$0xff]
    %v6845 = vld [vmem:[#allocation9 + $0x30] sm:$0xff]
    %v6846 = vld [vmem:[#allocation9 + $0x38] sm:$0xff]
    %v6847 = vld [vmem:[#allocation9 + $0x40] sm:$0xff]
    %v6848 = vld [vmem:[#allocation9 + $0x48] sm:$0xff]
    %v6849 = vld [vmem:[#allocation9 + $0x50] sm:$0xff]
    %v6850 = vld [vmem:[#allocation9 + $0x58] sm:$0xff]
    %v6851 = vld [vmem:[#allocation9 + $0x60] sm:$0xff]
    %v6852 = vld [vmem:[#allocation9 + $0x68] sm:$0xff]
    %v6853 = vld [vmem:[#allocation9 + $0x70] sm:$0xff]
    %v6854 = vld [vmem:[#allocation9 + $0x78] sm:$0xff]
    %v6855 = vld [vmem:[#allocation9 + $0x80] sm:$0xff]
    %v6856 = vld [vmem:[#allocation9 + $0x88] sm:$0xff]
    %v6857 = vld [vmem:[#allocation9 + $0x90] sm:$0xff]
    %v6858 = vld [vmem:[#allocation9 + $0x98] sm:$0xff]
    %v6859 = vld [vmem:[#allocation9 + $0xa0] sm:$0xff]
    %v6860 = vld [vmem:[#allocation9 + $0xa8] sm:$0xff]
    %v6861 = vld [vmem:[#allocation9 + $0xb0] sm:$0xff]
    %v6862 = vld [vmem:[#allocation9 + $0xb8] sm:$0xff]
    %v6863 = vld [vmem:[#allocation9 + $0xc0] sm:$0xff]
    %v6864 = vld [vmem:[#allocation9 + $0xc8] sm:$0xff]
    %v6865 = vld [vmem:[#allocation9 + $0xd0] sm:$0xff]
    %v6866 = vld [vmem:[#allocation9 + $0xd8] sm:$0xff]
    %v6867 = vld [vmem:[#allocation9 + $0xe0] sm:$0xff]
    %v6868 = vld [vmem:[#allocation9 + $0xe8] sm:$0xff]
    %v6869 = vld [vmem:[#allocation9 + $0xf0] sm:$0xff]
    %v6870 = vld [vmem:[#allocation9 + $0xf8] sm:$0xff]
    %v6871 = vld [vmem:[#allocation9 + $0x100] sm:$0xff]
    %v6872 = vld [vmem:[#allocation9 + $0x108] sm:$0xff]
    %v6873 = vld [vmem:[#allocation9 + $0x110] sm:$0xff]
    %v6874 = vld [vmem:[#allocation9 + $0x118] sm:$0xff]
    %v6875 = vld [vmem:[#allocation9 + $0x120] sm:$0xff]
    %v6876 = vld [vmem:[#allocation9 + $0x128] sm:$0xff]
    %v6877 = vld [vmem:[#allocation9 + $0x130] sm:$0xff]
    %v6878 = vld [vmem:[#allocation9 + $0x138] sm:$0xff]
    %v6879 = vld [vmem:[#allocation9 + $0x140] sm:$0xff]
    %v6880 = vld [vmem:[#allocation9 + $0x148] sm:$0xff]
    %v6881 = vld [vmem:[#allocation9 + $0x150] sm:$0xff]
    %v6882 = vld [vmem:[#allocation9 + $0x158] sm:$0xff]
    %v6883 = vld [vmem:[#allocation9 + $0x160] sm:$0xff]
    %v6884 = vld [vmem:[#allocation9 + $0x168] sm:$0xff]
    %v6885 = vld [vmem:[#allocation9 + $0x170] sm:$0xff]
    %v6886 = vld [vmem:[#allocation9 + $0x178] sm:$0xff]
    %v6887 = vld [vmem:[#allocation9 + $0x180] sm:$0xff]
    %v6888 = vld [vmem:[#allocation9 + $0x188] sm:$0xff]
    %v6889 = vld [vmem:[#allocation9 + $0x190] sm:$0xff]
    %v6890 = vld [vmem:[#allocation9 + $0x198] sm:$0xff]
    %v6891 = vld [vmem:[#allocation9 + $0x1a0] sm:$0xff]
    %v6892 = vld [vmem:[#allocation9 + $0x1a8] sm:$0xff]
    %v6893 = vld [vmem:[#allocation9 + $0x1b0] sm:$0xff]
    %v6894 = vld [vmem:[#allocation9 + $0x1b8] sm:$0xff]
    %v6895 = vld [vmem:[#allocation9 + $0x1c0] sm:$0xff]
    %v6896 = vld [vmem:[#allocation9 + $0x1c8] sm:$0xff]
    %v6897 = vld [vmem:[#allocation9 + $0x1d0] sm:$0xff]
    %v6898 = vld [vmem:[#allocation9 + $0x1d8] sm:$0xff]
    %v6899 = vld [vmem:[#allocation9 + $0x1e0] sm:$0xff]
    %v6900 = vld [vmem:[#allocation9 + $0x1e8] sm:$0xff]
    %v6901 = vld [vmem:[#allocation9 + $0x1f0] sm:$0xff]
    %v6902 = vld [vmem:[#allocation9 + $0x1f8] sm:$0xff]
    %v6903 = vld [vmem:[#allocation9 + $0x200] sm:$0xff]
    %v6904 = vld [vmem:[#allocation9 + $0x208] sm:$0xff]
    %v6905 = vld [vmem:[#allocation9 + $0x210] sm:$0xff]
    %v6906 = vld [vmem:[#allocation9 + $0x218] sm:$0xff]
    %v6907 = vld [vmem:[#allocation9 + $0x220] sm:$0xff]
    %v6908 = vld [vmem:[#allocation9 + $0x228] sm:$0xff]
    %v6909 = vld [vmem:[#allocation9 + $0x230] sm:$0xff]
    %v6910 = vld [vmem:[#allocation9 + $0x238] sm:$0xff]
    %v6911 = vld [vmem:[#allocation9 + $0x240] sm:$0xff]
    %v6912 = vld [vmem:[#allocation9 + $0x248] sm:$0xff]
    %v6913 = vld [vmem:[#allocation9 + $0x250] sm:$0xff]
    %v6914 = vld [vmem:[#allocation9 + $0x258] sm:$0xff]
    %v6915 = vld [vmem:[#allocation9 + $0x260] sm:$0xff]
    %v6916 = vld [vmem:[#allocation9 + $0x268] sm:$0xff]
    %v6917 = vld [vmem:[#allocation9 + $0x270] sm:$0xff]
    %v6918 = vld [vmem:[#allocation9 + $0x278] sm:$0xff]
    %v6919 = vld [vmem:[#allocation9 + $0x280] sm:$0xff]
    %v6920 = vld [vmem:[#allocation9 + $0x288] sm:$0xff]
    %v6921 = vld [vmem:[#allocation9 + $0x290] sm:$0xff]
    %v6922 = vld [vmem:[#allocation9 + $0x298] sm:$0xff]
    %v6923 = vld [vmem:[#allocation9 + $0x2a0] sm:$0xff]
    %v6924 = vld [vmem:[#allocation9 + $0x2a8] sm:$0xff]
    %v6925 = vld [vmem:[#allocation9 + $0x2b0] sm:$0xff]
    %v6926 = vld [vmem:[#allocation9 + $0x2b8] sm:$0xff]
    %v6927 = vld [vmem:[#allocation9 + $0x2c0] sm:$0xff]
    %v6928 = vld [vmem:[#allocation9 + $0x2c8] sm:$0xff]
    %v6929 = vld [vmem:[#allocation9 + $0x2d0] sm:$0xff]
    %v6930 = vld [vmem:[#allocation9 + $0x2d8] sm:$0xff]
    %v6931 = vld [vmem:[#allocation9 + $0x2e0] sm:$0xff]
    %v6932 = vld [vmem:[#allocation9 + $0x2e8] sm:$0xff]
    %v6933 = vld [vmem:[#allocation9 + $0x2f0] sm:$0xff]
    %v6934 = vld [vmem:[#allocation9 + $0x2f8] sm:$0xff]
    %v6935 = vld [vmem:[#allocation9 + $0x300] sm:$0xff]
    %v6936 = vld [vmem:[#allocation9 + $0x308] sm:$0xff]
    %v6937 = vld [vmem:[#allocation9 + $0x310] sm:$0xff]
    %v6938 = vld [vmem:[#allocation9 + $0x318] sm:$0xff]
    %v6939 = vld [vmem:[#allocation9 + $0x320] sm:$0xff]
    %v6940 = vld [vmem:[#allocation9 + $0x328] sm:$0xff]
    %v6941 = vld [vmem:[#allocation9 + $0x330] sm:$0xff]
    %v6942 = vld [vmem:[#allocation9 + $0x338] sm:$0xff]
    %v6943 = vld [vmem:[#allocation9 + $0x340] sm:$0xff]
    %v6944 = vld [vmem:[#allocation9 + $0x348] sm:$0xff]
    %v6945 = vld [vmem:[#allocation9 + $0x350] sm:$0xff]
    %v6946 = vld [vmem:[#allocation9 + $0x358] sm:$0xff]
    %v6947 = vld [vmem:[#allocation9 + $0x360] sm:$0xff]
    %v6948 = vld [vmem:[#allocation9 + $0x368] sm:$0xff]
    %v6949 = vld [vmem:[#allocation9 + $0x370] sm:$0xff]
    %v6950 = vld [vmem:[#allocation9 + $0x378] sm:$0xff]
    %v6951 = vld [vmem:[#allocation9 + $0x380] sm:$0xff]
    %v6952 = vld [vmem:[#allocation9 + $0x388] sm:$0xff]
    %v6953 = vld [vmem:[#allocation9 + $0x390] sm:$0xff]
    %v6954 = vld [vmem:[#allocation9 + $0x398] sm:$0xff]
    %v6955 = vld [vmem:[#allocation9 + $0x3a0] sm:$0xff]
    %v6956 = vld [vmem:[#allocation9 + $0x3a8] sm:$0xff]
    %v6957 = vld [vmem:[#allocation9 + $0x3b0] sm:$0xff]
    %v6958 = vld [vmem:[#allocation9 + $0x3b8] sm:$0xff]
    %v6959 = vld [vmem:[#allocation9 + $0x3c0] sm:$0xff]
    %v6960 = vld [vmem:[#allocation9 + $0x3c8] sm:$0xff]
    %v6961 = vld [vmem:[#allocation9 + $0x3d0] sm:$0xff]
    %v6962 = vld [vmem:[#allocation9 + $0x3d8] sm:$0xff]
    %v6963 = vld [vmem:[#allocation9 + $0x3e0] sm:$0xff]
    %v6964 = vld [vmem:[#allocation9 + $0x3e8] sm:$0xff]
    %v6965 = vld [vmem:[#allocation9 + $0x3f0] sm:$0xff]
    %v6966 = vld [vmem:[#allocation9 + $0x3f8] sm:$0xff]
    %v6967 = vld [vmem:[#allocation9 + $0x400] sm:$0xff]
    %v6968 = vld [vmem:[#allocation9 + $0x408] sm:$0xff]
    %v6969 = vld [vmem:[#allocation9 + $0x410] sm:$0xff]
    %v6970 = vld [vmem:[#allocation9 + $0x418] sm:$0xff]
    %v6971 = vld [vmem:[#allocation9 + $0x420] sm:$0xff]
    %v6972 = vld [vmem:[#allocation9 + $0x428] sm:$0xff]
    %v6973 = vld [vmem:[#allocation9 + $0x430] sm:$0xff]
    %v6974 = vld [vmem:[#allocation9 + $0x438] sm:$0xff]
    %v6975 = vld [vmem:[#allocation9 + $0x440] sm:$0xff]
    %v6976 = vld [vmem:[#allocation9 + $0x448] sm:$0xff]
    %v6977 = vld [vmem:[#allocation9 + $0x450] sm:$0xff]
    %v6978 = vld [vmem:[#allocation9 + $0x458] sm:$0xff]
    %v6979 = vld [vmem:[#allocation9 + $0x460] sm:$0xff]
    %v6980 = vld [vmem:[#allocation9 + $0x468] sm:$0xff]
    %v6981 = vld [vmem:[#allocation9 + $0x470] sm:$0xff]
    %v6982 = vld [vmem:[#allocation9 + $0x478] sm:$0xff]
    %v6983 = vld [vmem:[#allocation9 + $0x480] sm:$0xff]
    %v6984 = vld [vmem:[#allocation9 + $0x488] sm:$0xff]
    %v6985 = vld [vmem:[#allocation9 + $0x490] sm:$0xff]
    %v6986 = vld [vmem:[#allocation9 + $0x498] sm:$0xff]
    %v6987 = vld [vmem:[#allocation9 + $0x4a0] sm:$0xff]
    %v6988 = vld [vmem:[#allocation9 + $0x4a8] sm:$0xff]
    %v6989 = vld [vmem:[#allocation9 + $0x4b0] sm:$0xff]
    %v6990 = vld [vmem:[#allocation9 + $0x4b8] sm:$0xff]
    %v6991 = vld [vmem:[#allocation9 + $0x4c0] sm:$0xff]
    %v6992 = vld [vmem:[#allocation9 + $0x4c8] sm:$0xff]
    %v6993 = vld [vmem:[#allocation9 + $0x4d0] sm:$0xff]
    %v6994 = vld [vmem:[#allocation9 + $0x4d8] sm:$0xff]
    %v6995 = vld [vmem:[#allocation9 + $0x4e0] sm:$0xff]
    %v6996 = vld [vmem:[#allocation9 + $0x4e8] sm:$0xff]
    %v6997 = vld [vmem:[#allocation9 + $0x4f0] sm:$0xff]
    %v6998 = vld [vmem:[#allocation9 + $0x4f8] sm:$0xff]
    %v6999 = vld [vmem:[#allocation9 + $0x500] sm:$0xff]
    %v7000 = vld [vmem:[#allocation9 + $0x508] sm:$0xff]
    %v7001 = vld [vmem:[#allocation9 + $0x510] sm:$0xff]
    %v7002 = vld [vmem:[#allocation9 + $0x518] sm:$0xff]
    %v7003 = vld [vmem:[#allocation9 + $0x520] sm:$0xff]
    %v7004 = vld [vmem:[#allocation9 + $0x528] sm:$0xff]
    %v7005 = vld [vmem:[#allocation9 + $0x530] sm:$0xff]
    %v7006 = vld [vmem:[#allocation9 + $0x538] sm:$0xff]
    %v7007 = vld [vmem:[#allocation9 + $0x540] sm:$0xff]
    %v7008 = vld [vmem:[#allocation9 + $0x548] sm:$0xff]
    %v7009 = vld [vmem:[#allocation9 + $0x550] sm:$0xff]
    %v7010 = vld [vmem:[#allocation9 + $0x558] sm:$0xff]
    %v7011 = vld [vmem:[#allocation9 + $0x560] sm:$0xff]
    %v7012 = vld [vmem:[#allocation9 + $0x568] sm:$0xff]
    %v7013 = vld [vmem:[#allocation9 + $0x570] sm:$0xff]
    %v7014 = vld [vmem:[#allocation9 + $0x578] sm:$0xff]
    %v7015 = vld [vmem:[#allocation9 + $0x580] sm:$0xff]
    %v7016 = vld [vmem:[#allocation9 + $0x588] sm:$0xff]
    %v7017 = vld [vmem:[#allocation9 + $0x590] sm:$0xff]
    %v7018 = vld [vmem:[#allocation9 + $0x598] sm:$0xff]
    %v7019 = vld [vmem:[#allocation9 + $0x5a0] sm:$0xff]
    %v7020 = vld [vmem:[#allocation9 + $0x5a8] sm:$0xff]
    %v7021 = vld [vmem:[#allocation9 + $0x5b0] sm:$0xff]
    %v7022 = vld [vmem:[#allocation9 + $0x5b8] sm:$0xff]
    %v7023 = vld [vmem:[#allocation9 + $0x5c0] sm:$0xff]
    %v7024 = vld [vmem:[#allocation9 + $0x5c8] sm:$0xff]
    %v7025 = vld [vmem:[#allocation9 + $0x5d0] sm:$0xff]
    %v7026 = vld [vmem:[#allocation9 + $0x5d8] sm:$0xff]
    %v7027 = vld [vmem:[#allocation9 + $0x5e0] sm:$0xff]
    %v7028 = vld [vmem:[#allocation9 + $0x5e8] sm:$0xff]
    %v7029 = vld [vmem:[#allocation9 + $0x5f0] sm:$0xff]
    %v7030 = vld [vmem:[#allocation9 + $0x5f8] sm:$0xff]
    %v7031 = vld [vmem:[#allocation9 + $0x600] sm:$0xff]
    %v7032 = vld [vmem:[#allocation9 + $0x608] sm:$0xff]
    %v7033 = vld [vmem:[#allocation9 + $0x610] sm:$0xff]
    %v7034 = vld [vmem:[#allocation9 + $0x618] sm:$0xff]
    %v7035 = vld [vmem:[#allocation9 + $0x620] sm:$0xff]
    %v7036 = vld [vmem:[#allocation9 + $0x628] sm:$0xff]
    %v7037 = vld [vmem:[#allocation9 + $0x630] sm:$0xff]
    %v7038 = vld [vmem:[#allocation9 + $0x638] sm:$0xff]
    %v7039 = vld [vmem:[#allocation9 + $0x640] sm:$0xff]
    %v7040 = vld [vmem:[#allocation9 + $0x648] sm:$0xff]
    %v7041 = vld [vmem:[#allocation9 + $0x650] sm:$0xff]
    %v7042 = vld [vmem:[#allocation9 + $0x658] sm:$0xff]
    %v7043 = vld [vmem:[#allocation9 + $0x660] sm:$0xff]
    %v7044 = vld [vmem:[#allocation9 + $0x668] sm:$0xff]
    %v7045 = vld [vmem:[#allocation9 + $0x670] sm:$0xff]
    %v7046 = vld [vmem:[#allocation9 + $0x678] sm:$0xff]
    %v7047 = vld [vmem:[#allocation9 + $0x680] sm:$0xff]
    %v7048 = vld [vmem:[#allocation9 + $0x688] sm:$0xff]
    %v7049 = vld [vmem:[#allocation9 + $0x690] sm:$0xff]
    %v7050 = vld [vmem:[#allocation9 + $0x698] sm:$0xff]
    %v7051 = vld [vmem:[#allocation9 + $0x6a0] sm:$0xff]
    %v7052 = vld [vmem:[#allocation9 + $0x6a8] sm:$0xff]
    %v7053 = vld [vmem:[#allocation9 + $0x6b0] sm:$0xff]
    %v7054 = vld [vmem:[#allocation9 + $0x6b8] sm:$0xff]
    %v7055 = vld [vmem:[#allocation9 + $0x6c0] sm:$0xff]
    %v7056 = vld [vmem:[#allocation9 + $0x6c8] sm:$0xff]
    %v7057 = vld [vmem:[#allocation9 + $0x6d0] sm:$0xff]
    %v7058 = vld [vmem:[#allocation9 + $0x6d8] sm:$0xff]
    %v7059 = vld [vmem:[#allocation9 + $0x6e0] sm:$0xff]
    %v7060 = vld [vmem:[#allocation9 + $0x6e8] sm:$0xff]
    %v7061 = vld [vmem:[#allocation9 + $0x6f0] sm:$0xff]
    %v7062 = vld [vmem:[#allocation9 + $0x6f8] sm:$0xff]
    %v7063 = vld [vmem:[#allocation9 + $0x700] sm:$0xff]
    %v7064 = vld [vmem:[#allocation9 + $0x708] sm:$0xff]
    %v7065 = vld [vmem:[#allocation9 + $0x710] sm:$0xff]
    %v7066 = vld [vmem:[#allocation9 + $0x718] sm:$0xff]
    %v7067 = vld [vmem:[#allocation9 + $0x720] sm:$0xff]
    %v7068 = vld [vmem:[#allocation9 + $0x728] sm:$0xff]
    %v7069 = vld [vmem:[#allocation9 + $0x730] sm:$0xff]
    %v7070 = vld [vmem:[#allocation9 + $0x738] sm:$0xff]
    %v7071 = vld [vmem:[#allocation9 + $0x740] sm:$0xff]
    %v7072 = vld [vmem:[#allocation9 + $0x748] sm:$0xff]
    %v7073 = vld [vmem:[#allocation9 + $0x750] sm:$0xff]
    %v7074 = vld [vmem:[#allocation9 + $0x758] sm:$0xff]
    %v7075 = vld [vmem:[#allocation9 + $0x760] sm:$0xff]
    %v7076 = vld [vmem:[#allocation9 + $0x768] sm:$0xff]
    %v7077 = vld [vmem:[#allocation9 + $0x770] sm:$0xff]
    %v7078 = vld [vmem:[#allocation9 + $0x778] sm:$0xff]
    %v7079 = vld [vmem:[#allocation9 + $0x780] sm:$0xff]
    %v7080 = vld [vmem:[#allocation9 + $0x788] sm:$0xff]
    %v7081 = vld [vmem:[#allocation9 + $0x790] sm:$0xff]
    %v7082 = vld [vmem:[#allocation9 + $0x798] sm:$0xff]
    %v7083 = vld [vmem:[#allocation9 + $0x7a0] sm:$0xff]
    %v7084 = vld [vmem:[#allocation9 + $0x7a8] sm:$0xff]
    %v7085 = vld [vmem:[#allocation9 + $0x7b0] sm:$0xff]
    %v7086 = vld [vmem:[#allocation9 + $0x7b8] sm:$0xff]
    %v7087 = vld [vmem:[#allocation9 + $0x7c0] sm:$0xff]
    %v7088 = vld [vmem:[#allocation9 + $0x7c8] sm:$0xff]
    %v7089 = vld [vmem:[#allocation9 + $0x7d0] sm:$0xff]
    %v7090 = vld [vmem:[#allocation9 + $0x7d8] sm:$0xff]
    %v7091 = vld [vmem:[#allocation9 + $0x7e0] sm:$0xff]
    %v7092 = vld [vmem:[#allocation9 + $0x7e8] sm:$0xff]
    %v7093 = vld [vmem:[#allocation9 + $0x7f0] sm:$0xff]
    %v7094 = vld [vmem:[#allocation9 + $0x7f8] sm:$0xff]
    %v7095 = vld [vmem:[#allocation9 + $0x800] sm:$0xff]
    %v7096 = vld [vmem:[#allocation9 + $0x808] sm:$0xff]
    %v7097 = vld [vmem:[#allocation9 + $0x810] sm:$0xff]
    %v7098 = vld [vmem:[#allocation9 + $0x818] sm:$0xff]
    %v7099 = vld [vmem:[#allocation9 + $0x820] sm:$0xff]
    %v7100 = vld [vmem:[#allocation9 + $0x828] sm:$0xff]
    %v7101 = vld [vmem:[#allocation9 + $0x830] sm:$0xff]
    %v7102 = vld [vmem:[#allocation9 + $0x838] sm:$0xff]
    %v7103 = vld [vmem:[#allocation9 + $0x840] sm:$0xff]
    %v7104 = vld [vmem:[#allocation9 + $0x848] sm:$0xff]
    %v7105 = vld [vmem:[#allocation9 + $0x850] sm:$0xff]
    %v7106 = vld [vmem:[#allocation9 + $0x858] sm:$0xff]
    %v7107 = vld [vmem:[#allocation9 + $0x860] sm:$0xff]
    %v7108 = vld [vmem:[#allocation9 + $0x868] sm:$0xff]
    %v7109 = vld [vmem:[#allocation9 + $0x870] sm:$0xff]
    %v7110 = vld [vmem:[#allocation9 + $0x878] sm:$0xff]
    %v7111 = vld [vmem:[#allocation9 + $0x880] sm:$0xff]
    %v7112 = vld [vmem:[#allocation9 + $0x888] sm:$0xff]
    %v7113 = vld [vmem:[#allocation9 + $0x890] sm:$0xff]
    %v7114 = vld [vmem:[#allocation9 + $0x898] sm:$0xff]
    %v7115 = vld [vmem:[#allocation9 + $0x8a0] sm:$0xff]
    %v7116 = vld [vmem:[#allocation9 + $0x8a8] sm:$0xff]
    %v7117 = vld [vmem:[#allocation9 + $0x8b0] sm:$0xff]
    %v7118 = vld [vmem:[#allocation9 + $0x8b8] sm:$0xff]
    %v7119 = vld [vmem:[#allocation9 + $0x8c0] sm:$0xff]
    %v7120 = vld [vmem:[#allocation9 + $0x8c8] sm:$0xff]
    %v7121 = vld [vmem:[#allocation9 + $0x8d0] sm:$0xff]
    %v7122 = vld [vmem:[#allocation9 + $0x8d8] sm:$0xff]
    %v7123 = vld [vmem:[#allocation9 + $0x8e0] sm:$0xff]
    %v7124 = vld [vmem:[#allocation9 + $0x8e8] sm:$0xff]
    %v7125 = vld [vmem:[#allocation9 + $0x8f0] sm:$0xff]
    %v7126 = vld [vmem:[#allocation9 + $0x8f8] sm:$0xff]
    %v7127 = vld [vmem:[#allocation9 + $0x900] sm:$0xff]
    %v7128 = vld [vmem:[#allocation9 + $0x908] sm:$0xff]
    %v7129 = vld [vmem:[#allocation9 + $0x910] sm:$0xff]
    %v7130 = vld [vmem:[#allocation9 + $0x918] sm:$0xff]
    %v7131 = vld [vmem:[#allocation9 + $0x920] sm:$0xff]
    %v7132 = vld [vmem:[#allocation9 + $0x928] sm:$0xff]
    %v7133 = vld [vmem:[#allocation9 + $0x930] sm:$0xff]
    %v7134 = vld [vmem:[#allocation9 + $0x938] sm:$0xff]
    %v7135 = vld [vmem:[#allocation9 + $0x940] sm:$0xff]
    %v7136 = vld [vmem:[#allocation9 + $0x948] sm:$0xff]
    %v7137 = vld [vmem:[#allocation9 + $0x950] sm:$0xff]
    %v7138 = vld [vmem:[#allocation9 + $0x958] sm:$0xff]
    %v7139 = vld [vmem:[#allocation9 + $0x960] sm:$0xff]
    %v7140 = vld [vmem:[#allocation9 + $0x968] sm:$0xff]
    %v7141 = vld [vmem:[#allocation9 + $0x970] sm:$0xff]
    %v7142 = vld [vmem:[#allocation9 + $0x978] sm:$0xff]
    %v7143 = vld [vmem:[#allocation9 + $0x980] sm:$0xff]
    %v7144 = vld [vmem:[#allocation9 + $0x988] sm:$0xff]
    %v7145 = vld [vmem:[#allocation9 + $0x990] sm:$0xff]
    %v7146 = vld [vmem:[#allocation9 + $0x998] sm:$0xff]
    %v7147 = vld [vmem:[#allocation9 + $0x9a0] sm:$0xff]
    %v7148 = vld [vmem:[#allocation9 + $0x9a8] sm:$0xff]
    %v7149 = vld [vmem:[#allocation9 + $0x9b0] sm:$0xff]
    %v7150 = vld [vmem:[#allocation9 + $0x9b8] sm:$0xff]
    %v7151 = vld [vmem:[#allocation9 + $0x9c0] sm:$0xff]
    %v7152 = vld [vmem:[#allocation9 + $0x9c8] sm:$0xff]
    %v7153 = vld [vmem:[#allocation9 + $0x9d0] sm:$0xff]
    %v7154 = vld [vmem:[#allocation9 + $0x9d8] sm:$0xff]
    %v7155 = vld [vmem:[#allocation9 + $0x9e0] sm:$0xff]
    %v7156 = vld [vmem:[#allocation9 + $0x9e8] sm:$0xff]
    %v7157 = vld [vmem:[#allocation9 + $0x9f0] sm:$0xff]
    %v7158 = vld [vmem:[#allocation9 + $0x9f8] sm:$0xff]
    %v7159 = vld [vmem:[#allocation9 + $0xa00] sm:$0xff]
    %v7160 = vld [vmem:[#allocation9 + $0xa08] sm:$0xff]
    %v7161 = vld [vmem:[#allocation9 + $0xa10] sm:$0xff]
    %v7162 = vld [vmem:[#allocation9 + $0xa18] sm:$0xff]
    %v7163 = vld [vmem:[#allocation9 + $0xa20] sm:$0xff]
    %v7164 = vld [vmem:[#allocation9 + $0xa28] sm:$0xff]
    %v7165 = vld [vmem:[#allocation9 + $0xa30] sm:$0xff]
    %v7166 = vld [vmem:[#allocation9 + $0xa38] sm:$0xff]
    %v7167 = vld [vmem:[#allocation9 + $0xa40] sm:$0xff]
    %v7168 = vld [vmem:[#allocation9 + $0xa48] sm:$0xff]
    %v7169 = vld [vmem:[#allocation9 + $0xa50] sm:$0xff]
    %v7170 = vld [vmem:[#allocation9 + $0xa58] sm:$0xff]
    %v7171 = vld [vmem:[#allocation9 + $0xa60] sm:$0xff]
    %v7172 = vld [vmem:[#allocation9 + $0xa68] sm:$0xff]
    %v7173 = vld [vmem:[#allocation9 + $0xa70] sm:$0xff]
    %v7174 = vld [vmem:[#allocation9 + $0xa78] sm:$0xff]
    %v7175 = vld [vmem:[#allocation9 + $0xa80] sm:$0xff]
    %v7176 = vld [vmem:[#allocation9 + $0xa88] sm:$0xff]
    %v7177 = vld [vmem:[#allocation9 + $0xa90] sm:$0xff]
    %v7178 = vld [vmem:[#allocation9 + $0xa98] sm:$0xff]
    %v7179 = vld [vmem:[#allocation9 + $0xaa0] sm:$0xff]
    %v7180 = vld [vmem:[#allocation9 + $0xaa8] sm:$0xff]
    %v7181 = vld [vmem:[#allocation9 + $0xab0] sm:$0xff]
    %v7182 = vld [vmem:[#allocation9 + $0xab8] sm:$0xff]
    %v7183 = vld [vmem:[#allocation9 + $0xac0] sm:$0xff]
    %v7184 = vld [vmem:[#allocation9 + $0xac8] sm:$0xff]
    %v7185 = vld [vmem:[#allocation9 + $0xad0] sm:$0xff]
    %v7186 = vld [vmem:[#allocation9 + $0xad8] sm:$0xff]
    %v7187 = vld [vmem:[#allocation9 + $0xae0] sm:$0xff]
    %v7188 = vld [vmem:[#allocation9 + $0xae8] sm:$0xff]
    %v7189 = vld [vmem:[#allocation9 + $0xaf0] sm:$0xff]
    %v7190 = vld [vmem:[#allocation9 + $0xaf8] sm:$0xff]
    %v7191 = vld [vmem:[#allocation9 + $0xb00] sm:$0xff]
    %v7192 = vld [vmem:[#allocation9 + $0xb08] sm:$0xff]
    %v7193 = vld [vmem:[#allocation9 + $0xb10] sm:$0xff]
    %v7194 = vld [vmem:[#allocation9 + $0xb18] sm:$0xff]
    %v7195 = vld [vmem:[#allocation9 + $0xb20] sm:$0xff]
    %v7196 = vld [vmem:[#allocation9 + $0xb28] sm:$0xff]
    %v7197 = vld [vmem:[#allocation9 + $0xb30] sm:$0xff]
    %v7198 = vld [vmem:[#allocation9 + $0xb38] sm:$0xff]
    %v7199 = vld [vmem:[#allocation9 + $0xb40] sm:$0xff]
    %v7200 = vld [vmem:[#allocation9 + $0xb48] sm:$0xff]
    %v7201 = vld [vmem:[#allocation9 + $0xb50] sm:$0xff]
    %v7202 = vld [vmem:[#allocation9 + $0xb58] sm:$0xff]
    %v7203 = vld [vmem:[#allocation9 + $0xb60] sm:$0xff]
    %v7204 = vld [vmem:[#allocation9 + $0xb68] sm:$0xff]
    %v7205 = vld [vmem:[#allocation9 + $0xb70] sm:$0xff]
    %v7206 = vld [vmem:[#allocation9 + $0xb78] sm:$0xff]
    %v7207 = vld [vmem:[#allocation9 + $0xb80] sm:$0xff]
    %v7208 = vld [vmem:[#allocation9 + $0xb88] sm:$0xff]
    %v7209 = vld [vmem:[#allocation9 + $0xb90] sm:$0xff]
    %v7210 = vld [vmem:[#allocation9 + $0xb98] sm:$0xff]
    %v7211 = vld [vmem:[#allocation9 + $0xba0] sm:$0xff]
    %v7212 = vld [vmem:[#allocation9 + $0xba8] sm:$0xff]
    %v7213 = vld [vmem:[#allocation9 + $0xbb0] sm:$0xff]
    %v7214 = vld [vmem:[#allocation9 + $0xbb8] sm:$0xff]
    %v7215 = vld [vmem:[#allocation9 + $0xbc0] sm:$0xff]
    %v7216 = vld [vmem:[#allocation9 + $0xbc8] sm:$0xff]
    %v7217 = vld [vmem:[#allocation9 + $0xbd0] sm:$0xff]
    %v7218 = vld [vmem:[#allocation9 + $0xbd8] sm:$0xff]
    %v7219 = vld [vmem:[#allocation9 + $0xbe0] sm:$0xff]
    %v7220 = vld [vmem:[#allocation9 + $0xbe8] sm:$0xff]
    %v7221 = vld [vmem:[#allocation9 + $0xbf0] sm:$0xff]
    %v7222 = vld [vmem:[#allocation9 + $0xbf8] sm:$0xff]
    %v7223 = vld [vmem:[#allocation9 + $0xc00] sm:$0xff]
    %v7224 = vld [vmem:[#allocation9 + $0xc08] sm:$0xff]
    %v7225 = vld [vmem:[#allocation9 + $0xc10] sm:$0xff]
    %v7226 = vld [vmem:[#allocation9 + $0xc18] sm:$0xff]
    %v7227 = vld [vmem:[#allocation9 + $0xc20] sm:$0xff]
    %v7228 = vld [vmem:[#allocation9 + $0xc28] sm:$0xff]
    %v7229 = vld [vmem:[#allocation9 + $0xc30] sm:$0xff]
    %v7230 = vld [vmem:[#allocation9 + $0xc38] sm:$0xff]
    %v7231 = vld [vmem:[#allocation9 + $0xc40] sm:$0xff]
    %v7232 = vld [vmem:[#allocation9 + $0xc48] sm:$0xff]
    %v7233 = vld [vmem:[#allocation9 + $0xc50] sm:$0xff]
    %v7234 = vld [vmem:[#allocation9 + $0xc58] sm:$0xff]
    %v7235 = vld [vmem:[#allocation9 + $0xc60] sm:$0xff]
    %v7236 = vld [vmem:[#allocation9 + $0xc68] sm:$0xff]
    %v7237 = vld [vmem:[#allocation9 + $0xc70] sm:$0xff]
    %v7238 = vld [vmem:[#allocation9 + $0xc78] sm:$0xff]
    %v7239 = vld [vmem:[#allocation9 + $0xc80] sm:$0xff]
    %v7240 = vld [vmem:[#allocation9 + $0xc88] sm:$0xff]
    %v7241 = vld [vmem:[#allocation9 + $0xc90] sm:$0xff]
    %v7242 = vld [vmem:[#allocation9 + $0xc98] sm:$0xff]
    %v7243 = vld [vmem:[#allocation9 + $0xca0] sm:$0xff]
    %v7244 = vld [vmem:[#allocation9 + $0xca8] sm:$0xff]
    %v7245 = vld [vmem:[#allocation9 + $0xcb0] sm:$0xff]
    %v7246 = vld [vmem:[#allocation9 + $0xcb8] sm:$0xff]
    %v7247 = vld [vmem:[#allocation9 + $0xcc0] sm:$0xff]
    %v7248 = vld [vmem:[#allocation9 + $0xcc8] sm:$0xff]
    %v7249 = vld [vmem:[#allocation9 + $0xcd0] sm:$0xff]
    %v7250 = vld [vmem:[#allocation9 + $0xcd8] sm:$0xff]
    %v7251 = vld [vmem:[#allocation9 + $0xce0] sm:$0xff]
    %v7252 = vld [vmem:[#allocation9 + $0xce8] sm:$0xff]
    %v7253 = vld [vmem:[#allocation9 + $0xcf0] sm:$0xff]
    %v7254 = vld [vmem:[#allocation9 + $0xcf8] sm:$0xff]
    %v7255 = vld [vmem:[#allocation9 + $0xd00] sm:$0xff]
    %v7256 = vld [vmem:[#allocation9 + $0xd08] sm:$0xff]
    %v7257 = vld [vmem:[#allocation9 + $0xd10] sm:$0xff]
    %v7258 = vld [vmem:[#allocation9 + $0xd18] sm:$0xff]
    %v7259 = vld [vmem:[#allocation9 + $0xd20] sm:$0xff]
    %v7260 = vld [vmem:[#allocation9 + $0xd28] sm:$0xff]
    %v7261 = vld [vmem:[#allocation9 + $0xd30] sm:$0xff]
    %v7262 = vld [vmem:[#allocation9 + $0xd38] sm:$0xff]
    %v7263 = vld [vmem:[#allocation9 + $0xd40] sm:$0xff]
    %v7264 = vld [vmem:[#allocation9 + $0xd48] sm:$0xff]
    %v7265 = vld [vmem:[#allocation9 + $0xd50] sm:$0xff]
    %v7266 = vld [vmem:[#allocation9 + $0xd58] sm:$0xff]
    %v7267 = vld [vmem:[#allocation9 + $0xd60] sm:$0xff]
    %v7268 = vld [vmem:[#allocation9 + $0xd68] sm:$0xff]
    %v7269 = vld [vmem:[#allocation9 + $0xd70] sm:$0xff]
    %v7270 = vld [vmem:[#allocation9 + $0xd78] sm:$0xff]
    %v7271 = vld [vmem:[#allocation9 + $0xd80] sm:$0xff]
    %v7272 = vld [vmem:[#allocation9 + $0xd88] sm:$0xff]
    %v7273 = vld [vmem:[#allocation9 + $0xd90] sm:$0xff]
    %v7274 = vld [vmem:[#allocation9 + $0xd98] sm:$0xff]
    %v7275 = vld [vmem:[#allocation9 + $0xda0] sm:$0xff]
    %v7276 = vld [vmem:[#allocation9 + $0xda8] sm:$0xff]
    %v7277 = vld [vmem:[#allocation9 + $0xdb0] sm:$0xff]
    %v7278 = vld [vmem:[#allocation9 + $0xdb8] sm:$0xff]
    %v7279 = vld [vmem:[#allocation9 + $0xdc0] sm:$0xff]
    %v7280 = vld [vmem:[#allocation9 + $0xdc8] sm:$0xff]
    %v7281 = vld [vmem:[#allocation9 + $0xdd0] sm:$0xff]
    %v7282 = vld [vmem:[#allocation9 + $0xdd8] sm:$0xff]
    %v7283 = vld [vmem:[#allocation9 + $0xde0] sm:$0xff]
    %v7284 = vld [vmem:[#allocation9 + $0xde8] sm:$0xff]
    %v7285 = vld [vmem:[#allocation9 + $0xdf0] sm:$0xff]
    %v7286 = vld [vmem:[#allocation9 + $0xdf8] sm:$0xff]
    %v7287 = vld [vmem:[#allocation9 + $0xe00] sm:$0xff]
    %v7288 = vld [vmem:[#allocation9 + $0xe08] sm:$0xff]
    %v7289 = vld [vmem:[#allocation9 + $0xe10] sm:$0xff]
    %v7290 = vld [vmem:[#allocation9 + $0xe18] sm:$0xff]
    %v7291 = vld [vmem:[#allocation9 + $0xe20] sm:$0xff]
    %v7292 = vld [vmem:[#allocation9 + $0xe28] sm:$0xff]
    %v7293 = vld [vmem:[#allocation9 + $0xe30] sm:$0xff]
    %v7294 = vld [vmem:[#allocation9 + $0xe38] sm:$0xff]
    %v7295 = vld [vmem:[#allocation9 + $0xe40] sm:$0xff]
    %v7296 = vld [vmem:[#allocation9 + $0xe48] sm:$0xff]
    %v7297 = vld [vmem:[#allocation9 + $0xe50] sm:$0xff]
    %v7298 = vld [vmem:[#allocation9 + $0xe58] sm:$0xff]
    %v7299 = vld [vmem:[#allocation9 + $0xe60] sm:$0xff]
    %v7300 = vld [vmem:[#allocation9 + $0xe68] sm:$0xff]
    %v7301 = vld [vmem:[#allocation9 + $0xe70] sm:$0xff]
    %v7302 = vld [vmem:[#allocation9 + $0xe78] sm:$0xff]
    %v7303 = vld [vmem:[#allocation9 + $0xe80] sm:$0xff]
    %v7304 = vld [vmem:[#allocation9 + $0xe88] sm:$0xff]
    %v7305 = vld [vmem:[#allocation9 + $0xe90] sm:$0xff]
    %v7306 = vld [vmem:[#allocation9 + $0xe98] sm:$0xff]
    %v7307 = vld [vmem:[#allocation9 + $0xea0] sm:$0xff]
    %v7308 = vld [vmem:[#allocation9 + $0xea8] sm:$0xff]
    %v7309 = vld [vmem:[#allocation9 + $0xeb0] sm:$0xff]
    %v7310 = vld [vmem:[#allocation9 + $0xeb8] sm:$0xff]
    %v7311 = vld [vmem:[#allocation9 + $0xec0] sm:$0xff]
    %v7312 = vld [vmem:[#allocation9 + $0xec8] sm:$0xff]
    %v7313 = vld [vmem:[#allocation9 + $0xed0] sm:$0xff]
    %v7314 = vld [vmem:[#allocation9 + $0xed8] sm:$0xff]
    %v7315 = vld [vmem:[#allocation9 + $0xee0] sm:$0xff]
    %v7316 = vld [vmem:[#allocation9 + $0xee8] sm:$0xff]
    %v7317 = vld [vmem:[#allocation9 + $0xef0] sm:$0xff]
    %v7318 = vld [vmem:[#allocation9 + $0xef8] sm:$0xff]
    %v7319 = vld [vmem:[#allocation9 + $0xf00] sm:$0xff]
    %v7320 = vld [vmem:[#allocation9 + $0xf08] sm:$0xff]
    %v7321 = vld [vmem:[#allocation9 + $0xf10] sm:$0xff]
    %v7322 = vld [vmem:[#allocation9 + $0xf18] sm:$0xff]
    %v7323 = vld [vmem:[#allocation9 + $0xf20] sm:$0xff]
    %v7324 = vld [vmem:[#allocation9 + $0xf28] sm:$0xff]
    %v7325 = vld [vmem:[#allocation9 + $0xf30] sm:$0xff]
    %v7326 = vld [vmem:[#allocation9 + $0xf38] sm:$0xff]
    %v7327 = vld [vmem:[#allocation9 + $0xf40] sm:$0xff]
    %v7328 = vld [vmem:[#allocation9 + $0xf48] sm:$0xff]
    %v7329 = vld [vmem:[#allocation9 + $0xf50] sm:$0xff]
    %v7330 = vld [vmem:[#allocation9 + $0xf58] sm:$0xff]
    %v7331 = vld [vmem:[#allocation9 + $0xf60] sm:$0xff]
    %v7332 = vld [vmem:[#allocation9 + $0xf68] sm:$0xff]
    %v7333 = vld [vmem:[#allocation9 + $0xf70] sm:$0xff]
    %v7334 = vld [vmem:[#allocation9 + $0xf78] sm:$0xff]
    %v7335 = vld [vmem:[#allocation9 + $0xf80] sm:$0xff]
    %v7336 = vld [vmem:[#allocation9 + $0xf88] sm:$0xff]
    %v7337 = vld [vmem:[#allocation9 + $0xf90] sm:$0xff]
    %v7338 = vld [vmem:[#allocation9 + $0xf98] sm:$0xff]
    %v7339 = vld [vmem:[#allocation9 + $0xfa0] sm:$0xff]
    %v7340 = vld [vmem:[#allocation9 + $0xfa8] sm:$0xff]
    %v7341 = vld [vmem:[#allocation9 + $0xfb0] sm:$0xff]
    %v7342 = vld [vmem:[#allocation9 + $0xfb8] sm:$0xff]
    %v7343 = vld [vmem:[#allocation9 + $0xfc0] sm:$0xff]
    %v7344 = vld [vmem:[#allocation9 + $0xfc8] sm:$0xff]
    %v7345 = vld [vmem:[#allocation9 + $0xfd0] sm:$0xff]
    %v7346 = vld [vmem:[#allocation9 + $0xfd8] sm:$0xff]
    %v7347 = vld [vmem:[#allocation9 + $0xfe0] sm:$0xff]
    %v7348 = vld [vmem:[#allocation9 + $0xfe8] sm:$0xff]
    %v7349 = vld [vmem:[#allocation9 + $0xff0] sm:$0xff]
    %v7350 = vld [vmem:[#allocation9 + $0xff8] sm:$0xff]
    %v7351 = vld [vmem:[#allocation9 + $0x1000] sm:$0xff]
    %v7352 = vld [vmem:[#allocation9 + $0x1008] sm:$0xff]
    %v7353 = vld [vmem:[#allocation9 + $0x1010] sm:$0xff]
    %v7354 = vld [vmem:[#allocation9 + $0x1018] sm:$0xff]
    %v7355 = vld [vmem:[#allocation9 + $0x1020] sm:$0xff]
    %v7356 = vld [vmem:[#allocation9 + $0x1028] sm:$0xff]
    %v7357 = vld [vmem:[#allocation9 + $0x1030] sm:$0xff]
    %v7358 = vld [vmem:[#allocation9 + $0x1038] sm:$0xff]
    %v7359 = vld [vmem:[#allocation9 + $0x1040] sm:$0xff]
    %v7360 = vld [vmem:[#allocation9 + $0x1048] sm:$0xff]
    %v7361 = vld [vmem:[#allocation9 + $0x1050] sm:$0xff]
    %v7362 = vld [vmem:[#allocation9 + $0x1058] sm:$0xff]
    %v7363 = vld [vmem:[#allocation9 + $0x1060] sm:$0xff]
    %v7364 = vld [vmem:[#allocation9 + $0x1068] sm:$0xff]
    %v7365 = vld [vmem:[#allocation9 + $0x1070] sm:$0xff]
    %v7366 = vld [vmem:[#allocation9 + $0x1078] sm:$0xff]
    %v7367 = vld [vmem:[#allocation9 + $0x1080] sm:$0xff]
    %v7368 = vld [vmem:[#allocation9 + $0x1088] sm:$0xff]
    %v7369 = vld [vmem:[#allocation9 + $0x1090] sm:$0xff]
    %v7370 = vld [vmem:[#allocation9 + $0x1098] sm:$0xff]
    %v7371 = vld [vmem:[#allocation9 + $0x10a0] sm:$0xff]
    %v7372 = vld [vmem:[#allocation9 + $0x10a8] sm:$0xff]
    %v7373 = vld [vmem:[#allocation9 + $0x10b0] sm:$0xff]
    %v7374 = vld [vmem:[#allocation9 + $0x10b8] sm:$0xff]
    %v7375 = vld [vmem:[#allocation9 + $0x10c0] sm:$0xff]
    %v7376 = vld [vmem:[#allocation9 + $0x10c8] sm:$0xff]
    %v7377 = vld [vmem:[#allocation9 + $0x10d0] sm:$0xff]
    %v7378 = vld [vmem:[#allocation9 + $0x10d8] sm:$0xff]
    %v7379 = vld [vmem:[#allocation9 + $0x10e0] sm:$0xff]
    %v7380 = vld [vmem:[#allocation9 + $0x10e8] sm:$0xff]
    %v7381 = vld [vmem:[#allocation9 + $0x10f0] sm:$0xff]
    %v7382 = vld [vmem:[#allocation9 + $0x10f8] sm:$0xff]
    %v7383 = vld [vmem:[#allocation9 + $0x1100] sm:$0xff]
    %v7384 = vld [vmem:[#allocation9 + $0x1108] sm:$0xff]
    %v7385 = vld [vmem:[#allocation9 + $0x1110] sm:$0xff]
    %v7386 = vld [vmem:[#allocation9 + $0x1118] sm:$0xff]
    %v7387 = vld [vmem:[#allocation9 + $0x1120] sm:$0xff]
    %v7388 = vld [vmem:[#allocation9 + $0x1128] sm:$0xff]
    %v7389 = vld [vmem:[#allocation9 + $0x1130] sm:$0xff]
    %v7390 = vld [vmem:[#allocation9 + $0x1138] sm:$0xff]
    %v7391 = vld [vmem:[#allocation9 + $0x1140] sm:$0xff]
    %v7392 = vld [vmem:[#allocation9 + $0x1148] sm:$0xff]
    %v7393 = vld [vmem:[#allocation9 + $0x1150] sm:$0xff]
    %v7394 = vld [vmem:[#allocation9 + $0x1158] sm:$0xff]
    %v7395 = vld [vmem:[#allocation9 + $0x1160] sm:$0xff]
    %v7396 = vld [vmem:[#allocation9 + $0x1168] sm:$0xff]
    %v7397 = vld [vmem:[#allocation9 + $0x1170] sm:$0xff]
    %v7398 = vld [vmem:[#allocation9 + $0x1178] sm:$0xff]
    %v7399 = vld [vmem:[#allocation9 + $0x1180] sm:$0xff]
    %v7400 = vld [vmem:[#allocation9 + $0x1188] sm:$0xff]
    %v7401 = vld [vmem:[#allocation9 + $0x1190] sm:$0xff]
    %v7402 = vld [vmem:[#allocation9 + $0x1198] sm:$0xff]
    %v7403 = vld [vmem:[#allocation9 + $0x11a0] sm:$0xff]
    %v7404 = vld [vmem:[#allocation9 + $0x11a8] sm:$0xff]
    %v7405 = vld [vmem:[#allocation9 + $0x11b0] sm:$0xff]
    %v7406 = vld [vmem:[#allocation9 + $0x11b8] sm:$0xff]
    %v7407 = vld [vmem:[#allocation9 + $0x11c0] sm:$0xff]
    %v7408 = vld [vmem:[#allocation9 + $0x11c8] sm:$0xff]
    %v7409 = vld [vmem:[#allocation9 + $0x11d0] sm:$0xff]
    %v7410 = vld [vmem:[#allocation9 + $0x11d8] sm:$0xff]
    %v7411 = vld [vmem:[#allocation9 + $0x11e0] sm:$0xff]
    %v7412 = vld [vmem:[#allocation9 + $0x11e8] sm:$0xff]
    %v7413 = vld [vmem:[#allocation9 + $0x11f0] sm:$0xff]
    %v7414 = vld [vmem:[#allocation9 + $0x11f8] sm:$0xff]
    %v7415 = vld [vmem:[#allocation10] sm:$0x3f]
    %v7417 = vperm.slane %v7415, 0
    %v7418 = vperm.slane %v7415, 1
    %v7419 = vperm.slane %v7415, 2
    %v7420 = vperm.slane %v7415, 3
    %v7421 = vperm.slane %v7415, 4
    %v7422 = vperm.slane %v7415, 5
    %v8005 = vunpack.c.l.b16 %v6839
    %v8006 = vunpack.c.h.b16 %v6839
    %v8007 = vunpack.c.l.b16 %v6840
    %v8008 = vunpack.c.h.b16 %v6840
    %v8009 = vunpack.c.l.b16 %v6841
    %v8010 = vunpack.c.h.b16 %v6841
    %v8011 = vunpack.c.l.b16 %v6842
    %v8012 = vunpack.c.h.b16 %v6842
    %v8013 = vunpack.c.l.b16 %v6843
    %v8014 = vunpack.c.h.b16 %v6843
    %v8015 = vunpack.c.l.b16 %v6844
    %v8016 = vunpack.c.h.b16 %v6844
    %v8017 = vunpack.c.l.b16 %v6845
    %v8018 = vunpack.c.h.b16 %v6845
    %v8019 = vunpack.c.l.b16 %v6846
    %v8020 = vunpack.c.h.b16 %v6846
    %v8021 = vunpack.c.l.b16 %v6847
    %v8022 = vunpack.c.h.b16 %v6847
    %v8023 = vunpack.c.l.b16 %v6848
    %v8024 = vunpack.c.h.b16 %v6848
    %v8025 = vunpack.c.l.b16 %v6849
    %v8026 = vunpack.c.h.b16 %v6849
    %v8027 = vunpack.c.l.b16 %v6850
    %v8028 = vunpack.c.h.b16 %v6850
    %v8029 = vunpack.c.l.b16 %v6851
    %v8030 = vunpack.c.h.b16 %v6851
    %v8031 = vunpack.c.l.b16 %v6852
    %v8032 = vunpack.c.h.b16 %v6852
    %v8033 = vunpack.c.l.b16 %v6853
    %v8034 = vunpack.c.h.b16 %v6853
    %v8035 = vunpack.c.l.b16 %v6854
    %v8036 = vunpack.c.h.b16 %v6854
    %v8037 = vunpack.c.l.b16 %v6855
    %v8038 = vunpack.c.h.b16 %v6855
    %v8039 = vunpack.c.l.b16 %v6856
    %v8040 = vunpack.c.h.b16 %v6856
    %v8041 = vunpack.c.l.b16 %v6857
    %v8042 = vunpack.c.h.b16 %v6857
    %v8043 = vunpack.c.l.b16 %v6858
    %v8044 = vunpack.c.h.b16 %v6858
    %v8045 = vunpack.c.l.b16 %v6859
    %v8046 = vunpack.c.h.b16 %v6859
    %v8047 = vunpack.c.l.b16 %v6860
    %v8048 = vunpack.c.h.b16 %v6860
    %v8049 = vunpack.c.l.b16 %v6861
    %v8050 = vunpack.c.h.b16 %v6861
    %v8051 = vunpack.c.l.b16 %v6862
    %v8052 = vunpack.c.h.b16 %v6862
    %v8053 = vunpack.c.l.b16 %v6863
    %v8054 = vunpack.c.h.b16 %v6863
    %v8055 = vunpack.c.l.b16 %v6864
    %v8056 = vunpack.c.h.b16 %v6864
    %v8057 = vunpack.c.l.b16 %v6865
    %v8058 = vunpack.c.h.b16 %v6865
    %v8059 = vunpack.c.l.b16 %v6866
    %v8060 = vunpack.c.h.b16 %v6866
    %v8061 = vunpack.c.l.b16 %v6867
    %v8062 = vunpack.c.h.b16 %v6867
    %v8063 = vunpack.c.l.b16 %v6868
    %v8064 = vunpack.c.h.b16 %v6868
    %v8065 = vunpack.c.l.b16 %v6869
    %v8066 = vunpack.c.h.b16 %v6869
    %v8067 = vunpack.c.l.b16 %v6870
    %v8068 = vunpack.c.h.b16 %v6870
    %v8069 = vunpack.c.l.b16 %v6871
    %v8070 = vunpack.c.h.b16 %v6871
    %v8071 = vunpack.c.l.b16 %v6872
    %v8072 = vunpack.c.h.b16 %v6872
    %v8073 = vunpack.c.l.b16 %v6873
    %v8074 = vunpack.c.h.b16 %v6873
    %v8075 = vunpack.c.l.b16 %v6874
    %v8076 = vunpack.c.h.b16 %v6874
    %v8077 = vunpack.c.l.b16 %v6875
    %v8078 = vunpack.c.h.b16 %v6875
    %v8079 = vunpack.c.l.b16 %v6876
    %v8080 = vunpack.c.h.b16 %v6876
    %v8081 = vunpack.c.l.b16 %v6877
    %v8082 = vunpack.c.h.b16 %v6877
    %v8083 = vunpack.c.l.b16 %v6878
    %v8084 = vunpack.c.h.b16 %v6878
    %v8085 = vunpack.c.l.b16 %v6879
    %v8086 = vunpack.c.h.b16 %v6879
    %v8087 = vunpack.c.l.b16 %v6880
    %v8088 = vunpack.c.h.b16 %v6880
    %v8089 = vunpack.c.l.b16 %v6881
    %v8090 = vunpack.c.h.b16 %v6881
    %v8091 = vunpack.c.l.b16 %v6882
    %v8092 = vunpack.c.h.b16 %v6882
    %v8093 = vunpack.c.l.b16 %v6883
    %v8094 = vunpack.c.h.b16 %v6883
    %v8095 = vunpack.c.l.b16 %v6884
    %v8096 = vunpack.c.h.b16 %v6884
    %v8097 = vunpack.c.l.b16 %v6885
    %v8098 = vunpack.c.h.b16 %v6885
    %v8099 = vunpack.c.l.b16 %v6886
    %v8100 = vunpack.c.h.b16 %v6886
    %v8101 = vunpack.c.l.b16 %v6887
    %v8102 = vunpack.c.h.b16 %v6887
    %v8103 = vunpack.c.l.b16 %v6888
    %v8104 = vunpack.c.h.b16 %v6888
    %v8105 = vunpack.c.l.b16 %v6889
    %v8106 = vunpack.c.h.b16 %v6889
    %v8107 = vunpack.c.l.b16 %v6890
    %v8108 = vunpack.c.h.b16 %v6890
    %v8109 = vunpack.c.l.b16 %v6891
    %v8110 = vunpack.c.h.b16 %v6891
    %v8111 = vunpack.c.l.b16 %v6892
    %v8112 = vunpack.c.h.b16 %v6892
    %v8113 = vunpack.c.l.b16 %v6893
    %v8114 = vunpack.c.h.b16 %v6893
    %v8115 = vunpack.c.l.b16 %v6894
    %v8116 = vunpack.c.h.b16 %v6894
    %v8117 = vunpack.c.l.b16 %v6895
    %v8118 = vunpack.c.h.b16 %v6895
    %v8119 = vunpack.c.l.b16 %v6896
    %v8120 = vunpack.c.h.b16 %v6896
    %v8121 = vunpack.c.l.b16 %v6897
    %v8122 = vunpack.c.h.b16 %v6897
    %v8123 = vunpack.c.l.b16 %v6898
    %v8124 = vunpack.c.h.b16 %v6898
    %v8125 = vunpack.c.l.b16 %v6899
    %v8126 = vunpack.c.h.b16 %v6899
    %v8127 = vunpack.c.l.b16 %v6900
    %v8128 = vunpack.c.h.b16 %v6900
    %v8129 = vunpack.c.l.b16 %v6901
    %v8130 = vunpack.c.h.b16 %v6901
    %v8131 = vunpack.c.l.b16 %v6902
    %v8132 = vunpack.c.h.b16 %v6902
    %v8133 = vunpack.c.l.b16 %v6903
    %v8134 = vunpack.c.h.b16 %v6903
    %v8135 = vunpack.c.l.b16 %v6904
    %v8136 = vunpack.c.h.b16 %v6904
    %v8137 = vunpack.c.l.b16 %v6905
    %v8138 = vunpack.c.h.b16 %v6905
    %v8139 = vunpack.c.l.b16 %v6906
    %v8140 = vunpack.c.h.b16 %v6906
    %v8141 = vunpack.c.l.b16 %v6907
    %v8142 = vunpack.c.h.b16 %v6907
    %v8143 = vunpack.c.l.b16 %v6908
    %v8144 = vunpack.c.h.b16 %v6908
    %v8145 = vunpack.c.l.b16 %v6909
    %v8146 = vunpack.c.h.b16 %v6909
    %v8147 = vunpack.c.l.b16 %v6910
    %v8148 = vunpack.c.h.b16 %v6910
    %v8149 = vunpack.c.l.b16 %v6911
    %v8150 = vunpack.c.h.b16 %v6911
    %v8151 = vunpack.c.l.b16 %v6912
    %v8152 = vunpack.c.h.b16 %v6912
    %v8153 = vunpack.c.l.b16 %v6913
    %v8154 = vunpack.c.h.b16 %v6913
    %v8155 = vunpack.c.l.b16 %v6914
    %v8156 = vunpack.c.h.b16 %v6914
    %v8157 = vunpack.c.l.b16 %v6915
    %v8158 = vunpack.c.h.b16 %v6915
    %v8159 = vunpack.c.l.b16 %v6916
    %v8160 = vunpack.c.h.b16 %v6916
    %v8161 = vunpack.c.l.b16 %v6917
    %v8162 = vunpack.c.h.b16 %v6917
    %v8163 = vunpack.c.l.b16 %v6918
    %v8164 = vunpack.c.h.b16 %v6918
    %v8165 = vunpack.c.l.b16 %v6919
    %v8166 = vunpack.c.h.b16 %v6919
    %v8167 = vunpack.c.l.b16 %v6920
    %v8168 = vunpack.c.h.b16 %v6920
    %v8169 = vunpack.c.l.b16 %v6921
    %v8170 = vunpack.c.h.b16 %v6921
    %v8171 = vunpack.c.l.b16 %v6922
    %v8172 = vunpack.c.h.b16 %v6922
    %v8173 = vunpack.c.l.b16 %v6923
    %v8174 = vunpack.c.h.b16 %v6923
    %v8175 = vunpack.c.l.b16 %v6924
    %v8176 = vunpack.c.h.b16 %v6924
    %v8177 = vunpack.c.l.b16 %v6925
    %v8178 = vunpack.c.h.b16 %v6925
    %v8179 = vunpack.c.l.b16 %v6926
    %v8180 = vunpack.c.h.b16 %v6926
    %v8181 = vunpack.c.l.b16 %v6927
    %v8182 = vunpack.c.h.b16 %v6927
    %v8183 = vunpack.c.l.b16 %v6928
    %v8184 = vunpack.c.h.b16 %v6928
    %v8185 = vunpack.c.l.b16 %v6929
    %v8186 = vunpack.c.h.b16 %v6929
    %v8187 = vunpack.c.l.b16 %v6930
    %v8188 = vunpack.c.h.b16 %v6930
    %v8189 = vunpack.c.l.b16 %v6931
    %v8190 = vunpack.c.h.b16 %v6931
    %v8191 = vunpack.c.l.b16 %v6932
    %v8192 = vunpack.c.h.b16 %v6932
    %v8193 = vunpack.c.l.b16 %v6933
    %v8194 = vunpack.c.h.b16 %v6933
    %v8195 = vunpack.c.l.b16 %v6934
    %v8196 = vunpack.c.h.b16 %v6934
    %v8197 = vunpack.c.l.b16 %v6935
    %v8198 = vunpack.c.h.b16 %v6935
    %v8199 = vunpack.c.l.b16 %v6936
    %v8200 = vunpack.c.h.b16 %v6936
    %v8201 = vunpack.c.l.b16 %v6937
    %v8202 = vunpack.c.h.b16 %v6937
    %v8203 = vunpack.c.l.b16 %v6938
    %v8204 = vunpack.c.h.b16 %v6938
    %v8205 = vunpack.c.l.b16 %v6939
    %v8206 = vunpack.c.h.b16 %v6939
    %v8207 = vunpack.c.l.b16 %v6940
    %v8208 = vunpack.c.h.b16 %v6940
    %v8209 = vunpack.c.l.b16 %v6941
    %v8210 = vunpack.c.h.b16 %v6941
    %v8211 = vunpack.c.l.b16 %v6942
    %v8212 = vunpack.c.h.b16 %v6942
    %v8213 = vunpack.c.l.b16 %v6943
    %v8214 = vunpack.c.h.b16 %v6943
    %v8215 = vunpack.c.l.b16 %v6944
    %v8216 = vunpack.c.h.b16 %v6944
    %v8217 = vunpack.c.l.b16 %v6945
    %v8218 = vunpack.c.h.b16 %v6945
    %v8219 = vunpack.c.l.b16 %v6946
    %v8220 = vunpack.c.h.b16 %v6946
    %v8221 = vunpack.c.l.b16 %v6947
    %v8222 = vunpack.c.h.b16 %v6947
    %v8223 = vunpack.c.l.b16 %v6948
    %v8224 = vunpack.c.h.b16 %v6948
    %v8225 = vunpack.c.l.b16 %v6949
    %v8226 = vunpack.c.h.b16 %v6949
    %v8227 = vunpack.c.l.b16 %v6950
    %v8228 = vunpack.c.h.b16 %v6950
    %v8229 = vunpack.c.l.b16 %v6951
    %v8230 = vunpack.c.h.b16 %v6951
    %v8231 = vunpack.c.l.b16 %v6952
    %v8232 = vunpack.c.h.b16 %v6952
    %v8233 = vunpack.c.l.b16 %v6953
    %v8234 = vunpack.c.h.b16 %v6953
    %v8235 = vunpack.c.l.b16 %v6954
    %v8236 = vunpack.c.h.b16 %v6954
    %v8237 = vunpack.c.l.b16 %v6955
    %v8238 = vunpack.c.h.b16 %v6955
    %v8239 = vunpack.c.l.b16 %v6956
    %v8240 = vunpack.c.h.b16 %v6956
    %v8241 = vunpack.c.l.b16 %v6957
    %v8242 = vunpack.c.h.b16 %v6957
    %v8243 = vunpack.c.l.b16 %v6958
    %v8244 = vunpack.c.h.b16 %v6958
    %v8245 = vunpack.c.l.b16 %v6959
    %v8246 = vunpack.c.h.b16 %v6959
    %v8247 = vunpack.c.l.b16 %v6960
    %v8248 = vunpack.c.h.b16 %v6960
    %v8249 = vunpack.c.l.b16 %v6961
    %v8250 = vunpack.c.h.b16 %v6961
    %v8251 = vunpack.c.l.b16 %v6962
    %v8252 = vunpack.c.h.b16 %v6962
    %v8253 = vunpack.c.l.b16 %v6963
    %v8254 = vunpack.c.h.b16 %v6963
    %v8255 = vunpack.c.l.b16 %v6964
    %v8256 = vunpack.c.h.b16 %v6964
    %v8257 = vunpack.c.l.b16 %v6965
    %v8258 = vunpack.c.h.b16 %v6965
    %v8259 = vunpack.c.l.b16 %v6966
    %v8260 = vunpack.c.h.b16 %v6966
    %v8261 = vunpack.c.l.b16 %v6967
    %v8262 = vunpack.c.h.b16 %v6967
    %v8263 = vunpack.c.l.b16 %v6968
    %v8264 = vunpack.c.h.b16 %v6968
    %v8265 = vunpack.c.l.b16 %v6969
    %v8266 = vunpack.c.h.b16 %v6969
    %v8267 = vunpack.c.l.b16 %v6970
    %v8268 = vunpack.c.h.b16 %v6970
    %v8269 = vunpack.c.l.b16 %v6971
    %v8270 = vunpack.c.h.b16 %v6971
    %v8271 = vunpack.c.l.b16 %v6972
    %v8272 = vunpack.c.h.b16 %v6972
    %v8273 = vunpack.c.l.b16 %v6973
    %v8274 = vunpack.c.h.b16 %v6973
    %v8275 = vunpack.c.l.b16 %v6974
    %v8276 = vunpack.c.h.b16 %v6974
    %v8277 = vunpack.c.l.b16 %v6975
    %v8278 = vunpack.c.h.b16 %v6975
    %v8279 = vunpack.c.l.b16 %v6976
    %v8280 = vunpack.c.h.b16 %v6976
    %v8281 = vunpack.c.l.b16 %v6977
    %v8282 = vunpack.c.h.b16 %v6977
    %v8283 = vunpack.c.l.b16 %v6978
    %v8284 = vunpack.c.h.b16 %v6978
    %v8285 = vunpack.c.l.b16 %v6979
    %v8286 = vunpack.c.h.b16 %v6979
    %v8287 = vunpack.c.l.b16 %v6980
    %v8288 = vunpack.c.h.b16 %v6980
    %v8289 = vunpack.c.l.b16 %v6981
    %v8290 = vunpack.c.h.b16 %v6981
    %v8291 = vunpack.c.l.b16 %v6982
    %v8292 = vunpack.c.h.b16 %v6982
    %v8293 = vunpack.c.l.b16 %v6983
    %v8294 = vunpack.c.h.b16 %v6983
    %v8295 = vunpack.c.l.b16 %v6984
    %v8296 = vunpack.c.h.b16 %v6984
    %v8297 = vunpack.c.l.b16 %v6985
    %v8298 = vunpack.c.h.b16 %v6985
    %v8299 = vunpack.c.l.b16 %v6986
    %v8300 = vunpack.c.h.b16 %v6986
    %v8301 = vunpack.c.l.b16 %v6987
    %v8302 = vunpack.c.h.b16 %v6987
    %v8303 = vunpack.c.l.b16 %v6988
    %v8304 = vunpack.c.h.b16 %v6988
    %v8305 = vunpack.c.l.b16 %v6989
    %v8306 = vunpack.c.h.b16 %v6989
    %v8307 = vunpack.c.l.b16 %v6990
    %v8308 = vunpack.c.h.b16 %v6990
    %v8309 = vunpack.c.l.b16 %v6991
    %v8310 = vunpack.c.h.b16 %v6991
    %v8311 = vunpack.c.l.b16 %v6992
    %v8312 = vunpack.c.h.b16 %v6992
    %v8313 = vunpack.c.l.b16 %v6993
    %v8314 = vunpack.c.h.b16 %v6993
    %v8315 = vunpack.c.l.b16 %v6994
    %v8316 = vunpack.c.h.b16 %v6994
    %v8317 = vunpack.c.l.b16 %v6995
    %v8318 = vunpack.c.h.b16 %v6995
    %v8319 = vunpack.c.l.b16 %v6996
    %v8320 = vunpack.c.h.b16 %v6996
    %v8321 = vunpack.c.l.b16 %v6997
    %v8322 = vunpack.c.h.b16 %v6997
    %v8323 = vunpack.c.l.b16 %v6998
    %v8324 = vunpack.c.h.b16 %v6998
    %v8325 = vunpack.c.l.b16 %v6999
    %v8326 = vunpack.c.h.b16 %v6999
    %v8327 = vunpack.c.l.b16 %v7000
    %v8328 = vunpack.c.h.b16 %v7000
    %v8329 = vunpack.c.l.b16 %v7001
    %v8330 = vunpack.c.h.b16 %v7001
    %v8331 = vunpack.c.l.b16 %v7002
    %v8332 = vunpack.c.h.b16 %v7002
    %v8333 = vunpack.c.l.b16 %v7003
    %v8334 = vunpack.c.h.b16 %v7003
    %v8335 = vunpack.c.l.b16 %v7004
    %v8336 = vunpack.c.h.b16 %v7004
    %v8337 = vunpack.c.l.b16 %v7005
    %v8338 = vunpack.c.h.b16 %v7005
    %v8339 = vunpack.c.l.b16 %v7006
    %v8340 = vunpack.c.h.b16 %v7006
    %v8341 = vunpack.c.l.b16 %v7007
    %v8342 = vunpack.c.h.b16 %v7007
    %v8343 = vunpack.c.l.b16 %v7008
    %v8344 = vunpack.c.h.b16 %v7008
    %v8345 = vunpack.c.l.b16 %v7009
    %v8346 = vunpack.c.h.b16 %v7009
    %v8347 = vunpack.c.l.b16 %v7010
    %v8348 = vunpack.c.h.b16 %v7010
    %v8349 = vunpack.c.l.b16 %v7011
    %v8350 = vunpack.c.h.b16 %v7011
    %v8351 = vunpack.c.l.b16 %v7012
    %v8352 = vunpack.c.h.b16 %v7012
    %v8353 = vunpack.c.l.b16 %v7013
    %v8354 = vunpack.c.h.b16 %v7013
    %v8355 = vunpack.c.l.b16 %v7014
    %v8356 = vunpack.c.h.b16 %v7014
    %v8357 = vunpack.c.l.b16 %v7015
    %v8358 = vunpack.c.h.b16 %v7015
    %v8359 = vunpack.c.l.b16 %v7016
    %v8360 = vunpack.c.h.b16 %v7016
    %v8361 = vunpack.c.l.b16 %v7017
    %v8362 = vunpack.c.h.b16 %v7017
    %v8363 = vunpack.c.l.b16 %v7018
    %v8364 = vunpack.c.h.b16 %v7018
    %v8365 = vunpack.c.l.b16 %v7019
    %v8366 = vunpack.c.h.b16 %v7019
    %v8367 = vunpack.c.l.b16 %v7020
    %v8368 = vunpack.c.h.b16 %v7020
    %v8369 = vunpack.c.l.b16 %v7021
    %v8370 = vunpack.c.h.b16 %v7021
    %v8371 = vunpack.c.l.b16 %v7022
    %v8372 = vunpack.c.h.b16 %v7022
    %v8373 = vunpack.c.l.b16 %v7023
    %v8374 = vunpack.c.h.b16 %v7023
    %v8375 = vunpack.c.l.b16 %v7024
    %v8376 = vunpack.c.h.b16 %v7024
    %v8377 = vunpack.c.l.b16 %v7025
    %v8378 = vunpack.c.h.b16 %v7025
    %v8379 = vunpack.c.l.b16 %v7026
    %v8380 = vunpack.c.h.b16 %v7026
    %v8381 = vunpack.c.l.b16 %v7027
    %v8382 = vunpack.c.h.b16 %v7027
    %v8383 = vunpack.c.l.b16 %v7028
    %v8384 = vunpack.c.h.b16 %v7028
    %v8385 = vunpack.c.l.b16 %v7029
    %v8386 = vunpack.c.h.b16 %v7029
    %v8387 = vunpack.c.l.b16 %v7030
    %v8388 = vunpack.c.h.b16 %v7030
    %v8389 = vunpack.c.l.b16 %v7031
    %v8390 = vunpack.c.h.b16 %v7031
    %v8391 = vunpack.c.l.b16 %v7032
    %v8392 = vunpack.c.h.b16 %v7032
    %v8393 = vunpack.c.l.b16 %v7033
    %v8394 = vunpack.c.h.b16 %v7033
    %v8395 = vunpack.c.l.b16 %v7034
    %v8396 = vunpack.c.h.b16 %v7034
    %v8397 = vunpack.c.l.b16 %v7035
    %v8398 = vunpack.c.h.b16 %v7035
    %v8399 = vunpack.c.l.b16 %v7036
    %v8400 = vunpack.c.h.b16 %v7036
    %v8401 = vunpack.c.l.b16 %v7037
    %v8402 = vunpack.c.h.b16 %v7037
    %v8403 = vunpack.c.l.b16 %v7038
    %v8404 = vunpack.c.h.b16 %v7038
    %v8405 = vunpack.c.l.b16 %v7039
    %v8406 = vunpack.c.h.b16 %v7039
    %v8407 = vunpack.c.l.b16 %v7040
    %v8408 = vunpack.c.h.b16 %v7040
    %v8409 = vunpack.c.l.b16 %v7041
    %v8410 = vunpack.c.h.b16 %v7041
    %v8411 = vunpack.c.l.b16 %v7042
    %v8412 = vunpack.c.h.b16 %v7042
    %v8413 = vunpack.c.l.b16 %v7043
    %v8414 = vunpack.c.h.b16 %v7043
    %v8415 = vunpack.c.l.b16 %v7044
    %v8416 = vunpack.c.h.b16 %v7044
    %v8417 = vunpack.c.l.b16 %v7045
    %v8418 = vunpack.c.h.b16 %v7045
    %v8419 = vunpack.c.l.b16 %v7046
    %v8420 = vunpack.c.h.b16 %v7046
    %v8421 = vunpack.c.l.b16 %v7047
    %v8422 = vunpack.c.h.b16 %v7047
    %v8423 = vunpack.c.l.b16 %v7048
    %v8424 = vunpack.c.h.b16 %v7048
    %v8425 = vunpack.c.l.b16 %v7049
    %v8426 = vunpack.c.h.b16 %v7049
    %v8427 = vunpack.c.l.b16 %v7050
    %v8428 = vunpack.c.h.b16 %v7050
    %v8429 = vunpack.c.l.b16 %v7051
    %v8430 = vunpack.c.h.b16 %v7051
    %v8431 = vunpack.c.l.b16 %v7052
    %v8432 = vunpack.c.h.b16 %v7052
    %v8433 = vunpack.c.l.b16 %v7053
    %v8434 = vunpack.c.h.b16 %v7053
    %v8435 = vunpack.c.l.b16 %v7054
    %v8436 = vunpack.c.h.b16 %v7054
    %v8437 = vunpack.c.l.b16 %v7055
    %v8438 = vunpack.c.h.b16 %v7055
    %v8439 = vunpack.c.l.b16 %v7056
    %v8440 = vunpack.c.h.b16 %v7056
    %v8441 = vunpack.c.l.b16 %v7057
    %v8442 = vunpack.c.h.b16 %v7057
    %v8443 = vunpack.c.l.b16 %v7058
    %v8444 = vunpack.c.h.b16 %v7058
    %v8445 = vunpack.c.l.b16 %v7059
    %v8446 = vunpack.c.h.b16 %v7059
    %v8447 = vunpack.c.l.b16 %v7060
    %v8448 = vunpack.c.h.b16 %v7060
    %v8449 = vunpack.c.l.b16 %v7061
    %v8450 = vunpack.c.h.b16 %v7061
    %v8451 = vunpack.c.l.b16 %v7062
    %v8452 = vunpack.c.h.b16 %v7062
    %v8453 = vunpack.c.l.b16 %v7063
    %v8454 = vunpack.c.h.b16 %v7063
    %v8455 = vunpack.c.l.b16 %v7064
    %v8456 = vunpack.c.h.b16 %v7064
    %v8457 = vunpack.c.l.b16 %v7065
    %v8458 = vunpack.c.h.b16 %v7065
    %v8459 = vunpack.c.l.b16 %v7066
    %v8460 = vunpack.c.h.b16 %v7066
    %v8461 = vunpack.c.l.b16 %v7067
    %v8462 = vunpack.c.h.b16 %v7067
    %v8463 = vunpack.c.l.b16 %v7068
    %v8464 = vunpack.c.h.b16 %v7068
    %v8465 = vunpack.c.l.b16 %v7069
    %v8466 = vunpack.c.h.b16 %v7069
    %v8467 = vunpack.c.l.b16 %v7070
    %v8468 = vunpack.c.h.b16 %v7070
    %v8469 = vunpack.c.l.b16 %v7071
    %v8470 = vunpack.c.h.b16 %v7071
    %v8471 = vunpack.c.l.b16 %v7072
    %v8472 = vunpack.c.h.b16 %v7072
    %v8473 = vunpack.c.l.b16 %v7073
    %v8474 = vunpack.c.h.b16 %v7073
    %v8475 = vunpack.c.l.b16 %v7074
    %v8476 = vunpack.c.h.b16 %v7074
    %v8477 = vunpack.c.l.b16 %v7075
    %v8478 = vunpack.c.h.b16 %v7075
    %v8479 = vunpack.c.l.b16 %v7076
    %v8480 = vunpack.c.h.b16 %v7076
    %v8481 = vunpack.c.l.b16 %v7077
    %v8482 = vunpack.c.h.b16 %v7077
    %v8483 = vunpack.c.l.b16 %v7078
    %v8484 = vunpack.c.h.b16 %v7078
    %v8485 = vunpack.c.l.b16 %v7079
    %v8486 = vunpack.c.h.b16 %v7079
    %v8487 = vunpack.c.l.b16 %v7080
    %v8488 = vunpack.c.h.b16 %v7080
    %v8489 = vunpack.c.l.b16 %v7081
    %v8490 = vunpack.c.h.b16 %v7081
    %v8491 = vunpack.c.l.b16 %v7082
    %v8492 = vunpack.c.h.b16 %v7082
    %v8493 = vunpack.c.l.b16 %v7083
    %v8494 = vunpack.c.h.b16 %v7083
    %v8495 = vunpack.c.l.b16 %v7084
    %v8496 = vunpack.c.h.b16 %v7084
    %v8497 = vunpack.c.l.b16 %v7085
    %v8498 = vunpack.c.h.b16 %v7085
    %v8499 = vunpack.c.l.b16 %v7086
    %v8500 = vunpack.c.h.b16 %v7086
    %v8501 = vunpack.c.l.b16 %v7087
    %v8502 = vunpack.c.h.b16 %v7087
    %v8503 = vunpack.c.l.b16 %v7088
    %v8504 = vunpack.c.h.b16 %v7088
    %v8505 = vunpack.c.l.b16 %v7089
    %v8506 = vunpack.c.h.b16 %v7089
    %v8507 = vunpack.c.l.b16 %v7090
    %v8508 = vunpack.c.h.b16 %v7090
    %v8509 = vunpack.c.l.b16 %v7091
    %v8510 = vunpack.c.h.b16 %v7091
    %v8511 = vunpack.c.l.b16 %v7092
    %v8512 = vunpack.c.h.b16 %v7092
    %v8513 = vunpack.c.l.b16 %v7093
    %v8514 = vunpack.c.h.b16 %v7093
    %v8515 = vunpack.c.l.b16 %v7094
    %v8516 = vunpack.c.h.b16 %v7094
    %v8517 = vunpack.c.l.b16 %v7095
    %v8518 = vunpack.c.h.b16 %v7095
    %v8519 = vunpack.c.l.b16 %v7096
    %v8520 = vunpack.c.h.b16 %v7096
    %v8521 = vunpack.c.l.b16 %v7097
    %v8522 = vunpack.c.h.b16 %v7097
    %v8523 = vunpack.c.l.b16 %v7098
    %v8524 = vunpack.c.h.b16 %v7098
    %v8525 = vunpack.c.l.b16 %v7099
    %v8526 = vunpack.c.h.b16 %v7099
    %v8527 = vunpack.c.l.b16 %v7100
    %v8528 = vunpack.c.h.b16 %v7100
    %v8529 = vunpack.c.l.b16 %v7101
    %v8530 = vunpack.c.h.b16 %v7101
    %v8531 = vunpack.c.l.b16 %v7102
    %v8532 = vunpack.c.h.b16 %v7102
    %v8533 = vunpack.c.l.b16 %v7103
    %v8534 = vunpack.c.h.b16 %v7103
    %v8535 = vunpack.c.l.b16 %v7104
    %v8536 = vunpack.c.h.b16 %v7104
    %v8537 = vunpack.c.l.b16 %v7105
    %v8538 = vunpack.c.h.b16 %v7105
    %v8539 = vunpack.c.l.b16 %v7106
    %v8540 = vunpack.c.h.b16 %v7106
    %v8541 = vunpack.c.l.b16 %v7107
    %v8542 = vunpack.c.h.b16 %v7107
    %v8543 = vunpack.c.l.b16 %v7108
    %v8544 = vunpack.c.h.b16 %v7108
    %v8545 = vunpack.c.l.b16 %v7109
    %v8546 = vunpack.c.h.b16 %v7109
    %v8547 = vunpack.c.l.b16 %v7110
    %v8548 = vunpack.c.h.b16 %v7110
    %v8549 = vunpack.c.l.b16 %v7111
    %v8550 = vunpack.c.h.b16 %v7111
    %v8551 = vunpack.c.l.b16 %v7112
    %v8552 = vunpack.c.h.b16 %v7112
    %v8553 = vunpack.c.l.b16 %v7113
    %v8554 = vunpack.c.h.b16 %v7113
    %v8555 = vunpack.c.l.b16 %v7114
    %v8556 = vunpack.c.h.b16 %v7114
    %v8557 = vunpack.c.l.b16 %v7115
    %v8558 = vunpack.c.h.b16 %v7115
    %v8559 = vunpack.c.l.b16 %v7116
    %v8560 = vunpack.c.h.b16 %v7116
    %v8561 = vunpack.c.l.b16 %v7117
    %v8562 = vunpack.c.h.b16 %v7117
    %v8563 = vunpack.c.l.b16 %v7118
    %v8564 = vunpack.c.h.b16 %v7118
    %v8565 = vunpack.c.l.b16 %v7119
    %v8566 = vunpack.c.h.b16 %v7119
    %v8567 = vunpack.c.l.b16 %v7120
    %v8568 = vunpack.c.h.b16 %v7120
    %v8569 = vunpack.c.l.b16 %v7121
    %v8570 = vunpack.c.h.b16 %v7121
    %v8571 = vunpack.c.l.b16 %v7122
    %v8572 = vunpack.c.h.b16 %v7122
    %v8573 = vunpack.c.l.b16 %v7123
    %v8574 = vunpack.c.h.b16 %v7123
    %v8575 = vunpack.c.l.b16 %v7124
    %v8576 = vunpack.c.h.b16 %v7124
    %v8577 = vunpack.c.l.b16 %v7125
    %v8578 = vunpack.c.h.b16 %v7125
    %v8579 = vunpack.c.l.b16 %v7126
    %v8580 = vunpack.c.h.b16 %v7126
    %v8581 = vunpack.c.l.b16 %v7127
    %v8582 = vunpack.c.h.b16 %v7127
    %v8583 = vunpack.c.l.b16 %v7128
    %v8584 = vunpack.c.h.b16 %v7128
    %v8585 = vunpack.c.l.b16 %v7129
    %v8586 = vunpack.c.h.b16 %v7129
    %v8587 = vunpack.c.l.b16 %v7130
    %v8588 = vunpack.c.h.b16 %v7130
    %v8589 = vunpack.c.l.b16 %v7131
    %v8590 = vunpack.c.h.b16 %v7131
    %v8591 = vunpack.c.l.b16 %v7132
    %v8592 = vunpack.c.h.b16 %v7132
    %v8593 = vunpack.c.l.b16 %v7133
    %v8594 = vunpack.c.h.b16 %v7133
    %v8595 = vunpack.c.l.b16 %v7134
    %v8596 = vunpack.c.h.b16 %v7134
    %v8597 = vunpack.c.l.b16 %v7135
    %v8598 = vunpack.c.h.b16 %v7135
    %v8599 = vunpack.c.l.b16 %v7136
    %v8600 = vunpack.c.h.b16 %v7136
    %v8601 = vunpack.c.l.b16 %v7137
    %v8602 = vunpack.c.h.b16 %v7137
    %v8603 = vunpack.c.l.b16 %v7138
    %v8604 = vunpack.c.h.b16 %v7138
    %v8605 = vunpack.c.l.b16 %v7139
    %v8606 = vunpack.c.h.b16 %v7139
    %v8607 = vunpack.c.l.b16 %v7140
    %v8608 = vunpack.c.h.b16 %v7140
    %v8609 = vunpack.c.l.b16 %v7141
    %v8610 = vunpack.c.h.b16 %v7141
    %v8611 = vunpack.c.l.b16 %v7142
    %v8612 = vunpack.c.h.b16 %v7142
    %v8613 = vunpack.c.l.b16 %v7143
    %v8614 = vunpack.c.h.b16 %v7143
    %v8615 = vunpack.c.l.b16 %v7144
    %v8616 = vunpack.c.h.b16 %v7144
    %v8617 = vunpack.c.l.b16 %v7145
    %v8618 = vunpack.c.h.b16 %v7145
    %v8619 = vunpack.c.l.b16 %v7146
    %v8620 = vunpack.c.h.b16 %v7146
    %v8621 = vunpack.c.l.b16 %v7147
    %v8622 = vunpack.c.h.b16 %v7147
    %v8623 = vunpack.c.l.b16 %v7148
    %v8624 = vunpack.c.h.b16 %v7148
    %v8625 = vunpack.c.l.b16 %v7149
    %v8626 = vunpack.c.h.b16 %v7149
    %v8627 = vunpack.c.l.b16 %v7150
    %v8628 = vunpack.c.h.b16 %v7150
    %v8629 = vunpack.c.l.b16 %v7151
    %v8630 = vunpack.c.h.b16 %v7151
    %v8631 = vunpack.c.l.b16 %v7152
    %v8632 = vunpack.c.h.b16 %v7152
    %v8633 = vunpack.c.l.b16 %v7153
    %v8634 = vunpack.c.h.b16 %v7153
    %v8635 = vunpack.c.l.b16 %v7154
    %v8636 = vunpack.c.h.b16 %v7154
    %v8637 = vunpack.c.l.b16 %v7155
    %v8638 = vunpack.c.h.b16 %v7155
    %v8639 = vunpack.c.l.b16 %v7156
    %v8640 = vunpack.c.h.b16 %v7156
    %v8641 = vunpack.c.l.b16 %v7157
    %v8642 = vunpack.c.h.b16 %v7157
    %v8643 = vunpack.c.l.b16 %v7158
    %v8644 = vunpack.c.h.b16 %v7158
    %v8645 = vunpack.c.l.b16 %v7159
    %v8646 = vunpack.c.h.b16 %v7159
    %v8647 = vunpack.c.l.b16 %v7160
    %v8648 = vunpack.c.h.b16 %v7160
    %v8649 = vunpack.c.l.b16 %v7161
    %v8650 = vunpack.c.h.b16 %v7161
    %v8651 = vunpack.c.l.b16 %v7162
    %v8652 = vunpack.c.h.b16 %v7162
    %v8653 = vunpack.c.l.b16 %v7163
    %v8654 = vunpack.c.h.b16 %v7163
    %v8655 = vunpack.c.l.b16 %v7164
    %v8656 = vunpack.c.h.b16 %v7164
    %v8657 = vunpack.c.l.b16 %v7165
    %v8658 = vunpack.c.h.b16 %v7165
    %v8659 = vunpack.c.l.b16 %v7166
    %v8660 = vunpack.c.h.b16 %v7166
    %v8661 = vunpack.c.l.b16 %v7167
    %v8662 = vunpack.c.h.b16 %v7167
    %v8663 = vunpack.c.l.b16 %v7168
    %v8664 = vunpack.c.h.b16 %v7168
    %v8665 = vunpack.c.l.b16 %v7169
    %v8666 = vunpack.c.h.b16 %v7169
    %v8667 = vunpack.c.l.b16 %v7170
    %v8668 = vunpack.c.h.b16 %v7170
    %v8669 = vunpack.c.l.b16 %v7171
    %v8670 = vunpack.c.h.b16 %v7171
    %v8671 = vunpack.c.l.b16 %v7172
    %v8672 = vunpack.c.h.b16 %v7172
    %v8673 = vunpack.c.l.b16 %v7173
    %v8674 = vunpack.c.h.b16 %v7173
    %v8675 = vunpack.c.l.b16 %v7174
    %v8676 = vunpack.c.h.b16 %v7174
    %v8677 = vunpack.c.l.b16 %v7175
    %v8678 = vunpack.c.h.b16 %v7175
    %v8679 = vunpack.c.l.b16 %v7176
    %v8680 = vunpack.c.h.b16 %v7176
    %v8681 = vunpack.c.l.b16 %v7177
    %v8682 = vunpack.c.h.b16 %v7177
    %v8683 = vunpack.c.l.b16 %v7178
    %v8684 = vunpack.c.h.b16 %v7178
    %v8685 = vunpack.c.l.b16 %v7179
    %v8686 = vunpack.c.h.b16 %v7179
    %v8687 = vunpack.c.l.b16 %v7180
    %v8688 = vunpack.c.h.b16 %v7180
    %v8689 = vunpack.c.l.b16 %v7181
    %v8690 = vunpack.c.h.b16 %v7181
    %v8691 = vunpack.c.l.b16 %v7182
    %v8692 = vunpack.c.h.b16 %v7182
    %v8693 = vunpack.c.l.b16 %v7183
    %v8694 = vunpack.c.h.b16 %v7183
    %v8695 = vunpack.c.l.b16 %v7184
    %v8696 = vunpack.c.h.b16 %v7184
    %v8697 = vunpack.c.l.b16 %v7185
    %v8698 = vunpack.c.h.b16 %v7185
    %v8699 = vunpack.c.l.b16 %v7186
    %v8700 = vunpack.c.h.b16 %v7186
    %v8701 = vunpack.c.l.b16 %v7187
    %v8702 = vunpack.c.h.b16 %v7187
    %v8703 = vunpack.c.l.b16 %v7188
    %v8704 = vunpack.c.h.b16 %v7188
    %v8705 = vunpack.c.l.b16 %v7189
    %v8706 = vunpack.c.h.b16 %v7189
    %v8707 = vunpack.c.l.b16 %v7190
    %v8708 = vunpack.c.h.b16 %v7190
    %v8709 = vunpack.c.l.b16 %v7191
    %v8710 = vunpack.c.h.b16 %v7191
    %v8711 = vunpack.c.l.b16 %v7192
    %v8712 = vunpack.c.h.b16 %v7192
    %v8713 = vunpack.c.l.b16 %v7193
    %v8714 = vunpack.c.h.b16 %v7193
    %v8715 = vunpack.c.l.b16 %v7194
    %v8716 = vunpack.c.h.b16 %v7194
    %v8717 = vunpack.c.l.b16 %v7195
    %v8718 = vunpack.c.h.b16 %v7195
    %v8719 = vunpack.c.l.b16 %v7196
    %v8720 = vunpack.c.h.b16 %v7196
    %v8721 = vunpack.c.l.b16 %v7197
    %v8722 = vunpack.c.h.b16 %v7197
    %v8723 = vunpack.c.l.b16 %v7198
    %v8724 = vunpack.c.h.b16 %v7198
    %v8725 = vunpack.c.l.b16 %v7199
    %v8726 = vunpack.c.h.b16 %v7199
    %v8727 = vunpack.c.l.b16 %v7200
    %v8728 = vunpack.c.h.b16 %v7200
    %v8729 = vunpack.c.l.b16 %v7201
    %v8730 = vunpack.c.h.b16 %v7201
    %v8731 = vunpack.c.l.b16 %v7202
    %v8732 = vunpack.c.h.b16 %v7202
    %v8733 = vunpack.c.l.b16 %v7203
    %v8734 = vunpack.c.h.b16 %v7203
    %v8735 = vunpack.c.l.b16 %v7204
    %v8736 = vunpack.c.h.b16 %v7204
    %v8737 = vunpack.c.l.b16 %v7205
    %v8738 = vunpack.c.h.b16 %v7205
    %v8739 = vunpack.c.l.b16 %v7206
    %v8740 = vunpack.c.h.b16 %v7206
    %v8741 = vunpack.c.l.b16 %v7207
    %v8742 = vunpack.c.h.b16 %v7207
    %v8743 = vunpack.c.l.b16 %v7208
    %v8744 = vunpack.c.h.b16 %v7208
    %v8745 = vunpack.c.l.b16 %v7209
    %v8746 = vunpack.c.h.b16 %v7209
    %v8747 = vunpack.c.l.b16 %v7210
    %v8748 = vunpack.c.h.b16 %v7210
    %v8749 = vunpack.c.l.b16 %v7211
    %v8750 = vunpack.c.h.b16 %v7211
    %v8751 = vunpack.c.l.b16 %v7212
    %v8752 = vunpack.c.h.b16 %v7212
    %v8753 = vunpack.c.l.b16 %v7213
    %v8754 = vunpack.c.h.b16 %v7213
    %v8755 = vunpack.c.l.b16 %v7214
    %v8756 = vunpack.c.h.b16 %v7214
    %v8757 = vunpack.c.l.b16 %v7215
    %v8758 = vunpack.c.h.b16 %v7215
    %v8759 = vunpack.c.l.b16 %v7216
    %v8760 = vunpack.c.h.b16 %v7216
    %v8761 = vunpack.c.l.b16 %v7217
    %v8762 = vunpack.c.h.b16 %v7217
    %v8763 = vunpack.c.l.b16 %v7218
    %v8764 = vunpack.c.h.b16 %v7218
    %v8765 = vunpack.c.l.b16 %v7219
    %v8766 = vunpack.c.h.b16 %v7219
    %v8767 = vunpack.c.l.b16 %v7220
    %v8768 = vunpack.c.h.b16 %v7220
    %v8769 = vunpack.c.l.b16 %v7221
    %v8770 = vunpack.c.h.b16 %v7221
    %v8771 = vunpack.c.l.b16 %v7222
    %v8772 = vunpack.c.h.b16 %v7222
    %v8773 = vunpack.c.l.b16 %v7223
    %v8774 = vunpack.c.h.b16 %v7223
    %v8775 = vunpack.c.l.b16 %v7224
    %v8776 = vunpack.c.h.b16 %v7224
    %v8777 = vunpack.c.l.b16 %v7225
    %v8778 = vunpack.c.h.b16 %v7225
    %v8779 = vunpack.c.l.b16 %v7226
    %v8780 = vunpack.c.h.b16 %v7226
    %v8781 = vunpack.c.l.b16 %v7227
    %v8782 = vunpack.c.h.b16 %v7227
    %v8783 = vunpack.c.l.b16 %v7228
    %v8784 = vunpack.c.h.b16 %v7228
    %v8785 = vunpack.c.l.b16 %v7229
    %v8786 = vunpack.c.h.b16 %v7229
    %v8787 = vunpack.c.l.b16 %v7230
    %v8788 = vunpack.c.h.b16 %v7230
    %v8789 = vunpack.c.l.b16 %v7231
    %v8790 = vunpack.c.h.b16 %v7231
    %v8791 = vunpack.c.l.b16 %v7232
    %v8792 = vunpack.c.h.b16 %v7232
    %v8793 = vunpack.c.l.b16 %v7233
    %v8794 = vunpack.c.h.b16 %v7233
    %v8795 = vunpack.c.l.b16 %v7234
    %v8796 = vunpack.c.h.b16 %v7234
    %v8797 = vunpack.c.l.b16 %v7235
    %v8798 = vunpack.c.h.b16 %v7235
    %v8799 = vunpack.c.l.b16 %v7236
    %v8800 = vunpack.c.h.b16 %v7236
    %v8801 = vunpack.c.l.b16 %v7237
    %v8802 = vunpack.c.h.b16 %v7237
    %v8803 = vunpack.c.l.b16 %v7238
    %v8804 = vunpack.c.h.b16 %v7238
    %v8805 = vunpack.c.l.b16 %v7239
    %v8806 = vunpack.c.h.b16 %v7239
    %v8807 = vunpack.c.l.b16 %v7240
    %v8808 = vunpack.c.h.b16 %v7240
    %v8809 = vunpack.c.l.b16 %v7241
    %v8810 = vunpack.c.h.b16 %v7241
    %v8811 = vunpack.c.l.b16 %v7242
    %v8812 = vunpack.c.h.b16 %v7242
    %v8813 = vunpack.c.l.b16 %v7243
    %v8814 = vunpack.c.h.b16 %v7243
    %v8815 = vunpack.c.l.b16 %v7244
    %v8816 = vunpack.c.h.b16 %v7244
    %v8817 = vunpack.c.l.b16 %v7245
    %v8818 = vunpack.c.h.b16 %v7245
    %v8819 = vunpack.c.l.b16 %v7246
    %v8820 = vunpack.c.h.b16 %v7246
    %v8821 = vunpack.c.l.b16 %v7247
    %v8822 = vunpack.c.h.b16 %v7247
    %v8823 = vunpack.c.l.b16 %v7248
    %v8824 = vunpack.c.h.b16 %v7248
    %v8825 = vunpack.c.l.b16 %v7249
    %v8826 = vunpack.c.h.b16 %v7249
    %v8827 = vunpack.c.l.b16 %v7250
    %v8828 = vunpack.c.h.b16 %v7250
    %v8829 = vunpack.c.l.b16 %v7251
    %v8830 = vunpack.c.h.b16 %v7251
    %v8831 = vunpack.c.l.b16 %v7252
    %v8832 = vunpack.c.h.b16 %v7252
    %v8833 = vunpack.c.l.b16 %v7253
    %v8834 = vunpack.c.h.b16 %v7253
    %v8835 = vunpack.c.l.b16 %v7254
    %v8836 = vunpack.c.h.b16 %v7254
    %v8837 = vunpack.c.l.b16 %v7255
    %v8838 = vunpack.c.h.b16 %v7255
    %v8839 = vunpack.c.l.b16 %v7256
    %v8840 = vunpack.c.h.b16 %v7256
    %v8841 = vunpack.c.l.b16 %v7257
    %v8842 = vunpack.c.h.b16 %v7257
    %v8843 = vunpack.c.l.b16 %v7258
    %v8844 = vunpack.c.h.b16 %v7258
    %v8845 = vunpack.c.l.b16 %v7259
    %v8846 = vunpack.c.h.b16 %v7259
    %v8847 = vunpack.c.l.b16 %v7260
    %v8848 = vunpack.c.h.b16 %v7260
    %v8849 = vunpack.c.l.b16 %v7261
    %v8850 = vunpack.c.h.b16 %v7261
    %v8851 = vunpack.c.l.b16 %v7262
    %v8852 = vunpack.c.h.b16 %v7262
    %v8853 = vunpack.c.l.b16 %v7263
    %v8854 = vunpack.c.h.b16 %v7263
    %v8855 = vunpack.c.l.b16 %v7264
    %v8856 = vunpack.c.h.b16 %v7264
    %v8857 = vunpack.c.l.b16 %v7265
    %v8858 = vunpack.c.h.b16 %v7265
    %v8859 = vunpack.c.l.b16 %v7266
    %v8860 = vunpack.c.h.b16 %v7266
    %v8861 = vunpack.c.l.b16 %v7267
    %v8862 = vunpack.c.h.b16 %v7267
    %v8863 = vunpack.c.l.b16 %v7268
    %v8864 = vunpack.c.h.b16 %v7268
    %v8865 = vunpack.c.l.b16 %v7269
    %v8866 = vunpack.c.h.b16 %v7269
    %v8867 = vunpack.c.l.b16 %v7270
    %v8868 = vunpack.c.h.b16 %v7270
    %v8869 = vunpack.c.l.b16 %v7271
    %v8870 = vunpack.c.h.b16 %v7271
    %v8871 = vunpack.c.l.b16 %v7272
    %v8872 = vunpack.c.h.b16 %v7272
    %v8873 = vunpack.c.l.b16 %v7273
    %v8874 = vunpack.c.h.b16 %v7273
    %v8875 = vunpack.c.l.b16 %v7274
    %v8876 = vunpack.c.h.b16 %v7274
    %v8877 = vunpack.c.l.b16 %v7275
    %v8878 = vunpack.c.h.b16 %v7275
    %v8879 = vunpack.c.l.b16 %v7276
    %v8880 = vunpack.c.h.b16 %v7276
    %v8881 = vunpack.c.l.b16 %v7277
    %v8882 = vunpack.c.h.b16 %v7277
    %v8883 = vunpack.c.l.b16 %v7278
    %v8884 = vunpack.c.h.b16 %v7278
    %v8885 = vunpack.c.l.b16 %v7279
    %v8886 = vunpack.c.h.b16 %v7279
    %v8887 = vunpack.c.l.b16 %v7280
    %v8888 = vunpack.c.h.b16 %v7280
    %v8889 = vunpack.c.l.b16 %v7281
    %v8890 = vunpack.c.h.b16 %v7281
    %v8891 = vunpack.c.l.b16 %v7282
    %v8892 = vunpack.c.h.b16 %v7282
    %v8893 = vunpack.c.l.b16 %v7283
    %v8894 = vunpack.c.h.b16 %v7283
    %v8895 = vunpack.c.l.b16 %v7284
    %v8896 = vunpack.c.h.b16 %v7284
    %v8897 = vunpack.c.l.b16 %v7285
    %v8898 = vunpack.c.h.b16 %v7285
    %v8899 = vunpack.c.l.b16 %v7286
    %v8900 = vunpack.c.h.b16 %v7286
    %v8901 = vunpack.c.l.b16 %v7287
    %v8902 = vunpack.c.h.b16 %v7287
    %v8903 = vunpack.c.l.b16 %v7288
    %v8904 = vunpack.c.h.b16 %v7288
    %v8905 = vunpack.c.l.b16 %v7289
    %v8906 = vunpack.c.h.b16 %v7289
    %v8907 = vunpack.c.l.b16 %v7290
    %v8908 = vunpack.c.h.b16 %v7290
    %v8909 = vunpack.c.l.b16 %v7291
    %v8910 = vunpack.c.h.b16 %v7291
    %v8911 = vunpack.c.l.b16 %v7292
    %v8912 = vunpack.c.h.b16 %v7292
    %v8913 = vunpack.c.l.b16 %v7293
    %v8914 = vunpack.c.h.b16 %v7293
    %v8915 = vunpack.c.l.b16 %v7294
    %v8916 = vunpack.c.h.b16 %v7294
    %v8917 = vunpack.c.l.b16 %v7295
    %v8918 = vunpack.c.h.b16 %v7295
    %v8919 = vunpack.c.l.b16 %v7296
    %v8920 = vunpack.c.h.b16 %v7296
    %v8921 = vunpack.c.l.b16 %v7297
    %v8922 = vunpack.c.h.b16 %v7297
    %v8923 = vunpack.c.l.b16 %v7298
    %v8924 = vunpack.c.h.b16 %v7298
    %v8925 = vunpack.c.l.b16 %v7299
    %v8926 = vunpack.c.h.b16 %v7299
    %v8927 = vunpack.c.l.b16 %v7300
    %v8928 = vunpack.c.h.b16 %v7300
    %v8929 = vunpack.c.l.b16 %v7301
    %v8930 = vunpack.c.h.b16 %v7301
    %v8931 = vunpack.c.l.b16 %v7302
    %v8932 = vunpack.c.h.b16 %v7302
    %v8933 = vunpack.c.l.b16 %v7303
    %v8934 = vunpack.c.h.b16 %v7303
    %v8935 = vunpack.c.l.b16 %v7304
    %v8936 = vunpack.c.h.b16 %v7304
    %v8937 = vunpack.c.l.b16 %v7305
    %v8938 = vunpack.c.h.b16 %v7305
    %v8939 = vunpack.c.l.b16 %v7306
    %v8940 = vunpack.c.h.b16 %v7306
    %v8941 = vunpack.c.l.b16 %v7307
    %v8942 = vunpack.c.h.b16 %v7307
    %v8943 = vunpack.c.l.b16 %v7308
    %v8944 = vunpack.c.h.b16 %v7308
    %v8945 = vunpack.c.l.b16 %v7309
    %v8946 = vunpack.c.h.b16 %v7309
    %v8947 = vunpack.c.l.b16 %v7310
    %v8948 = vunpack.c.h.b16 %v7310
    %v8949 = vunpack.c.l.b16 %v7311
    %v8950 = vunpack.c.h.b16 %v7311
    %v8951 = vunpack.c.l.b16 %v7312
    %v8952 = vunpack.c.h.b16 %v7312
    %v8953 = vunpack.c.l.b16 %v7313
    %v8954 = vunpack.c.h.b16 %v7313
    %v8955 = vunpack.c.l.b16 %v7314
    %v8956 = vunpack.c.h.b16 %v7314
    %v8957 = vunpack.c.l.b16 %v7315
    %v8958 = vunpack.c.h.b16 %v7315
    %v8959 = vunpack.c.l.b16 %v7316
    %v8960 = vunpack.c.h.b16 %v7316
    %v8961 = vunpack.c.l.b16 %v7317
    %v8962 = vunpack.c.h.b16 %v7317
    %v8963 = vunpack.c.l.b16 %v7318
    %v8964 = vunpack.c.h.b16 %v7318
    %v8965 = vunpack.c.l.b16 %v7319
    %v8966 = vunpack.c.h.b16 %v7319
    %v8967 = vunpack.c.l.b16 %v7320
    %v8968 = vunpack.c.h.b16 %v7320
    %v8969 = vunpack.c.l.b16 %v7321
    %v8970 = vunpack.c.h.b16 %v7321
    %v8971 = vunpack.c.l.b16 %v7322
    %v8972 = vunpack.c.h.b16 %v7322
    %v8973 = vunpack.c.l.b16 %v7323
    %v8974 = vunpack.c.h.b16 %v7323
    %v8975 = vunpack.c.l.b16 %v7324
    %v8976 = vunpack.c.h.b16 %v7324
    %v8977 = vunpack.c.l.b16 %v7325
    %v8978 = vunpack.c.h.b16 %v7325
    %v8979 = vunpack.c.l.b16 %v7326
    %v8980 = vunpack.c.h.b16 %v7326
    %v8981 = vunpack.c.l.b16 %v7327
    %v8982 = vunpack.c.h.b16 %v7327
    %v8983 = vunpack.c.l.b16 %v7328
    %v8984 = vunpack.c.h.b16 %v7328
    %v8985 = vunpack.c.l.b16 %v7329
    %v8986 = vunpack.c.h.b16 %v7329
    %v8987 = vunpack.c.l.b16 %v7330
    %v8988 = vunpack.c.h.b16 %v7330
    %v8989 = vunpack.c.l.b16 %v7331
    %v8990 = vunpack.c.h.b16 %v7331
    %v8991 = vunpack.c.l.b16 %v7332
    %v8992 = vunpack.c.h.b16 %v7332
    %v8993 = vunpack.c.l.b16 %v7333
    %v8994 = vunpack.c.h.b16 %v7333
    %v8995 = vunpack.c.l.b16 %v7334
    %v8996 = vunpack.c.h.b16 %v7334
    %v8997 = vunpack.c.l.b16 %v7335
    %v8998 = vunpack.c.h.b16 %v7335
    %v8999 = vunpack.c.l.b16 %v7336
    %v9000 = vunpack.c.h.b16 %v7336
    %v9001 = vunpack.c.l.b16 %v7337
    %v9002 = vunpack.c.h.b16 %v7337
    %v9003 = vunpack.c.l.b16 %v7338
    %v9004 = vunpack.c.h.b16 %v7338
    %v9005 = vunpack.c.l.b16 %v7339
    %v9006 = vunpack.c.h.b16 %v7339
    %v9007 = vunpack.c.l.b16 %v7340
    %v9008 = vunpack.c.h.b16 %v7340
    %v9009 = vunpack.c.l.b16 %v7341
    %v9010 = vunpack.c.h.b16 %v7341
    %v9011 = vunpack.c.l.b16 %v7342
    %v9012 = vunpack.c.h.b16 %v7342
    %v9013 = vunpack.c.l.b16 %v7343
    %v9014 = vunpack.c.h.b16 %v7343
    %v9015 = vunpack.c.l.b16 %v7344
    %v9016 = vunpack.c.h.b16 %v7344
    %v9017 = vunpack.c.l.b16 %v7345
    %v9018 = vunpack.c.h.b16 %v7345
    %v9019 = vunpack.c.l.b16 %v7346
    %v9020 = vunpack.c.h.b16 %v7346
    %v9021 = vunpack.c.l.b16 %v7347
    %v9022 = vunpack.c.h.b16 %v7347
    %v9023 = vunpack.c.l.b16 %v7348
    %v9024 = vunpack.c.h.b16 %v7348
    %v9025 = vunpack.c.l.b16 %v7349
    %v9026 = vunpack.c.h.b16 %v7349
    %v9027 = vunpack.c.l.b16 %v7350
    %v9028 = vunpack.c.h.b16 %v7350
    %v9029 = vunpack.c.l.b16 %v7351
    %v9030 = vunpack.c.h.b16 %v7351
    %v9031 = vunpack.c.l.b16 %v7352
    %v9032 = vunpack.c.h.b16 %v7352
    %v9033 = vunpack.c.l.b16 %v7353
    %v9034 = vunpack.c.h.b16 %v7353
    %v9035 = vunpack.c.l.b16 %v7354
    %v9036 = vunpack.c.h.b16 %v7354
    %v9037 = vunpack.c.l.b16 %v7355
    %v9038 = vunpack.c.h.b16 %v7355
    %v9039 = vunpack.c.l.b16 %v7356
    %v9040 = vunpack.c.h.b16 %v7356
    %v9041 = vunpack.c.l.b16 %v7357
    %v9042 = vunpack.c.h.b16 %v7357
    %v9043 = vunpack.c.l.b16 %v7358
    %v9044 = vunpack.c.h.b16 %v7358
    %v9045 = vunpack.c.l.b16 %v7359
    %v9046 = vunpack.c.h.b16 %v7359
    %v9047 = vunpack.c.l.b16 %v7360
    %v9048 = vunpack.c.h.b16 %v7360
    %v9049 = vunpack.c.l.b16 %v7361
    %v9050 = vunpack.c.h.b16 %v7361
    %v9051 = vunpack.c.l.b16 %v7362
    %v9052 = vunpack.c.h.b16 %v7362
    %v9053 = vunpack.c.l.b16 %v7363
    %v9054 = vunpack.c.h.b16 %v7363
    %v9055 = vunpack.c.l.b16 %v7364
    %v9056 = vunpack.c.h.b16 %v7364
    %v9057 = vunpack.c.l.b16 %v7365
    %v9058 = vunpack.c.h.b16 %v7365
    %v9059 = vunpack.c.l.b16 %v7366
    %v9060 = vunpack.c.h.b16 %v7366
    %v9061 = vunpack.c.l.b16 %v7367
    %v9062 = vunpack.c.h.b16 %v7367
    %v9063 = vunpack.c.l.b16 %v7368
    %v9064 = vunpack.c.h.b16 %v7368
    %v9065 = vunpack.c.l.b16 %v7369
    %v9066 = vunpack.c.h.b16 %v7369
    %v9067 = vunpack.c.l.b16 %v7370
    %v9068 = vunpack.c.h.b16 %v7370
    %v9069 = vunpack.c.l.b16 %v7371
    %v9070 = vunpack.c.h.b16 %v7371
    %v9071 = vunpack.c.l.b16 %v7372
    %v9072 = vunpack.c.h.b16 %v7372
    %v9073 = vunpack.c.l.b16 %v7373
    %v9074 = vunpack.c.h.b16 %v7373
    %v9075 = vunpack.c.l.b16 %v7374
    %v9076 = vunpack.c.h.b16 %v7374
    %v9077 = vunpack.c.l.b16 %v7375
    %v9078 = vunpack.c.h.b16 %v7375
    %v9079 = vunpack.c.l.b16 %v7376
    %v9080 = vunpack.c.h.b16 %v7376
    %v9081 = vunpack.c.l.b16 %v7377
    %v9082 = vunpack.c.h.b16 %v7377
    %v9083 = vunpack.c.l.b16 %v7378
    %v9084 = vunpack.c.h.b16 %v7378
    %v9085 = vunpack.c.l.b16 %v7379
    %v9086 = vunpack.c.h.b16 %v7379
    %v9087 = vunpack.c.l.b16 %v7380
    %v9088 = vunpack.c.h.b16 %v7380
    %v9089 = vunpack.c.l.b16 %v7381
    %v9090 = vunpack.c.h.b16 %v7381
    %v9091 = vunpack.c.l.b16 %v7382
    %v9092 = vunpack.c.h.b16 %v7382
    %v9093 = vunpack.c.l.b16 %v7383
    %v9094 = vunpack.c.h.b16 %v7383
    %v9095 = vunpack.c.l.b16 %v7384
    %v9096 = vunpack.c.h.b16 %v7384
    %v9097 = vunpack.c.l.b16 %v7385
    %v9098 = vunpack.c.h.b16 %v7385
    %v9099 = vunpack.c.l.b16 %v7386
    %v9100 = vunpack.c.h.b16 %v7386
    %v9101 = vunpack.c.l.b16 %v7387
    %v9102 = vunpack.c.h.b16 %v7387
    %v9103 = vunpack.c.l.b16 %v7388
    %v9104 = vunpack.c.h.b16 %v7388
    %v9105 = vunpack.c.l.b16 %v7389
    %v9106 = vunpack.c.h.b16 %v7389
    %v9107 = vunpack.c.l.b16 %v7390
    %v9108 = vunpack.c.h.b16 %v7390
    %v9109 = vunpack.c.l.b16 %v7391
    %v9110 = vunpack.c.h.b16 %v7391
    %v9111 = vunpack.c.l.b16 %v7392
    %v9112 = vunpack.c.h.b16 %v7392
    %v9113 = vunpack.c.l.b16 %v7393
    %v9114 = vunpack.c.h.b16 %v7393
    %v9115 = vunpack.c.l.b16 %v7394
    %v9116 = vunpack.c.h.b16 %v7394
    %v9117 = vunpack.c.l.b16 %v7395
    %v9118 = vunpack.c.h.b16 %v7395
    %v9119 = vunpack.c.l.b16 %v7396
    %v9120 = vunpack.c.h.b16 %v7396
    %v9121 = vunpack.c.l.b16 %v7397
    %v9122 = vunpack.c.h.b16 %v7397
    %v9123 = vunpack.c.l.b16 %v7398
    %v9124 = vunpack.c.h.b16 %v7398
    %v9125 = vunpack.c.l.b16 %v7399
    %v9126 = vunpack.c.h.b16 %v7399
    %v9127 = vunpack.c.l.b16 %v7400
    %v9128 = vunpack.c.h.b16 %v7400
    %v9129 = vunpack.c.l.b16 %v7401
    %v9130 = vunpack.c.h.b16 %v7401
    %v9131 = vunpack.c.l.b16 %v7402
    %v9132 = vunpack.c.h.b16 %v7402
    %v9133 = vunpack.c.l.b16 %v7403
    %v9134 = vunpack.c.h.b16 %v7403
    %v9135 = vunpack.c.l.b16 %v7404
    %v9136 = vunpack.c.h.b16 %v7404
    %v9137 = vunpack.c.l.b16 %v7405
    %v9138 = vunpack.c.h.b16 %v7405
    %v9139 = vunpack.c.l.b16 %v7406
    %v9140 = vunpack.c.h.b16 %v7406
    %v9141 = vunpack.c.l.b16 %v7407
    %v9142 = vunpack.c.h.b16 %v7407
    %v9143 = vunpack.c.l.b16 %v7408
    %v9144 = vunpack.c.h.b16 %v7408
    %v9145 = vunpack.c.l.b16 %v7409
    %v9146 = vunpack.c.h.b16 %v7409
    %v9147 = vunpack.c.l.b16 %v7410
    %v9148 = vunpack.c.h.b16 %v7410
    %v9149 = vunpack.c.l.b16 %v7411
    %v9150 = vunpack.c.h.b16 %v7411
    %v9151 = vunpack.c.l.b16 %v7412
    %v9152 = vunpack.c.h.b16 %v7412
    %v9153 = vunpack.c.l.b16 %v7413
    %v9154 = vunpack.c.h.b16 %v7413
    %v9155 = vunpack.c.l.b16 %v7414
    %v9156 = vunpack.c.h.b16 %v7414
    %v9157 = vpack.c.b16 %v8011, %v8005
    %v9158 = vpack.c.b16 %v8012, %v8006
    %v9159 = vpack.c.b16 %v8013, %v8007
    %v9160 = vpack.c.b16 %v8014, %v8008
    %v9161 = vpack.c.b16 %v8015, %v8009
    %v9162 = vpack.c.b16 %v8016, %v8010
    %v9163 = vpack.c.b16 %v8023, %v8017
    %v9164 = vpack.c.b16 %v8024, %v8018
    %v9165 = vpack.c.b16 %v8025, %v8019
    %v9166 = vpack.c.b16 %v8026, %v8020
    %v9167 = vpack.c.b16 %v8027, %v8021
    %v9168 = vpack.c.b16 %v8028, %v8022
    %v9169 = vpack.c.b16 %v8035, %v8029
    %v9170 = vpack.c.b16 %v8036, %v8030
    %v9171 = vpack.c.b16 %v8037, %v8031
    %v9172 = vpack.c.b16 %v8038, %v8032
    %v9173 = vpack.c.b16 %v8039, %v8033
    %v9174 = vpack.c.b16 %v8040, %v8034
    %v9175 = vpack.c.b16 %v8047, %v8041
    %v9176 = vpack.c.b16 %v8048, %v8042
    %v9177 = vpack.c.b16 %v8049, %v8043
    %v9178 = vpack.c.b16 %v8050, %v8044
    %v9179 = vpack.c.b16 %v8051, %v8045
    %v9180 = vpack.c.b16 %v8052, %v8046
    %v9181 = vpack.c.b16 %v8059, %v8053
    %v9182 = vpack.c.b16 %v8060, %v8054
    %v9183 = vpack.c.b16 %v8061, %v8055
    %v9184 = vpack.c.b16 %v8062, %v8056
    %v9185 = vpack.c.b16 %v8063, %v8057
    %v9186 = vpack.c.b16 %v8064, %v8058
    %v9187 = vpack.c.b16 %v8071, %v8065
    %v9188 = vpack.c.b16 %v8072, %v8066
    %v9189 = vpack.c.b16 %v8073, %v8067
    %v9190 = vpack.c.b16 %v8074, %v8068
    %v9191 = vpack.c.b16 %v8075, %v8069
    %v9192 = vpack.c.b16 %v8076, %v8070
    %v9193 = vpack.c.b16 %v8083, %v8077
    %v9194 = vpack.c.b16 %v8084, %v8078
    %v9195 = vpack.c.b16 %v8085, %v8079
    %v9196 = vpack.c.b16 %v8086, %v8080
    %v9197 = vpack.c.b16 %v8087, %v8081
    %v9198 = vpack.c.b16 %v8088, %v8082
    %v9199 = vpack.c.b16 %v8095, %v8089
    %v9200 = vpack.c.b16 %v8096, %v8090
    %v9201 = vpack.c.b16 %v8097, %v8091
    %v9202 = vpack.c.b16 %v8098, %v8092
    %v9203 = vpack.c.b16 %v8099, %v8093
    %v9204 = vpack.c.b16 %v8100, %v8094
    %v9205 = vpack.c.b16 %v8107, %v8101
    %v9206 = vpack.c.b16 %v8108, %v8102
    %v9207 = vpack.c.b16 %v8109, %v8103
    %v9208 = vpack.c.b16 %v8110, %v8104
    %v9209 = vpack.c.b16 %v8111, %v8105
    %v9210 = vpack.c.b16 %v8112, %v8106
    %v9211 = vpack.c.b16 %v8119, %v8113
    %v9212 = vpack.c.b16 %v8120, %v8114
    %v9213 = vpack.c.b16 %v8121, %v8115
    %v9214 = vpack.c.b16 %v8122, %v8116
    %v9215 = vpack.c.b16 %v8123, %v8117
    %v9216 = vpack.c.b16 %v8124, %v8118
    %v9217 = vpack.c.b16 %v8131, %v8125
    %v9218 = vpack.c.b16 %v8132, %v8126
    %v9219 = vpack.c.b16 %v8133, %v8127
    %v9220 = vpack.c.b16 %v8134, %v8128
    %v9221 = vpack.c.b16 %v8135, %v8129
    %v9222 = vpack.c.b16 %v8136, %v8130
    %v9223 = vpack.c.b16 %v8143, %v8137
    %v9224 = vpack.c.b16 %v8144, %v8138
    %v9225 = vpack.c.b16 %v8145, %v8139
    %v9226 = vpack.c.b16 %v8146, %v8140
    %v9227 = vpack.c.b16 %v8147, %v8141
    %v9228 = vpack.c.b16 %v8148, %v8142
    %v9229 = vpack.c.b16 %v8155, %v8149
    %v9230 = vpack.c.b16 %v8156, %v8150
    %v9231 = vpack.c.b16 %v8157, %v8151
    %v9232 = vpack.c.b16 %v8158, %v8152
    %v9233 = vpack.c.b16 %v8159, %v8153
    %v9234 = vpack.c.b16 %v8160, %v8154
    %v9235 = vpack.c.b16 %v8167, %v8161
    %v9236 = vpack.c.b16 %v8168, %v8162
    %v9237 = vpack.c.b16 %v8169, %v8163
    %v9238 = vpack.c.b16 %v8170, %v8164
    %v9239 = vpack.c.b16 %v8171, %v8165
    %v9240 = vpack.c.b16 %v8172, %v8166
    %v9241 = vpack.c.b16 %v8179, %v8173
    %v9242 = vpack.c.b16 %v8180, %v8174
    %v9243 = vpack.c.b16 %v8181, %v8175
    %v9244 = vpack.c.b16 %v8182, %v8176
    %v9245 = vpack.c.b16 %v8183, %v8177
    %v9246 = vpack.c.b16 %v8184, %v8178
    %v9247 = vpack.c.b16 %v8191, %v8185
    %v9248 = vpack.c.b16 %v8192, %v8186
    %v9249 = vpack.c.b16 %v8193, %v8187
    %v9250 = vpack.c.b16 %v8194, %v8188
    %v9251 = vpack.c.b16 %v8195, %v8189
    %v9252 = vpack.c.b16 %v8196, %v8190
    %v9253 = vpack.c.b16 %v8203, %v8197
    %v9254 = vpack.c.b16 %v8204, %v8198
    %v9255 = vpack.c.b16 %v8205, %v8199
    %v9256 = vpack.c.b16 %v8206, %v8200
    %v9257 = vpack.c.b16 %v8207, %v8201
    %v9258 = vpack.c.b16 %v8208, %v8202
    %v9259 = vpack.c.b16 %v8215, %v8209
    %v9260 = vpack.c.b16 %v8216, %v8210
    %v9261 = vpack.c.b16 %v8217, %v8211
    %v9262 = vpack.c.b16 %v8218, %v8212
    %v9263 = vpack.c.b16 %v8219, %v8213
    %v9264 = vpack.c.b16 %v8220, %v8214
    %v9265 = vpack.c.b16 %v8227, %v8221
    %v9266 = vpack.c.b16 %v8228, %v8222
    %v9267 = vpack.c.b16 %v8229, %v8223
    %v9268 = vpack.c.b16 %v8230, %v8224
    %v9269 = vpack.c.b16 %v8231, %v8225
    %v9270 = vpack.c.b16 %v8232, %v8226
    %v9271 = vpack.c.b16 %v8239, %v8233
    %v9272 = vpack.c.b16 %v8240, %v8234
    %v9273 = vpack.c.b16 %v8241, %v8235
    %v9274 = vpack.c.b16 %v8242, %v8236
    %v9275 = vpack.c.b16 %v8243, %v8237
    %v9276 = vpack.c.b16 %v8244, %v8238
    %v9277 = vpack.c.b16 %v8251, %v8245
    %v9278 = vpack.c.b16 %v8252, %v8246
    %v9279 = vpack.c.b16 %v8253, %v8247
    %v9280 = vpack.c.b16 %v8254, %v8248
    %v9281 = vpack.c.b16 %v8255, %v8249
    %v9282 = vpack.c.b16 %v8256, %v8250
    %v9283 = vpack.c.b16 %v8263, %v8257
    %v9284 = vpack.c.b16 %v8264, %v8258
    %v9285 = vpack.c.b16 %v8265, %v8259
    %v9286 = vpack.c.b16 %v8266, %v8260
    %v9287 = vpack.c.b16 %v8267, %v8261
    %v9288 = vpack.c.b16 %v8268, %v8262
    %v9289 = vpack.c.b16 %v8275, %v8269
    %v9290 = vpack.c.b16 %v8276, %v8270
    %v9291 = vpack.c.b16 %v8277, %v8271
    %v9292 = vpack.c.b16 %v8278, %v8272
    %v9293 = vpack.c.b16 %v8279, %v8273
    %v9294 = vpack.c.b16 %v8280, %v8274
    %v9295 = vpack.c.b16 %v8287, %v8281
    %v9296 = vpack.c.b16 %v8288, %v8282
    %v9297 = vpack.c.b16 %v8289, %v8283
    %v9298 = vpack.c.b16 %v8290, %v8284
    %v9299 = vpack.c.b16 %v8291, %v8285
    %v9300 = vpack.c.b16 %v8292, %v8286
    %v9301 = vpack.c.b16 %v8299, %v8293
    %v9302 = vpack.c.b16 %v8300, %v8294
    %v9303 = vpack.c.b16 %v8301, %v8295
    %v9304 = vpack.c.b16 %v8302, %v8296
    %v9305 = vpack.c.b16 %v8303, %v8297
    %v9306 = vpack.c.b16 %v8304, %v8298
    %v9307 = vpack.c.b16 %v8311, %v8305
    %v9308 = vpack.c.b16 %v8312, %v8306
    %v9309 = vpack.c.b16 %v8313, %v8307
    %v9310 = vpack.c.b16 %v8314, %v8308
    %v9311 = vpack.c.b16 %v8315, %v8309
    %v9312 = vpack.c.b16 %v8316, %v8310
    %v9313 = vpack.c.b16 %v8323, %v8317
    %v9314 = vpack.c.b16 %v8324, %v8318
    %v9315 = vpack.c.b16 %v8325, %v8319
    %v9316 = vpack.c.b16 %v8326, %v8320
    %v9317 = vpack.c.b16 %v8327, %v8321
    %v9318 = vpack.c.b16 %v8328, %v8322
    %v9319 = vpack.c.b16 %v8335, %v8329
    %v9320 = vpack.c.b16 %v8336, %v8330
    %v9321 = vpack.c.b16 %v8337, %v8331
    %v9322 = vpack.c.b16 %v8338, %v8332
    %v9323 = vpack.c.b16 %v8339, %v8333
    %v9324 = vpack.c.b16 %v8340, %v8334
    %v9325 = vpack.c.b16 %v8347, %v8341
    %v9326 = vpack.c.b16 %v8348, %v8342
    %v9327 = vpack.c.b16 %v8349, %v8343
    %v9328 = vpack.c.b16 %v8350, %v8344
    %v9329 = vpack.c.b16 %v8351, %v8345
    %v9330 = vpack.c.b16 %v8352, %v8346
    %v9331 = vpack.c.b16 %v8359, %v8353
    %v9332 = vpack.c.b16 %v8360, %v8354
    %v9333 = vpack.c.b16 %v8361, %v8355
    %v9334 = vpack.c.b16 %v8362, %v8356
    %v9335 = vpack.c.b16 %v8363, %v8357
    %v9336 = vpack.c.b16 %v8364, %v8358
    %v9337 = vpack.c.b16 %v8371, %v8365
    %v9338 = vpack.c.b16 %v8372, %v8366
    %v9339 = vpack.c.b16 %v8373, %v8367
    %v9340 = vpack.c.b16 %v8374, %v8368
    %v9341 = vpack.c.b16 %v8375, %v8369
    %v9342 = vpack.c.b16 %v8376, %v8370
    %v9343 = vpack.c.b16 %v8383, %v8377
    %v9344 = vpack.c.b16 %v8384, %v8378
    %v9345 = vpack.c.b16 %v8385, %v8379
    %v9346 = vpack.c.b16 %v8386, %v8380
    %v9347 = vpack.c.b16 %v8387, %v8381
    %v9348 = vpack.c.b16 %v8388, %v8382
    %v9349 = vpack.c.b16 %v8395, %v8389
    %v9350 = vpack.c.b16 %v8396, %v8390
    %v9351 = vpack.c.b16 %v8397, %v8391
    %v9352 = vpack.c.b16 %v8398, %v8392
    %v9353 = vpack.c.b16 %v8399, %v8393
    %v9354 = vpack.c.b16 %v8400, %v8394
    %v9355 = vpack.c.b16 %v8407, %v8401
    %v9356 = vpack.c.b16 %v8408, %v8402
    %v9357 = vpack.c.b16 %v8409, %v8403
    %v9358 = vpack.c.b16 %v8410, %v8404
    %v9359 = vpack.c.b16 %v8411, %v8405
    %v9360 = vpack.c.b16 %v8412, %v8406
    %v9361 = vpack.c.b16 %v8419, %v8413
    %v9362 = vpack.c.b16 %v8420, %v8414
    %v9363 = vpack.c.b16 %v8421, %v8415
    %v9364 = vpack.c.b16 %v8422, %v8416
    %v9365 = vpack.c.b16 %v8423, %v8417
    %v9366 = vpack.c.b16 %v8424, %v8418
    %v9367 = vpack.c.b16 %v8431, %v8425
    %v9368 = vpack.c.b16 %v8432, %v8426
    %v9369 = vpack.c.b16 %v8433, %v8427
    %v9370 = vpack.c.b16 %v8434, %v8428
    %v9371 = vpack.c.b16 %v8435, %v8429
    %v9372 = vpack.c.b16 %v8436, %v8430
    %v9373 = vpack.c.b16 %v8443, %v8437
    %v9374 = vpack.c.b16 %v8444, %v8438
    %v9375 = vpack.c.b16 %v8445, %v8439
    %v9376 = vpack.c.b16 %v8446, %v8440
    %v9377 = vpack.c.b16 %v8447, %v8441
    %v9378 = vpack.c.b16 %v8448, %v8442
    %v9379 = vpack.c.b16 %v8455, %v8449
    %v9380 = vpack.c.b16 %v8456, %v8450
    %v9381 = vpack.c.b16 %v8457, %v8451
    %v9382 = vpack.c.b16 %v8458, %v8452
    %v9383 = vpack.c.b16 %v8459, %v8453
    %v9384 = vpack.c.b16 %v8460, %v8454
    %v9385 = vpack.c.b16 %v8467, %v8461
    %v9386 = vpack.c.b16 %v8468, %v8462
    %v9387 = vpack.c.b16 %v8469, %v8463
    %v9388 = vpack.c.b16 %v8470, %v8464
    %v9389 = vpack.c.b16 %v8471, %v8465
    %v9390 = vpack.c.b16 %v8472, %v8466
    %v9391 = vpack.c.b16 %v8479, %v8473
    %v9392 = vpack.c.b16 %v8480, %v8474
    %v9393 = vpack.c.b16 %v8481, %v8475
    %v9394 = vpack.c.b16 %v8482, %v8476
    %v9395 = vpack.c.b16 %v8483, %v8477
    %v9396 = vpack.c.b16 %v8484, %v8478
    %v9397 = vpack.c.b16 %v8491, %v8485
    %v9398 = vpack.c.b16 %v8492, %v8486
    %v9399 = vpack.c.b16 %v8493, %v8487
    %v9400 = vpack.c.b16 %v8494, %v8488
    %v9401 = vpack.c.b16 %v8495, %v8489
    %v9402 = vpack.c.b16 %v8496, %v8490
    %v9403 = vpack.c.b16 %v8503, %v8497
    %v9404 = vpack.c.b16 %v8504, %v8498
    %v9405 = vpack.c.b16 %v8505, %v8499
    %v9406 = vpack.c.b16 %v8506, %v8500
    %v9407 = vpack.c.b16 %v8507, %v8501
    %v9408 = vpack.c.b16 %v8508, %v8502
    %v9409 = vpack.c.b16 %v8515, %v8509
    %v9410 = vpack.c.b16 %v8516, %v8510
    %v9411 = vpack.c.b16 %v8517, %v8511
    %v9412 = vpack.c.b16 %v8518, %v8512
    %v9413 = vpack.c.b16 %v8519, %v8513
    %v9414 = vpack.c.b16 %v8520, %v8514
    %v9415 = vpack.c.b16 %v8527, %v8521
    %v9416 = vpack.c.b16 %v8528, %v8522
    %v9417 = vpack.c.b16 %v8529, %v8523
    %v9418 = vpack.c.b16 %v8530, %v8524
    %v9419 = vpack.c.b16 %v8531, %v8525
    %v9420 = vpack.c.b16 %v8532, %v8526
    %v9421 = vpack.c.b16 %v8539, %v8533
    %v9422 = vpack.c.b16 %v8540, %v8534
    %v9423 = vpack.c.b16 %v8541, %v8535
    %v9424 = vpack.c.b16 %v8542, %v8536
    %v9425 = vpack.c.b16 %v8543, %v8537
    %v9426 = vpack.c.b16 %v8544, %v8538
    %v9427 = vpack.c.b16 %v8551, %v8545
    %v9428 = vpack.c.b16 %v8552, %v8546
    %v9429 = vpack.c.b16 %v8553, %v8547
    %v9430 = vpack.c.b16 %v8554, %v8548
    %v9431 = vpack.c.b16 %v8555, %v8549
    %v9432 = vpack.c.b16 %v8556, %v8550
    %v9433 = vpack.c.b16 %v8563, %v8557
    %v9434 = vpack.c.b16 %v8564, %v8558
    %v9435 = vpack.c.b16 %v8565, %v8559
    %v9436 = vpack.c.b16 %v8566, %v8560
    %v9437 = vpack.c.b16 %v8567, %v8561
    %v9438 = vpack.c.b16 %v8568, %v8562
    %v9439 = vpack.c.b16 %v8575, %v8569
    %v9440 = vpack.c.b16 %v8576, %v8570
    %v9441 = vpack.c.b16 %v8577, %v8571
    %v9442 = vpack.c.b16 %v8578, %v8572
    %v9443 = vpack.c.b16 %v8579, %v8573
    %v9444 = vpack.c.b16 %v8580, %v8574
    %v9445 = vpack.c.b16 %v8587, %v8581
    %v9446 = vpack.c.b16 %v8588, %v8582
    %v9447 = vpack.c.b16 %v8589, %v8583
    %v9448 = vpack.c.b16 %v8590, %v8584
    %v9449 = vpack.c.b16 %v8591, %v8585
    %v9450 = vpack.c.b16 %v8592, %v8586
    %v9451 = vpack.c.b16 %v8599, %v8593
    %v9452 = vpack.c.b16 %v8600, %v8594
    %v9453 = vpack.c.b16 %v8601, %v8595
    %v9454 = vpack.c.b16 %v8602, %v8596
    %v9455 = vpack.c.b16 %v8603, %v8597
    %v9456 = vpack.c.b16 %v8604, %v8598
    %v9457 = vpack.c.b16 %v8611, %v8605
    %v9458 = vpack.c.b16 %v8612, %v8606
    %v9459 = vpack.c.b16 %v8613, %v8607
    %v9460 = vpack.c.b16 %v8614, %v8608
    %v9461 = vpack.c.b16 %v8615, %v8609
    %v9462 = vpack.c.b16 %v8616, %v8610
    %v9463 = vpack.c.b16 %v8623, %v8617
    %v9464 = vpack.c.b16 %v8624, %v8618
    %v9465 = vpack.c.b16 %v8625, %v8619
    %v9466 = vpack.c.b16 %v8626, %v8620
    %v9467 = vpack.c.b16 %v8627, %v8621
    %v9468 = vpack.c.b16 %v8628, %v8622
    %v9469 = vpack.c.b16 %v8635, %v8629
    %v9470 = vpack.c.b16 %v8636, %v8630
    %v9471 = vpack.c.b16 %v8637, %v8631
    %v9472 = vpack.c.b16 %v8638, %v8632
    %v9473 = vpack.c.b16 %v8639, %v8633
    %v9474 = vpack.c.b16 %v8640, %v8634
    %v9475 = vpack.c.b16 %v8647, %v8641
    %v9476 = vpack.c.b16 %v8648, %v8642
    %v9477 = vpack.c.b16 %v8649, %v8643
    %v9478 = vpack.c.b16 %v8650, %v8644
    %v9479 = vpack.c.b16 %v8651, %v8645
    %v9480 = vpack.c.b16 %v8652, %v8646
    %v9481 = vpack.c.b16 %v8659, %v8653
    %v9482 = vpack.c.b16 %v8660, %v8654
    %v9483 = vpack.c.b16 %v8661, %v8655
    %v9484 = vpack.c.b16 %v8662, %v8656
    %v9485 = vpack.c.b16 %v8663, %v8657
    %v9486 = vpack.c.b16 %v8664, %v8658
    %v9487 = vpack.c.b16 %v8671, %v8665
    %v9488 = vpack.c.b16 %v8672, %v8666
    %v9489 = vpack.c.b16 %v8673, %v8667
    %v9490 = vpack.c.b16 %v8674, %v8668
    %v9491 = vpack.c.b16 %v8675, %v8669
    %v9492 = vpack.c.b16 %v8676, %v8670
    %v9493 = vpack.c.b16 %v8683, %v8677
    %v9494 = vpack.c.b16 %v8684, %v8678
    %v9495 = vpack.c.b16 %v8685, %v8679
    %v9496 = vpack.c.b16 %v8686, %v8680
    %v9497 = vpack.c.b16 %v8687, %v8681
    %v9498 = vpack.c.b16 %v8688, %v8682
    %v9499 = vpack.c.b16 %v8695, %v8689
    %v9500 = vpack.c.b16 %v8696, %v8690
    %v9501 = vpack.c.b16 %v8697, %v8691
    %v9502 = vpack.c.b16 %v8698, %v8692
    %v9503 = vpack.c.b16 %v8699, %v8693
    %v9504 = vpack.c.b16 %v8700, %v8694
    %v9505 = vpack.c.b16 %v8707, %v8701
    %v9506 = vpack.c.b16 %v8708, %v8702
    %v9507 = vpack.c.b16 %v8709, %v8703
    %v9508 = vpack.c.b16 %v8710, %v8704
    %v9509 = vpack.c.b16 %v8711, %v8705
    %v9510 = vpack.c.b16 %v8712, %v8706
    %v9511 = vpack.c.b16 %v8719, %v8713
    %v9512 = vpack.c.b16 %v8720, %v8714
    %v9513 = vpack.c.b16 %v8721, %v8715
    %v9514 = vpack.c.b16 %v8722, %v8716
    %v9515 = vpack.c.b16 %v8723, %v8717
    %v9516 = vpack.c.b16 %v8724, %v8718
    %v9517 = vpack.c.b16 %v8731, %v8725
    %v9518 = vpack.c.b16 %v8732, %v8726
    %v9519 = vpack.c.b16 %v8733, %v8727
    %v9520 = vpack.c.b16 %v8734, %v8728
    %v9521 = vpack.c.b16 %v8735, %v8729
    %v9522 = vpack.c.b16 %v8736, %v8730
    %v9523 = vpack.c.b16 %v8743, %v8737
    %v9524 = vpack.c.b16 %v8744, %v8738
    %v9525 = vpack.c.b16 %v8745, %v8739
    %v9526 = vpack.c.b16 %v8746, %v8740
    %v9527 = vpack.c.b16 %v8747, %v8741
    %v9528 = vpack.c.b16 %v8748, %v8742
    %v9529 = vpack.c.b16 %v8755, %v8749
    %v9530 = vpack.c.b16 %v8756, %v8750
    %v9531 = vpack.c.b16 %v8757, %v8751
    %v9532 = vpack.c.b16 %v8758, %v8752
    %v9533 = vpack.c.b16 %v8759, %v8753
    %v9534 = vpack.c.b16 %v8760, %v8754
    %v9535 = vpack.c.b16 %v8767, %v8761
    %v9536 = vpack.c.b16 %v8768, %v8762
    %v9537 = vpack.c.b16 %v8769, %v8763
    %v9538 = vpack.c.b16 %v8770, %v8764
    %v9539 = vpack.c.b16 %v8771, %v8765
    %v9540 = vpack.c.b16 %v8772, %v8766
    %v9541 = vpack.c.b16 %v8779, %v8773
    %v9542 = vpack.c.b16 %v8780, %v8774
    %v9543 = vpack.c.b16 %v8781, %v8775
    %v9544 = vpack.c.b16 %v8782, %v8776
    %v9545 = vpack.c.b16 %v8783, %v8777
    %v9546 = vpack.c.b16 %v8784, %v8778
    %v9547 = vpack.c.b16 %v8791, %v8785
    %v9548 = vpack.c.b16 %v8792, %v8786
    %v9549 = vpack.c.b16 %v8793, %v8787
    %v9550 = vpack.c.b16 %v8794, %v8788
    %v9551 = vpack.c.b16 %v8795, %v8789
    %v9552 = vpack.c.b16 %v8796, %v8790
    %v9553 = vpack.c.b16 %v8803, %v8797
    %v9554 = vpack.c.b16 %v8804, %v8798
    %v9555 = vpack.c.b16 %v8805, %v8799
    %v9556 = vpack.c.b16 %v8806, %v8800
    %v9557 = vpack.c.b16 %v8807, %v8801
    %v9558 = vpack.c.b16 %v8808, %v8802
    %v9559 = vpack.c.b16 %v8815, %v8809
    %v9560 = vpack.c.b16 %v8816, %v8810
    %v9561 = vpack.c.b16 %v8817, %v8811
    %v9562 = vpack.c.b16 %v8818, %v8812
    %v9563 = vpack.c.b16 %v8819, %v8813
    %v9564 = vpack.c.b16 %v8820, %v8814
    %v9565 = vpack.c.b16 %v8827, %v8821
    %v9566 = vpack.c.b16 %v8828, %v8822
    %v9567 = vpack.c.b16 %v8829, %v8823
    %v9568 = vpack.c.b16 %v8830, %v8824
    %v9569 = vpack.c.b16 %v8831, %v8825
    %v9570 = vpack.c.b16 %v8832, %v8826
    %v9571 = vpack.c.b16 %v8839, %v8833
    %v9572 = vpack.c.b16 %v8840, %v8834
    %v9573 = vpack.c.b16 %v8841, %v8835
    %v9574 = vpack.c.b16 %v8842, %v8836
    %v9575 = vpack.c.b16 %v8843, %v8837
    %v9576 = vpack.c.b16 %v8844, %v8838
    %v9577 = vpack.c.b16 %v8851, %v8845
    %v9578 = vpack.c.b16 %v8852, %v8846
    %v9579 = vpack.c.b16 %v8853, %v8847
    %v9580 = vpack.c.b16 %v8854, %v8848
    %v9581 = vpack.c.b16 %v8855, %v8849
    %v9582 = vpack.c.b16 %v8856, %v8850
    %v9583 = vpack.c.b16 %v8863, %v8857
    %v9584 = vpack.c.b16 %v8864, %v8858
    %v9585 = vpack.c.b16 %v8865, %v8859
    %v9586 = vpack.c.b16 %v8866, %v8860
    %v9587 = vpack.c.b16 %v8867, %v8861
    %v9588 = vpack.c.b16 %v8868, %v8862
    %v9589 = vpack.c.b16 %v8875, %v8869
    %v9590 = vpack.c.b16 %v8876, %v8870
    %v9591 = vpack.c.b16 %v8877, %v8871
    %v9592 = vpack.c.b16 %v8878, %v8872
    %v9593 = vpack.c.b16 %v8879, %v8873
    %v9594 = vpack.c.b16 %v8880, %v8874
    %v9595 = vpack.c.b16 %v8887, %v8881
    %v9596 = vpack.c.b16 %v8888, %v8882
    %v9597 = vpack.c.b16 %v8889, %v8883
    %v9598 = vpack.c.b16 %v8890, %v8884
    %v9599 = vpack.c.b16 %v8891, %v8885
    %v9600 = vpack.c.b16 %v8892, %v8886
    %v9601 = vpack.c.b16 %v8899, %v8893
    %v9602 = vpack.c.b16 %v8900, %v8894
    %v9603 = vpack.c.b16 %v8901, %v8895
    %v9604 = vpack.c.b16 %v8902, %v8896
    %v9605 = vpack.c.b16 %v8903, %v8897
    %v9606 = vpack.c.b16 %v8904, %v8898
    %v9607 = vpack.c.b16 %v8911, %v8905
    %v9608 = vpack.c.b16 %v8912, %v8906
    %v9609 = vpack.c.b16 %v8913, %v8907
    %v9610 = vpack.c.b16 %v8914, %v8908
    %v9611 = vpack.c.b16 %v8915, %v8909
    %v9612 = vpack.c.b16 %v8916, %v8910
    %v9613 = vpack.c.b16 %v8923, %v8917
    %v9614 = vpack.c.b16 %v8924, %v8918
    %v9615 = vpack.c.b16 %v8925, %v8919
    %v9616 = vpack.c.b16 %v8926, %v8920
    %v9617 = vpack.c.b16 %v8927, %v8921
    %v9618 = vpack.c.b16 %v8928, %v8922
    %v9619 = vpack.c.b16 %v8935, %v8929
    %v9620 = vpack.c.b16 %v8936, %v8930
    %v9621 = vpack.c.b16 %v8937, %v8931
    %v9622 = vpack.c.b16 %v8938, %v8932
    %v9623 = vpack.c.b16 %v8939, %v8933
    %v9624 = vpack.c.b16 %v8940, %v8934
    %v9625 = vpack.c.b16 %v8947, %v8941
    %v9626 = vpack.c.b16 %v8948, %v8942
    %v9627 = vpack.c.b16 %v8949, %v8943
    %v9628 = vpack.c.b16 %v8950, %v8944
    %v9629 = vpack.c.b16 %v8951, %v8945
    %v9630 = vpack.c.b16 %v8952, %v8946
    %v9631 = vpack.c.b16 %v8959, %v8953
    %v9632 = vpack.c.b16 %v8960, %v8954
    %v9633 = vpack.c.b16 %v8961, %v8955
    %v9634 = vpack.c.b16 %v8962, %v8956
    %v9635 = vpack.c.b16 %v8963, %v8957
    %v9636 = vpack.c.b16 %v8964, %v8958
    %v9637 = vpack.c.b16 %v8971, %v8965
    %v9638 = vpack.c.b16 %v8972, %v8966
    %v9639 = vpack.c.b16 %v8973, %v8967
    %v9640 = vpack.c.b16 %v8974, %v8968
    %v9641 = vpack.c.b16 %v8975, %v8969
    %v9642 = vpack.c.b16 %v8976, %v8970
    %v9643 = vpack.c.b16 %v8983, %v8977
    %v9644 = vpack.c.b16 %v8984, %v8978
    %v9645 = vpack.c.b16 %v8985, %v8979
    %v9646 = vpack.c.b16 %v8986, %v8980
    %v9647 = vpack.c.b16 %v8987, %v8981
    %v9648 = vpack.c.b16 %v8988, %v8982
    %v9649 = vpack.c.b16 %v8995, %v8989
    %v9650 = vpack.c.b16 %v8996, %v8990
    %v9651 = vpack.c.b16 %v8997, %v8991
    %v9652 = vpack.c.b16 %v8998, %v8992
    %v9653 = vpack.c.b16 %v8999, %v8993
    %v9654 = vpack.c.b16 %v9000, %v8994
    %v9655 = vpack.c.b16 %v9007, %v9001
    %v9656 = vpack.c.b16 %v9008, %v9002
    %v9657 = vpack.c.b16 %v9009, %v9003
    %v9658 = vpack.c.b16 %v9010, %v9004
    %v9659 = vpack.c.b16 %v9011, %v9005
    %v9660 = vpack.c.b16 %v9012, %v9006
    %v9661 = vpack.c.b16 %v9019, %v9013
    %v9662 = vpack.c.b16 %v9020, %v9014
    %v9663 = vpack.c.b16 %v9021, %v9015
    %v9664 = vpack.c.b16 %v9022, %v9016
    %v9665 = vpack.c.b16 %v9023, %v9017
    %v9666 = vpack.c.b16 %v9024, %v9018
    %v9667 = vpack.c.b16 %v9031, %v9025
    %v9668 = vpack.c.b16 %v9032, %v9026
    %v9669 = vpack.c.b16 %v9033, %v9027
    %v9670 = vpack.c.b16 %v9034, %v9028
    %v9671 = vpack.c.b16 %v9035, %v9029
    %v9672 = vpack.c.b16 %v9036, %v9030
    %v9673 = vpack.c.b16 %v9043, %v9037
    %v9674 = vpack.c.b16 %v9044, %v9038
    %v9675 = vpack.c.b16 %v9045, %v9039
    %v9676 = vpack.c.b16 %v9046, %v9040
    %v9677 = vpack.c.b16 %v9047, %v9041
    %v9678 = vpack.c.b16 %v9048, %v9042
    %v9679 = vpack.c.b16 %v9055, %v9049
    %v9680 = vpack.c.b16 %v9056, %v9050
    %v9681 = vpack.c.b16 %v9057, %v9051
    %v9682 = vpack.c.b16 %v9058, %v9052
    %v9683 = vpack.c.b16 %v9059, %v9053
    %v9684 = vpack.c.b16 %v9060, %v9054
    %v9685 = vpack.c.b16 %v9067, %v9061
    %v9686 = vpack.c.b16 %v9068, %v9062
    %v9687 = vpack.c.b16 %v9069, %v9063
    %v9688 = vpack.c.b16 %v9070, %v9064
    %v9689 = vpack.c.b16 %v9071, %v9065
    %v9690 = vpack.c.b16 %v9072, %v9066
    %v9691 = vpack.c.b16 %v9079, %v9073
    %v9692 = vpack.c.b16 %v9080, %v9074
    %v9693 = vpack.c.b16 %v9081, %v9075
    %v9694 = vpack.c.b16 %v9082, %v9076
    %v9695 = vpack.c.b16 %v9083, %v9077
    %v9696 = vpack.c.b16 %v9084, %v9078
    %v9697 = vpack.c.b16 %v9091, %v9085
    %v9698 = vpack.c.b16 %v9092, %v9086
    %v9699 = vpack.c.b16 %v9093, %v9087
    %v9700 = vpack.c.b16 %v9094, %v9088
    %v9701 = vpack.c.b16 %v9095, %v9089
    %v9702 = vpack.c.b16 %v9096, %v9090
    %v9703 = vpack.c.b16 %v9103, %v9097
    %v9704 = vpack.c.b16 %v9104, %v9098
    %v9705 = vpack.c.b16 %v9105, %v9099
    %v9706 = vpack.c.b16 %v9106, %v9100
    %v9707 = vpack.c.b16 %v9107, %v9101
    %v9708 = vpack.c.b16 %v9108, %v9102
    %v9709 = vpack.c.b16 %v9115, %v9109
    %v9710 = vpack.c.b16 %v9116, %v9110
    %v9711 = vpack.c.b16 %v9117, %v9111
    %v9712 = vpack.c.b16 %v9118, %v9112
    %v9713 = vpack.c.b16 %v9119, %v9113
    %v9714 = vpack.c.b16 %v9120, %v9114
    %v9715 = vpack.c.b16 %v9127, %v9121
    %v9716 = vpack.c.b16 %v9128, %v9122
    %v9717 = vpack.c.b16 %v9129, %v9123
    %v9718 = vpack.c.b16 %v9130, %v9124
    %v9719 = vpack.c.b16 %v9131, %v9125
    %v9720 = vpack.c.b16 %v9132, %v9126
    %v9721 = vpack.c.b16 %v9139, %v9133
    %v9722 = vpack.c.b16 %v9140, %v9134
    %v9723 = vpack.c.b16 %v9141, %v9135
    %v9724 = vpack.c.b16 %v9142, %v9136
    %v9725 = vpack.c.b16 %v9143, %v9137
    %v9726 = vpack.c.b16 %v9144, %v9138
    %v9727 = vpack.c.b16 %v9151, %v9145
    %v9728 = vpack.c.b16 %v9152, %v9146
    %v9729 = vpack.c.b16 %v9153, %v9147
    %v9730 = vpack.c.b16 %v9154, %v9148
    %v9731 = vpack.c.b16 %v9155, %v9149
    %v9732 = vpack.c.b16 %v9156, %v9150
    %10309 = vmatpush.bf16.msra.mxu0 %v9199
    %10310 = vmatpush.bf16.msra.mxu0 %v9193
    %10311 = vmatpush.bf16.msra.mxu0 %v9187
    %10312 = vmatpush.bf16.msra.mxu0 %v9181
    %10313 = vmatpush.bf16.msra.mxu0 %v9175
    %10314 = vmatpush.bf16.msra.mxu0 %v9169
    %10315 = vmatpush.bf16.msra.mxu0 %v9163
    %10316 = vmatpush.bf16.msra.mxu0 %v9157
    %10317 = vmatmul.bf16.gmra.mxu0 %v6827
    %v10318 = vpop.f32.mrf.mxu0
    %v10319 = vadd.f32 %v7417, %v10318
    %v10320 = vpop.f32.mrf.mxu0
    %10321 = vdwg.mxu0
    %10322 = vmatpush.bf16.msra.mxu0 %v9247
    %10323 = vmatpush.bf16.msra.mxu0 %v9241
    %10324 = vmatpush.bf16.msra.mxu0 %v9235
    %10325 = vmatpush.bf16.msra.mxu0 %v9229
    %10326 = vmatpush.bf16.msra.mxu0 %v9223
    %10327 = vmatpush.bf16.msra.mxu0 %v9217
    %10328 = vmatpush.bf16.msra.mxu0 %v9211
    %10329 = vmatpush.bf16.msra.mxu0 %v9205
    %10330 = vmatmul.bf16.gmra.mxu0 %v6828
    %v10331 = vpop.f32.mrf.mxu0
    %v10332 = vadd.f32 %v10319, %v10331
    %v10333 = vpop.f32.mrf.mxu0
    %10334 = vdwg.mxu0
    %10335 = vmatpush.bf16.msra.mxu0 %v9295
    %10336 = vmatpush.bf16.msra.mxu0 %v9289
    %10337 = vmatpush.bf16.msra.mxu0 %v9283
    %10338 = vmatpush.bf16.msra.mxu0 %v9277
    %10339 = vmatpush.bf16.msra.mxu0 %v9271
    %10340 = vmatpush.bf16.msra.mxu0 %v9265
    %10341 = vmatpush.bf16.msra.mxu0 %v9259
    %10342 = vmatpush.bf16.msra.mxu0 %v9253
    %10343 = vmatmul.bf16.gmra.mxu0 %v6829
    %v10344 = vpop.f32.mrf.mxu0
    %v10345 = vadd.f32 %v10332, %v10344
    %v10346 = vpop.f32.mrf.mxu0
    %10347 = vdwg.mxu0
    %10348 = vmatpush.bf16.msra.mxu0 %v9343
    %10349 = vmatpush.bf16.msra.mxu0 %v9337
    %10350 = vmatpush.bf16.msra.mxu0 %v9331
    %10351 = vmatpush.bf16.msra.mxu0 %v9325
    %10352 = vmatpush.bf16.msra.mxu0 %v9319
    %10353 = vmatpush.bf16.msra.mxu0 %v9313
    %10354 = vmatpush.bf16.msra.mxu0 %v9307
    %10355 = vmatpush.bf16.msra.mxu0 %v9301
    %10356 = vmatmul.bf16.gmra.mxu0 %v6830
    %v10357 = vpop.f32.mrf.mxu0
    %v10358 = vadd.f32 %v10345, %v10357
    %v10359 = vpop.f32.mrf.mxu0
    %10360 = vdwg.mxu0
    %10361 = vmatpush.bf16.msra.mxu0 %v9391
    %10362 = vmatpush.bf16.msra.mxu0 %v9385
    %10363 = vmatpush.bf16.msra.mxu0 %v9379
    %10364 = vmatpush.bf16.msra.mxu0 %v9373
    %10365 = vmatpush.bf16.msra.mxu0 %v9367
    %10366 = vmatpush.bf16.msra.mxu0 %v9361
    %10367 = vmatpush.bf16.msra.mxu0 %v9355
    %10368 = vmatpush.bf16.msra.mxu0 %v9349
    %10369 = vmatmul.bf16.gmra.mxu0 %v6831
    %v10370 = vpop.f32.mrf.mxu0
    %v10371 = vadd.f32 %v10358, %v10370
    %v10372 = vpop.f32.mrf.mxu0
    %10373 = vdwg.mxu0
    %10374 = vmatpush.bf16.msra.mxu0 %v9439
    %10375 = vmatpush.bf16.msra.mxu0 %v9433
    %10376 = vmatpush.bf16.msra.mxu0 %v9427
    %10377 = vmatpush.bf16.msra.mxu0 %v9421
    %10378 = vmatpush.bf16.msra.mxu0 %v9415
    %10379 = vmatpush.bf16.msra.mxu0 %v9409
    %10380 = vmatpush.bf16.msra.mxu0 %v9403
    %10381 = vmatpush.bf16.msra.mxu0 %v9397
    %10382 = vmatmul.bf16.gmra.mxu0 %v6832
    %v10383 = vpop.f32.mrf.mxu0
    %v10384 = vadd.f32 %v10371, %v10383
    %v10385 = vpop.f32.mrf.mxu0
    %10386 = vdwg.mxu0
    %10387 = vmatpush.bf16.msra.mxu0 %v9487
    %10388 = vmatpush.bf16.msra.mxu0 %v9481
    %10389 = vmatpush.bf16.msra.mxu0 %v9475
    %10390 = vmatpush.bf16.msra.mxu0 %v9469
    %10391 = vmatpush.bf16.msra.mxu0 %v9463
    %10392 = vmatpush.bf16.msra.mxu0 %v9457
    %10393 = vmatpush.bf16.msra.mxu0 %v9451
    %10394 = vmatpush.bf16.msra.mxu0 %v9445
    %10395 = vmatmul.bf16.gmra.mxu0 %v6833
    %v10396 = vpop.f32.mrf.mxu0
    %v10397 = vadd.f32 %v10384, %v10396
    %v10398 = vpop.f32.mrf.mxu0
    %10399 = vdwg.mxu0
    %10400 = vmatpush.bf16.msra.mxu0 %v9535
    %10401 = vmatpush.bf16.msra.mxu0 %v9529
    %10402 = vmatpush.bf16.msra.mxu0 %v9523
    %10403 = vmatpush.bf16.msra.mxu0 %v9517
    %10404 = vmatpush.bf16.msra.mxu0 %v9511
    %10405 = vmatpush.bf16.msra.mxu0 %v9505
    %10406 = vmatpush.bf16.msra.mxu0 %v9499
    %10407 = vmatpush.bf16.msra.mxu0 %v9493
    %10408 = vmatmul.bf16.gmra.mxu0 %v6834
    %v10409 = vpop.f32.mrf.mxu0
    %v10410 = vadd.f32 %v10397, %v10409
    %v10411 = vpop.f32.mrf.mxu0
    %10412 = vdwg.mxu0
    %10413 = vmatpush.bf16.msra.mxu0 %v9583
    %10414 = vmatpush.bf16.msra.mxu0 %v9577
    %10415 = vmatpush.bf16.msra.mxu0 %v9571
    %10416 = vmatpush.bf16.msra.mxu0 %v9565
    %10417 = vmatpush.bf16.msra.mxu0 %v9559
    %10418 = vmatpush.bf16.msra.mxu0 %v9553
    %10419 = vmatpush.bf16.msra.mxu0 %v9547
    %10420 = vmatpush.bf16.msra.mxu0 %v9541
    %10421 = vmatmul.bf16.gmra.mxu0 %v6835
    %v10422 = vpop.f32.mrf.mxu0
    %v10423 = vadd.f32 %v10410, %v10422
    %v10424 = vpop.f32.mrf.mxu0
    %10425 = vdwg.mxu0
    %10426 = vmatpush.bf16.msra.mxu0 %v9631
    %10427 = vmatpush.bf16.msra.mxu0 %v9625
    %10428 = vmatpush.bf16.msra.mxu0 %v9619
    %10429 = vmatpush.bf16.msra.mxu0 %v9613
    %10430 = vmatpush.bf16.msra.mxu0 %v9607
    %10431 = vmatpush.bf16.msra.mxu0 %v9601
    %10432 = vmatpush.bf16.msra.mxu0 %v9595
    %10433 = vmatpush.bf16.msra.mxu0 %v9589
    %10434 = vmatmul.bf16.gmra.mxu0 %v6836
    %v10435 = vpop.f32.mrf.mxu0
    %v10436 = vadd.f32 %v10423, %v10435
    %v10437 = vpop.f32.mrf.mxu0
    %10438 = vdwg.mxu0
    %10439 = vmatpush.bf16.msra.mxu0 %v9679
    %10440 = vmatpush.bf16.msra.mxu0 %v9673
    %10441 = vmatpush.bf16.msra.mxu0 %v9667
    %10442 = vmatpush.bf16.msra.mxu0 %v9661
    %10443 = vmatpush.bf16.msra.mxu0 %v9655
    %10444 = vmatpush.bf16.msra.mxu0 %v9649
    %10445 = vmatpush.bf16.msra.mxu0 %v9643
    %10446 = vmatpush.bf16.msra.mxu0 %v9637
    %10447 = vmatmul.bf16.gmra.mxu0 %v6837
    %v10448 = vpop.f32.mrf.mxu0
    %v10449 = vadd.f32 %v10436, %v10448
    %v10450 = vpop.f32.mrf.mxu0
    %10451 = vdwg.mxu0
    %10452 = vmatpush.bf16.msra.mxu0 %v9727
    %10453 = vmatpush.bf16.msra.mxu0 %v9721
    %10454 = vmatpush.bf16.msra.mxu0 %v9715
    %10455 = vmatpush.bf16.msra.mxu0 %v9709
    %10456 = vmatpush.bf16.msra.mxu0 %v9703
    %10457 = vmatpush.bf16.msra.mxu0 %v9697
    %10458 = vmatpush.bf16.msra.mxu0 %v9691
    %10459 = vmatpush.bf16.msra.mxu0 %v9685
    %10460 = vmatmul.bf16.gmra.mxu0 %v6838
    %v10461 = vpop.f32.mrf.mxu0
    %v10462 = vadd.f32 %v10449, %v10461
    %v10463 = vpop.f32.mrf.mxu0
    %10464 = vdwg.mxu0
    %10465 = vmatpush.bf16.msra.mxu0 %v9200
    %10466 = vmatpush.bf16.msra.mxu0 %v9194
    %10467 = vmatpush.bf16.msra.mxu0 %v9188
    %10468 = vmatpush.bf16.msra.mxu0 %v9182
    %10469 = vmatpush.bf16.msra.mxu0 %v9176
    %10470 = vmatpush.bf16.msra.mxu0 %v9170
    %10471 = vmatpush.bf16.msra.mxu0 %v9164
    %10472 = vmatpush.bf16.msra.mxu0 %v9158
    %10473 = vmatmul.bf16.gmra.mxu0 %v6827
    %v10474 = vpop.f32.mrf.mxu0
    %v10475 = vadd.f32 %v7418, %v10474
    %v10476 = vpop.f32.mrf.mxu0
    %10477 = vdwg.mxu0
    %10478 = vmatpush.bf16.msra.mxu0 %v9248
    %10479 = vmatpush.bf16.msra.mxu0 %v9242
    %10480 = vmatpush.bf16.msra.mxu0 %v9236
    %10481 = vmatpush.bf16.msra.mxu0 %v9230
    %10482 = vmatpush.bf16.msra.mxu0 %v9224
    %10483 = vmatpush.bf16.msra.mxu0 %v9218
    %10484 = vmatpush.bf16.msra.mxu0 %v9212
    %10485 = vmatpush.bf16.msra.mxu0 %v9206
    %10486 = vmatmul.bf16.gmra.mxu0 %v6828
    %v10487 = vpop.f32.mrf.mxu0
    %v10488 = vadd.f32 %v10475, %v10487
    %v10489 = vpop.f32.mrf.mxu0
    %10490 = vdwg.mxu0
    %10491 = vmatpush.bf16.msra.mxu0 %v9296
    %10492 = vmatpush.bf16.msra.mxu0 %v9290
    %10493 = vmatpush.bf16.msra.mxu0 %v9284
    %10494 = vmatpush.bf16.msra.mxu0 %v9278
    %10495 = vmatpush.bf16.msra.mxu0 %v9272
    %10496 = vmatpush.bf16.msra.mxu0 %v9266
    %10497 = vmatpush.bf16.msra.mxu0 %v9260
    %10498 = vmatpush.bf16.msra.mxu0 %v9254
    %10499 = vmatmul.bf16.gmra.mxu0 %v6829
    %v10500 = vpop.f32.mrf.mxu0
    %v10501 = vadd.f32 %v10488, %v10500
    %v10502 = vpop.f32.mrf.mxu0
    %10503 = vdwg.mxu0
    %10504 = vmatpush.bf16.msra.mxu0 %v9344
    %10505 = vmatpush.bf16.msra.mxu0 %v9338
    %10506 = vmatpush.bf16.msra.mxu0 %v9332
    %10507 = vmatpush.bf16.msra.mxu0 %v9326
    %10508 = vmatpush.bf16.msra.mxu0 %v9320
    %10509 = vmatpush.bf16.msra.mxu0 %v9314
    %10510 = vmatpush.bf16.msra.mxu0 %v9308
    %10511 = vmatpush.bf16.msra.mxu0 %v9302
    %10512 = vmatmul.bf16.gmra.mxu0 %v6830
    %v10513 = vpop.f32.mrf.mxu0
    %v10514 = vadd.f32 %v10501, %v10513
    %v10515 = vpop.f32.mrf.mxu0
    %10516 = vdwg.mxu0
    %10517 = vmatpush.bf16.msra.mxu0 %v9392
    %10518 = vmatpush.bf16.msra.mxu0 %v9386
    %10519 = vmatpush.bf16.msra.mxu0 %v9380
    %10520 = vmatpush.bf16.msra.mxu0 %v9374
    %10521 = vmatpush.bf16.msra.mxu0 %v9368
    %10522 = vmatpush.bf16.msra.mxu0 %v9362
    %10523 = vmatpush.bf16.msra.mxu0 %v9356
    %10524 = vmatpush.bf16.msra.mxu0 %v9350
    %10525 = vmatmul.bf16.gmra.mxu0 %v6831
    %v10526 = vpop.f32.mrf.mxu0
    %v10527 = vadd.f32 %v10514, %v10526
    %v10528 = vpop.f32.mrf.mxu0
    %10529 = vdwg.mxu0
    %10530 = vmatpush.bf16.msra.mxu0 %v9440
    %10531 = vmatpush.bf16.msra.mxu0 %v9434
    %10532 = vmatpush.bf16.msra.mxu0 %v9428
    %10533 = vmatpush.bf16.msra.mxu0 %v9422
    %10534 = vmatpush.bf16.msra.mxu0 %v9416
    %10535 = vmatpush.bf16.msra.mxu0 %v9410
    %10536 = vmatpush.bf16.msra.mxu0 %v9404
    %10537 = vmatpush.bf16.msra.mxu0 %v9398
    %10538 = vmatmul.bf16.gmra.mxu0 %v6832
    %v10539 = vpop.f32.mrf.mxu0
    %v10540 = vadd.f32 %v10527, %v10539
    %v10541 = vpop.f32.mrf.mxu0
    %10542 = vdwg.mxu0
    %10543 = vmatpush.bf16.msra.mxu0 %v9488
    %10544 = vmatpush.bf16.msra.mxu0 %v9482
    %10545 = vmatpush.bf16.msra.mxu0 %v9476
    %10546 = vmatpush.bf16.msra.mxu0 %v9470
    %10547 = vmatpush.bf16.msra.mxu0 %v9464
    %10548 = vmatpush.bf16.msra.mxu0 %v9458
    %10549 = vmatpush.bf16.msra.mxu0 %v9452
    %10550 = vmatpush.bf16.msra.mxu0 %v9446
    %10551 = vmatmul.bf16.gmra.mxu0 %v6833
    %v10552 = vpop.f32.mrf.mxu0
    %v10553 = vadd.f32 %v10540, %v10552
    %v10554 = vpop.f32.mrf.mxu0
    %10555 = vdwg.mxu0
    %10556 = vmatpush.bf16.msra.mxu0 %v9536
    %10557 = vmatpush.bf16.msra.mxu0 %v9530
    %10558 = vmatpush.bf16.msra.mxu0 %v9524
    %10559 = vmatpush.bf16.msra.mxu0 %v9518
    %10560 = vmatpush.bf16.msra.mxu0 %v9512
    %10561 = vmatpush.bf16.msra.mxu0 %v9506
    %10562 = vmatpush.bf16.msra.mxu0 %v9500
    %10563 = vmatpush.bf16.msra.mxu0 %v9494
    %10564 = vmatmul.bf16.gmra.mxu0 %v6834
    %v10565 = vpop.f32.mrf.mxu0
    %v10566 = vadd.f32 %v10553, %v10565
    %v10567 = vpop.f32.mrf.mxu0
    %10568 = vdwg.mxu0
    %10569 = vmatpush.bf16.msra.mxu0 %v9584
    %10570 = vmatpush.bf16.msra.mxu0 %v9578
    %10571 = vmatpush.bf16.msra.mxu0 %v9572
    %10572 = vmatpush.bf16.msra.mxu0 %v9566
    %10573 = vmatpush.bf16.msra.mxu0 %v9560
    %10574 = vmatpush.bf16.msra.mxu0 %v9554
    %10575 = vmatpush.bf16.msra.mxu0 %v9548
    %10576 = vmatpush.bf16.msra.mxu0 %v9542
    %10577 = vmatmul.bf16.gmra.mxu0 %v6835
    %v10578 = vpop.f32.mrf.mxu0
    %v10579 = vadd.f32 %v10566, %v10578
    %v10580 = vpop.f32.mrf.mxu0
    %10581 = vdwg.mxu0
    %10582 = vmatpush.bf16.msra.mxu0 %v9632
    %10583 = vmatpush.bf16.msra.mxu0 %v9626
    %10584 = vmatpush.bf16.msra.mxu0 %v9620
    %10585 = vmatpush.bf16.msra.mxu0 %v9614
    %10586 = vmatpush.bf16.msra.mxu0 %v9608
    %10587 = vmatpush.bf16.msra.mxu0 %v9602
    %10588 = vmatpush.bf16.msra.mxu0 %v9596
    %10589 = vmatpush.bf16.msra.mxu0 %v9590
    %10590 = vmatmul.bf16.gmra.mxu0 %v6836
    %v10591 = vpop.f32.mrf.mxu0
    %v10592 = vadd.f32 %v10579, %v10591
    %v10593 = vpop.f32.mrf.mxu0
    %10594 = vdwg.mxu0
    %10595 = vmatpush.bf16.msra.mxu0 %v9680
    %10596 = vmatpush.bf16.msra.mxu0 %v9674
    %10597 = vmatpush.bf16.msra.mxu0 %v9668
    %10598 = vmatpush.bf16.msra.mxu0 %v9662
    %10599 = vmatpush.bf16.msra.mxu0 %v9656
    %10600 = vmatpush.bf16.msra.mxu0 %v9650
    %10601 = vmatpush.bf16.msra.mxu0 %v9644
    %10602 = vmatpush.bf16.msra.mxu0 %v9638
    %10603 = vmatmul.bf16.gmra.mxu0 %v6837
    %v10604 = vpop.f32.mrf.mxu0
    %v10605 = vadd.f32 %v10592, %v10604
    %v10606 = vpop.f32.mrf.mxu0
    %10607 = vdwg.mxu0
    %10608 = vmatpush.bf16.msra.mxu0 %v9728
    %10609 = vmatpush.bf16.msra.mxu0 %v9722
    %10610 = vmatpush.bf16.msra.mxu0 %v9716
    %10611 = vmatpush.bf16.msra.mxu0 %v9710
    %10612 = vmatpush.bf16.msra.mxu0 %v9704
    %10613 = vmatpush.bf16.msra.mxu0 %v9698
    %10614 = vmatpush.bf16.msra.mxu0 %v9692
    %10615 = vmatpush.bf16.msra.mxu0 %v9686
    %10616 = vmatmul.bf16.gmra.mxu0 %v6838
    %v10617 = vpop.f32.mrf.mxu0
    %v10618 = vadd.f32 %v10605, %v10617
    %v10619 = vpop.f32.mrf.mxu0
    %10620 = vdwg.mxu0
    %10621 = vmatpush.bf16.msra.mxu0 %v9201
    %10622 = vmatpush.bf16.msra.mxu0 %v9195
    %10623 = vmatpush.bf16.msra.mxu0 %v9189
    %10624 = vmatpush.bf16.msra.mxu0 %v9183
    %10625 = vmatpush.bf16.msra.mxu0 %v9177
    %10626 = vmatpush.bf16.msra.mxu0 %v9171
    %10627 = vmatpush.bf16.msra.mxu0 %v9165
    %10628 = vmatpush.bf16.msra.mxu0 %v9159
    %10629 = vmatmul.bf16.gmra.mxu0 %v6827
    %v10630 = vpop.f32.mrf.mxu0
    %v10631 = vadd.f32 %v7419, %v10630
    %v10632 = vpop.f32.mrf.mxu0
    %10633 = vdwg.mxu0
    %10634 = vmatpush.bf16.msra.mxu0 %v9249
    %10635 = vmatpush.bf16.msra.mxu0 %v9243
    %10636 = vmatpush.bf16.msra.mxu0 %v9237
    %10637 = vmatpush.bf16.msra.mxu0 %v9231
    %10638 = vmatpush.bf16.msra.mxu0 %v9225
    %10639 = vmatpush.bf16.msra.mxu0 %v9219
    %10640 = vmatpush.bf16.msra.mxu0 %v9213
    %10641 = vmatpush.bf16.msra.mxu0 %v9207
    %10642 = vmatmul.bf16.gmra.mxu0 %v6828
    %v10643 = vpop.f32.mrf.mxu0
    %v10644 = vadd.f32 %v10631, %v10643
    %v10645 = vpop.f32.mrf.mxu0
    %10646 = vdwg.mxu0
    %10647 = vmatpush.bf16.msra.mxu0 %v9297
    %10648 = vmatpush.bf16.msra.mxu0 %v9291
    %10649 = vmatpush.bf16.msra.mxu0 %v9285
    %10650 = vmatpush.bf16.msra.mxu0 %v9279
    %10651 = vmatpush.bf16.msra.mxu0 %v9273
    %10652 = vmatpush.bf16.msra.mxu0 %v9267
    %10653 = vmatpush.bf16.msra.mxu0 %v9261
    %10654 = vmatpush.bf16.msra.mxu0 %v9255
    %10655 = vmatmul.bf16.gmra.mxu0 %v6829
    %v10656 = vpop.f32.mrf.mxu0
    %v10657 = vadd.f32 %v10644, %v10656
    %v10658 = vpop.f32.mrf.mxu0
    %10659 = vdwg.mxu0
    %10660 = vmatpush.bf16.msra.mxu0 %v9345
    %10661 = vmatpush.bf16.msra.mxu0 %v9339
    %10662 = vmatpush.bf16.msra.mxu0 %v9333
    %10663 = vmatpush.bf16.msra.mxu0 %v9327
    %10664 = vmatpush.bf16.msra.mxu0 %v9321
    %10665 = vmatpush.bf16.msra.mxu0 %v9315
    %10666 = vmatpush.bf16.msra.mxu0 %v9309
    %10667 = vmatpush.bf16.msra.mxu0 %v9303
    %10668 = vmatmul.bf16.gmra.mxu0 %v6830
    %v10669 = vpop.f32.mrf.mxu0
    %v10670 = vadd.f32 %v10657, %v10669
    %v10671 = vpop.f32.mrf.mxu0
    %10672 = vdwg.mxu0
    %10673 = vmatpush.bf16.msra.mxu0 %v9393
    %10674 = vmatpush.bf16.msra.mxu0 %v9387
    %10675 = vmatpush.bf16.msra.mxu0 %v9381
    %10676 = vmatpush.bf16.msra.mxu0 %v9375
    %10677 = vmatpush.bf16.msra.mxu0 %v9369
    %10678 = vmatpush.bf16.msra.mxu0 %v9363
    %10679 = vmatpush.bf16.msra.mxu0 %v9357
    %10680 = vmatpush.bf16.msra.mxu0 %v9351
    %10681 = vmatmul.bf16.gmra.mxu0 %v6831
    %v10682 = vpop.f32.mrf.mxu0
    %v10683 = vadd.f32 %v10670, %v10682
    %v10684 = vpop.f32.mrf.mxu0
    %10685 = vdwg.mxu0
    %10686 = vmatpush.bf16.msra.mxu0 %v9441
    %10687 = vmatpush.bf16.msra.mxu0 %v9435
    %10688 = vmatpush.bf16.msra.mxu0 %v9429
    %10689 = vmatpush.bf16.msra.mxu0 %v9423
    %10690 = vmatpush.bf16.msra.mxu0 %v9417
    %10691 = vmatpush.bf16.msra.mxu0 %v9411
    %10692 = vmatpush.bf16.msra.mxu0 %v9405
    %10693 = vmatpush.bf16.msra.mxu0 %v9399
    %10694 = vmatmul.bf16.gmra.mxu0 %v6832
    %v10695 = vpop.f32.mrf.mxu0
    %v10696 = vadd.f32 %v10683, %v10695
    %v10697 = vpop.f32.mrf.mxu0
    %10698 = vdwg.mxu0
    %10699 = vmatpush.bf16.msra.mxu0 %v9489
    %10700 = vmatpush.bf16.msra.mxu0 %v9483
    %10701 = vmatpush.bf16.msra.mxu0 %v9477
    %10702 = vmatpush.bf16.msra.mxu0 %v9471
    %10703 = vmatpush.bf16.msra.mxu0 %v9465
    %10704 = vmatpush.bf16.msra.mxu0 %v9459
    %10705 = vmatpush.bf16.msra.mxu0 %v9453
    %10706 = vmatpush.bf16.msra.mxu0 %v9447
    %10707 = vmatmul.bf16.gmra.mxu0 %v6833
    %v10708 = vpop.f32.mrf.mxu0
    %v10709 = vadd.f32 %v10696, %v10708
    %v10710 = vpop.f32.mrf.mxu0
    %10711 = vdwg.mxu0
    %10712 = vmatpush.bf16.msra.mxu0 %v9537
    %10713 = vmatpush.bf16.msra.mxu0 %v9531
    %10714 = vmatpush.bf16.msra.mxu0 %v9525
    %10715 = vmatpush.bf16.msra.mxu0 %v9519
    %10716 = vmatpush.bf16.msra.mxu0 %v9513
    %10717 = vmatpush.bf16.msra.mxu0 %v9507
    %10718 = vmatpush.bf16.msra.mxu0 %v9501
    %10719 = vmatpush.bf16.msra.mxu0 %v9495
    %10720 = vmatmul.bf16.gmra.mxu0 %v6834
    %v10721 = vpop.f32.mrf.mxu0
    %v10722 = vadd.f32 %v10709, %v10721
    %v10723 = vpop.f32.mrf.mxu0
    %10724 = vdwg.mxu0
    %10725 = vmatpush.bf16.msra.mxu0 %v9585
    %10726 = vmatpush.bf16.msra.mxu0 %v9579
    %10727 = vmatpush.bf16.msra.mxu0 %v9573
    %10728 = vmatpush.bf16.msra.mxu0 %v9567
    %10729 = vmatpush.bf16.msra.mxu0 %v9561
    %10730 = vmatpush.bf16.msra.mxu0 %v9555
    %10731 = vmatpush.bf16.msra.mxu0 %v9549
    %10732 = vmatpush.bf16.msra.mxu0 %v9543
    %10733 = vmatmul.bf16.gmra.mxu0 %v6835
    %v10734 = vpop.f32.mrf.mxu0
    %v10735 = vadd.f32 %v10722, %v10734
    %v10736 = vpop.f32.mrf.mxu0
    %10737 = vdwg.mxu0
    %10738 = vmatpush.bf16.msra.mxu0 %v9633
    %10739 = vmatpush.bf16.msra.mxu0 %v9627
    %10740 = vmatpush.bf16.msra.mxu0 %v9621
    %10741 = vmatpush.bf16.msra.mxu0 %v9615
    %10742 = vmatpush.bf16.msra.mxu0 %v9609
    %10743 = vmatpush.bf16.msra.mxu0 %v9603
    %10744 = vmatpush.bf16.msra.mxu0 %v9597
    %10745 = vmatpush.bf16.msra.mxu0 %v9591
    %10746 = vmatmul.bf16.gmra.mxu0 %v6836
    %v10747 = vpop.f32.mrf.mxu0
    %v10748 = vadd.f32 %v10735, %v10747
    %v10749 = vpop.f32.mrf.mxu0
    %10750 = vdwg.mxu0
    %10751 = vmatpush.bf16.msra.mxu0 %v9681
    %10752 = vmatpush.bf16.msra.mxu0 %v9675
    %10753 = vmatpush.bf16.msra.mxu0 %v9669
    %10754 = vmatpush.bf16.msra.mxu0 %v9663
    %10755 = vmatpush.bf16.msra.mxu0 %v9657
    %10756 = vmatpush.bf16.msra.mxu0 %v9651
    %10757 = vmatpush.bf16.msra.mxu0 %v9645
    %10758 = vmatpush.bf16.msra.mxu0 %v9639
    %10759 = vmatmul.bf16.gmra.mxu0 %v6837
    %v10760 = vpop.f32.mrf.mxu0
    %v10761 = vadd.f32 %v10748, %v10760
    %v10762 = vpop.f32.mrf.mxu0
    %10763 = vdwg.mxu0
    %10764 = vmatpush.bf16.msra.mxu0 %v9729
    %10765 = vmatpush.bf16.msra.mxu0 %v9723
    %10766 = vmatpush.bf16.msra.mxu0 %v9717
    %10767 = vmatpush.bf16.msra.mxu0 %v9711
    %10768 = vmatpush.bf16.msra.mxu0 %v9705
    %10769 = vmatpush.bf16.msra.mxu0 %v9699
    %10770 = vmatpush.bf16.msra.mxu0 %v9693
    %10771 = vmatpush.bf16.msra.mxu0 %v9687
    %10772 = vmatmul.bf16.gmra.mxu0 %v6838
    %v10773 = vpop.f32.mrf.mxu0
    %v10774 = vadd.f32 %v10761, %v10773
    %v10775 = vpop.f32.mrf.mxu0
    %10776 = vdwg.mxu0
    %10777 = vmatpush.bf16.msra.mxu0 %v9202
    %10778 = vmatpush.bf16.msra.mxu0 %v9196
    %10779 = vmatpush.bf16.msra.mxu0 %v9190
    %10780 = vmatpush.bf16.msra.mxu0 %v9184
    %10781 = vmatpush.bf16.msra.mxu0 %v9178
    %10782 = vmatpush.bf16.msra.mxu0 %v9172
    %10783 = vmatpush.bf16.msra.mxu0 %v9166
    %10784 = vmatpush.bf16.msra.mxu0 %v9160
    %10785 = vmatmul.bf16.gmra.mxu0 %v6827
    %v10786 = vpop.f32.mrf.mxu0
    %v10787 = vadd.f32 %v7420, %v10786
    %v10788 = vpop.f32.mrf.mxu0
    %10789 = vdwg.mxu0
    %10790 = vmatpush.bf16.msra.mxu0 %v9250
    %10791 = vmatpush.bf16.msra.mxu0 %v9244
    %10792 = vmatpush.bf16.msra.mxu0 %v9238
    %10793 = vmatpush.bf16.msra.mxu0 %v9232
    %10794 = vmatpush.bf16.msra.mxu0 %v9226
    %10795 = vmatpush.bf16.msra.mxu0 %v9220
    %10796 = vmatpush.bf16.msra.mxu0 %v9214
    %10797 = vmatpush.bf16.msra.mxu0 %v9208
    %10798 = vmatmul.bf16.gmra.mxu0 %v6828
    %v10799 = vpop.f32.mrf.mxu0
    %v10800 = vadd.f32 %v10787, %v10799
    %v10801 = vpop.f32.mrf.mxu0
    %10802 = vdwg.mxu0
    %10803 = vmatpush.bf16.msra.mxu0 %v9298
    %10804 = vmatpush.bf16.msra.mxu0 %v9292
    %10805 = vmatpush.bf16.msra.mxu0 %v9286
    %10806 = vmatpush.bf16.msra.mxu0 %v9280
    %10807 = vmatpush.bf16.msra.mxu0 %v9274
    %10808 = vmatpush.bf16.msra.mxu0 %v9268
    %10809 = vmatpush.bf16.msra.mxu0 %v9262
    %10810 = vmatpush.bf16.msra.mxu0 %v9256
    %10811 = vmatmul.bf16.gmra.mxu0 %v6829
    %v10812 = vpop.f32.mrf.mxu0
    %v10813 = vadd.f32 %v10800, %v10812
    %v10814 = vpop.f32.mrf.mxu0
    %10815 = vdwg.mxu0
    %10816 = vmatpush.bf16.msra.mxu0 %v9346
    %10817 = vmatpush.bf16.msra.mxu0 %v9340
    %10818 = vmatpush.bf16.msra.mxu0 %v9334
    %10819 = vmatpush.bf16.msra.mxu0 %v9328
    %10820 = vmatpush.bf16.msra.mxu0 %v9322
    %10821 = vmatpush.bf16.msra.mxu0 %v9316
    %10822 = vmatpush.bf16.msra.mxu0 %v9310
    %10823 = vmatpush.bf16.msra.mxu0 %v9304
    %10824 = vmatmul.bf16.gmra.mxu0 %v6830
    %v10825 = vpop.f32.mrf.mxu0
    %v10826 = vadd.f32 %v10813, %v10825
    %v10827 = vpop.f32.mrf.mxu0
    %10828 = vdwg.mxu0
    %10829 = vmatpush.bf16.msra.mxu0 %v9394
    %10830 = vmatpush.bf16.msra.mxu0 %v9388
    %10831 = vmatpush.bf16.msra.mxu0 %v9382
    %10832 = vmatpush.bf16.msra.mxu0 %v9376
    %10833 = vmatpush.bf16.msra.mxu0 %v9370
    %10834 = vmatpush.bf16.msra.mxu0 %v9364
    %10835 = vmatpush.bf16.msra.mxu0 %v9358
    %10836 = vmatpush.bf16.msra.mxu0 %v9352
    %10837 = vmatmul.bf16.gmra.mxu0 %v6831
    %v10838 = vpop.f32.mrf.mxu0
    %v10839 = vadd.f32 %v10826, %v10838
    %v10840 = vpop.f32.mrf.mxu0
    %10841 = vdwg.mxu0
    %10842 = vmatpush.bf16.msra.mxu0 %v9442
    %10843 = vmatpush.bf16.msra.mxu0 %v9436
    %10844 = vmatpush.bf16.msra.mxu0 %v9430
    %10845 = vmatpush.bf16.msra.mxu0 %v9424
    %10846 = vmatpush.bf16.msra.mxu0 %v9418
    %10847 = vmatpush.bf16.msra.mxu0 %v9412
    %10848 = vmatpush.bf16.msra.mxu0 %v9406
    %10849 = vmatpush.bf16.msra.mxu0 %v9400
    %10850 = vmatmul.bf16.gmra.mxu0 %v6832
    %v10851 = vpop.f32.mrf.mxu0
    %v10852 = vadd.f32 %v10839, %v10851
    %v10853 = vpop.f32.mrf.mxu0
    %10854 = vdwg.mxu0
    %10855 = vmatpush.bf16.msra.mxu0 %v9490
    %10856 = vmatpush.bf16.msra.mxu0 %v9484
    %10857 = vmatpush.bf16.msra.mxu0 %v9478
    %10858 = vmatpush.bf16.msra.mxu0 %v9472
    %10859 = vmatpush.bf16.msra.mxu0 %v9466
    %10860 = vmatpush.bf16.msra.mxu0 %v9460
    %10861 = vmatpush.bf16.msra.mxu0 %v9454
    %10862 = vmatpush.bf16.msra.mxu0 %v9448
    %10863 = vmatmul.bf16.gmra.mxu0 %v6833
    %v10864 = vpop.f32.mrf.mxu0
    %v10865 = vadd.f32 %v10852, %v10864
    %v10866 = vpop.f32.mrf.mxu0
    %10867 = vdwg.mxu0
    %10868 = vmatpush.bf16.msra.mxu0 %v9538
    %10869 = vmatpush.bf16.msra.mxu0 %v9532
    %10870 = vmatpush.bf16.msra.mxu0 %v9526
    %10871 = vmatpush.bf16.msra.mxu0 %v9520
    %10872 = vmatpush.bf16.msra.mxu0 %v9514
    %10873 = vmatpush.bf16.msra.mxu0 %v9508
    %10874 = vmatpush.bf16.msra.mxu0 %v9502
    %10875 = vmatpush.bf16.msra.mxu0 %v9496
    %10876 = vmatmul.bf16.gmra.mxu0 %v6834
    %v10877 = vpop.f32.mrf.mxu0
    %v10878 = vadd.f32 %v10865, %v10877
    %v10879 = vpop.f32.mrf.mxu0
    %10880 = vdwg.mxu0
    %10881 = vmatpush.bf16.msra.mxu0 %v9586
    %10882 = vmatpush.bf16.msra.mxu0 %v9580
    %10883 = vmatpush.bf16.msra.mxu0 %v9574
    %10884 = vmatpush.bf16.msra.mxu0 %v9568
    %10885 = vmatpush.bf16.msra.mxu0 %v9562
    %10886 = vmatpush.bf16.msra.mxu0 %v9556
    %10887 = vmatpush.bf16.msra.mxu0 %v9550
    %10888 = vmatpush.bf16.msra.mxu0 %v9544
    %10889 = vmatmul.bf16.gmra.mxu0 %v6835
    %v10890 = vpop.f32.mrf.mxu0
    %v10891 = vadd.f32 %v10878, %v10890
    %v10892 = vpop.f32.mrf.mxu0
    %10893 = vdwg.mxu0
    %10894 = vmatpush.bf16.msra.mxu0 %v9634
    %10895 = vmatpush.bf16.msra.mxu0 %v9628
    %10896 = vmatpush.bf16.msra.mxu0 %v9622
    %10897 = vmatpush.bf16.msra.mxu0 %v9616
    %10898 = vmatpush.bf16.msra.mxu0 %v9610
    %10899 = vmatpush.bf16.msra.mxu0 %v9604
    %10900 = vmatpush.bf16.msra.mxu0 %v9598
    %10901 = vmatpush.bf16.msra.mxu0 %v9592
    %10902 = vmatmul.bf16.gmra.mxu0 %v6836
    %v10903 = vpop.f32.mrf.mxu0
    %v10904 = vadd.f32 %v10891, %v10903
    %v10905 = vpop.f32.mrf.mxu0
    %10906 = vdwg.mxu0
    %10907 = vmatpush.bf16.msra.mxu0 %v9682
    %10908 = vmatpush.bf16.msra.mxu0 %v9676
    %10909 = vmatpush.bf16.msra.mxu0 %v9670
    %10910 = vmatpush.bf16.msra.mxu0 %v9664
    %10911 = vmatpush.bf16.msra.mxu0 %v9658
    %10912 = vmatpush.bf16.msra.mxu0 %v9652
    %10913 = vmatpush.bf16.msra.mxu0 %v9646
    %10914 = vmatpush.bf16.msra.mxu0 %v9640
    %10915 = vmatmul.bf16.gmra.mxu0 %v6837
    %v10916 = vpop.f32.mrf.mxu0
    %v10917 = vadd.f32 %v10904, %v10916
    %v10918 = vpop.f32.mrf.mxu0
    %10919 = vdwg.mxu0
    %10920 = vmatpush.bf16.msra.mxu0 %v9730
    %10921 = vmatpush.bf16.msra.mxu0 %v9724
    %10922 = vmatpush.bf16.msra.mxu0 %v9718
    %10923 = vmatpush.bf16.msra.mxu0 %v9712
    %10924 = vmatpush.bf16.msra.mxu0 %v9706
    %10925 = vmatpush.bf16.msra.mxu0 %v9700
    %10926 = vmatpush.bf16.msra.mxu0 %v9694
    %10927 = vmatpush.bf16.msra.mxu0 %v9688
    %10928 = vmatmul.bf16.gmra.mxu0 %v6838
    %v10929 = vpop.f32.mrf.mxu0
    %v10930 = vadd.f32 %v10917, %v10929
    %v10931 = vpop.f32.mrf.mxu0
    %10932 = vdwg.mxu0
    %10933 = vmatpush.bf16.msra.mxu0 %v9203
    %10934 = vmatpush.bf16.msra.mxu0 %v9197
    %10935 = vmatpush.bf16.msra.mxu0 %v9191
    %10936 = vmatpush.bf16.msra.mxu0 %v9185
    %10937 = vmatpush.bf16.msra.mxu0 %v9179
    %10938 = vmatpush.bf16.msra.mxu0 %v9173
    %10939 = vmatpush.bf16.msra.mxu0 %v9167
    %10940 = vmatpush.bf16.msra.mxu0 %v9161
    %10941 = vmatmul.bf16.gmra.mxu0 %v6827
    %v10942 = vpop.f32.mrf.mxu0
    %v10943 = vadd.f32 %v7421, %v10942
    %v10944 = vpop.f32.mrf.mxu0
    %10945 = vdwg.mxu0
    %10946 = vmatpush.bf16.msra.mxu0 %v9251
    %10947 = vmatpush.bf16.msra.mxu0 %v9245
    %10948 = vmatpush.bf16.msra.mxu0 %v9239
    %10949 = vmatpush.bf16.msra.mxu0 %v9233
    %10950 = vmatpush.bf16.msra.mxu0 %v9227
    %10951 = vmatpush.bf16.msra.mxu0 %v9221
    %10952 = vmatpush.bf16.msra.mxu0 %v9215
    %10953 = vmatpush.bf16.msra.mxu0 %v9209
    %10954 = vmatmul.bf16.gmra.mxu0 %v6828
    %v10955 = vpop.f32.mrf.mxu0
    %v10956 = vadd.f32 %v10943, %v10955
    %v10957 = vpop.f32.mrf.mxu0
    %10958 = vdwg.mxu0
    %10959 = vmatpush.bf16.msra.mxu0 %v9299
    %10960 = vmatpush.bf16.msra.mxu0 %v9293
    %10961 = vmatpush.bf16.msra.mxu0 %v9287
    %10962 = vmatpush.bf16.msra.mxu0 %v9281
    %10963 = vmatpush.bf16.msra.mxu0 %v9275
    %10964 = vmatpush.bf16.msra.mxu0 %v9269
    %10965 = vmatpush.bf16.msra.mxu0 %v9263
    %10966 = vmatpush.bf16.msra.mxu0 %v9257
    %10967 = vmatmul.bf16.gmra.mxu0 %v6829
    %v10968 = vpop.f32.mrf.mxu0
    %v10969 = vadd.f32 %v10956, %v10968
    %v10970 = vpop.f32.mrf.mxu0
    %10971 = vdwg.mxu0
    %10972 = vmatpush.bf16.msra.mxu0 %v9347
    %10973 = vmatpush.bf16.msra.mxu0 %v9341
    %10974 = vmatpush.bf16.msra.mxu0 %v9335
    %10975 = vmatpush.bf16.msra.mxu0 %v9329
    %10976 = vmatpush.bf16.msra.mxu0 %v9323
    %10977 = vmatpush.bf16.msra.mxu0 %v9317
    %10978 = vmatpush.bf16.msra.mxu0 %v9311
    %10979 = vmatpush.bf16.msra.mxu0 %v9305
    %10980 = vmatmul.bf16.gmra.mxu0 %v6830
    %v10981 = vpop.f32.mrf.mxu0
    %v10982 = vadd.f32 %v10969, %v10981
    %v10983 = vpop.f32.mrf.mxu0
    %10984 = vdwg.mxu0
    %10985 = vmatpush.bf16.msra.mxu0 %v9395
    %10986 = vmatpush.bf16.msra.mxu0 %v9389
    %10987 = vmatpush.bf16.msra.mxu0 %v9383
    %10988 = vmatpush.bf16.msra.mxu0 %v9377
    %10989 = vmatpush.bf16.msra.mxu0 %v9371
    %10990 = vmatpush.bf16.msra.mxu0 %v9365
    %10991 = vmatpush.bf16.msra.mxu0 %v9359
    %10992 = vmatpush.bf16.msra.mxu0 %v9353
    %10993 = vmatmul.bf16.gmra.mxu0 %v6831
    %v10994 = vpop.f32.mrf.mxu0
    %v10995 = vadd.f32 %v10982, %v10994
    %v10996 = vpop.f32.mrf.mxu0
    %10997 = vdwg.mxu0
    %10998 = vmatpush.bf16.msra.mxu0 %v9443
    %10999 = vmatpush.bf16.msra.mxu0 %v9437
    %11000 = vmatpush.bf16.msra.mxu0 %v9431
    %11001 = vmatpush.bf16.msra.mxu0 %v9425
    %11002 = vmatpush.bf16.msra.mxu0 %v9419
    %11003 = vmatpush.bf16.msra.mxu0 %v9413
    %11004 = vmatpush.bf16.msra.mxu0 %v9407
    %11005 = vmatpush.bf16.msra.mxu0 %v9401
    %11006 = vmatmul.bf16.gmra.mxu0 %v6832
    %v11007 = vpop.f32.mrf.mxu0
    %v11008 = vadd.f32 %v10995, %v11007
    %v11009 = vpop.f32.mrf.mxu0
    %11010 = vdwg.mxu0
    %11011 = vmatpush.bf16.msra.mxu0 %v9491
    %11012 = vmatpush.bf16.msra.mxu0 %v9485
    %11013 = vmatpush.bf16.msra.mxu0 %v9479
    %11014 = vmatpush.bf16.msra.mxu0 %v9473
    %11015 = vmatpush.bf16.msra.mxu0 %v9467
    %11016 = vmatpush.bf16.msra.mxu0 %v9461
    %11017 = vmatpush.bf16.msra.mxu0 %v9455
    %11018 = vmatpush.bf16.msra.mxu0 %v9449
    %11019 = vmatmul.bf16.gmra.mxu0 %v6833
    %v11020 = vpop.f32.mrf.mxu0
    %v11021 = vadd.f32 %v11008, %v11020
    %v11022 = vpop.f32.mrf.mxu0
    %11023 = vdwg.mxu0
    %11024 = vmatpush.bf16.msra.mxu0 %v9539
    %11025 = vmatpush.bf16.msra.mxu0 %v9533
    %11026 = vmatpush.bf16.msra.mxu0 %v9527
    %11027 = vmatpush.bf16.msra.mxu0 %v9521
    %11028 = vmatpush.bf16.msra.mxu0 %v9515
    %11029 = vmatpush.bf16.msra.mxu0 %v9509
    %11030 = vmatpush.bf16.msra.mxu0 %v9503
    %11031 = vmatpush.bf16.msra.mxu0 %v9497
    %11032 = vmatmul.bf16.gmra.mxu0 %v6834
    %v11033 = vpop.f32.mrf.mxu0
    %v11034 = vadd.f32 %v11021, %v11033
    %v11035 = vpop.f32.mrf.mxu0
    %11036 = vdwg.mxu0
    %11037 = vmatpush.bf16.msra.mxu0 %v9587
    %11038 = vmatpush.bf16.msra.mxu0 %v9581
    %11039 = vmatpush.bf16.msra.mxu0 %v9575
    %11040 = vmatpush.bf16.msra.mxu0 %v9569
    %11041 = vmatpush.bf16.msra.mxu0 %v9563
    %11042 = vmatpush.bf16.msra.mxu0 %v9557
    %11043 = vmatpush.bf16.msra.mxu0 %v9551
    %11044 = vmatpush.bf16.msra.mxu0 %v9545
    %11045 = vmatmul.bf16.gmra.mxu0 %v6835
    %v11046 = vpop.f32.mrf.mxu0
    %v11047 = vadd.f32 %v11034, %v11046
    %v11048 = vpop.f32.mrf.mxu0
    %11049 = vdwg.mxu0
    %11050 = vmatpush.bf16.msra.mxu0 %v9635
    %11051 = vmatpush.bf16.msra.mxu0 %v9629
    %11052 = vmatpush.bf16.msra.mxu0 %v9623
    %11053 = vmatpush.bf16.msra.mxu0 %v9617
    %11054 = vmatpush.bf16.msra.mxu0 %v9611
    %11055 = vmatpush.bf16.msra.mxu0 %v9605
    %11056 = vmatpush.bf16.msra.mxu0 %v9599
    %11057 = vmatpush.bf16.msra.mxu0 %v9593
    %11058 = vmatmul.bf16.gmra.mxu0 %v6836
    %v11059 = vpop.f32.mrf.mxu0
    %v11060 = vadd.f32 %v11047, %v11059
    %v11061 = vpop.f32.mrf.mxu0
    %11062 = vdwg.mxu0
    %11063 = vmatpush.bf16.msra.mxu0 %v9683
    %11064 = vmatpush.bf16.msra.mxu0 %v9677
    %11065 = vmatpush.bf16.msra.mxu0 %v9671
    %11066 = vmatpush.bf16.msra.mxu0 %v9665
    %11067 = vmatpush.bf16.msra.mxu0 %v9659
    %11068 = vmatpush.bf16.msra.mxu0 %v9653
    %11069 = vmatpush.bf16.msra.mxu0 %v9647
    %11070 = vmatpush.bf16.msra.mxu0 %v9641
    %11071 = vmatmul.bf16.gmra.mxu0 %v6837
    %v11072 = vpop.f32.mrf.mxu0
    %v11073 = vadd.f32 %v11060, %v11072
    %v11074 = vpop.f32.mrf.mxu0
    %11075 = vdwg.mxu0
    %11076 = vmatpush.bf16.msra.mxu0 %v9731
    %11077 = vmatpush.bf16.msra.mxu0 %v9725
    %11078 = vmatpush.bf16.msra.mxu0 %v9719
    %11079 = vmatpush.bf16.msra.mxu0 %v9713
    %11080 = vmatpush.bf16.msra.mxu0 %v9707
    %11081 = vmatpush.bf16.msra.mxu0 %v9701
    %11082 = vmatpush.bf16.msra.mxu0 %v9695
    %11083 = vmatpush.bf16.msra.mxu0 %v9689
    %11084 = vmatmul.bf16.gmra.mxu0 %v6838
    %v11085 = vpop.f32.mrf.mxu0
    %v11086 = vadd.f32 %v11073, %v11085
    %v11087 = vpop.f32.mrf.mxu0
    %11088 = vdwg.mxu0
    %11089 = vmatpush.bf16.msra.mxu0 %v9204
    %11090 = vmatpush.bf16.msra.mxu0 %v9198
    %11091 = vmatpush.bf16.msra.mxu0 %v9192
    %11092 = vmatpush.bf16.msra.mxu0 %v9186
    %11093 = vmatpush.bf16.msra.mxu0 %v9180
    %11094 = vmatpush.bf16.msra.mxu0 %v9174
    %11095 = vmatpush.bf16.msra.mxu0 %v9168
    %11096 = vmatpush.bf16.msra.mxu0 %v9162
    %11097 = vmatmul.bf16.gmra.mxu0 %v6827
    %v11098 = vpop.f32.mrf.mxu0
    %v11099 = vadd.f32 %v7422, %v11098
    %v11100 = vpop.f32.mrf.mxu0
    %11101 = vdwg.mxu0
    %11102 = vmatpush.bf16.msra.mxu0 %v9252
    %11103 = vmatpush.bf16.msra.mxu0 %v9246
    %11104 = vmatpush.bf16.msra.mxu0 %v9240
    %11105 = vmatpush.bf16.msra.mxu0 %v9234
    %11106 = vmatpush.bf16.msra.mxu0 %v9228
    %11107 = vmatpush.bf16.msra.mxu0 %v9222
    %11108 = vmatpush.bf16.msra.mxu0 %v9216
    %11109 = vmatpush.bf16.msra.mxu0 %v9210
    %11110 = vmatmul.bf16.gmra.mxu0 %v6828
    %v11111 = vpop.f32.mrf.mxu0
    %v11112 = vadd.f32 %v11099, %v11111
    %v11113 = vpop.f32.mrf.mxu0
    %11114 = vdwg.mxu0
    %11115 = vmatpush.bf16.msra.mxu0 %v9300
    %11116 = vmatpush.bf16.msra.mxu0 %v9294
    %11117 = vmatpush.bf16.msra.mxu0 %v9288
    %11118 = vmatpush.bf16.msra.mxu0 %v9282
    %11119 = vmatpush.bf16.msra.mxu0 %v9276
    %11120 = vmatpush.bf16.msra.mxu0 %v9270
    %11121 = vmatpush.bf16.msra.mxu0 %v9264
    %11122 = vmatpush.bf16.msra.mxu0 %v9258
    %11123 = vmatmul.bf16.gmra.mxu0 %v6829
    %v11124 = vpop.f32.mrf.mxu0
    %v11125 = vadd.f32 %v11112, %v11124
    %v11126 = vpop.f32.mrf.mxu0
    %11127 = vdwg.mxu0
    %11128 = vmatpush.bf16.msra.mxu0 %v9348
    %11129 = vmatpush.bf16.msra.mxu0 %v9342
    %11130 = vmatpush.bf16.msra.mxu0 %v9336
    %11131 = vmatpush.bf16.msra.mxu0 %v9330
    %11132 = vmatpush.bf16.msra.mxu0 %v9324
    %11133 = vmatpush.bf16.msra.mxu0 %v9318
    %11134 = vmatpush.bf16.msra.mxu0 %v9312
    %11135 = vmatpush.bf16.msra.mxu0 %v9306
    %11136 = vmatmul.bf16.gmra.mxu0 %v6830
    %v11137 = vpop.f32.mrf.mxu0
    %v11138 = vadd.f32 %v11125, %v11137
    %v11139 = vpop.f32.mrf.mxu0
    %11140 = vdwg.mxu0
    %11141 = vmatpush.bf16.msra.mxu0 %v9396
    %11142 = vmatpush.bf16.msra.mxu0 %v9390
    %11143 = vmatpush.bf16.msra.mxu0 %v9384
    %11144 = vmatpush.bf16.msra.mxu0 %v9378
    %11145 = vmatpush.bf16.msra.mxu0 %v9372
    %11146 = vmatpush.bf16.msra.mxu0 %v9366
    %11147 = vmatpush.bf16.msra.mxu0 %v9360
    %11148 = vmatpush.bf16.msra.mxu0 %v9354
    %11149 = vmatmul.bf16.gmra.mxu0 %v6831
    %v11150 = vpop.f32.mrf.mxu0
    %v11151 = vadd.f32 %v11138, %v11150
    %v11152 = vpop.f32.mrf.mxu0
    %11153 = vdwg.mxu0
    %11154 = vmatpush.bf16.msra.mxu0 %v9444
    %11155 = vmatpush.bf16.msra.mxu0 %v9438
    %11156 = vmatpush.bf16.msra.mxu0 %v9432
    %11157 = vmatpush.bf16.msra.mxu0 %v9426
    %11158 = vmatpush.bf16.msra.mxu0 %v9420
    %11159 = vmatpush.bf16.msra.mxu0 %v9414
    %11160 = vmatpush.bf16.msra.mxu0 %v9408
    %11161 = vmatpush.bf16.msra.mxu0 %v9402
    %11162 = vmatmul.bf16.gmra.mxu0 %v6832
    %v11163 = vpop.f32.mrf.mxu0
    %v11164 = vadd.f32 %v11151, %v11163
    %v11165 = vpop.f32.mrf.mxu0
    %11166 = vdwg.mxu0
    %11167 = vmatpush.bf16.msra.mxu0 %v9492
    %11168 = vmatpush.bf16.msra.mxu0 %v9486
    %11169 = vmatpush.bf16.msra.mxu0 %v9480
    %11170 = vmatpush.bf16.msra.mxu0 %v9474
    %11171 = vmatpush.bf16.msra.mxu0 %v9468
    %11172 = vmatpush.bf16.msra.mxu0 %v9462
    %11173 = vmatpush.bf16.msra.mxu0 %v9456
    %11174 = vmatpush.bf16.msra.mxu0 %v9450
    %11175 = vmatmul.bf16.gmra.mxu0 %v6833
    %v11176 = vpop.f32.mrf.mxu0
    %v11177 = vadd.f32 %v11164, %v11176
    %v11178 = vpop.f32.mrf.mxu0
    %11179 = vdwg.mxu0
    %11180 = vmatpush.bf16.msra.mxu0 %v9540
    %11181 = vmatpush.bf16.msra.mxu0 %v9534
    %11182 = vmatpush.bf16.msra.mxu0 %v9528
    %11183 = vmatpush.bf16.msra.mxu0 %v9522
    %11184 = vmatpush.bf16.msra.mxu0 %v9516
    %11185 = vmatpush.bf16.msra.mxu0 %v9510
    %11186 = vmatpush.bf16.msra.mxu0 %v9504
    %11187 = vmatpush.bf16.msra.mxu0 %v9498
    %11188 = vmatmul.bf16.gmra.mxu0 %v6834
    %v11189 = vpop.f32.mrf.mxu0
    %v11190 = vadd.f32 %v11177, %v11189
    %v11191 = vpop.f32.mrf.mxu0
    %11192 = vdwg.mxu0
    %11193 = vmatpush.bf16.msra.mxu0 %v9588
    %11194 = vmatpush.bf16.msra.mxu0 %v9582
    %11195 = vmatpush.bf16.msra.mxu0 %v9576
    %11196 = vmatpush.bf16.msra.mxu0 %v9570
    %11197 = vmatpush.bf16.msra.mxu0 %v9564
    %11198 = vmatpush.bf16.msra.mxu0 %v9558
    %11199 = vmatpush.bf16.msra.mxu0 %v9552
    %11200 = vmatpush.bf16.msra.mxu0 %v9546
    %11201 = vmatmul.bf16.gmra.mxu0 %v6835
    %v11202 = vpop.f32.mrf.mxu0
    %v11203 = vadd.f32 %v11190, %v11202
    %v11204 = vpop.f32.mrf.mxu0
    %11205 = vdwg.mxu0
    %11206 = vmatpush.bf16.msra.mxu0 %v9636
    %11207 = vmatpush.bf16.msra.mxu0 %v9630
    %11208 = vmatpush.bf16.msra.mxu0 %v9624
    %11209 = vmatpush.bf16.msra.mxu0 %v9618
    %11210 = vmatpush.bf16.msra.mxu0 %v9612
    %11211 = vmatpush.bf16.msra.mxu0 %v9606
    %11212 = vmatpush.bf16.msra.mxu0 %v9600
    %11213 = vmatpush.bf16.msra.mxu0 %v9594
    %11214 = vmatmul.bf16.gmra.mxu0 %v6836
    %v11215 = vpop.f32.mrf.mxu0
    %v11216 = vadd.f32 %v11203, %v11215
    %v11217 = vpop.f32.mrf.mxu0
    %11218 = vdwg.mxu0
    %11219 = vmatpush.bf16.msra.mxu0 %v9684
    %11220 = vmatpush.bf16.msra.mxu0 %v9678
    %11221 = vmatpush.bf16.msra.mxu0 %v9672
    %11222 = vmatpush.bf16.msra.mxu0 %v9666
    %11223 = vmatpush.bf16.msra.mxu0 %v9660
    %11224 = vmatpush.bf16.msra.mxu0 %v9654
    %11225 = vmatpush.bf16.msra.mxu0 %v9648
    %11226 = vmatpush.bf16.msra.mxu0 %v9642
    %11227 = vmatmul.bf16.gmra.mxu0 %v6837
    %v11228 = vpop.f32.mrf.mxu0
    %v11229 = vadd.f32 %v11216, %v11228
    %v11230 = vpop.f32.mrf.mxu0
    %11231 = vdwg.mxu0
    %11232 = vmatpush.bf16.msra.mxu0 %v9732
    %11233 = vmatpush.bf16.msra.mxu0 %v9726
    %11234 = vmatpush.bf16.msra.mxu0 %v9720
    %11235 = vmatpush.bf16.msra.mxu0 %v9714
    %11236 = vmatpush.bf16.msra.mxu0 %v9708
    %11237 = vmatpush.bf16.msra.mxu0 %v9702
    %11238 = vmatpush.bf16.msra.mxu0 %v9696
    %11239 = vmatpush.bf16.msra.mxu0 %v9690
    %11240 = vmatmul.bf16.gmra.mxu0 %v6838
    %v11241 = vpop.f32.mrf.mxu0
    %v11242 = vadd.f32 %v11229, %v11241
    %v11243 = vpop.f32.mrf.mxu0
    %11244 = vdwg.mxu0
    %v11245 = vtanh.pop %v10462
    %v11246 = vtanh.pop %v10618
    %v11247 = vtanh.pop %v10774
    %v11248 = vtanh.pop %v10930
    %v11249 = vtanh.pop %v11086
    %v11250 = vtanh.pop %v11242
    %v11251 = vpack.c.bf16 %v11245, %v11245
    %v11252 = vpack.c.bf16 %v11246, %v11246
    %v11253 = vpack.c.bf16 %v11247, %v11247
    %v11254 = vpack.c.bf16 %v11248, %v11248
    %v11255 = vpack.c.bf16 %v11249, %v11249
    %v11256 = vpack.c.bf16 %v11250, %v11250
    %v11257 = vld [vmem:[#allocation12] sm:$0xf]
    %v11258 = vld [vmem:[#allocation12 + $0x4] sm:$0xf]
    %v11259 = vld [vmem:[#allocation12 + $0x8] sm:$0xf]
    %v11260 = vld [vmem:[#allocation12 + $0xc] sm:$0xf]
    %v11261 = vld [vmem:[#allocation12 + $0x10] sm:$0xf]
    %v11262 = vld [vmem:[#allocation12 + $0x14] sm:$0xf]
    %v11263 = vld [vmem:[#allocation12 + $0x18] sm:$0xf]
    %v11264 = vld [vmem:[#allocation12 + $0x1c] sm:$0xf]
    %v11265 = vld [vmem:[#allocation12 + $0x20] sm:$0xf]
    %v11266 = vld [vmem:[#allocation12 + $0x24] sm:$0xf]
    %v11267 = vld [vmem:[#allocation12 + $0x28] sm:$0xf]
    %v11268 = vld [vmem:[#allocation12 + $0x2c] sm:$0xf]
    %v11269 = vld [vmem:[#allocation12 + $0x30] sm:$0xf]
    %v11270 = vld [vmem:[#allocation12 + $0x34] sm:$0xf]
    %v11271 = vld [vmem:[#allocation12 + $0x38] sm:$0xf]
    %v11272 = vld [vmem:[#allocation12 + $0x3c] sm:$0xf]
    %v11273 = vld [vmem:[#allocation12 + $0x40] sm:$0xf]
    %v11274 = vld [vmem:[#allocation12 + $0x44] sm:$0xf]
    %v11275 = vld [vmem:[#allocation12 + $0x48] sm:$0xf]
    %v11276 = vld [vmem:[#allocation12 + $0x4c] sm:$0xf]
    %v11277 = vld [vmem:[#allocation12 + $0x50] sm:$0xf]
    %v11278 = vld [vmem:[#allocation12 + $0x54] sm:$0xf]
    %v11279 = vld [vmem:[#allocation12 + $0x58] sm:$0xf]
    %v11280 = vld [vmem:[#allocation12 + $0x5c] sm:$0xf]
    %v11281 = vld [vmem:[#allocation12 + $0x60] sm:$0xf]
    %v11282 = vld [vmem:[#allocation12 + $0x64] sm:$0xf]
    %v11283 = vld [vmem:[#allocation12 + $0x68] sm:$0xf]
    %v11284 = vld [vmem:[#allocation12 + $0x6c] sm:$0xf]
    %v11285 = vld [vmem:[#allocation12 + $0x70] sm:$0xf]
    %v11286 = vld [vmem:[#allocation12 + $0x74] sm:$0xf]
    %v11287 = vld [vmem:[#allocation12 + $0x78] sm:$0xf]
    %v11288 = vld [vmem:[#allocation12 + $0x7c] sm:$0xf]
    %v11289 = vld [vmem:[#allocation12 + $0x80] sm:$0xf]
    %v11290 = vld [vmem:[#allocation12 + $0x84] sm:$0xf]
    %v11291 = vld [vmem:[#allocation12 + $0x88] sm:$0xf]
    %v11292 = vld [vmem:[#allocation12 + $0x8c] sm:$0xf]
    %v11293 = vld [vmem:[#allocation12 + $0x90] sm:$0xf]
    %v11294 = vld [vmem:[#allocation12 + $0x94] sm:$0xf]
    %v11295 = vld [vmem:[#allocation12 + $0x98] sm:$0xf]
    %v11296 = vld [vmem:[#allocation12 + $0x9c] sm:$0xf]
    %v11297 = vld [vmem:[#allocation12 + $0xa0] sm:$0xf]
    %v11298 = vld [vmem:[#allocation12 + $0xa4] sm:$0xf]
    %v11299 = vld [vmem:[#allocation12 + $0xa8] sm:$0xf]
    %v11300 = vld [vmem:[#allocation12 + $0xac] sm:$0xf]
    %v11301 = vld [vmem:[#allocation12 + $0xb0] sm:$0xf]
    %v11302 = vld [vmem:[#allocation12 + $0xb4] sm:$0xf]
    %v11303 = vld [vmem:[#allocation12 + $0xb8] sm:$0xf]
    %v11304 = vld [vmem:[#allocation12 + $0xbc] sm:$0xf]
    %v11305 = vld [vmem:[#allocation12 + $0xc0] sm:$0xf]
    %v11306 = vld [vmem:[#allocation12 + $0xc4] sm:$0xf]
    %v11307 = vld [vmem:[#allocation12 + $0xc8] sm:$0xf]
    %v11308 = vld [vmem:[#allocation12 + $0xcc] sm:$0xf]
    %v11309 = vld [vmem:[#allocation12 + $0xd0] sm:$0xf]
    %v11310 = vld [vmem:[#allocation12 + $0xd4] sm:$0xf]
    %v11311 = vld [vmem:[#allocation12 + $0xd8] sm:$0xf]
    %v11312 = vld [vmem:[#allocation12 + $0xdc] sm:$0xf]
    %v11313 = vld [vmem:[#allocation12 + $0xe0] sm:$0xf]
    %v11314 = vld [vmem:[#allocation12 + $0xe4] sm:$0xf]
    %v11315 = vld [vmem:[#allocation12 + $0xe8] sm:$0xf]
    %v11316 = vld [vmem:[#allocation12 + $0xec] sm:$0xf]
    %v11317 = vld [vmem:[#allocation12 + $0xf0] sm:$0xf]
    %v11318 = vld [vmem:[#allocation12 + $0xf4] sm:$0xf]
    %v11319 = vld [vmem:[#allocation12 + $0xf8] sm:$0xf]
    %v11320 = vld [vmem:[#allocation12 + $0xfc] sm:$0xf]
    %v11321 = vld [vmem:[#allocation12 + $0x100] sm:$0xf]
    %v11322 = vld [vmem:[#allocation12 + $0x104] sm:$0xf]
    %v11323 = vld [vmem:[#allocation12 + $0x108] sm:$0xf]
    %v11324 = vld [vmem:[#allocation12 + $0x10c] sm:$0xf]
    %v11325 = vld [vmem:[#allocation12 + $0x110] sm:$0xf]
    %v11326 = vld [vmem:[#allocation12 + $0x114] sm:$0xf]
    %v11327 = vld [vmem:[#allocation12 + $0x118] sm:$0xf]
    %v11328 = vld [vmem:[#allocation12 + $0x11c] sm:$0xf]
    %v11329 = vld [vmem:[#allocation12 + $0x120] sm:$0xf]
    %v11330 = vld [vmem:[#allocation12 + $0x124] sm:$0xf]
    %v11331 = vld [vmem:[#allocation12 + $0x128] sm:$0xf]
    %v11332 = vld [vmem:[#allocation12 + $0x12c] sm:$0xf]
    %v11333 = vld [vmem:[#allocation12 + $0x130] sm:$0xf]
    %v11334 = vld [vmem:[#allocation12 + $0x134] sm:$0xf]
    %v11335 = vld [vmem:[#allocation12 + $0x138] sm:$0xf]
    %v11336 = vld [vmem:[#allocation12 + $0x13c] sm:$0xf]
    %v11337 = vld [vmem:[#allocation12 + $0x140] sm:$0xf]
    %v11338 = vld [vmem:[#allocation12 + $0x144] sm:$0xf]
    %v11339 = vld [vmem:[#allocation12 + $0x148] sm:$0xf]
    %v11340 = vld [vmem:[#allocation12 + $0x14c] sm:$0xf]
    %v11341 = vld [vmem:[#allocation12 + $0x150] sm:$0xf]
    %v11342 = vld [vmem:[#allocation12 + $0x154] sm:$0xf]
    %v11343 = vld [vmem:[#allocation12 + $0x158] sm:$0xf]
    %v11344 = vld [vmem:[#allocation12 + $0x15c] sm:$0xf]
    %v11345 = vld [vmem:[#allocation12 + $0x160] sm:$0xf]
    %v11346 = vld [vmem:[#allocation12 + $0x164] sm:$0xf]
    %v11347 = vld [vmem:[#allocation12 + $0x168] sm:$0xf]
    %v11348 = vld [vmem:[#allocation12 + $0x16c] sm:$0xf]
    %v11349 = vld [vmem:[#allocation12 + $0x170] sm:$0xf]
    %v11350 = vld [vmem:[#allocation12 + $0x174] sm:$0xf]
    %v11351 = vld [vmem:[#allocation12 + $0x178] sm:$0xf]
    %v11352 = vld [vmem:[#allocation12 + $0x17c] sm:$0xf]
    %v11353 = vld [vmem:[#allocation13] sm:$0x1]
    %v11355 = vperm.slane %v11353, 0
    %v11453 = vunpack.c.l.b16 %v11257
    %v11454 = vunpack.c.l.b16 %v11258
    %v11455 = vunpack.c.l.b16 %v11259
    %v11456 = vunpack.c.l.b16 %v11260
    %v11457 = vunpack.c.l.b16 %v11261
    %v11458 = vunpack.c.l.b16 %v11262
    %v11459 = vunpack.c.l.b16 %v11263
    %v11460 = vunpack.c.l.b16 %v11264
    %v11461 = vunpack.c.l.b16 %v11265
    %v11462 = vunpack.c.l.b16 %v11266
    %v11463 = vunpack.c.l.b16 %v11267
    %v11464 = vunpack.c.l.b16 %v11268
    %v11465 = vunpack.c.l.b16 %v11269
    %v11466 = vunpack.c.l.b16 %v11270
    %v11467 = vunpack.c.l.b16 %v11271
    %v11468 = vunpack.c.l.b16 %v11272
    %v11469 = vunpack.c.l.b16 %v11273
    %v11470 = vunpack.c.l.b16 %v11274
    %v11471 = vunpack.c.l.b16 %v11275
    %v11472 = vunpack.c.l.b16 %v11276
    %v11473 = vunpack.c.l.b16 %v11277
    %v11474 = vunpack.c.l.b16 %v11278
    %v11475 = vunpack.c.l.b16 %v11279
    %v11476 = vunpack.c.l.b16 %v11280
    %v11477 = vunpack.c.l.b16 %v11281
    %v11478 = vunpack.c.l.b16 %v11282
    %v11479 = vunpack.c.l.b16 %v11283
    %v11480 = vunpack.c.l.b16 %v11284
    %v11481 = vunpack.c.l.b16 %v11285
    %v11482 = vunpack.c.l.b16 %v11286
    %v11483 = vunpack.c.l.b16 %v11287
    %v11484 = vunpack.c.l.b16 %v11288
    %v11485 = vunpack.c.l.b16 %v11289
    %v11486 = vunpack.c.l.b16 %v11290
    %v11487 = vunpack.c.l.b16 %v11291
    %v11488 = vunpack.c.l.b16 %v11292
    %v11489 = vunpack.c.l.b16 %v11293
    %v11490 = vunpack.c.l.b16 %v11294
    %v11491 = vunpack.c.l.b16 %v11295
    %v11492 = vunpack.c.l.b16 %v11296
    %v11493 = vunpack.c.l.b16 %v11297
    %v11494 = vunpack.c.l.b16 %v11298
    %v11495 = vunpack.c.l.b16 %v11299
    %v11496 = vunpack.c.l.b16 %v11300
    %v11497 = vunpack.c.l.b16 %v11301
    %v11498 = vunpack.c.l.b16 %v11302
    %v11499 = vunpack.c.l.b16 %v11303
    %v11500 = vunpack.c.l.b16 %v11304
    %v11501 = vunpack.c.l.b16 %v11305
    %v11502 = vunpack.c.l.b16 %v11306
    %v11503 = vunpack.c.l.b16 %v11307
    %v11504 = vunpack.c.l.b16 %v11308
    %v11505 = vunpack.c.l.b16 %v11309
    %v11506 = vunpack.c.l.b16 %v11310
    %v11507 = vunpack.c.l.b16 %v11311
    %v11508 = vunpack.c.l.b16 %v11312
    %v11509 = vunpack.c.l.b16 %v11313
    %v11510 = vunpack.c.l.b16 %v11314
    %v11511 = vunpack.c.l.b16 %v11315
    %v11512 = vunpack.c.l.b16 %v11316
    %v11513 = vunpack.c.l.b16 %v11317
    %v11514 = vunpack.c.l.b16 %v11318
    %v11515 = vunpack.c.l.b16 %v11319
    %v11516 = vunpack.c.l.b16 %v11320
    %v11517 = vunpack.c.l.b16 %v11321
    %v11518 = vunpack.c.l.b16 %v11322
    %v11519 = vunpack.c.l.b16 %v11323
    %v11520 = vunpack.c.l.b16 %v11324
    %v11521 = vunpack.c.l.b16 %v11325
    %v11522 = vunpack.c.l.b16 %v11326
    %v11523 = vunpack.c.l.b16 %v11327
    %v11524 = vunpack.c.l.b16 %v11328
    %v11525 = vunpack.c.l.b16 %v11329
    %v11526 = vunpack.c.l.b16 %v11330
    %v11527 = vunpack.c.l.b16 %v11331
    %v11528 = vunpack.c.l.b16 %v11332
    %v11529 = vunpack.c.l.b16 %v11333
    %v11530 = vunpack.c.l.b16 %v11334
    %v11531 = vunpack.c.l.b16 %v11335
    %v11532 = vunpack.c.l.b16 %v11336
    %v11533 = vunpack.c.l.b16 %v11337
    %v11534 = vunpack.c.l.b16 %v11338
    %v11535 = vunpack.c.l.b16 %v11339
    %v11536 = vunpack.c.l.b16 %v11340
    %v11537 = vunpack.c.l.b16 %v11341
    %v11538 = vunpack.c.l.b16 %v11342
    %v11539 = vunpack.c.l.b16 %v11343
    %v11540 = vunpack.c.l.b16 %v11344
    %v11541 = vunpack.c.l.b16 %v11345
    %v11542 = vunpack.c.l.b16 %v11346
    %v11543 = vunpack.c.l.b16 %v11347
    %v11544 = vunpack.c.l.b16 %v11348
    %v11545 = vunpack.c.l.b16 %v11349
    %v11546 = vunpack.c.l.b16 %v11350
    %v11547 = vunpack.c.l.b16 %v11351
    %v11548 = vunpack.c.l.b16 %v11352
    %v11549 = vpack.c.b16 %v11454, %v11453
    %v11550 = vpack.c.b16 %v11456, %v11455
    %v11551 = vpack.c.b16 %v11458, %v11457
    %v11552 = vpack.c.b16 %v11460, %v11459
    %v11553 = vpack.c.b16 %v11462, %v11461
    %v11554 = vpack.c.b16 %v11464, %v11463
    %v11555 = vpack.c.b16 %v11466, %v11465
    %v11556 = vpack.c.b16 %v11468, %v11467
    %v11557 = vpack.c.b16 %v11470, %v11469
    %v11558 = vpack.c.b16 %v11472, %v11471
    %v11559 = vpack.c.b16 %v11474, %v11473
    %v11560 = vpack.c.b16 %v11476, %v11475
    %v11561 = vpack.c.b16 %v11478, %v11477
    %v11562 = vpack.c.b16 %v11480, %v11479
    %v11563 = vpack.c.b16 %v11482, %v11481
    %v11564 = vpack.c.b16 %v11484, %v11483
    %v11565 = vpack.c.b16 %v11486, %v11485
    %v11566 = vpack.c.b16 %v11488, %v11487
    %v11567 = vpack.c.b16 %v11490, %v11489
    %v11568 = vpack.c.b16 %v11492, %v11491
    %v11569 = vpack.c.b16 %v11494, %v11493
    %v11570 = vpack.c.b16 %v11496, %v11495
    %v11571 = vpack.c.b16 %v11498, %v11497
    %v11572 = vpack.c.b16 %v11500, %v11499
    %v11573 = vpack.c.b16 %v11502, %v11501
    %v11574 = vpack.c.b16 %v11504, %v11503
    %v11575 = vpack.c.b16 %v11506, %v11505
    %v11576 = vpack.c.b16 %v11508, %v11507
    %v11577 = vpack.c.b16 %v11510, %v11509
    %v11578 = vpack.c.b16 %v11512, %v11511
    %v11579 = vpack.c.b16 %v11514, %v11513
    %v11580 = vpack.c.b16 %v11516, %v11515
    %v11581 = vpack.c.b16 %v11518, %v11517
    %v11582 = vpack.c.b16 %v11520, %v11519
    %v11583 = vpack.c.b16 %v11522, %v11521
    %v11584 = vpack.c.b16 %v11524, %v11523
    %v11585 = vpack.c.b16 %v11526, %v11525
    %v11586 = vpack.c.b16 %v11528, %v11527
    %v11587 = vpack.c.b16 %v11530, %v11529
    %v11588 = vpack.c.b16 %v11532, %v11531
    %v11589 = vpack.c.b16 %v11534, %v11533
    %v11590 = vpack.c.b16 %v11536, %v11535
    %v11591 = vpack.c.b16 %v11538, %v11537
    %v11592 = vpack.c.b16 %v11540, %v11539
    %v11593 = vpack.c.b16 %v11542, %v11541
    %v11594 = vpack.c.b16 %v11544, %v11543
    %v11595 = vpack.c.b16 %v11546, %v11545
    %v11596 = vpack.c.b16 %v11548, %v11547
    %11645 = vmatpush.bf16.msra.mxu0 %v11556
    %11646 = vmatpush.bf16.msra.mxu0 %v11555
    %11647 = vmatpush.bf16.msra.mxu0 %v11554
    %11648 = vmatpush.bf16.msra.mxu0 %v11553
    %11649 = vmatpush.bf16.msra.mxu0 %v11552
    %11650 = vmatpush.bf16.msra.mxu0 %v11551
    %11651 = vmatpush.bf16.msra.mxu0 %v11550
    %11652 = vmatpush.bf16.msra.mxu0 %v11549
    %11653 = vmatmul.bf16.gmra.mxu0 %v11251
    %v11654 = vpop.f32.mrf.mxu0
    %v11655 = vadd.f32 %v11355, %v11654
    %v11656 = vpop.f32.mrf.mxu0
    %11657 = vdwg.mxu0
    %11658 = vmatpush.bf16.msra.mxu0 %v11564
    %11659 = vmatpush.bf16.msra.mxu0 %v11563
    %11660 = vmatpush.bf16.msra.mxu0 %v11562
    %11661 = vmatpush.bf16.msra.mxu0 %v11561
    %11662 = vmatpush.bf16.msra.mxu0 %v11560
    %11663 = vmatpush.bf16.msra.mxu0 %v11559
    %11664 = vmatpush.bf16.msra.mxu0 %v11558
    %11665 = vmatpush.bf16.msra.mxu0 %v11557
    %11666 = vmatmul.bf16.gmra.mxu0 %v11252
    %v11667 = vpop.f32.mrf.mxu0
    %v11668 = vadd.f32 %v11655, %v11667
    %v11669 = vpop.f32.mrf.mxu0
    %11670 = vdwg.mxu0
    %11671 = vmatpush.bf16.msra.mxu0 %v11572
    %11672 = vmatpush.bf16.msra.mxu0 %v11571
    %11673 = vmatpush.bf16.msra.mxu0 %v11570
    %11674 = vmatpush.bf16.msra.mxu0 %v11569
    %11675 = vmatpush.bf16.msra.mxu0 %v11568
    %11676 = vmatpush.bf16.msra.mxu0 %v11567
    %11677 = vmatpush.bf16.msra.mxu0 %v11566
    %11678 = vmatpush.bf16.msra.mxu0 %v11565
    %11679 = vmatmul.bf16.gmra.mxu0 %v11253
    %v11680 = vpop.f32.mrf.mxu0
    %v11681 = vadd.f32 %v11668, %v11680
    %v11682 = vpop.f32.mrf.mxu0
    %11683 = vdwg.mxu0
    %11684 = vmatpush.bf16.msra.mxu0 %v11580
    %11685 = vmatpush.bf16.msra.mxu0 %v11579
    %11686 = vmatpush.bf16.msra.mxu0 %v11578
    %11687 = vmatpush.bf16.msra.mxu0 %v11577
    %11688 = vmatpush.bf16.msra.mxu0 %v11576
    %11689 = vmatpush.bf16.msra.mxu0 %v11575
    %11690 = vmatpush.bf16.msra.mxu0 %v11574
    %11691 = vmatpush.bf16.msra.mxu0 %v11573
    %11692 = vmatmul.bf16.gmra.mxu0 %v11254
    %v11693 = vpop.f32.mrf.mxu0
    %v11694 = vadd.f32 %v11681, %v11693
    %v11695 = vpop.f32.mrf.mxu0
    %11696 = vdwg.mxu0
    %11697 = vmatpush.bf16.msra.mxu0 %v11588
    %11698 = vmatpush.bf16.msra.mxu0 %v11587
    %11699 = vmatpush.bf16.msra.mxu0 %v11586
    %11700 = vmatpush.bf16.msra.mxu0 %v11585
    %11701 = vmatpush.bf16.msra.mxu0 %v11584
    %11702 = vmatpush.bf16.msra.mxu0 %v11583
    %11703 = vmatpush.bf16.msra.mxu0 %v11582
    %11704 = vmatpush.bf16.msra.mxu0 %v11581
    %11705 = vmatmul.bf16.gmra.mxu0 %v11255
    %v11706 = vpop.f32.mrf.mxu0
    %v11707 = vadd.f32 %v11694, %v11706
    %v11708 = vpop.f32.mrf.mxu0
    %11709 = vdwg.mxu0
    %11710 = vmatpush.bf16.msra.mxu0 %v11596
    %11711 = vmatpush.bf16.msra.mxu0 %v11595
    %11712 = vmatpush.bf16.msra.mxu0 %v11594
    %11713 = vmatpush.bf16.msra.mxu0 %v11593
    %11714 = vmatpush.bf16.msra.mxu0 %v11592
    %11715 = vmatpush.bf16.msra.mxu0 %v11591
    %11716 = vmatpush.bf16.msra.mxu0 %v11590
    %11717 = vmatpush.bf16.msra.mxu0 %v11589
    %11718 = vmatmul.bf16.gmra.mxu0 %v11256
    %v11719 = vpop.f32.mrf.mxu0
    %v11720 = vadd.f32 %v11707, %v11719
    %v11721 = vpop.f32.mrf.mxu0
    %11722 = vdwg.mxu0
    %11723 = vst [vmem:[%s9] sm:$0xff] %v11720
    // Predicated region
    $region70: #{hs_addn_discriminator.1} parent=1 // pred_check
      _
    $region71: #{hs_addn_discriminator.1} parent=1 // pred_check_branch
      %11725 = sbr.rel (0) target = $region73
    $region72: #{hs_addn_discriminator.1} parent=1 // pred_region
      _
    $region73: #{hs_addn_discriminator.1} parent=1 // pred_fallthru
      _
    // Predicated region
    $region74: #{hs_addn_discriminator.1} parent=1 // pred_check
      _
    $region75: #{hs_addn_discriminator.1} parent=1 // pred_check_branch
      %11727 = sbr.rel (0) target = $region77
    $region76: #{hs_addn_discriminator.1} parent=1 // pred_region
      _
    $region77: #{hs_addn_discriminator.1} parent=1 // pred_fallthru
      _
    %11728 = vsyncpa [#allocation3], 1
    %11729 = vsyncpa [#allocation5], 1
    %11730 = vsyncpa [#allocation8], 1
    %11731 = vsyncpa [#allocation11], 1
    %11732 = vsyncpa [#allocation14], 1

</llo_original>
